<compile_context>
chip_gen: v5e
topology: v5e:2x2
jax: 0.10.0
libtpu: 0.0.40
codegen_flags: <defaults>
</compile_context>

<pallas_src>
import math

import jax
import jax.numpy as jnp
from jax.experimental import pallas as pl
from jax.experimental.pallas import tpu as pltpu

STATE_DIM = 64          # must be divisible by nhead=8
DIM_FF = 128
NHEAD = 8
SEQ = 32                # hard-coded by the module's x.reshape(-1, 32, state_dim)
NUM_LAYERS = 4
EPS = 1e-5              # nn.LayerNorm default

# bf16 operands + f32 accumulation on the MXU (set to jnp.float32 for exact-f32 matmuls)
_MM_DTYPE = jnp.bfloat16


# ---------------------------------------------------------------------------
# Fused 4-layer encoder kernel.  Activation block: (BB*SEQ, D) rows, D on lanes.
# ---------------------------------------------------------------------------
def _world_model_kernel(x_ref, wqkv_ref, bqkv_ref, wo_ref, bo_ref,
                        w1_ref, b1_ref, w2_ref, b2_ref,
                        g1_ref, be1_ref, g2_ref, be2_ref, out_ref):
    rows, D = x_ref.shape                    # rows = BB * SEQ
    BB = rows // SEQ
    HD = D // NHEAD
    num_layers = wqkv_ref.shape[0]

    x = x_ref[...].astype(jnp.float32)       # (rows, D) activation, stays on-chip

    for l in range(num_layers):              # fused layers: static unroll (4)
        xc = x.astype(_MM_DTYPE)

        # ---- fused QKV projection: one (rows, D) @ (D, 3D) matmul ----
        # (1/sqrt(HD) already folded into Wq / bq at prepare_params time)
        qkv = jnp.dot(xc, wqkv_ref[l],
                      preferred_element_type=jnp.float32) + bqkv_ref[l]   # (rows, 3D)
        q3 = qkv[:, :D].reshape(BB, SEQ, D).astype(_MM_DTYPE)
        k3 = qkv[:, D:2 * D].reshape(BB, SEQ, D).astype(_MM_DTYPE)
        v3 = qkv[:, 2 * D:3 * D].reshape(BB, SEQ, D).astype(_MM_DTYPE)

        # ---- per-head attention (single-batch-dim einsums, lowering-safe) ----
        o_heads = []
        for h in range(NHEAD):               # static unroll (8)
            qh = q3[:, :, h * HD:(h + 1) * HD]            # (BB, S, HD)
            kh = k3[:, :, h * HD:(h + 1) * HD]
            vh = v3[:, :, h * HD:(h + 1) * HD]

            s = jnp.einsum('bqd,bkd->bqk', qh, kh,
                           preferred_element_type=jnp.float32)            # (BB, S, S)
            s = s - jnp.max(s, axis=-1, keepdims=True)
            p = jnp.exp(s)
            p = p * pl.reciprocal(jnp.sum(p, axis=-1, keepdims=True), approx=True)

            o_heads.append(jnp.einsum('bqs,bsd->bqd', p.astype(_MM_DTYPE), vh,
                                      preferred_element_type=jnp.float32))  # (BB,S,HD)

        # assemble heads -> (rows, D), then one K=64 output projection
        attn = jnp.concatenate(o_heads, axis=-1).reshape(rows, D)
        attn = jnp.dot(attn.astype(_MM_DTYPE), wo_ref[l],
                       preferred_element_type=jnp.float32) + bo_ref[l]
        # dropout(p=0.1) after attention is identity in eval mode

        # ---- residual + LayerNorm 1 (post-norm) ----
        y = x + attn
        mu = jnp.mean(y, axis=-1, keepdims=True)
        var = jnp.mean(jnp.square(y - mu), axis=-1, keepdims=True)
        y = (y - mu) * jax.lax.rsqrt(var + EPS) * g1_ref[l] + be1_ref[l]

        # ---- feed-forward: linear1 -> ReLU -> linear2 (flat (rows, *) matmuls) ----
        h1 = jnp.dot(y.astype(_MM_DTYPE), w1_ref[l],
                     preferred_element_type=jnp.float32) + b1_ref[l]
        h1 = jnp.maximum(h1, 0.0)
        ff = jnp.dot(h1.astype(_MM_DTYPE), w2_ref[l],
                     preferred_element_type=jnp.float32) + b2_ref[l]

        # ---- residual + LayerNorm 2 ----
        z = y + ff
        mu2 = jnp.mean(z, axis=-1, keepdims=True)
        var2 = jnp.mean(jnp.square(z - mu2), axis=-1, keepdims=True)
        x = (z - mu2) * jax.lax.rsqrt(var2 + EPS) * g2_ref[l] + be2_ref[l]

    out_ref[...] = x.astype(out_ref.dtype)


_PARAM_ORDER = ("wqkv", "bqkv", "wo", "bo", "w1", "b1", "w2", "b2",
                "g1", "be1", "g2", "be2")


def _const_spec(arr):
    nd = arr.ndim
    return pl.BlockSpec(arr.shape, lambda b, _nd=nd: (0,) * _nd)


def _choose_block_batch(num_seqs, max_bb=64, min_grid=2):
    """Sequences-per-block (bb) and grid size.

    Targets large blocks (bb*32 rows, up to 2048) to amortize per-grid-step and
    per-matmul overhead, while keeping >= min_grid grid steps when possible so
    the "parallel" axis can shard across v7x's two TensorCores.  num_seqs is
    padded up to bb*grid by the caller (padding sliced off afterwards).
    """
    if num_seqs <= min_grid:
        bb = 1
    elif num_seqs <= max_bb * min_grid:
        bb = -(-num_seqs // min_grid)        # ceil div
    else:
        bb = max_bb
    grid_n = -(-num_seqs // bb)
    return bb, grid_n


def world_model_forward(x, kparams):
    """Matches WorldModel.forward: reshape to (-1, 32, state_dim), 4 encoder layers."""
    obs = x.reshape(-1, SEQ, STATE_DIM)
    num_seqs = obs.shape[0]
    bb, grid_n = _choose_block_batch(num_seqs)
    padded_seqs = bb * grid_n
    rows_per_block = bb * SEQ

    xf = obs.reshape(num_seqs * SEQ, STATE_DIM)           # flat rows, D on lanes
    if padded_seqs != num_seqs:
        # Padded sequences are independent (per-row LN, per-sequence attention)
        # and are sliced off below, so they cannot contaminate real outputs.
        xf = jnp.pad(xf, ((0, (padded_seqs - num_seqs) * SEQ), (0, 0)))

    in_specs = [pl.BlockSpec((rows_per_block, STATE_DIM), lambda b: (b, 0))]
    in_specs += [_const_spec(kparams[name]) for name in _PARAM_ORDER]

    out = pl.pallas_call(
        _world_model_kernel,
        out_shape=jax.ShapeDtypeStruct((padded_seqs * SEQ, STATE_DIM), x.dtype),
        grid=(grid_n,),
        in_specs=in_specs,
        out_specs=pl.BlockSpec((rows_per_block, STATE_DIM), lambda b: (b, 0)),
        compiler_params=pltpu.CompilerParams(
            dimension_semantics=("parallel",),
            vmem_limit_bytes=48 * 1024 * 1024),
    )(xf, *[kparams[name] for name in _PARAM_ORDER])

    out = out[:num_seqs * SEQ]
    return out.reshape(num_seqs, SEQ, STATE_DIM)


# ---------------------------------------------------------------------------
# Parameter construction: PyTorch-layout params -> kernel layout (QKV packed,
# pre-transposed, scale-folded, layer-stacked; matmul weights cast to bf16 once).
# ---------------------------------------------------------------------------
def init_torch_layer_params(key, d=STATE_DIM, dff=DIM_FF):
    """Synthetic params in nn.TransformerEncoderLayer's native layout."""
    ks = jax.random.split(key, 7)
    la = 1.0 / math.sqrt(d)
    lf = 1.0 / math.sqrt(dff)
    return dict(
        in_proj_weight=jax.random.uniform(ks[0], (3 * d, d), jnp.float32, -la, la),
        in_proj_bias=jax.random.uniform(ks[6], (3 * d,), jnp.float32, -la, la),
        out_proj_weight=jax.random.uniform(ks[1], (d, d), jnp.float32, -la, la),
        out_proj_bias=jnp.zeros((d,), jnp.float32),
        linear1_weight=jax.random.uniform(ks[2], (dff, d), jnp.float32, -la, la),
        linear1_bias=jax.random.uniform(ks[3], (dff,), jnp.float32, -la, la),
        linear2_weight=jax.random.uniform(ks[4], (d, dff), jnp.float32, -lf, lf),
        linear2_bias=jax.random.uniform(ks[5], (d,), jnp.float32, -lf, lf),
        norm1_weight=jnp.ones((d,), jnp.float32),
        norm1_bias=jnp.zeros((d,), jnp.float32),
        norm2_weight=jnp.ones((d,), jnp.float32),
        norm2_bias=jnp.zeros((d,), jnp.float32),
    )


def prepare_params(torch_layers):
    d, dff = STATE_DIM, DIM_FF
    hd = d // NHEAD
    scale = 1.0 / math.sqrt(hd)

    def stack(fn):
        return jnp.stack([fn(p) for p in torch_layers], axis=0)

    def qkv_w(p):
        w = p["in_proj_weight"]                     # (3D, D): rows = [Wq; Wk; Wv]
        wq, wk, wv = w[:d] * scale, w[d:2 * d], w[2 * d:]   # fold 1/sqrt(HD) into Wq
        return jnp.concatenate([wq, wk, wv], axis=0).T      # (D, 3D), y = x @ W

    def qkv_b(p):
        b = p["in_proj_bias"]
        bq, bk, bv = b[:d] * scale, b[d:2 * d], b[2 * d:]
        return jnp.concatenate([bq, bk, bv]).reshape(1, 3 * d)

    return dict(
        wqkv=stack(qkv_w).astype(_MM_DTYPE),                            # (L, D, 3D)
        bqkv=stack(qkv_b),                                              # (L, 1, 3D)
        wo=stack(lambda p: p["out_proj_weight"].T).astype(_MM_DTYPE),   # (L, D, D)
        bo=stack(lambda p: p["out_proj_bias"].reshape(1, d)),
        w1=stack(lambda p: p["linear1_weight"].T).astype(_MM_DTYPE),    # (L, D, DFF)
        b1=stack(lambda p: p["linear1_bias"].reshape(1, dff)),
        w2=stack(lambda p: p["linear2_weight"].T).astype(_MM_DTYPE),    # (L, DFF, D)
        b2=stack(lambda p: p["linear2_bias"].reshape(1, d)),
        g1=stack(lambda p: p["norm1_weight"].reshape(1, d)),
        be1=stack(lambda p: p["norm1_bias"].reshape(1, d)),
        g2=stack(lambda p: p["norm2_weight"].reshape(1, d)),
        be2=stack(lambda p: p["norm2_bias"].reshape(1, d)),
    )


# ---------------------------------------------------------------------------
# Pure-JAX f32 reference (mirrors PyTorch TransformerEncoderLayer, eval mode).
# ---------------------------------------------------------------------------
def _layer_norm(x, g, b):
    mu = jnp.mean(x, axis=-1, keepdims=True)
    var = jnp.mean(jnp.square(x - mu), axis=-1, keepdims=True)
    return (x - mu) * jax.lax.rsqrt(var + EPS) * g + b


def world_model_reference(x, torch_layers):
    d, h = STATE_DIM, NHEAD
    hd = d // h
    y = x.reshape(-1, SEQ, d)
    B = y.shape[0]
    for p in torch_layers:
        w_in, b_in = p["in_proj_weight"], p["in_proj_bias"]
        q = y @ w_in[:d].T + b_in[:d]
        k = y @ w_in[d:2 * d].T + b_in[d:2 * d]
        v = y @ w_in[2 * d:].T + b_in[2 * d:]

        def split(t):
            return t.reshape(B, SEQ, h, hd).transpose(0, 2, 1, 3)

        qh, kh, vh = split(q), split(k), split(v)
        s = jnp.einsum('bhqd,bhkd->bhqk', qh, kh) / math.sqrt(hd)
        pa = jax.nn.softmax(s, axis=-1)
        o = jnp.einsum('bhqk,bhkd->bhqd', pa, vh).transpose(0, 2, 1, 3).reshape(B, SEQ, d)
        o = o @ p["out_proj_weight"].T + p["out_proj_bias"]

        y1 = _layer_norm(y + o, p["norm1_weight"], p["norm1_bias"])
        ff = jnp.maximum(y1 @ p["linear1_weight"].T + p["linear1_bias"], 0.0)
        ff = ff @ p["linear2_weight"].T + p["linear2_bias"]
        y = _layer_norm(y1 + ff, p["norm2_weight"], p["norm2_bias"])
    return y


if __name__ == "__main__":
    key = jax.random.PRNGKey(0)
    kx, kp = jax.random.split(key)

    x = jax.random.normal(kx, (2, SEQ, STATE_DIM), jnp.float32)   # (B=2, 32, 64)
    torch_layers = [init_torch_layer_params(jax.random.fold_in(kp, i))
                    for i in range(NUM_LAYERS)]
    params = prepare_params(torch_layers)

    out = jax.jit(world_model_forward)(x, params)
    jax.block_until_ready(out)

    assert out.shape == (2, SEQ, STATE_DIM)
    assert bool(jnp.all(jnp.isfinite(out)))

    # Loose tolerance: bf16 matmul operands + approx softmax reciprocal vs f32 ref.
    ref = world_model_reference(x, torch_layers)
    max_err = float(jnp.max(jnp.abs(out - ref)))
    assert max_err < 0.15, f"max abs error vs f32 reference too large: {max_err}"

    print("KERNEL_OK")
</pallas_src>

<mosaic_0001>
module attributes {stable_mosaic.version = 11 : i64} {
  func.func @_world_model_kernel(%arg0: i32, %arg1: memref<32x64xf32, #tpu.memory_space<vmem>>, %arg2: memref<4x64x192xbf16, #tpu.memory_space<vmem>>, %arg3: memref<4x1x192xf32, #tpu.memory_space<vmem>>, %arg4: memref<4x64x64xbf16, #tpu.memory_space<vmem>>, %arg5: memref<4x1x64xf32, #tpu.memory_space<vmem>>, %arg6: memref<4x64x128xbf16, #tpu.memory_space<vmem>>, %arg7: memref<4x1x128xf32, #tpu.memory_space<vmem>>, %arg8: memref<4x128x64xbf16, #tpu.memory_space<vmem>>, %arg9: memref<4x1x64xf32, #tpu.memory_space<vmem>>, %arg10: memref<4x1x64xf32, #tpu.memory_space<vmem>>, %arg11: memref<4x1x64xf32, #tpu.memory_space<vmem>>, %arg12: memref<4x1x64xf32, #tpu.memory_space<vmem>>, %arg13: memref<4x1x64xf32, #tpu.memory_space<vmem>>, %arg14: memref<32x64xf32, #tpu.memory_space<vmem>>) attributes {dimension_semantics = [#tpu.dimension_semantics<parallel>], iteration_bounds = array<i64: 2>, scalar_prefetch = 0 : i64, scratch_operands = 0 : i64, tpu.core_type = #tpu.core_type<tc>, window_params = [{transform_indices = @transform_0, window_bounds = array<i64: 32, 64>}, {pipeline_mode = #tpu.pipeline_mode<synchronous>, transform_indices = @transform_1, window_bounds = array<i64: 4, 64, 192>}, {pipeline_mode = #tpu.pipeline_mode<synchronous>, transform_indices = @transform_2, window_bounds = array<i64: 4, 1, 192>}, {pipeline_mode = #tpu.pipeline_mode<synchronous>, transform_indices = @transform_3, window_bounds = array<i64: 4, 64, 64>}, {pipeline_mode = #tpu.pipeline_mode<synchronous>, transform_indices = @transform_4, window_bounds = array<i64: 4, 1, 64>}, {pipeline_mode = #tpu.pipeline_mode<synchronous>, transform_indices = @transform_5, window_bounds = array<i64: 4, 64, 128>}, {pipeline_mode = #tpu.pipeline_mode<synchronous>, transform_indices = @transform_6, window_bounds = array<i64: 4, 1, 128>}, {pipeline_mode = #tpu.pipeline_mode<synchronous>, transform_indices = @transform_7, window_bounds = array<i64: 4, 128, 64>}, {pipeline_mode = #tpu.pipeline_mode<synchronous>, transform_indices = @transform_8, window_bounds = array<i64: 4, 1, 64>}, {pipeline_mode = #tpu.pipeline_mode<synchronous>, transform_indices = @transform_9, window_bounds = array<i64: 4, 1, 64>}, {pipeline_mode = #tpu.pipeline_mode<synchronous>, transform_indices = @transform_10, window_bounds = array<i64: 4, 1, 64>}, {pipeline_mode = #tpu.pipeline_mode<synchronous>, transform_indices = @transform_11, window_bounds = array<i64: 4, 1, 64>}, {pipeline_mode = #tpu.pipeline_mode<synchronous>, transform_indices = @transform_12, window_bounds = array<i64: 4, 1, 64>}, {transform_indices = @transform_13, window_bounds = array<i64: 32, 64>}]} {
    %c0 = arith.constant 0 : index
    %c0_0 = arith.constant 0 : index
    %0 = vector.load %arg1[%c0, %c0_0] : memref<32x64xf32, #tpu.memory_space<vmem>>, vector<32x64xf32>
    %1 = arith.truncf %0 : vector<32x64xf32> to vector<32x64xbf16>
    %c0_1 = arith.constant 0 : index
    %c0_2 = arith.constant 0 : index
    %c0_3 = arith.constant 0 : index
    %2 = vector.load %arg2[%c0_1, %c0_2, %c0_3] : memref<4x64x192xbf16, #tpu.memory_space<vmem>>, vector<1x64x192xbf16>
    %3 = vector.shape_cast %2 : vector<1x64x192xbf16> to vector<64x192xbf16>
    %cst = arith.constant dense<0.000000e+00> : vector<32x192xf32>
    %4 = tpu.matmul %1, %3, %cst {dimension_numbers = #tpu.dot_dimension_numbers<[1], [0], [0], [1], [0, 0, 1, 1], [], []>} : vector<32x64xbf16>, vector<64x192xbf16>, vector<32x192xf32> -> vector<32x192xf32>
    %c0_4 = arith.constant 0 : index
    %c0_5 = arith.constant 0 : index
    %c0_6 = arith.constant 0 : index
    %5 = vector.load %arg3[%c0_4, %c0_5, %c0_6] : memref<4x1x192xf32, #tpu.memory_space<vmem>>, vector<1x1x192xf32>
    %6 = vector.shape_cast %5 : vector<1x1x192xf32> to vector<1x192xf32>
    %7 = vector.broadcast %6 : vector<1x192xf32> to vector<32x192xf32>
    %8 = arith.addf %4, %7 : vector<32x192xf32>
    %9 = vector.extract_strided_slice %8 {offsets = [0, 0], sizes = [32, 64], strides = [1, 1]} : vector<32x192xf32> to vector<32x64xf32>
    %10 = vector.shape_cast %9 : vector<32x64xf32> to vector<1x32x64xf32>
    %11 = arith.truncf %10 : vector<1x32x64xf32> to vector<1x32x64xbf16>
    %12 = vector.extract_strided_slice %8 {offsets = [0, 64], sizes = [32, 64], strides = [1, 1]} : vector<32x192xf32> to vector<32x64xf32>
    %13 = vector.shape_cast %12 : vector<32x64xf32> to vector<1x32x64xf32>
    %14 = arith.truncf %13 : vector<1x32x64xf32> to vector<1x32x64xbf16>
    %15 = vector.extract_strided_slice %8 {offsets = [0, 128], sizes = [32, 64], strides = [1, 1]} : vector<32x192xf32> to vector<32x64xf32>
    %16 = vector.shape_cast %15 : vector<32x64xf32> to vector<1x32x64xf32>
    %17 = arith.truncf %16 : vector<1x32x64xf32> to vector<1x32x64xbf16>
    %18 = vector.extract_strided_slice %11 {offsets = [0, 0, 0], sizes = [1, 32, 8], strides = [1, 1, 1]} : vector<1x32x64xbf16> to vector<1x32x8xbf16>
    %19 = vector.extract_strided_slice %14 {offsets = [0, 0, 0], sizes = [1, 32, 8], strides = [1, 1, 1]} : vector<1x32x64xbf16> to vector<1x32x8xbf16>
    %20 = vector.extract_strided_slice %17 {offsets = [0, 0, 0], sizes = [1, 32, 8], strides = [1, 1, 1]} : vector<1x32x64xbf16> to vector<1x32x8xbf16>
    "tpu.trace_start"() <{level = 10 : i32, message = "bqd,bkd->bqk"}> : () -> ()
    %cst_7 = arith.constant dense<0.000000e+00> : vector<1x32x32xf32>
    %21 = tpu.matmul %18, %19, %cst_7 {dimension_numbers = #tpu.dot_dimension_numbers<[2], [2], [1], [1], [0, 0, 0, 1, 1, 1], [0], [0]>} : vector<1x32x8xbf16>, vector<1x32x8xbf16>, vector<1x32x32xf32> -> vector<1x32x32xf32>
    "tpu.trace_stop"() : () -> ()
    %cst_8 = arith.constant dense<0xFF800000> : vector<1x32xf32>
    %22 = vector.multi_reduction <maximumf>, %21, %cst_8 [2] : vector<1x32x32xf32> to vector<1x32xf32>
    %23 = vector.shape_cast %22 : vector<1x32xf32> to vector<1x32x1xf32>
    %24 = vector.broadcast %23 : vector<1x32x1xf32> to vector<1x32x32xf32>
    %25 = arith.subf %21, %24 : vector<1x32x32xf32>
    %26 = math.exp %25 : vector<1x32x32xf32>
    %cst_9 = arith.constant dense<0.000000e+00> : vector<1x32xf32>
    %27 = vector.multi_reduction <add>, %26, %cst_9 [2] : vector<1x32x32xf32> to vector<1x32xf32>
    %28 = vector.shape_cast %27 : vector<1x32xf32> to vector<1x32x1xf32>
    %29 = tpu.reciprocal %28 {approx = true} : vector<1x32x1xf32> -> vector<1x32x1xf32>
    %30 = vector.broadcast %29 : vector<1x32x1xf32> to vector<1x32x32xf32>
    %31 = arith.mulf %26, %30 : vector<1x32x32xf32>
    %32 = arith.truncf %31 : vector<1x32x32xf32> to vector<1x32x32xbf16>
    "tpu.trace_start"() <{level = 10 : i32, message = "bqs,bsd->bqd"}> : () -> ()
    %cst_10 = arith.constant dense<0.000000e+00> : vector<1x32x8xf32>
    %33 = tpu.matmul %32, %20, %cst_10 {dimension_numbers = #tpu.dot_dimension_numbers<[2], [1], [1], [2], [0, 0, 0, 1, 1, 2], [0], [0]>} : vector<1x32x32xbf16>, vector<1x32x8xbf16>, vector<1x32x8xf32> -> vector<1x32x8xf32>
    "tpu.trace_stop"() : () -> ()
    %34 = vector.extract_strided_slice %11 {offsets = [0, 0, 8], sizes = [1, 32, 8], strides = [1, 1, 1]} : vector<1x32x64xbf16> to vector<1x32x8xbf16>
    %35 = vector.extract_strided_slice %14 {offsets = [0, 0, 8], sizes = [1, 32, 8], strides = [1, 1, 1]} : vector<1x32x64xbf16> to vector<1x32x8xbf16>
    %36 = vector.extract_strided_slice %17 {offsets = [0, 0, 8], sizes = [1, 32, 8], strides = [1, 1, 1]} : vector<1x32x64xbf16> to vector<1x32x8xbf16>
    "tpu.trace_start"() <{level = 10 : i32, message = "bqd,bkd->bqk"}> : () -> ()
    %cst_11 = arith.constant dense<0.000000e+00> : vector<1x32x32xf32>
    %37 = tpu.matmul %34, %35, %cst_11 {dimension_numbers = #tpu.dot_dimension_numbers<[2], [2], [1], [1], [0, 0, 0, 1, 1, 1], [0], [0]>} : vector<1x32x8xbf16>, vector<1x32x8xbf16>, vector<1x32x32xf32> -> vector<1x32x32xf32>
    "tpu.trace_stop"() : () -> ()
    %cst_12 = arith.constant dense<0xFF800000> : vector<1x32xf32>
    %38 = vector.multi_reduction <maximumf>, %37, %cst_12 [2] : vector<1x32x32xf32> to vector<1x32xf32>
    %39 = vector.shape_cast %38 : vector<1x32xf32> to vector<1x32x1xf32>
    %40 = vector.broadcast %39 : vector<1x32x1xf32> to vector<1x32x32xf32>
    %41 = arith.subf %37, %40 : vector<1x32x32xf32>
    %42 = math.exp %41 : vector<1x32x32xf32>
    %cst_13 = arith.constant dense<0.000000e+00> : vector<1x32xf32>
    %43 = vector.multi_reduction <add>, %42, %cst_13 [2] : vector<1x32x32xf32> to vector<1x32xf32>
    %44 = vector.shape_cast %43 : vector<1x32xf32> to vector<1x32x1xf32>
    %45 = tpu.reciprocal %44 {approx = true} : vector<1x32x1xf32> -> vector<1x32x1xf32>
    %46 = vector.broadcast %45 : vector<1x32x1xf32> to vector<1x32x32xf32>
    %47 = arith.mulf %42, %46 : vector<1x32x32xf32>
    %48 = arith.truncf %47 : vector<1x32x32xf32> to vector<1x32x32xbf16>
    "tpu.trace_start"() <{level = 10 : i32, message = "bqs,bsd->bqd"}> : () -> ()
    %cst_14 = arith.constant dense<0.000000e+00> : vector<1x32x8xf32>
    %49 = tpu.matmul %48, %36, %cst_14 {dimension_numbers = #tpu.dot_dimension_numbers<[2], [1], [1], [2], [0, 0, 0, 1, 1, 2], [0], [0]>} : vector<1x32x32xbf16>, vector<1x32x8xbf16>, vector<1x32x8xf32> -> vector<1x32x8xf32>
    "tpu.trace_stop"() : () -> ()
    %50 = vector.extract_strided_slice %11 {offsets = [0, 0, 16], sizes = [1, 32, 8], strides = [1, 1, 1]} : vector<1x32x64xbf16> to vector<1x32x8xbf16>
    %51 = vector.extract_strided_slice %14 {offsets = [0, 0, 16], sizes = [1, 32, 8], strides = [1, 1, 1]} : vector<1x32x64xbf16> to vector<1x32x8xbf16>
    %52 = vector.extract_strided_slice %17 {offsets = [0, 0, 16], sizes = [1, 32, 8], strides = [1, 1, 1]} : vector<1x32x64xbf16> to vector<1x32x8xbf16>
    "tpu.trace_start"() <{level = 10 : i32, message = "bqd,bkd->bqk"}> : () -> ()
    %cst_15 = arith.constant dense<0.000000e+00> : vector<1x32x32xf32>
    %53 = tpu.matmul %50, %51, %cst_15 {dimension_numbers = #tpu.dot_dimension_numbers<[2], [2], [1], [1], [0, 0, 0, 1, 1, 1], [0], [0]>} : vector<1x32x8xbf16>, vector<1x32x8xbf16>, vector<1x32x32xf32> -> vector<1x32x32xf32>
    "tpu.trace_stop"() : () -> ()
    %cst_16 = arith.constant dense<0xFF800000> : vector<1x32xf32>
    %54 = vector.multi_reduction <maximumf>, %53, %cst_16 [2] : vector<1x32x32xf32> to vector<1x32xf32>
    %55 = vector.shape_cast %54 : vector<1x32xf32> to vector<1x32x1xf32>
    %56 = vector.broadcast %55 : vector<1x32x1xf32> to vector<1x32x32xf32>
    %57 = arith.subf %53, %56 : vector<1x32x32xf32>
    %58 = math.exp %57 : vector<1x32x32xf32>
    %cst_17 = arith.constant dense<0.000000e+00> : vector<1x32xf32>
    %59 = vector.multi_reduction <add>, %58, %cst_17 [2] : vector<1x32x32xf32> to vector<1x32xf32>
    %60 = vector.shape_cast %59 : vector<1x32xf32> to vector<1x32x1xf32>
    %61 = tpu.reciprocal %60 {approx = true} : vector<1x32x1xf32> -> vector<1x32x1xf32>
    %62 = vector.broadcast %61 : vector<1x32x1xf32> to vector<1x32x32xf32>
    %63 = arith.mulf %58, %62 : vector<1x32x32xf32>
    %64 = arith.truncf %63 : vector<1x32x32xf32> to vector<1x32x32xbf16>
    "tpu.trace_start"() <{level = 10 : i32, message = "bqs,bsd->bqd"}> : () -> ()
    %cst_18 = arith.constant dense<0.000000e+00> : vector<1x32x8xf32>
    %65 = tpu.matmul %64, %52, %cst_18 {dimension_numbers = #tpu.dot_dimension_numbers<[2], [1], [1], [2], [0, 0, 0, 1, 1, 2], [0], [0]>} : vector<1x32x32xbf16>, vector<1x32x8xbf16>, vector<1x32x8xf32> -> vector<1x32x8xf32>
    "tpu.trace_stop"() : () -> ()
    %66 = vector.extract_strided_slice %11 {offsets = [0, 0, 24], sizes = [1, 32, 8], strides = [1, 1, 1]} : vector<1x32x64xbf16> to vector<1x32x8xbf16>
    %67 = vector.extract_strided_slice %14 {offsets = [0, 0, 24], sizes = [1, 32, 8], strides = [1, 1, 1]} : vector<1x32x64xbf16> to vector<1x32x8xbf16>
    %68 = vector.extract_strided_slice %17 {offsets = [0, 0, 24], sizes = [1, 32, 8], strides = [1, 1, 1]} : vector<1x32x64xbf16> to vector<1x32x8xbf16>
    "tpu.trace_start"() <{level = 10 : i32, message = "bqd,bkd->bqk"}> : () -> ()
    %cst_19 = arith.constant dense<0.000000e+00> : vector<1x32x32xf32>
    %69 = tpu.matmul %66, %67, %cst_19 {dimension_numbers = #tpu.dot_dimension_numbers<[2], [2], [1], [1], [0, 0, 0, 1, 1, 1], [0], [0]>} : vector<1x32x8xbf16>, vector<1x32x8xbf16>, vector<1x32x32xf32> -> vector<1x32x32xf32>
    "tpu.trace_stop"() : () -> ()
    %cst_20 = arith.constant dense<0xFF800000> : vector<1x32xf32>
    %70 = vector.multi_reduction <maximumf>, %69, %cst_20 [2] : vector<1x32x32xf32> to vector<1x32xf32>
    %71 = vector.shape_cast %70 : vector<1x32xf32> to vector<1x32x1xf32>
    %72 = vector.broadcast %71 : vector<1x32x1xf32> to vector<1x32x32xf32>
    %73 = arith.subf %69, %72 : vector<1x32x32xf32>
    %74 = math.exp %73 : vector<1x32x32xf32>
    %cst_21 = arith.constant dense<0.000000e+00> : vector<1x32xf32>
    %75 = vector.multi_reduction <add>, %74, %cst_21 [2] : vector<1x32x32xf32> to vector<1x32xf32>
    %76 = vector.shape_cast %75 : vector<1x32xf32> to vector<1x32x1xf32>
    %77 = tpu.reciprocal %76 {approx = true} : vector<1x32x1xf32> -> vector<1x32x1xf32>
    %78 = vector.broadcast %77 : vector<1x32x1xf32> to vector<1x32x32xf32>
    %79 = arith.mulf %74, %78 : vector<1x32x32xf32>
    %80 = arith.truncf %79 : vector<1x32x32xf32> to vector<1x32x32xbf16>
    "tpu.trace_start"() <{level = 10 : i32, message = "bqs,bsd->bqd"}> : () -> ()
    %cst_22 = arith.constant dense<0.000000e+00> : vector<1x32x8xf32>
    %81 = tpu.matmul %80, %68, %cst_22 {dimension_numbers = #tpu.dot_dimension_numbers<[2], [1], [1], [2], [0, 0, 0, 1, 1, 2], [0], [0]>} : vector<1x32x32xbf16>, vector<1x32x8xbf16>, vector<1x32x8xf32> -> vector<1x32x8xf32>
    "tpu.trace_stop"() : () -> ()
    %82 = vector.extract_strided_slice %11 {offsets = [0, 0, 32], sizes = [1, 32, 8], strides = [1, 1, 1]} : vector<1x32x64xbf16> to vector<1x32x8xbf16>
    %83 = vector.extract_strided_slice %14 {offsets = [0, 0, 32], sizes = [1, 32, 8], strides = [1, 1, 1]} : vector<1x32x64xbf16> to vector<1x32x8xbf16>
    %84 = vector.extract_strided_slice %17 {offsets = [0, 0, 32], sizes = [1, 32, 8], strides = [1, 1, 1]} : vector<1x32x64xbf16> to vector<1x32x8xbf16>
    "tpu.trace_start"() <{level = 10 : i32, message = "bqd,bkd->bqk"}> : () -> ()
    %cst_23 = arith.constant dense<0.000000e+00> : vector<1x32x32xf32>
    %85 = tpu.matmul %82, %83, %cst_23 {dimension_numbers = #tpu.dot_dimension_numbers<[2], [2], [1], [1], [0, 0, 0, 1, 1, 1], [0], [0]>} : vector<1x32x8xbf16>, vector<1x32x8xbf16>, vector<1x32x32xf32> -> vector<1x32x32xf32>
    "tpu.trace_stop"() : () -> ()
    %cst_24 = arith.constant dense<0xFF800000> : vector<1x32xf32>
    %86 = vector.multi_reduction <maximumf>, %85, %cst_24 [2] : vector<1x32x32xf32> to vector<1x32xf32>
    %87 = vector.shape_cast %86 : vector<1x32xf32> to vector<1x32x1xf32>
    %88 = vector.broadcast %87 : vector<1x32x1xf32> to vector<1x32x32xf32>
    %89 = arith.subf %85, %88 : vector<1x32x32xf32>
    %90 = math.exp %89 : vector<1x32x32xf32>
    %cst_25 = arith.constant dense<0.000000e+00> : vector<1x32xf32>
    %91 = vector.multi_reduction <add>, %90, %cst_25 [2] : vector<1x32x32xf32> to vector<1x32xf32>
    %92 = vector.shape_cast %91 : vector<1x32xf32> to vector<1x32x1xf32>
    %93 = tpu.reciprocal %92 {approx = true} : vector<1x32x1xf32> -> vector<1x32x1xf32>
    %94 = vector.broadcast %93 : vector<1x32x1xf32> to vector<1x32x32xf32>
    %95 = arith.mulf %90, %94 : vector<1x32x32xf32>
    %96 = arith.truncf %95 : vector<1x32x32xf32> to vector<1x32x32xbf16>
    "tpu.trace_start"() <{level = 10 : i32, message = "bqs,bsd->bqd"}> : () -> ()
    %cst_26 = arith.constant dense<0.000000e+00> : vector<1x32x8xf32>
    %97 = tpu.matmul %96, %84, %cst_26 {dimension_numbers = #tpu.dot_dimension_numbers<[2], [1], [1], [2], [0, 0, 0, 1, 1, 2], [0], [0]>} : vector<1x32x32xbf16>, vector<1x32x8xbf16>, vector<1x32x8xf32> -> vector<1x32x8xf32>
    "tpu.trace_stop"() : () -> ()
    %98 = vector.extract_strided_slice %11 {offsets = [0, 0, 40], sizes = [1, 32, 8], strides = [1, 1, 1]} : vector<1x32x64xbf16> to vector<1x32x8xbf16>
    %99 = vector.extract_strided_slice %14 {offsets = [0, 0, 40], sizes = [1, 32, 8], strides = [1, 1, 1]} : vector<1x32x64xbf16> to vector<1x32x8xbf16>
    %100 = vector.extract_strided_slice %17 {offsets = [0, 0, 40], sizes = [1, 32, 8], strides = [1, 1, 1]} : vector<1x32x64xbf16> to vector<1x32x8xbf16>
    "tpu.trace_start"() <{level = 10 : i32, message = "bqd,bkd->bqk"}> : () -> ()
    %cst_27 = arith.constant dense<0.000000e+00> : vector<1x32x32xf32>
    %101 = tpu.matmul %98, %99, %cst_27 {dimension_numbers = #tpu.dot_dimension_numbers<[2], [2], [1], [1], [0, 0, 0, 1, 1, 1], [0], [0]>} : vector<1x32x8xbf16>, vector<1x32x8xbf16>, vector<1x32x32xf32> -> vector<1x32x32xf32>
    "tpu.trace_stop"() : () -> ()
    %cst_28 = arith.constant dense<0xFF800000> : vector<1x32xf32>
    %102 = vector.multi_reduction <maximumf>, %101, %cst_28 [2] : vector<1x32x32xf32> to vector<1x32xf32>
    %103 = vector.shape_cast %102 : vector<1x32xf32> to vector<1x32x1xf32>
    %104 = vector.broadcast %103 : vector<1x32x1xf32> to vector<1x32x32xf32>
    %105 = arith.subf %101, %104 : vector<1x32x32xf32>
    %106 = math.exp %105 : vector<1x32x32xf32>
    %cst_29 = arith.constant dense<0.000000e+00> : vector<1x32xf32>
    %107 = vector.multi_reduction <add>, %106, %cst_29 [2] : vector<1x32x32xf32> to vector<1x32xf32>
    %108 = vector.shape_cast %107 : vector<1x32xf32> to vector<1x32x1xf32>
    %109 = tpu.reciprocal %108 {approx = true} : vector<1x32x1xf32> -> vector<1x32x1xf32>
    %110 = vector.broadcast %109 : vector<1x32x1xf32> to vector<1x32x32xf32>
    %111 = arith.mulf %106, %110 : vector<1x32x32xf32>
    %112 = arith.truncf %111 : vector<1x32x32xf32> to vector<1x32x32xbf16>
    "tpu.trace_start"() <{level = 10 : i32, message = "bqs,bsd->bqd"}> : () -> ()
    %cst_30 = arith.constant dense<0.000000e+00> : vector<1x32x8xf32>
    %113 = tpu.matmul %112, %100, %cst_30 {dimension_numbers = #tpu.dot_dimension_numbers<[2], [1], [1], [2], [0, 0, 0, 1, 1, 2], [0], [0]>} : vector<1x32x32xbf16>, vector<1x32x8xbf16>, vector<1x32x8xf32> -> vector<1x32x8xf32>
    "tpu.trace_stop"() : () -> ()
    %114 = vector.extract_strided_slice %11 {offsets = [0, 0, 48], sizes = [1, 32, 8], strides = [1, 1, 1]} : vector<1x32x64xbf16> to vector<1x32x8xbf16>
    %115 = vector.extract_strided_slice %14 {offsets = [0, 0, 48], sizes = [1, 32, 8], strides = [1, 1, 1]} : vector<1x32x64xbf16> to vector<1x32x8xbf16>
    %116 = vector.extract_strided_slice %17 {offsets = [0, 0, 48], sizes = [1, 32, 8], strides = [1, 1, 1]} : vector<1x32x64xbf16> to vector<1x32x8xbf16>
    "tpu.trace_start"() <{level = 10 : i32, message = "bqd,bkd->bqk"}> : () -> ()
    %cst_31 = arith.constant dense<0.000000e+00> : vector<1x32x32xf32>
    %117 = tpu.matmul %114, %115, %cst_31 {dimension_numbers = #tpu.dot_dimension_numbers<[2], [2], [1], [1], [0, 0, 0, 1, 1, 1], [0], [0]>} : vector<1x32x8xbf16>, vector<1x32x8xbf16>, vector<1x32x32xf32> -> vector<1x32x32xf32>
    "tpu.trace_stop"() : () -> ()
    %cst_32 = arith.constant dense<0xFF800000> : vector<1x32xf32>
    %118 = vector.multi_reduction <maximumf>, %117, %cst_32 [2] : vector<1x32x32xf32> to vector<1x32xf32>
    %119 = vector.shape_cast %118 : vector<1x32xf32> to vector<1x32x1xf32>
    %120 = vector.broadcast %119 : vector<1x32x1xf32> to vector<1x32x32xf32>
    %121 = arith.subf %117, %120 : vector<1x32x32xf32>
    %122 = math.exp %121 : vector<1x32x32xf32>
    %cst_33 = arith.constant dense<0.000000e+00> : vector<1x32xf32>
    %123 = vector.multi_reduction <add>, %122, %cst_33 [2] : vector<1x32x32xf32> to vector<1x32xf32>
    %124 = vector.shape_cast %123 : vector<1x32xf32> to vector<1x32x1xf32>
    %125 = tpu.reciprocal %124 {approx = true} : vector<1x32x1xf32> -> vector<1x32x1xf32>
    %126 = vector.broadcast %125 : vector<1x32x1xf32> to vector<1x32x32xf32>
    %127 = arith.mulf %122, %126 : vector<1x32x32xf32>
    %128 = arith.truncf %127 : vector<1x32x32xf32> to vector<1x32x32xbf16>
    "tpu.trace_start"() <{level = 10 : i32, message = "bqs,bsd->bqd"}> : () -> ()
    %cst_34 = arith.constant dense<0.000000e+00> : vector<1x32x8xf32>
    %129 = tpu.matmul %128, %116, %cst_34 {dimension_numbers = #tpu.dot_dimension_numbers<[2], [1], [1], [2], [0, 0, 0, 1, 1, 2], [0], [0]>} : vector<1x32x32xbf16>, vector<1x32x8xbf16>, vector<1x32x8xf32> -> vector<1x32x8xf32>
    "tpu.trace_stop"() : () -> ()
    %130 = vector.extract_strided_slice %11 {offsets = [0, 0, 56], sizes = [1, 32, 8], strides = [1, 1, 1]} : vector<1x32x64xbf16> to vector<1x32x8xbf16>
    %131 = vector.extract_strided_slice %14 {offsets = [0, 0, 56], sizes = [1, 32, 8], strides = [1, 1, 1]} : vector<1x32x64xbf16> to vector<1x32x8xbf16>
    %132 = vector.extract_strided_slice %17 {offsets = [0, 0, 56], sizes = [1, 32, 8], strides = [1, 1, 1]} : vector<1x32x64xbf16> to vector<1x32x8xbf16>
    "tpu.trace_start"() <{level = 10 : i32, message = "bqd,bkd->bqk"}> : () -> ()
    %cst_35 = arith.constant dense<0.000000e+00> : vector<1x32x32xf32>
    %133 = tpu.matmul %130, %131, %cst_35 {dimension_numbers = #tpu.dot_dimension_numbers<[2], [2], [1], [1], [0, 0, 0, 1, 1, 1], [0], [0]>} : vector<1x32x8xbf16>, vector<1x32x8xbf16>, vector<1x32x32xf32> -> vector<1x32x32xf32>
    "tpu.trace_stop"() : () -> ()
    %cst_36 = arith.constant dense<0xFF800000> : vector<1x32xf32>
    %134 = vector.multi_reduction <maximumf>, %133, %cst_36 [2] : vector<1x32x32xf32> to vector<1x32xf32>
    %135 = vector.shape_cast %134 : vector<1x32xf32> to vector<1x32x1xf32>
    %136 = vector.broadcast %135 : vector<1x32x1xf32> to vector<1x32x32xf32>
    %137 = arith.subf %133, %136 : vector<1x32x32xf32>
    %138 = math.exp %137 : vector<1x32x32xf32>
    %cst_37 = arith.constant dense<0.000000e+00> : vector<1x32xf32>
    %139 = vector.multi_reduction <add>, %138, %cst_37 [2] : vector<1x32x32xf32> to vector<1x32xf32>
    %140 = vector.shape_cast %139 : vector<1x32xf32> to vector<1x32x1xf32>
    %141 = tpu.reciprocal %140 {approx = true} : vector<1x32x1xf32> -> vector<1x32x1xf32>
    %142 = vector.broadcast %141 : vector<1x32x1xf32> to vector<1x32x32xf32>
    %143 = arith.mulf %138, %142 : vector<1x32x32xf32>
    %144 = arith.truncf %143 : vector<1x32x32xf32> to vector<1x32x32xbf16>
    "tpu.trace_start"() <{level = 10 : i32, message = "bqs,bsd->bqd"}> : () -> ()
    %cst_38 = arith.constant dense<0.000000e+00> : vector<1x32x8xf32>
    %145 = tpu.matmul %144, %132, %cst_38 {dimension_numbers = #tpu.dot_dimension_numbers<[2], [1], [1], [2], [0, 0, 0, 1, 1, 2], [0], [0]>} : vector<1x32x32xbf16>, vector<1x32x8xbf16>, vector<1x32x8xf32> -> vector<1x32x8xf32>
    "tpu.trace_stop"() : () -> ()
    %146 = tpu.concatenate %33, %49, %65, %81, %97, %113, %129, %145 in 2 : vector<1x32x8xf32>, vector<1x32x8xf32>, vector<1x32x8xf32>, vector<1x32x8xf32>, vector<1x32x8xf32>, vector<1x32x8xf32>, vector<1x32x8xf32>, vector<1x32x8xf32> -> vector<1x32x64xf32>
    %147 = vector.shape_cast %146 : vector<1x32x64xf32> to vector<32x64xf32>
    %148 = arith.truncf %147 : vector<32x64xf32> to vector<32x64xbf16>
    %c0_39 = arith.constant 0 : index
    %c0_40 = arith.constant 0 : index
    %c0_41 = arith.constant 0 : index
    %149 = vector.load %arg4[%c0_39, %c0_40, %c0_41] : memref<4x64x64xbf16, #tpu.memory_space<vmem>>, vector<1x64x64xbf16>
    %150 = vector.shape_cast %149 : vector<1x64x64xbf16> to vector<64x64xbf16>
    %cst_42 = arith.constant dense<0.000000e+00> : vector<32x64xf32>
    %151 = tpu.matmul %148, %150, %cst_42 {dimension_numbers = #tpu.dot_dimension_numbers<[1], [0], [0], [1], [0, 0, 1, 1], [], []>} : vector<32x64xbf16>, vector<64x64xbf16>, vector<32x64xf32> -> vector<32x64xf32>
    %c0_43 = arith.constant 0 : index
    %c0_44 = arith.constant 0 : index
    %c0_45 = arith.constant 0 : index
    %152 = vector.load %arg5[%c0_43, %c0_44, %c0_45] : memref<4x1x64xf32, #tpu.memory_space<vmem>>, vector<1x1x64xf32>
    %153 = vector.shape_cast %152 : vector<1x1x64xf32> to vector<1x64xf32>
    %154 = vector.broadcast %153 : vector<1x64xf32> to vector<32x64xf32>
    %155 = arith.addf %151, %154 : vector<32x64xf32>
    %156 = arith.addf %0, %155 : vector<32x64xf32>
    %cst_46 = arith.constant dense<0.000000e+00> : vector<32xf32>
    %157 = vector.multi_reduction <add>, %156, %cst_46 [1] : vector<32x64xf32> to vector<32xf32>
    %158 = vector.shape_cast %157 : vector<32xf32> to vector<32x1xf32>
    %cst_47 = arith.constant 6.400000e+01 : f32
    %159 = vector.broadcast %cst_47 : f32 to vector<32x1xf32>
    %160 = arith.divf %158, %159 : vector<32x1xf32>
    %161 = vector.broadcast %160 : vector<32x1xf32> to vector<32x64xf32>
    %162 = arith.subf %156, %161 : vector<32x64xf32>
    %163 = arith.mulf %162, %162 : vector<32x64xf32>
    %cst_48 = arith.constant dense<0.000000e+00> : vector<32xf32>
    %164 = vector.multi_reduction <add>, %163, %cst_48 [1] : vector<32x64xf32> to vector<32xf32>
    %165 = vector.shape_cast %164 : vector<32xf32> to vector<32x1xf32>
    %cst_49 = arith.constant 6.400000e+01 : f32
    %166 = vector.broadcast %cst_49 : f32 to vector<32x1xf32>
    %167 = arith.divf %165, %166 : vector<32x1xf32>
    %168 = vector.broadcast %160 : vector<32x1xf32> to vector<32x64xf32>
    %169 = arith.subf %156, %168 : vector<32x64xf32>
    %cst_50 = arith.constant 9.99999974E-6 : f32
    %170 = vector.broadcast %cst_50 : f32 to vector<32x1xf32>
    %171 = arith.addf %167, %170 : vector<32x1xf32>
    %172 = math.rsqrt %171 : vector<32x1xf32>
    %173 = vector.broadcast %172 : vector<32x1xf32> to vector<32x64xf32>
    %174 = arith.mulf %169, %173 : vector<32x64xf32>
    %c0_51 = arith.constant 0 : index
    %c0_52 = arith.constant 0 : index
    %c0_53 = arith.constant 0 : index
    %175 = vector.load %arg10[%c0_51, %c0_52, %c0_53] : memref<4x1x64xf32, #tpu.memory_space<vmem>>, vector<1x1x64xf32>
    %176 = vector.shape_cast %175 : vector<1x1x64xf32> to vector<1x64xf32>
    %177 = vector.broadcast %176 : vector<1x64xf32> to vector<32x64xf32>
    %178 = arith.mulf %174, %177 : vector<32x64xf32>
    %c0_54 = arith.constant 0 : index
    %c0_55 = arith.constant 0 : index
    %c0_56 = arith.constant 0 : index
    %179 = vector.load %arg11[%c0_54, %c0_55, %c0_56] : memref<4x1x64xf32, #tpu.memory_space<vmem>>, vector<1x1x64xf32>
    %180 = vector.shape_cast %179 : vector<1x1x64xf32> to vector<1x64xf32>
    %181 = vector.broadcast %180 : vector<1x64xf32> to vector<32x64xf32>
    %182 = arith.addf %178, %181 : vector<32x64xf32>
    %183 = arith.truncf %182 : vector<32x64xf32> to vector<32x64xbf16>
    %c0_57 = arith.constant 0 : index
    %c0_58 = arith.constant 0 : index
    %c0_59 = arith.constant 0 : index
    %184 = vector.load %arg6[%c0_57, %c0_58, %c0_59] : memref<4x64x128xbf16, #tpu.memory_space<vmem>>, vector<1x64x128xbf16>
    %185 = vector.shape_cast %184 : vector<1x64x128xbf16> to vector<64x128xbf16>
    %cst_60 = arith.constant dense<0.000000e+00> : vector<32x128xf32>
    %186 = tpu.matmul %183, %185, %cst_60 {dimension_numbers = #tpu.dot_dimension_numbers<[1], [0], [0], [1], [0, 0, 1, 1], [], []>} : vector<32x64xbf16>, vector<64x128xbf16>, vector<32x128xf32> -> vector<32x128xf32>
    %c0_61 = arith.constant 0 : index
    %c0_62 = arith.constant 0 : index
    %c0_63 = arith.constant 0 : index
    %187 = vector.load %arg7[%c0_61, %c0_62, %c0_63] : memref<4x1x128xf32, #tpu.memory_space<vmem>>, vector<1x1x128xf32>
    %188 = vector.shape_cast %187 : vector<1x1x128xf32> to vector<1x128xf32>
    %189 = vector.broadcast %188 : vector<1x128xf32> to vector<32x128xf32>
    %190 = arith.addf %186, %189 : vector<32x128xf32>
    %cst_64 = arith.constant 0.000000e+00 : f32
    %191 = vector.broadcast %cst_64 : f32 to vector<32x128xf32>
    %192 = arith.maximumf %190, %191 : vector<32x128xf32>
    %193 = arith.truncf %192 : vector<32x128xf32> to vector<32x128xbf16>
    %c0_65 = arith.constant 0 : index
    %c0_66 = arith.constant 0 : index
    %c0_67 = arith.constant 0 : index
    %194 = vector.load %arg8[%c0_65, %c0_66, %c0_67] : memref<4x128x64xbf16, #tpu.memory_space<vmem>>, vector<1x128x64xbf16>
    %195 = vector.shape_cast %194 : vector<1x128x64xbf16> to vector<128x64xbf16>
    %cst_68 = arith.constant dense<0.000000e+00> : vector<32x64xf32>
    %196 = tpu.matmul %193, %195, %cst_68 {dimension_numbers = #tpu.dot_dimension_numbers<[1], [0], [0], [1], [0, 0, 1, 1], [], []>} : vector<32x128xbf16>, vector<128x64xbf16>, vector<32x64xf32> -> vector<32x64xf32>
    %c0_69 = arith.constant 0 : index
    %c0_70 = arith.constant 0 : index
    %c0_71 = arith.constant 0 : index
    %197 = vector.load %arg9[%c0_69, %c0_70, %c0_71] : memref<4x1x64xf32, #tpu.memory_space<vmem>>, vector<1x1x64xf32>
    %198 = vector.shape_cast %197 : vector<1x1x64xf32> to vector<1x64xf32>
    %199 = vector.broadcast %198 : vector<1x64xf32> to vector<32x64xf32>
    %200 = arith.addf %196, %199 : vector<32x64xf32>
    %201 = arith.addf %182, %200 : vector<32x64xf32>
    %cst_72 = arith.constant dense<0.000000e+00> : vector<32xf32>
    %202 = vector.multi_reduction <add>, %201, %cst_72 [1] : vector<32x64xf32> to vector<32xf32>
    %203 = vector.shape_cast %202 : vector<32xf32> to vector<32x1xf32>
    %cst_73 = arith.constant 6.400000e+01 : f32
    %204 = vector.broadcast %cst_73 : f32 to vector<32x1xf32>
    %205 = arith.divf %203, %204 : vector<32x1xf32>
    %206 = vector.broadcast %205 : vector<32x1xf32> to vector<32x64xf32>
    %207 = arith.subf %201, %206 : vector<32x64xf32>
    %208 = arith.mulf %207, %207 : vector<32x64xf32>
    %cst_74 = arith.constant dense<0.000000e+00> : vector<32xf32>
    %209 = vector.multi_reduction <add>, %208, %cst_74 [1] : vector<32x64xf32> to vector<32xf32>
    %210 = vector.shape_cast %209 : vector<32xf32> to vector<32x1xf32>
    %cst_75 = arith.constant 6.400000e+01 : f32
    %211 = vector.broadcast %cst_75 : f32 to vector<32x1xf32>
    %212 = arith.divf %210, %211 : vector<32x1xf32>
    %213 = vector.broadcast %205 : vector<32x1xf32> to vector<32x64xf32>
    %214 = arith.subf %201, %213 : vector<32x64xf32>
    %cst_76 = arith.constant 9.99999974E-6 : f32
    %215 = vector.broadcast %cst_76 : f32 to vector<32x1xf32>
    %216 = arith.addf %212, %215 : vector<32x1xf32>
    %217 = math.rsqrt %216 : vector<32x1xf32>
    %218 = vector.broadcast %217 : vector<32x1xf32> to vector<32x64xf32>
    %219 = arith.mulf %214, %218 : vector<32x64xf32>
    %c0_77 = arith.constant 0 : index
    %c0_78 = arith.constant 0 : index
    %c0_79 = arith.constant 0 : index
    %220 = vector.load %arg12[%c0_77, %c0_78, %c0_79] : memref<4x1x64xf32, #tpu.memory_space<vmem>>, vector<1x1x64xf32>
    %221 = vector.shape_cast %220 : vector<1x1x64xf32> to vector<1x64xf32>
    %222 = vector.broadcast %221 : vector<1x64xf32> to vector<32x64xf32>
    %223 = arith.mulf %219, %222 : vector<32x64xf32>
    %c0_80 = arith.constant 0 : index
    %c0_81 = arith.constant 0 : index
    %c0_82 = arith.constant 0 : index
    %224 = vector.load %arg13[%c0_80, %c0_81, %c0_82] : memref<4x1x64xf32, #tpu.memory_space<vmem>>, vector<1x1x64xf32>
    %225 = vector.shape_cast %224 : vector<1x1x64xf32> to vector<1x64xf32>
    %226 = vector.broadcast %225 : vector<1x64xf32> to vector<32x64xf32>
    %227 = arith.addf %223, %226 : vector<32x64xf32>
    %228 = arith.truncf %227 : vector<32x64xf32> to vector<32x64xbf16>
    %c1 = arith.constant 1 : index
    %c0_83 = arith.constant 0 : index
    %c0_84 = arith.constant 0 : index
    %229 = vector.load %arg2[%c1, %c0_83, %c0_84] : memref<4x64x192xbf16, #tpu.memory_space<vmem>>, vector<1x64x192xbf16>
    %230 = vector.shape_cast %229 : vector<1x64x192xbf16> to vector<64x192xbf16>
    %cst_85 = arith.constant dense<0.000000e+00> : vector<32x192xf32>
    %231 = tpu.matmul %228, %230, %cst_85 {dimension_numbers = #tpu.dot_dimension_numbers<[1], [0], [0], [1], [0, 0, 1, 1], [], []>} : vector<32x64xbf16>, vector<64x192xbf16>, vector<32x192xf32> -> vector<32x192xf32>
    %c1_86 = arith.constant 1 : index
    %c0_87 = arith.constant 0 : index
    %c0_88 = arith.constant 0 : index
    %232 = vector.load %arg3[%c1_86, %c0_87, %c0_88] : memref<4x1x192xf32, #tpu.memory_space<vmem>>, vector<1x1x192xf32>
    %233 = vector.shape_cast %232 : vector<1x1x192xf32> to vector<1x192xf32>
    %234 = vector.broadcast %233 : vector<1x192xf32> to vector<32x192xf32>
    %235 = arith.addf %231, %234 : vector<32x192xf32>
    %236 = vector.extract_strided_slice %235 {offsets = [0, 0], sizes = [32, 64], strides = [1, 1]} : vector<32x192xf32> to vector<32x64xf32>
    %237 = vector.shape_cast %236 : vector<32x64xf32> to vector<1x32x64xf32>
    %238 = arith.truncf %237 : vector<1x32x64xf32> to vector<1x32x64xbf16>
    %239 = vector.extract_strided_slice %235 {offsets = [0, 64], sizes = [32, 64], strides = [1, 1]} : vector<32x192xf32> to vector<32x64xf32>
    %240 = vector.shape_cast %239 : vector<32x64xf32> to vector<1x32x64xf32>
    %241 = arith.truncf %240 : vector<1x32x64xf32> to vector<1x32x64xbf16>
    %242 = vector.extract_strided_slice %235 {offsets = [0, 128], sizes = [32, 64], strides = [1, 1]} : vector<32x192xf32> to vector<32x64xf32>
    %243 = vector.shape_cast %242 : vector<32x64xf32> to vector<1x32x64xf32>
    %244 = arith.truncf %243 : vector<1x32x64xf32> to vector<1x32x64xbf16>
    %245 = vector.extract_strided_slice %238 {offsets = [0, 0, 0], sizes = [1, 32, 8], strides = [1, 1, 1]} : vector<1x32x64xbf16> to vector<1x32x8xbf16>
    %246 = vector.extract_strided_slice %241 {offsets = [0, 0, 0], sizes = [1, 32, 8], strides = [1, 1, 1]} : vector<1x32x64xbf16> to vector<1x32x8xbf16>
    %247 = vector.extract_strided_slice %244 {offsets = [0, 0, 0], sizes = [1, 32, 8], strides = [1, 1, 1]} : vector<1x32x64xbf16> to vector<1x32x8xbf16>
    "tpu.trace_start"() <{level = 10 : i32, message = "bqd,bkd->bqk"}> : () -> ()
    %cst_89 = arith.constant dense<0.000000e+00> : vector<1x32x32xf32>
    %248 = tpu.matmul %245, %246, %cst_89 {dimension_numbers = #tpu.dot_dimension_numbers<[2], [2], [1], [1], [0, 0, 0, 1, 1, 1], [0], [0]>} : vector<1x32x8xbf16>, vector<1x32x8xbf16>, vector<1x32x32xf32> -> vector<1x32x32xf32>
    "tpu.trace_stop"() : () -> ()
    %cst_90 = arith.constant dense<0xFF800000> : vector<1x32xf32>
    %249 = vector.multi_reduction <maximumf>, %248, %cst_90 [2] : vector<1x32x32xf32> to vector<1x32xf32>
    %250 = vector.shape_cast %249 : vector<1x32xf32> to vector<1x32x1xf32>
    %251 = vector.broadcast %250 : vector<1x32x1xf32> to vector<1x32x32xf32>
    %252 = arith.subf %248, %251 : vector<1x32x32xf32>
    %253 = math.exp %252 : vector<1x32x32xf32>
    %cst_91 = arith.constant dense<0.000000e+00> : vector<1x32xf32>
    %254 = vector.multi_reduction <add>, %253, %cst_91 [2] : vector<1x32x32xf32> to vector<1x32xf32>
    %255 = vector.shape_cast %254 : vector<1x32xf32> to vector<1x32x1xf32>
    %256 = tpu.reciprocal %255 {approx = true} : vector<1x32x1xf32> -> vector<1x32x1xf32>
    %257 = vector.broadcast %256 : vector<1x32x1xf32> to vector<1x32x32xf32>
    %258 = arith.mulf %253, %257 : vector<1x32x32xf32>
    %259 = arith.truncf %258 : vector<1x32x32xf32> to vector<1x32x32xbf16>
    "tpu.trace_start"() <{level = 10 : i32, message = "bqs,bsd->bqd"}> : () -> ()
    %cst_92 = arith.constant dense<0.000000e+00> : vector<1x32x8xf32>
    %260 = tpu.matmul %259, %247, %cst_92 {dimension_numbers = #tpu.dot_dimension_numbers<[2], [1], [1], [2], [0, 0, 0, 1, 1, 2], [0], [0]>} : vector<1x32x32xbf16>, vector<1x32x8xbf16>, vector<1x32x8xf32> -> vector<1x32x8xf32>
    "tpu.trace_stop"() : () -> ()
    %261 = vector.extract_strided_slice %238 {offsets = [0, 0, 8], sizes = [1, 32, 8], strides = [1, 1, 1]} : vector<1x32x64xbf16> to vector<1x32x8xbf16>
    %262 = vector.extract_strided_slice %241 {offsets = [0, 0, 8], sizes = [1, 32, 8], strides = [1, 1, 1]} : vector<1x32x64xbf16> to vector<1x32x8xbf16>
    %263 = vector.extract_strided_slice %244 {offsets = [0, 0, 8], sizes = [1, 32, 8], strides = [1, 1, 1]} : vector<1x32x64xbf16> to vector<1x32x8xbf16>
    "tpu.trace_start"() <{level = 10 : i32, message = "bqd,bkd->bqk"}> : () -> ()
    %cst_93 = arith.constant dense<0.000000e+00> : vector<1x32x32xf32>
    %264 = tpu.matmul %261, %262, %cst_93 {dimension_numbers = #tpu.dot_dimension_numbers<[2], [2], [1], [1], [0, 0, 0, 1, 1, 1], [0], [0]>} : vector<1x32x8xbf16>, vector<1x32x8xbf16>, vector<1x32x32xf32> -> vector<1x32x32xf32>
    "tpu.trace_stop"() : () -> ()
    %cst_94 = arith.constant dense<0xFF800000> : vector<1x32xf32>
    %265 = vector.multi_reduction <maximumf>, %264, %cst_94 [2] : vector<1x32x32xf32> to vector<1x32xf32>
    %266 = vector.shape_cast %265 : vector<1x32xf32> to vector<1x32x1xf32>
    %267 = vector.broadcast %266 : vector<1x32x1xf32> to vector<1x32x32xf32>
    %268 = arith.subf %264, %267 : vector<1x32x32xf32>
    %269 = math.exp %268 : vector<1x32x32xf32>
    %cst_95 = arith.constant dense<0.000000e+00> : vector<1x32xf32>
    %270 = vector.multi_reduction <add>, %269, %cst_95 [2] : vector<1x32x32xf32> to vector<1x32xf32>
    %271 = vector.shape_cast %270 : vector<1x32xf32> to vector<1x32x1xf32>
    %272 = tpu.reciprocal %271 {approx = true} : vector<1x32x1xf32> -> vector<1x32x1xf32>
    %273 = vector.broadcast %272 : vector<1x32x1xf32> to vector<1x32x32xf32>
    %274 = arith.mulf %269, %273 : vector<1x32x32xf32>
    %275 = arith.truncf %274 : vector<1x32x32xf32> to vector<1x32x32xbf16>
    "tpu.trace_start"() <{level = 10 : i32, message = "bqs,bsd->bqd"}> : () -> ()
    %cst_96 = arith.constant dense<0.000000e+00> : vector<1x32x8xf32>
    %276 = tpu.matmul %275, %263, %cst_96 {dimension_numbers = #tpu.dot_dimension_numbers<[2], [1], [1], [2], [0, 0, 0, 1, 1, 2], [0], [0]>} : vector<1x32x32xbf16>, vector<1x32x8xbf16>, vector<1x32x8xf32> -> vector<1x32x8xf32>
    "tpu.trace_stop"() : () -> ()
    %277 = vector.extract_strided_slice %238 {offsets = [0, 0, 16], sizes = [1, 32, 8], strides = [1, 1, 1]} : vector<1x32x64xbf16> to vector<1x32x8xbf16>
    %278 = vector.extract_strided_slice %241 {offsets = [0, 0, 16], sizes = [1, 32, 8], strides = [1, 1, 1]} : vector<1x32x64xbf16> to vector<1x32x8xbf16>
    %279 = vector.extract_strided_slice %244 {offsets = [0, 0, 16], sizes = [1, 32, 8], strides = [1, 1, 1]} : vector<1x32x64xbf16> to vector<1x32x8xbf16>
    "tpu.trace_start"() <{level = 10 : i32, message = "bqd,bkd->bqk"}> : () -> ()
    %cst_97 = arith.constant dense<0.000000e+00> : vector<1x32x32xf32>
    %280 = tpu.matmul %277, %278, %cst_97 {dimension_numbers = #tpu.dot_dimension_numbers<[2], [2], [1], [1], [0, 0, 0, 1, 1, 1], [0], [0]>} : vector<1x32x8xbf16>, vector<1x32x8xbf16>, vector<1x32x32xf32> -> vector<1x32x32xf32>
    "tpu.trace_stop"() : () -> ()
    %cst_98 = arith.constant dense<0xFF800000> : vector<1x32xf32>
    %281 = vector.multi_reduction <maximumf>, %280, %cst_98 [2] : vector<1x32x32xf32> to vector<1x32xf32>
    %282 = vector.shape_cast %281 : vector<1x32xf32> to vector<1x32x1xf32>
    %283 = vector.broadcast %282 : vector<1x32x1xf32> to vector<1x32x32xf32>
    %284 = arith.subf %280, %283 : vector<1x32x32xf32>
    %285 = math.exp %284 : vector<1x32x32xf32>
    %cst_99 = arith.constant dense<0.000000e+00> : vector<1x32xf32>
    %286 = vector.multi_reduction <add>, %285, %cst_99 [2] : vector<1x32x32xf32> to vector<1x32xf32>
    %287 = vector.shape_cast %286 : vector<1x32xf32> to vector<1x32x1xf32>
    %288 = tpu.reciprocal %287 {approx = true} : vector<1x32x1xf32> -> vector<1x32x1xf32>
    %289 = vector.broadcast %288 : vector<1x32x1xf32> to vector<1x32x32xf32>
    %290 = arith.mulf %285, %289 : vector<1x32x32xf32>
    %291 = arith.truncf %290 : vector<1x32x32xf32> to vector<1x32x32xbf16>
    "tpu.trace_start"() <{level = 10 : i32, message = "bqs,bsd->bqd"}> : () -> ()
    %cst_100 = arith.constant dense<0.000000e+00> : vector<1x32x8xf32>
    %292 = tpu.matmul %291, %279, %cst_100 {dimension_numbers = #tpu.dot_dimension_numbers<[2], [1], [1], [2], [0, 0, 0, 1, 1, 2], [0], [0]>} : vector<1x32x32xbf16>, vector<1x32x8xbf16>, vector<1x32x8xf32> -> vector<1x32x8xf32>
    "tpu.trace_stop"() : () -> ()
    %293 = vector.extract_strided_slice %238 {offsets = [0, 0, 24], sizes = [1, 32, 8], strides = [1, 1, 1]} : vector<1x32x64xbf16> to vector<1x32x8xbf16>
    %294 = vector.extract_strided_slice %241 {offsets = [0, 0, 24], sizes = [1, 32, 8], strides = [1, 1, 1]} : vector<1x32x64xbf16> to vector<1x32x8xbf16>
    %295 = vector.extract_strided_slice %244 {offsets = [0, 0, 24], sizes = [1, 32, 8], strides = [1, 1, 1]} : vector<1x32x64xbf16> to vector<1x32x8xbf16>
    "tpu.trace_start"() <{level = 10 : i32, message = "bqd,bkd->bqk"}> : () -> ()
    %cst_101 = arith.constant dense<0.000000e+00> : vector<1x32x32xf32>
    %296 = tpu.matmul %293, %294, %cst_101 {dimension_numbers = #tpu.dot_dimension_numbers<[2], [2], [1], [1], [0, 0, 0, 1, 1, 1], [0], [0]>} : vector<1x32x8xbf16>, vector<1x32x8xbf16>, vector<1x32x32xf32> -> vector<1x32x32xf32>
    "tpu.trace_stop"() : () -> ()
    %cst_102 = arith.constant dense<0xFF800000> : vector<1x32xf32>
    %297 = vector.multi_reduction <maximumf>, %296, %cst_102 [2] : vector<1x32x32xf32> to vector<1x32xf32>
    %298 = vector.shape_cast %297 : vector<1x32xf32> to vector<1x32x1xf32>
    %299 = vector.broadcast %298 : vector<1x32x1xf32> to vector<1x32x32xf32>
    %300 = arith.subf %296, %299 : vector<1x32x32xf32>
    %301 = math.exp %300 : vector<1x32x32xf32>
    %cst_103 = arith.constant dense<0.000000e+00> : vector<1x32xf32>
    %302 = vector.multi_reduction <add>, %301, %cst_103 [2] : vector<1x32x32xf32> to vector<1x32xf32>
    %303 = vector.shape_cast %302 : vector<1x32xf32> to vector<1x32x1xf32>
    %304 = tpu.reciprocal %303 {approx = true} : vector<1x32x1xf32> -> vector<1x32x1xf32>
    %305 = vector.broadcast %304 : vector<1x32x1xf32> to vector<1x32x32xf32>
    %306 = arith.mulf %301, %305 : vector<1x32x32xf32>
    %307 = arith.truncf %306 : vector<1x32x32xf32> to vector<1x32x32xbf16>
    "tpu.trace_start"() <{level = 10 : i32, message = "bqs,bsd->bqd"}> : () -> ()
    %cst_104 = arith.constant dense<0.000000e+00> : vector<1x32x8xf32>
    %308 = tpu.matmul %307, %295, %cst_104 {dimension_numbers = #tpu.dot_dimension_numbers<[2], [1], [1], [2], [0, 0, 0, 1, 1, 2], [0], [0]>} : vector<1x32x32xbf16>, vector<1x32x8xbf16>, vector<1x32x8xf32> -> vector<1x32x8xf32>
    "tpu.trace_stop"() : () -> ()
    %309 = vector.extract_strided_slice %238 {offsets = [0, 0, 32], sizes = [1, 32, 8], strides = [1, 1, 1]} : vector<1x32x64xbf16> to vector<1x32x8xbf16>
    %310 = vector.extract_strided_slice %241 {offsets = [0, 0, 32], sizes = [1, 32, 8], strides = [1, 1, 1]} : vector<1x32x64xbf16> to vector<1x32x8xbf16>
    %311 = vector.extract_strided_slice %244 {offsets = [0, 0, 32], sizes = [1, 32, 8], strides = [1, 1, 1]} : vector<1x32x64xbf16> to vector<1x32x8xbf16>
    "tpu.trace_start"() <{level = 10 : i32, message = "bqd,bkd->bqk"}> : () -> ()
    %cst_105 = arith.constant dense<0.000000e+00> : vector<1x32x32xf32>
    %312 = tpu.matmul %309, %310, %cst_105 {dimension_numbers = #tpu.dot_dimension_numbers<[2], [2], [1], [1], [0, 0, 0, 1, 1, 1], [0], [0]>} : vector<1x32x8xbf16>, vector<1x32x8xbf16>, vector<1x32x32xf32> -> vector<1x32x32xf32>
    "tpu.trace_stop"() : () -> ()
    %cst_106 = arith.constant dense<0xFF800000> : vector<1x32xf32>
    %313 = vector.multi_reduction <maximumf>, %312, %cst_106 [2] : vector<1x32x32xf32> to vector<1x32xf32>
    %314 = vector.shape_cast %313 : vector<1x32xf32> to vector<1x32x1xf32>
    %315 = vector.broadcast %314 : vector<1x32x1xf32> to vector<1x32x32xf32>
    %316 = arith.subf %312, %315 : vector<1x32x32xf32>
    %317 = math.exp %316 : vector<1x32x32xf32>
    %cst_107 = arith.constant dense<0.000000e+00> : vector<1x32xf32>
    %318 = vector.multi_reduction <add>, %317, %cst_107 [2] : vector<1x32x32xf32> to vector<1x32xf32>
    %319 = vector.shape_cast %318 : vector<1x32xf32> to vector<1x32x1xf32>
    %320 = tpu.reciprocal %319 {approx = true} : vector<1x32x1xf32> -> vector<1x32x1xf32>
    %321 = vector.broadcast %320 : vector<1x32x1xf32> to vector<1x32x32xf32>
    %322 = arith.mulf %317, %321 : vector<1x32x32xf32>
    %323 = arith.truncf %322 : vector<1x32x32xf32> to vector<1x32x32xbf16>
    "tpu.trace_start"() <{level = 10 : i32, message = "bqs,bsd->bqd"}> : () -> ()
    %cst_108 = arith.constant dense<0.000000e+00> : vector<1x32x8xf32>
    %324 = tpu.matmul %323, %311, %cst_108 {dimension_numbers = #tpu.dot_dimension_numbers<[2], [1], [1], [2], [0, 0, 0, 1, 1, 2], [0], [0]>} : vector<1x32x32xbf16>, vector<1x32x8xbf16>, vector<1x32x8xf32> -> vector<1x32x8xf32>
    "tpu.trace_stop"() : () -> ()
    %325 = vector.extract_strided_slice %238 {offsets = [0, 0, 40], sizes = [1, 32, 8], strides = [1, 1, 1]} : vector<1x32x64xbf16> to vector<1x32x8xbf16>
    %326 = vector.extract_strided_slice %241 {offsets = [0, 0, 40], sizes = [1, 32, 8], strides = [1, 1, 1]} : vector<1x32x64xbf16> to vector<1x32x8xbf16>
    %327 = vector.extract_strided_slice %244 {offsets = [0, 0, 40], sizes = [1, 32, 8], strides = [1, 1, 1]} : vector<1x32x64xbf16> to vector<1x32x8xbf16>
    "tpu.trace_start"() <{level = 10 : i32, message = "bqd,bkd->bqk"}> : () -> ()
    %cst_109 = arith.constant dense<0.000000e+00> : vector<1x32x32xf32>
    %328 = tpu.matmul %325, %326, %cst_109 {dimension_numbers = #tpu.dot_dimension_numbers<[2], [2], [1], [1], [0, 0, 0, 1, 1, 1], [0], [0]>} : vector<1x32x8xbf16>, vector<1x32x8xbf16>, vector<1x32x32xf32> -> vector<1x32x32xf32>
    "tpu.trace_stop"() : () -> ()
    %cst_110 = arith.constant dense<0xFF800000> : vector<1x32xf32>
    %329 = vector.multi_reduction <maximumf>, %328, %cst_110 [2] : vector<1x32x32xf32> to vector<1x32xf32>
    %330 = vector.shape_cast %329 : vector<1x32xf32> to vector<1x32x1xf32>
    %331 = vector.broadcast %330 : vector<1x32x1xf32> to vector<1x32x32xf32>
    %332 = arith.subf %328, %331 : vector<1x32x32xf32>
    %333 = math.exp %332 : vector<1x32x32xf32>
    %cst_111 = arith.constant dense<0.000000e+00> : vector<1x32xf32>
    %334 = vector.multi_reduction <add>, %333, %cst_111 [2] : vector<1x32x32xf32> to vector<1x32xf32>
    %335 = vector.shape_cast %334 : vector<1x32xf32> to vector<1x32x1xf32>
    %336 = tpu.reciprocal %335 {approx = true} : vector<1x32x1xf32> -> vector<1x32x1xf32>
    %337 = vector.broadcast %336 : vector<1x32x1xf32> to vector<1x32x32xf32>
    %338 = arith.mulf %333, %337 : vector<1x32x32xf32>
    %339 = arith.truncf %338 : vector<1x32x32xf32> to vector<1x32x32xbf16>
    "tpu.trace_start"() <{level = 10 : i32, message = "bqs,bsd->bqd"}> : () -> ()
    %cst_112 = arith.constant dense<0.000000e+00> : vector<1x32x8xf32>
    %340 = tpu.matmul %339, %327, %cst_112 {dimension_numbers = #tpu.dot_dimension_numbers<[2], [1], [1], [2], [0, 0, 0, 1, 1, 2], [0], [0]>} : vector<1x32x32xbf16>, vector<1x32x8xbf16>, vector<1x32x8xf32> -> vector<1x32x8xf32>
    "tpu.trace_stop"() : () -> ()
    %341 = vector.extract_strided_slice %238 {offsets = [0, 0, 48], sizes = [1, 32, 8], strides = [1, 1, 1]} : vector<1x32x64xbf16> to vector<1x32x8xbf16>
    %342 = vector.extract_strided_slice %241 {offsets = [0, 0, 48], sizes = [1, 32, 8], strides = [1, 1, 1]} : vector<1x32x64xbf16> to vector<1x32x8xbf16>
    %343 = vector.extract_strided_slice %244 {offsets = [0, 0, 48], sizes = [1, 32, 8], strides = [1, 1, 1]} : vector<1x32x64xbf16> to vector<1x32x8xbf16>
    "tpu.trace_start"() <{level = 10 : i32, message = "bqd,bkd->bqk"}> : () -> ()
    %cst_113 = arith.constant dense<0.000000e+00> : vector<1x32x32xf32>
    %344 = tpu.matmul %341, %342, %cst_113 {dimension_numbers = #tpu.dot_dimension_numbers<[2], [2], [1], [1], [0, 0, 0, 1, 1, 1], [0], [0]>} : vector<1x32x8xbf16>, vector<1x32x8xbf16>, vector<1x32x32xf32> -> vector<1x32x32xf32>
    "tpu.trace_stop"() : () -> ()
    %cst_114 = arith.constant dense<0xFF800000> : vector<1x32xf32>
    %345 = vector.multi_reduction <maximumf>, %344, %cst_114 [2] : vector<1x32x32xf32> to vector<1x32xf32>
    %346 = vector.shape_cast %345 : vector<1x32xf32> to vector<1x32x1xf32>
    %347 = vector.broadcast %346 : vector<1x32x1xf32> to vector<1x32x32xf32>
    %348 = arith.subf %344, %347 : vector<1x32x32xf32>
    %349 = math.exp %348 : vector<1x32x32xf32>
    %cst_115 = arith.constant dense<0.000000e+00> : vector<1x32xf32>
    %350 = vector.multi_reduction <add>, %349, %cst_115 [2] : vector<1x32x32xf32> to vector<1x32xf32>
    %351 = vector.shape_cast %350 : vector<1x32xf32> to vector<1x32x1xf32>
    %352 = tpu.reciprocal %351 {approx = true} : vector<1x32x1xf32> -> vector<1x32x1xf32>
    %353 = vector.broadcast %352 : vector<1x32x1xf32> to vector<1x32x32xf32>
    %354 = arith.mulf %349, %353 : vector<1x32x32xf32>
    %355 = arith.truncf %354 : vector<1x32x32xf32> to vector<1x32x32xbf16>
    "tpu.trace_start"() <{level = 10 : i32, message = "bqs,bsd->bqd"}> : () -> ()
    %cst_116 = arith.constant dense<0.000000e+00> : vector<1x32x8xf32>
    %356 = tpu.matmul %355, %343, %cst_116 {dimension_numbers = #tpu.dot_dimension_numbers<[2], [1], [1], [2], [0, 0, 0, 1, 1, 2], [0], [0]>} : vector<1x32x32xbf16>, vector<1x32x8xbf16>, vector<1x32x8xf32> -> vector<1x32x8xf32>
    "tpu.trace_stop"() : () -> ()
    %357 = vector.extract_strided_slice %238 {offsets = [0, 0, 56], sizes = [1, 32, 8], strides = [1, 1, 1]} : vector<1x32x64xbf16> to vector<1x32x8xbf16>
    %358 = vector.extract_strided_slice %241 {offsets = [0, 0, 56], sizes = [1, 32, 8], strides = [1, 1, 1]} : vector<1x32x64xbf16> to vector<1x32x8xbf16>
    %359 = vector.extract_strided_slice %244 {offsets = [0, 0, 56], sizes = [1, 32, 8], strides = [1, 1, 1]} : vector<1x32x64xbf16> to vector<1x32x8xbf16>
    "tpu.trace_start"() <{level = 10 : i32, message = "bqd,bkd->bqk"}> : () -> ()
    %cst_117 = arith.constant dense<0.000000e+00> : vector<1x32x32xf32>
    %360 = tpu.matmul %357, %358, %cst_117 {dimension_numbers = #tpu.dot_dimension_numbers<[2], [2], [1], [1], [0, 0, 0, 1, 1, 1], [0], [0]>} : vector<1x32x8xbf16>, vector<1x32x8xbf16>, vector<1x32x32xf32> -> vector<1x32x32xf32>
    "tpu.trace_stop"() : () -> ()
    %cst_118 = arith.constant dense<0xFF800000> : vector<1x32xf32>
    %361 = vector.multi_reduction <maximumf>, %360, %cst_118 [2] : vector<1x32x32xf32> to vector<1x32xf32>
    %362 = vector.shape_cast %361 : vector<1x32xf32> to vector<1x32x1xf32>
    %363 = vector.broadcast %362 : vector<1x32x1xf32> to vector<1x32x32xf32>
    %364 = arith.subf %360, %363 : vector<1x32x32xf32>
    %365 = math.exp %364 : vector<1x32x32xf32>
    %cst_119 = arith.constant dense<0.000000e+00> : vector<1x32xf32>
    %366 = vector.multi_reduction <add>, %365, %cst_119 [2] : vector<1x32x32xf32> to vector<1x32xf32>
    %367 = vector.shape_cast %366 : vector<1x32xf32> to vector<1x32x1xf32>
    %368 = tpu.reciprocal %367 {approx = true} : vector<1x32x1xf32> -> vector<1x32x1xf32>
    %369 = vector.broadcast %368 : vector<1x32x1xf32> to vector<1x32x32xf32>
    %370 = arith.mulf %365, %369 : vector<1x32x32xf32>
    %371 = arith.truncf %370 : vector<1x32x32xf32> to vector<1x32x32xbf16>
    "tpu.trace_start"() <{level = 10 : i32, message = "bqs,bsd->bqd"}> : () -> ()
    %cst_120 = arith.constant dense<0.000000e+00> : vector<1x32x8xf32>
    %372 = tpu.matmul %371, %359, %cst_120 {dimension_numbers = #tpu.dot_dimension_numbers<[2], [1], [1], [2], [0, 0, 0, 1, 1, 2], [0], [0]>} : vector<1x32x32xbf16>, vector<1x32x8xbf16>, vector<1x32x8xf32> -> vector<1x32x8xf32>
    "tpu.trace_stop"() : () -> ()
    %373 = tpu.concatenate %260, %276, %292, %308, %324, %340, %356, %372 in 2 : vector<1x32x8xf32>, vector<1x32x8xf32>, vector<1x32x8xf32>, vector<1x32x8xf32>, vector<1x32x8xf32>, vector<1x32x8xf32>, vector<1x32x8xf32>, vector<1x32x8xf32> -> vector<1x32x64xf32>
    %374 = vector.shape_cast %373 : vector<1x32x64xf32> to vector<32x64xf32>
    %375 = arith.truncf %374 : vector<32x64xf32> to vector<32x64xbf16>
    %c1_121 = arith.constant 1 : index
    %c0_122 = arith.constant 0 : index
    %c0_123 = arith.constant 0 : index
    %376 = vector.load %arg4[%c1_121, %c0_122, %c0_123] : memref<4x64x64xbf16, #tpu.memory_space<vmem>>, vector<1x64x64xbf16>
    %377 = vector.shape_cast %376 : vector<1x64x64xbf16> to vector<64x64xbf16>
    %cst_124 = arith.constant dense<0.000000e+00> : vector<32x64xf32>
    %378 = tpu.matmul %375, %377, %cst_124 {dimension_numbers = #tpu.dot_dimension_numbers<[1], [0], [0], [1], [0, 0, 1, 1], [], []>} : vector<32x64xbf16>, vector<64x64xbf16>, vector<32x64xf32> -> vector<32x64xf32>
    %c1_125 = arith.constant 1 : index
    %c0_126 = arith.constant 0 : index
    %c0_127 = arith.constant 0 : index
    %379 = vector.load %arg5[%c1_125, %c0_126, %c0_127] : memref<4x1x64xf32, #tpu.memory_space<vmem>>, vector<1x1x64xf32>
    %380 = vector.shape_cast %379 : vector<1x1x64xf32> to vector<1x64xf32>
    %381 = vector.broadcast %380 : vector<1x64xf32> to vector<32x64xf32>
    %382 = arith.addf %378, %381 : vector<32x64xf32>
    %383 = arith.addf %227, %382 : vector<32x64xf32>
    %cst_128 = arith.constant dense<0.000000e+00> : vector<32xf32>
    %384 = vector.multi_reduction <add>, %383, %cst_128 [1] : vector<32x64xf32> to vector<32xf32>
    %385 = vector.shape_cast %384 : vector<32xf32> to vector<32x1xf32>
    %cst_129 = arith.constant 6.400000e+01 : f32
    %386 = vector.broadcast %cst_129 : f32 to vector<32x1xf32>
    %387 = arith.divf %385, %386 : vector<32x1xf32>
    %388 = vector.broadcast %387 : vector<32x1xf32> to vector<32x64xf32>
    %389 = arith.subf %383, %388 : vector<32x64xf32>
    %390 = arith.mulf %389, %389 : vector<32x64xf32>
    %cst_130 = arith.constant dense<0.000000e+00> : vector<32xf32>
    %391 = vector.multi_reduction <add>, %390, %cst_130 [1] : vector<32x64xf32> to vector<32xf32>
    %392 = vector.shape_cast %391 : vector<32xf32> to vector<32x1xf32>
    %cst_131 = arith.constant 6.400000e+01 : f32
    %393 = vector.broadcast %cst_131 : f32 to vector<32x1xf32>
    %394 = arith.divf %392, %393 : vector<32x1xf32>
    %395 = vector.broadcast %387 : vector<32x1xf32> to vector<32x64xf32>
    %396 = arith.subf %383, %395 : vector<32x64xf32>
    %cst_132 = arith.constant 9.99999974E-6 : f32
    %397 = vector.broadcast %cst_132 : f32 to vector<32x1xf32>
    %398 = arith.addf %394, %397 : vector<32x1xf32>
    %399 = math.rsqrt %398 : vector<32x1xf32>
    %400 = vector.broadcast %399 : vector<32x1xf32> to vector<32x64xf32>
    %401 = arith.mulf %396, %400 : vector<32x64xf32>
    %c1_133 = arith.constant 1 : index
    %c0_134 = arith.constant 0 : index
    %c0_135 = arith.constant 0 : index
    %402 = vector.load %arg10[%c1_133, %c0_134, %c0_135] : memref<4x1x64xf32, #tpu.memory_space<vmem>>, vector<1x1x64xf32>
    %403 = vector.shape_cast %402 : vector<1x1x64xf32> to vector<1x64xf32>
    %404 = vector.broadcast %403 : vector<1x64xf32> to vector<32x64xf32>
    %405 = arith.mulf %401, %404 : vector<32x64xf32>
    %c1_136 = arith.constant 1 : index
    %c0_137 = arith.constant 0 : index
    %c0_138 = arith.constant 0 : index
    %406 = vector.load %arg11[%c1_136, %c0_137, %c0_138] : memref<4x1x64xf32, #tpu.memory_space<vmem>>, vector<1x1x64xf32>
    %407 = vector.shape_cast %406 : vector<1x1x64xf32> to vector<1x64xf32>
    %408 = vector.broadcast %407 : vector<1x64xf32> to vector<32x64xf32>
    %409 = arith.addf %405, %408 : vector<32x64xf32>
    %410 = arith.truncf %409 : vector<32x64xf32> to vector<32x64xbf16>
    %c1_139 = arith.constant 1 : index
    %c0_140 = arith.constant 0 : index
    %c0_141 = arith.constant 0 : index
    %411 = vector.load %arg6[%c1_139, %c0_140, %c0_141] : memref<4x64x128xbf16, #tpu.memory_space<vmem>>, vector<1x64x128xbf16>
    %412 = vector.shape_cast %411 : vector<1x64x128xbf16> to vector<64x128xbf16>
    %cst_142 = arith.constant dense<0.000000e+00> : vector<32x128xf32>
    %413 = tpu.matmul %410, %412, %cst_142 {dimension_numbers = #tpu.dot_dimension_numbers<[1], [0], [0], [1], [0, 0, 1, 1], [], []>} : vector<32x64xbf16>, vector<64x128xbf16>, vector<32x128xf32> -> vector<32x128xf32>
    %c1_143 = arith.constant 1 : index
    %c0_144 = arith.constant 0 : index
    %c0_145 = arith.constant 0 : index
    %414 = vector.load %arg7[%c1_143, %c0_144, %c0_145] : memref<4x1x128xf32, #tpu.memory_space<vmem>>, vector<1x1x128xf32>
    %415 = vector.shape_cast %414 : vector<1x1x128xf32> to vector<1x128xf32>
    %416 = vector.broadcast %415 : vector<1x128xf32> to vector<32x128xf32>
    %417 = arith.addf %413, %416 : vector<32x128xf32>
    %cst_146 = arith.constant 0.000000e+00 : f32
    %418 = vector.broadcast %cst_146 : f32 to vector<32x128xf32>
    %419 = arith.maximumf %417, %418 : vector<32x128xf32>
    %420 = arith.truncf %419 : vector<32x128xf32> to vector<32x128xbf16>
    %c1_147 = arith.constant 1 : index
    %c0_148 = arith.constant 0 : index
    %c0_149 = arith.constant 0 : index
    %421 = vector.load %arg8[%c1_147, %c0_148, %c0_149] : memref<4x128x64xbf16, #tpu.memory_space<vmem>>, vector<1x128x64xbf16>
    %422 = vector.shape_cast %421 : vector<1x128x64xbf16> to vector<128x64xbf16>
    %cst_150 = arith.constant dense<0.000000e+00> : vector<32x64xf32>
    %423 = tpu.matmul %420, %422, %cst_150 {dimension_numbers = #tpu.dot_dimension_numbers<[1], [0], [0], [1], [0, 0, 1, 1], [], []>} : vector<32x128xbf16>, vector<128x64xbf16>, vector<32x64xf32> -> vector<32x64xf32>
    %c1_151 = arith.constant 1 : index
    %c0_152 = arith.constant 0 : index
    %c0_153 = arith.constant 0 : index
    %424 = vector.load %arg9[%c1_151, %c0_152, %c0_153] : memref<4x1x64xf32, #tpu.memory_space<vmem>>, vector<1x1x64xf32>
    %425 = vector.shape_cast %424 : vector<1x1x64xf32> to vector<1x64xf32>
    %426 = vector.broadcast %425 : vector<1x64xf32> to vector<32x64xf32>
    %427 = arith.addf %423, %426 : vector<32x64xf32>
    %428 = arith.addf %409, %427 : vector<32x64xf32>
    %cst_154 = arith.constant dense<0.000000e+00> : vector<32xf32>
    %429 = vector.multi_reduction <add>, %428, %cst_154 [1] : vector<32x64xf32> to vector<32xf32>
    %430 = vector.shape_cast %429 : vector<32xf32> to vector<32x1xf32>
    %cst_155 = arith.constant 6.400000e+01 : f32
    %431 = vector.broadcast %cst_155 : f32 to vector<32x1xf32>
    %432 = arith.divf %430, %431 : vector<32x1xf32>
    %433 = vector.broadcast %432 : vector<32x1xf32> to vector<32x64xf32>
    %434 = arith.subf %428, %433 : vector<32x64xf32>
    %435 = arith.mulf %434, %434 : vector<32x64xf32>
    %cst_156 = arith.constant dense<0.000000e+00> : vector<32xf32>
    %436 = vector.multi_reduction <add>, %435, %cst_156 [1] : vector<32x64xf32> to vector<32xf32>
    %437 = vector.shape_cast %436 : vector<32xf32> to vector<32x1xf32>
    %cst_157 = arith.constant 6.400000e+01 : f32
    %438 = vector.broadcast %cst_157 : f32 to vector<32x1xf32>
    %439 = arith.divf %437, %438 : vector<32x1xf32>
    %440 = vector.broadcast %432 : vector<32x1xf32> to vector<32x64xf32>
    %441 = arith.subf %428, %440 : vector<32x64xf32>
    %cst_158 = arith.constant 9.99999974E-6 : f32
    %442 = vector.broadcast %cst_158 : f32 to vector<32x1xf32>
    %443 = arith.addf %439, %442 : vector<32x1xf32>
    %444 = math.rsqrt %443 : vector<32x1xf32>
    %445 = vector.broadcast %444 : vector<32x1xf32> to vector<32x64xf32>
    %446 = arith.mulf %441, %445 : vector<32x64xf32>
    %c1_159 = arith.constant 1 : index
    %c0_160 = arith.constant 0 : index
    %c0_161 = arith.constant 0 : index
    %447 = vector.load %arg12[%c1_159, %c0_160, %c0_161] : memref<4x1x64xf32, #tpu.memory_space<vmem>>, vector<1x1x64xf32>
    %448 = vector.shape_cast %447 : vector<1x1x64xf32> to vector<1x64xf32>
    %449 = vector.broadcast %448 : vector<1x64xf32> to vector<32x64xf32>
    %450 = arith.mulf %446, %449 : vector<32x64xf32>
    %c1_162 = arith.constant 1 : index
    %c0_163 = arith.constant 0 : index
    %c0_164 = arith.constant 0 : index
    %451 = vector.load %arg13[%c1_162, %c0_163, %c0_164] : memref<4x1x64xf32, #tpu.memory_space<vmem>>, vector<1x1x64xf32>
    %452 = vector.shape_cast %451 : vector<1x1x64xf32> to vector<1x64xf32>
    %453 = vector.broadcast %452 : vector<1x64xf32> to vector<32x64xf32>
    %454 = arith.addf %450, %453 : vector<32x64xf32>
    %455 = arith.truncf %454 : vector<32x64xf32> to vector<32x64xbf16>
    %c2 = arith.constant 2 : index
    %c0_165 = arith.constant 0 : index
    %c0_166 = arith.constant 0 : index
    %456 = vector.load %arg2[%c2, %c0_165, %c0_166] : memref<4x64x192xbf16, #tpu.memory_space<vmem>>, vector<1x64x192xbf16>
    %457 = vector.shape_cast %456 : vector<1x64x192xbf16> to vector<64x192xbf16>
    %cst_167 = arith.constant dense<0.000000e+00> : vector<32x192xf32>
    %458 = tpu.matmul %455, %457, %cst_167 {dimension_numbers = #tpu.dot_dimension_numbers<[1], [0], [0], [1], [0, 0, 1, 1], [], []>} : vector<32x64xbf16>, vector<64x192xbf16>, vector<32x192xf32> -> vector<32x192xf32>
    %c2_168 = arith.constant 2 : index
    %c0_169 = arith.constant 0 : index
    %c0_170 = arith.constant 0 : index
    %459 = vector.load %arg3[%c2_168, %c0_169, %c0_170] : memref<4x1x192xf32, #tpu.memory_space<vmem>>, vector<1x1x192xf32>
    %460 = vector.shape_cast %459 : vector<1x1x192xf32> to vector<1x192xf32>
    %461 = vector.broadcast %460 : vector<1x192xf32> to vector<32x192xf32>
    %462 = arith.addf %458, %461 : vector<32x192xf32>
    %463 = vector.extract_strided_slice %462 {offsets = [0, 0], sizes = [32, 64], strides = [1, 1]} : vector<32x192xf32> to vector<32x64xf32>
    %464 = vector.shape_cast %463 : vector<32x64xf32> to vector<1x32x64xf32>
    %465 = arith.truncf %464 : vector<1x32x64xf32> to vector<1x32x64xbf16>
    %466 = vector.extract_strided_slice %462 {offsets = [0, 64], sizes = [32, 64], strides = [1, 1]} : vector<32x192xf32> to vector<32x64xf32>
    %467 = vector.shape_cast %466 : vector<32x64xf32> to vector<1x32x64xf32>
    %468 = arith.truncf %467 : vector<1x32x64xf32> to vector<1x32x64xbf16>
    %469 = vector.extract_strided_slice %462 {offsets = [0, 128], sizes = [32, 64], strides = [1, 1]} : vector<32x192xf32> to vector<32x64xf32>
    %470 = vector.shape_cast %469 : vector<32x64xf32> to vector<1x32x64xf32>
    %471 = arith.truncf %470 : vector<1x32x64xf32> to vector<1x32x64xbf16>
    %472 = vector.extract_strided_slice %465 {offsets = [0, 0, 0], sizes = [1, 32, 8], strides = [1, 1, 1]} : vector<1x32x64xbf16> to vector<1x32x8xbf16>
    %473 = vector.extract_strided_slice %468 {offsets = [0, 0, 0], sizes = [1, 32, 8], strides = [1, 1, 1]} : vector<1x32x64xbf16> to vector<1x32x8xbf16>
    %474 = vector.extract_strided_slice %471 {offsets = [0, 0, 0], sizes = [1, 32, 8], strides = [1, 1, 1]} : vector<1x32x64xbf16> to vector<1x32x8xbf16>
    "tpu.trace_start"() <{level = 10 : i32, message = "bqd,bkd->bqk"}> : () -> ()
    %cst_171 = arith.constant dense<0.000000e+00> : vector<1x32x32xf32>
    %475 = tpu.matmul %472, %473, %cst_171 {dimension_numbers = #tpu.dot_dimension_numbers<[2], [2], [1], [1], [0, 0, 0, 1, 1, 1], [0], [0]>} : vector<1x32x8xbf16>, vector<1x32x8xbf16>, vector<1x32x32xf32> -> vector<1x32x32xf32>
    "tpu.trace_stop"() : () -> ()
    %cst_172 = arith.constant dense<0xFF800000> : vector<1x32xf32>
    %476 = vector.multi_reduction <maximumf>, %475, %cst_172 [2] : vector<1x32x32xf32> to vector<1x32xf32>
    %477 = vector.shape_cast %476 : vector<1x32xf32> to vector<1x32x1xf32>
    %478 = vector.broadcast %477 : vector<1x32x1xf32> to vector<1x32x32xf32>
    %479 = arith.subf %475, %478 : vector<1x32x32xf32>
    %480 = math.exp %479 : vector<1x32x32xf32>
    %cst_173 = arith.constant dense<0.000000e+00> : vector<1x32xf32>
    %481 = vector.multi_reduction <add>, %480, %cst_173 [2] : vector<1x32x32xf32> to vector<1x32xf32>
    %482 = vector.shape_cast %481 : vector<1x32xf32> to vector<1x32x1xf32>
    %483 = tpu.reciprocal %482 {approx = true} : vector<1x32x1xf32> -> vector<1x32x1xf32>
    %484 = vector.broadcast %483 : vector<1x32x1xf32> to vector<1x32x32xf32>
    %485 = arith.mulf %480, %484 : vector<1x32x32xf32>
    %486 = arith.truncf %485 : vector<1x32x32xf32> to vector<1x32x32xbf16>
    "tpu.trace_start"() <{level = 10 : i32, message = "bqs,bsd->bqd"}> : () -> ()
    %cst_174 = arith.constant dense<0.000000e+00> : vector<1x32x8xf32>
    %487 = tpu.matmul %486, %474, %cst_174 {dimension_numbers = #tpu.dot_dimension_numbers<[2], [1], [1], [2], [0, 0, 0, 1, 1, 2], [0], [0]>} : vector<1x32x32xbf16>, vector<1x32x8xbf16>, vector<1x32x8xf32> -> vector<1x32x8xf32>
    "tpu.trace_stop"() : () -> ()
    %488 = vector.extract_strided_slice %465 {offsets = [0, 0, 8], sizes = [1, 32, 8], strides = [1, 1, 1]} : vector<1x32x64xbf16> to vector<1x32x8xbf16>
    %489 = vector.extract_strided_slice %468 {offsets = [0, 0, 8], sizes = [1, 32, 8], strides = [1, 1, 1]} : vector<1x32x64xbf16> to vector<1x32x8xbf16>
    %490 = vector.extract_strided_slice %471 {offsets = [0, 0, 8], sizes = [1, 32, 8], strides = [1, 1, 1]} : vector<1x32x64xbf16> to vector<1x32x8xbf16>
    "tpu.trace_start"() <{level = 10 : i32, message = "bqd,bkd->bqk"}> : () -> ()
    %cst_175 = arith.constant dense<0.000000e+00> : vector<1x32x32xf32>
    %491 = tpu.matmul %488, %489, %cst_175 {dimension_numbers = #tpu.dot_dimension_numbers<[2], [2], [1], [1], [0, 0, 0, 1, 1, 1], [0], [0]>} : vector<1x32x8xbf16>, vector<1x32x8xbf16>, vector<1x32x32xf32> -> vector<1x32x32xf32>
    "tpu.trace_stop"() : () -> ()
    %cst_176 = arith.constant dense<0xFF800000> : vector<1x32xf32>
    %492 = vector.multi_reduction <maximumf>, %491, %cst_176 [2] : vector<1x32x32xf32> to vector<1x32xf32>
    %493 = vector.shape_cast %492 : vector<1x32xf32> to vector<1x32x1xf32>
    %494 = vector.broadcast %493 : vector<1x32x1xf32> to vector<1x32x32xf32>
    %495 = arith.subf %491, %494 : vector<1x32x32xf32>
    %496 = math.exp %495 : vector<1x32x32xf32>
    %cst_177 = arith.constant dense<0.000000e+00> : vector<1x32xf32>
    %497 = vector.multi_reduction <add>, %496, %cst_177 [2] : vector<1x32x32xf32> to vector<1x32xf32>
    %498 = vector.shape_cast %497 : vector<1x32xf32> to vector<1x32x1xf32>
    %499 = tpu.reciprocal %498 {approx = true} : vector<1x32x1xf32> -> vector<1x32x1xf32>
    %500 = vector.broadcast %499 : vector<1x32x1xf32> to vector<1x32x32xf32>
    %501 = arith.mulf %496, %500 : vector<1x32x32xf32>
    %502 = arith.truncf %501 : vector<1x32x32xf32> to vector<1x32x32xbf16>
    "tpu.trace_start"() <{level = 10 : i32, message = "bqs,bsd->bqd"}> : () -> ()
    %cst_178 = arith.constant dense<0.000000e+00> : vector<1x32x8xf32>
    %503 = tpu.matmul %502, %490, %cst_178 {dimension_numbers = #tpu.dot_dimension_numbers<[2], [1], [1], [2], [0, 0, 0, 1, 1, 2], [0], [0]>} : vector<1x32x32xbf16>, vector<1x32x8xbf16>, vector<1x32x8xf32> -> vector<1x32x8xf32>
    "tpu.trace_stop"() : () -> ()
    %504 = vector.extract_strided_slice %465 {offsets = [0, 0, 16], sizes = [1, 32, 8], strides = [1, 1, 1]} : vector<1x32x64xbf16> to vector<1x32x8xbf16>
    %505 = vector.extract_strided_slice %468 {offsets = [0, 0, 16], sizes = [1, 32, 8], strides = [1, 1, 1]} : vector<1x32x64xbf16> to vector<1x32x8xbf16>
    %506 = vector.extract_strided_slice %471 {offsets = [0, 0, 16], sizes = [1, 32, 8], strides = [1, 1, 1]} : vector<1x32x64xbf16> to vector<1x32x8xbf16>
    "tpu.trace_start"() <{level = 10 : i32, message = "bqd,bkd->bqk"}> : () -> ()
    %cst_179 = arith.constant dense<0.000000e+00> : vector<1x32x32xf32>
    %507 = tpu.matmul %504, %505, %cst_179 {dimension_numbers = #tpu.dot_dimension_numbers<[2], [2], [1], [1], [0, 0, 0, 1, 1, 1], [0], [0]>} : vector<1x32x8xbf16>, vector<1x32x8xbf16>, vector<1x32x32xf32> -> vector<1x32x32xf32>
    "tpu.trace_stop"() : () -> ()
    %cst_180 = arith.constant dense<0xFF800000> : vector<1x32xf32>
    %508 = vector.multi_reduction <maximumf>, %507, %cst_180 [2] : vector<1x32x32xf32> to vector<1x32xf32>
    %509 = vector.shape_cast %508 : vector<1x32xf32> to vector<1x32x1xf32>
    %510 = vector.broadcast %509 : vector<1x32x1xf32> to vector<1x32x32xf32>
    %511 = arith.subf %507, %510 : vector<1x32x32xf32>
    %512 = math.exp %511 : vector<1x32x32xf32>
    %cst_181 = arith.constant dense<0.000000e+00> : vector<1x32xf32>
    %513 = vector.multi_reduction <add>, %512, %cst_181 [2] : vector<1x32x32xf32> to vector<1x32xf32>
    %514 = vector.shape_cast %513 : vector<1x32xf32> to vector<1x32x1xf32>
    %515 = tpu.reciprocal %514 {approx = true} : vector<1x32x1xf32> -> vector<1x32x1xf32>
    %516 = vector.broadcast %515 : vector<1x32x1xf32> to vector<1x32x32xf32>
    %517 = arith.mulf %512, %516 : vector<1x32x32xf32>
    %518 = arith.truncf %517 : vector<1x32x32xf32> to vector<1x32x32xbf16>
    "tpu.trace_start"() <{level = 10 : i32, message = "bqs,bsd->bqd"}> : () -> ()
    %cst_182 = arith.constant dense<0.000000e+00> : vector<1x32x8xf32>
    %519 = tpu.matmul %518, %506, %cst_182 {dimension_numbers = #tpu.dot_dimension_numbers<[2], [1], [1], [2], [0, 0, 0, 1, 1, 2], [0], [0]>} : vector<1x32x32xbf16>, vector<1x32x8xbf16>, vector<1x32x8xf32> -> vector<1x32x8xf32>
    "tpu.trace_stop"() : () -> ()
    %520 = vector.extract_strided_slice %465 {offsets = [0, 0, 24], sizes = [1, 32, 8], strides = [1, 1, 1]} : vector<1x32x64xbf16> to vector<1x32x8xbf16>
    %521 = vector.extract_strided_slice %468 {offsets = [0, 0, 24], sizes = [1, 32, 8], strides = [1, 1, 1]} : vector<1x32x64xbf16> to vector<1x32x8xbf16>
    %522 = vector.extract_strided_slice %471 {offsets = [0, 0, 24], sizes = [1, 32, 8], strides = [1, 1, 1]} : vector<1x32x64xbf16> to vector<1x32x8xbf16>
    "tpu.trace_start"() <{level = 10 : i32, message = "bqd,bkd->bqk"}> : () -> ()
    %cst_183 = arith.constant dense<0.000000e+00> : vector<1x32x32xf32>
    %523 = tpu.matmul %520, %521, %cst_183 {dimension_numbers = #tpu.dot_dimension_numbers<[2], [2], [1], [1], [0, 0, 0, 1, 1, 1], [0], [0]>} : vector<1x32x8xbf16>, vector<1x32x8xbf16>, vector<1x32x32xf32> -> vector<1x32x32xf32>
    "tpu.trace_stop"() : () -> ()
    %cst_184 = arith.constant dense<0xFF800000> : vector<1x32xf32>
    %524 = vector.multi_reduction <maximumf>, %523, %cst_184 [2] : vector<1x32x32xf32> to vector<1x32xf32>
    %525 = vector.shape_cast %524 : vector<1x32xf32> to vector<1x32x1xf32>
    %526 = vector.broadcast %525 : vector<1x32x1xf32> to vector<1x32x32xf32>
    %527 = arith.subf %523, %526 : vector<1x32x32xf32>
    %528 = math.exp %527 : vector<1x32x32xf32>
    %cst_185 = arith.constant dense<0.000000e+00> : vector<1x32xf32>
    %529 = vector.multi_reduction <add>, %528, %cst_185 [2] : vector<1x32x32xf32> to vector<1x32xf32>
    %530 = vector.shape_cast %529 : vector<1x32xf32> to vector<1x32x1xf32>
    %531 = tpu.reciprocal %530 {approx = true} : vector<1x32x1xf32> -> vector<1x32x1xf32>
    %532 = vector.broadcast %531 : vector<1x32x1xf32> to vector<1x32x32xf32>
    %533 = arith.mulf %528, %532 : vector<1x32x32xf32>
    %534 = arith.truncf %533 : vector<1x32x32xf32> to vector<1x32x32xbf16>
    "tpu.trace_start"() <{level = 10 : i32, message = "bqs,bsd->bqd"}> : () -> ()
    %cst_186 = arith.constant dense<0.000000e+00> : vector<1x32x8xf32>
    %535 = tpu.matmul %534, %522, %cst_186 {dimension_numbers = #tpu.dot_dimension_numbers<[2], [1], [1], [2], [0, 0, 0, 1, 1, 2], [0], [0]>} : vector<1x32x32xbf16>, vector<1x32x8xbf16>, vector<1x32x8xf32> -> vector<1x32x8xf32>
    "tpu.trace_stop"() : () -> ()
    %536 = vector.extract_strided_slice %465 {offsets = [0, 0, 32], sizes = [1, 32, 8], strides = [1, 1, 1]} : vector<1x32x64xbf16> to vector<1x32x8xbf16>
    %537 = vector.extract_strided_slice %468 {offsets = [0, 0, 32], sizes = [1, 32, 8], strides = [1, 1, 1]} : vector<1x32x64xbf16> to vector<1x32x8xbf16>
    %538 = vector.extract_strided_slice %471 {offsets = [0, 0, 32], sizes = [1, 32, 8], strides = [1, 1, 1]} : vector<1x32x64xbf16> to vector<1x32x8xbf16>
    "tpu.trace_start"() <{level = 10 : i32, message = "bqd,bkd->bqk"}> : () -> ()
    %cst_187 = arith.constant dense<0.000000e+00> : vector<1x32x32xf32>
    %539 = tpu.matmul %536, %537, %cst_187 {dimension_numbers = #tpu.dot_dimension_numbers<[2], [2], [1], [1], [0, 0, 0, 1, 1, 1], [0], [0]>} : vector<1x32x8xbf16>, vector<1x32x8xbf16>, vector<1x32x32xf32> -> vector<1x32x32xf32>
    "tpu.trace_stop"() : () -> ()
    %cst_188 = arith.constant dense<0xFF800000> : vector<1x32xf32>
    %540 = vector.multi_reduction <maximumf>, %539, %cst_188 [2] : vector<1x32x32xf32> to vector<1x32xf32>
    %541 = vector.shape_cast %540 : vector<1x32xf32> to vector<1x32x1xf32>
    %542 = vector.broadcast %541 : vector<1x32x1xf32> to vector<1x32x32xf32>
    %543 = arith.subf %539, %542 : vector<1x32x32xf32>
    %544 = math.exp %543 : vector<1x32x32xf32>
    %cst_189 = arith.constant dense<0.000000e+00> : vector<1x32xf32>
    %545 = vector.multi_reduction <add>, %544, %cst_189 [2] : vector<1x32x32xf32> to vector<1x32xf32>
    %546 = vector.shape_cast %545 : vector<1x32xf32> to vector<1x32x1xf32>
    %547 = tpu.reciprocal %546 {approx = true} : vector<1x32x1xf32> -> vector<1x32x1xf32>
    %548 = vector.broadcast %547 : vector<1x32x1xf32> to vector<1x32x32xf32>
    %549 = arith.mulf %544, %548 : vector<1x32x32xf32>
    %550 = arith.truncf %549 : vector<1x32x32xf32> to vector<1x32x32xbf16>
    "tpu.trace_start"() <{level = 10 : i32, message = "bqs,bsd->bqd"}> : () -> ()
    %cst_190 = arith.constant dense<0.000000e+00> : vector<1x32x8xf32>
    %551 = tpu.matmul %550, %538, %cst_190 {dimension_numbers = #tpu.dot_dimension_numbers<[2], [1], [1], [2], [0, 0, 0, 1, 1, 2], [0], [0]>} : vector<1x32x32xbf16>, vector<1x32x8xbf16>, vector<1x32x8xf32> -> vector<1x32x8xf32>
    "tpu.trace_stop"() : () -> ()
    %552 = vector.extract_strided_slice %465 {offsets = [0, 0, 40], sizes = [1, 32, 8], strides = [1, 1, 1]} : vector<1x32x64xbf16> to vector<1x32x8xbf16>
    %553 = vector.extract_strided_slice %468 {offsets = [0, 0, 40], sizes = [1, 32, 8], strides = [1, 1, 1]} : vector<1x32x64xbf16> to vector<1x32x8xbf16>
    %554 = vector.extract_strided_slice %471 {offsets = [0, 0, 40], sizes = [1, 32, 8], strides = [1, 1, 1]} : vector<1x32x64xbf16> to vector<1x32x8xbf16>
    "tpu.trace_start"() <{level = 10 : i32, message = "bqd,bkd->bqk"}> : () -> ()
    %cst_191 = arith.constant dense<0.000000e+00> : vector<1x32x32xf32>
    %555 = tpu.matmul %552, %553, %cst_191 {dimension_numbers = #tpu.dot_dimension_numbers<[2], [2], [1], [1], [0, 0, 0, 1, 1, 1], [0], [0]>} : vector<1x32x8xbf16>, vector<1x32x8xbf16>, vector<1x32x32xf32> -> vector<1x32x32xf32>
    "tpu.trace_stop"() : () -> ()
    %cst_192 = arith.constant dense<0xFF800000> : vector<1x32xf32>
    %556 = vector.multi_reduction <maximumf>, %555, %cst_192 [2] : vector<1x32x32xf32> to vector<1x32xf32>
    %557 = vector.shape_cast %556 : vector<1x32xf32> to vector<1x32x1xf32>
    %558 = vector.broadcast %557 : vector<1x32x1xf32> to vector<1x32x32xf32>
    %559 = arith.subf %555, %558 : vector<1x32x32xf32>
    %560 = math.exp %559 : vector<1x32x32xf32>
    %cst_193 = arith.constant dense<0.000000e+00> : vector<1x32xf32>
    %561 = vector.multi_reduction <add>, %560, %cst_193 [2] : vector<1x32x32xf32> to vector<1x32xf32>
    %562 = vector.shape_cast %561 : vector<1x32xf32> to vector<1x32x1xf32>
    %563 = tpu.reciprocal %562 {approx = true} : vector<1x32x1xf32> -> vector<1x32x1xf32>
    %564 = vector.broadcast %563 : vector<1x32x1xf32> to vector<1x32x32xf32>
    %565 = arith.mulf %560, %564 : vector<1x32x32xf32>
    %566 = arith.truncf %565 : vector<1x32x32xf32> to vector<1x32x32xbf16>
    "tpu.trace_start"() <{level = 10 : i32, message = "bqs,bsd->bqd"}> : () -> ()
    %cst_194 = arith.constant dense<0.000000e+00> : vector<1x32x8xf32>
    %567 = tpu.matmul %566, %554, %cst_194 {dimension_numbers = #tpu.dot_dimension_numbers<[2], [1], [1], [2], [0, 0, 0, 1, 1, 2], [0], [0]>} : vector<1x32x32xbf16>, vector<1x32x8xbf16>, vector<1x32x8xf32> -> vector<1x32x8xf32>
    "tpu.trace_stop"() : () -> ()
    %568 = vector.extract_strided_slice %465 {offsets = [0, 0, 48], sizes = [1, 32, 8], strides = [1, 1, 1]} : vector<1x32x64xbf16> to vector<1x32x8xbf16>
    %569 = vector.extract_strided_slice %468 {offsets = [0, 0, 48], sizes = [1, 32, 8], strides = [1, 1, 1]} : vector<1x32x64xbf16> to vector<1x32x8xbf16>
    %570 = vector.extract_strided_slice %471 {offsets = [0, 0, 48], sizes = [1, 32, 8], strides = [1, 1, 1]} : vector<1x32x64xbf16> to vector<1x32x8xbf16>
    "tpu.trace_start"() <{level = 10 : i32, message = "bqd,bkd->bqk"}> : () -> ()
    %cst_195 = arith.constant dense<0.000000e+00> : vector<1x32x32xf32>
    %571 = tpu.matmul %568, %569, %cst_195 {dimension_numbers = #tpu.dot_dimension_numbers<[2], [2], [1], [1], [0, 0, 0, 1, 1, 1], [0], [0]>} : vector<1x32x8xbf16>, vector<1x32x8xbf16>, vector<1x32x32xf32> -> vector<1x32x32xf32>
    "tpu.trace_stop"() : () -> ()
    %cst_196 = arith.constant dense<0xFF800000> : vector<1x32xf32>
    %572 = vector.multi_reduction <maximumf>, %571, %cst_196 [2] : vector<1x32x32xf32> to vector<1x32xf32>
    %573 = vector.shape_cast %572 : vector<1x32xf32> to vector<1x32x1xf32>
    %574 = vector.broadcast %573 : vector<1x32x1xf32> to vector<1x32x32xf32>
    %575 = arith.subf %571, %574 : vector<1x32x32xf32>
    %576 = math.exp %575 : vector<1x32x32xf32>
    %cst_197 = arith.constant dense<0.000000e+00> : vector<1x32xf32>
    %577 = vector.multi_reduction <add>, %576, %cst_197 [2] : vector<1x32x32xf32> to vector<1x32xf32>
    %578 = vector.shape_cast %577 : vector<1x32xf32> to vector<1x32x1xf32>
    %579 = tpu.reciprocal %578 {approx = true} : vector<1x32x1xf32> -> vector<1x32x1xf32>
    %580 = vector.broadcast %579 : vector<1x32x1xf32> to vector<1x32x32xf32>
    %581 = arith.mulf %576, %580 : vector<1x32x32xf32>
    %582 = arith.truncf %581 : vector<1x32x32xf32> to vector<1x32x32xbf16>
    "tpu.trace_start"() <{level = 10 : i32, message = "bqs,bsd->bqd"}> : () -> ()
    %cst_198 = arith.constant dense<0.000000e+00> : vector<1x32x8xf32>
    %583 = tpu.matmul %582, %570, %cst_198 {dimension_numbers = #tpu.dot_dimension_numbers<[2], [1], [1], [2], [0, 0, 0, 1, 1, 2], [0], [0]>} : vector<1x32x32xbf16>, vector<1x32x8xbf16>, vector<1x32x8xf32> -> vector<1x32x8xf32>
    "tpu.trace_stop"() : () -> ()
    %584 = vector.extract_strided_slice %465 {offsets = [0, 0, 56], sizes = [1, 32, 8], strides = [1, 1, 1]} : vector<1x32x64xbf16> to vector<1x32x8xbf16>
    %585 = vector.extract_strided_slice %468 {offsets = [0, 0, 56], sizes = [1, 32, 8], strides = [1, 1, 1]} : vector<1x32x64xbf16> to vector<1x32x8xbf16>
    %586 = vector.extract_strided_slice %471 {offsets = [0, 0, 56], sizes = [1, 32, 8], strides = [1, 1, 1]} : vector<1x32x64xbf16> to vector<1x32x8xbf16>
    "tpu.trace_start"() <{level = 10 : i32, message = "bqd,bkd->bqk"}> : () -> ()
    %cst_199 = arith.constant dense<0.000000e+00> : vector<1x32x32xf32>
    %587 = tpu.matmul %584, %585, %cst_199 {dimension_numbers = #tpu.dot_dimension_numbers<[2], [2], [1], [1], [0, 0, 0, 1, 1, 1], [0], [0]>} : vector<1x32x8xbf16>, vector<1x32x8xbf16>, vector<1x32x32xf32> -> vector<1x32x32xf32>
    "tpu.trace_stop"() : () -> ()
    %cst_200 = arith.constant dense<0xFF800000> : vector<1x32xf32>
    %588 = vector.multi_reduction <maximumf>, %587, %cst_200 [2] : vector<1x32x32xf32> to vector<1x32xf32>
    %589 = vector.shape_cast %588 : vector<1x32xf32> to vector<1x32x1xf32>
    %590 = vector.broadcast %589 : vector<1x32x1xf32> to vector<1x32x32xf32>
    %591 = arith.subf %587, %590 : vector<1x32x32xf32>
    %592 = math.exp %591 : vector<1x32x32xf32>
    %cst_201 = arith.constant dense<0.000000e+00> : vector<1x32xf32>
    %593 = vector.multi_reduction <add>, %592, %cst_201 [2] : vector<1x32x32xf32> to vector<1x32xf32>
    %594 = vector.shape_cast %593 : vector<1x32xf32> to vector<1x32x1xf32>
    %595 = tpu.reciprocal %594 {approx = true} : vector<1x32x1xf32> -> vector<1x32x1xf32>
    %596 = vector.broadcast %595 : vector<1x32x1xf32> to vector<1x32x32xf32>
    %597 = arith.mulf %592, %596 : vector<1x32x32xf32>
    %598 = arith.truncf %597 : vector<1x32x32xf32> to vector<1x32x32xbf16>
    "tpu.trace_start"() <{level = 10 : i32, message = "bqs,bsd->bqd"}> : () -> ()
    %cst_202 = arith.constant dense<0.000000e+00> : vector<1x32x8xf32>
    %599 = tpu.matmul %598, %586, %cst_202 {dimension_numbers = #tpu.dot_dimension_numbers<[2], [1], [1], [2], [0, 0, 0, 1, 1, 2], [0], [0]>} : vector<1x32x32xbf16>, vector<1x32x8xbf16>, vector<1x32x8xf32> -> vector<1x32x8xf32>
    "tpu.trace_stop"() : () -> ()
    %600 = tpu.concatenate %487, %503, %519, %535, %551, %567, %583, %599 in 2 : vector<1x32x8xf32>, vector<1x32x8xf32>, vector<1x32x8xf32>, vector<1x32x8xf32>, vector<1x32x8xf32>, vector<1x32x8xf32>, vector<1x32x8xf32>, vector<1x32x8xf32> -> vector<1x32x64xf32>
    %601 = vector.shape_cast %600 : vector<1x32x64xf32> to vector<32x64xf32>
    %602 = arith.truncf %601 : vector<32x64xf32> to vector<32x64xbf16>
    %c2_203 = arith.constant 2 : index
    %c0_204 = arith.constant 0 : index
    %c0_205 = arith.constant 0 : index
    %603 = vector.load %arg4[%c2_203, %c0_204, %c0_205] : memref<4x64x64xbf16, #tpu.memory_space<vmem>>, vector<1x64x64xbf16>
    %604 = vector.shape_cast %603 : vector<1x64x64xbf16> to vector<64x64xbf16>
    %cst_206 = arith.constant dense<0.000000e+00> : vector<32x64xf32>
    %605 = tpu.matmul %602, %604, %cst_206 {dimension_numbers = #tpu.dot_dimension_numbers<[1], [0], [0], [1], [0, 0, 1, 1], [], []>} : vector<32x64xbf16>, vector<64x64xbf16>, vector<32x64xf32> -> vector<32x64xf32>
    %c2_207 = arith.constant 2 : index
    %c0_208 = arith.constant 0 : index
    %c0_209 = arith.constant 0 : index
    %606 = vector.load %arg5[%c2_207, %c0_208, %c0_209] : memref<4x1x64xf32, #tpu.memory_space<vmem>>, vector<1x1x64xf32>
    %607 = vector.shape_cast %606 : vector<1x1x64xf32> to vector<1x64xf32>
    %608 = vector.broadcast %607 : vector<1x64xf32> to vector<32x64xf32>
    %609 = arith.addf %605, %608 : vector<32x64xf32>
    %610 = arith.addf %454, %609 : vector<32x64xf32>
    %cst_210 = arith.constant dense<0.000000e+00> : vector<32xf32>
    %611 = vector.multi_reduction <add>, %610, %cst_210 [1] : vector<32x64xf32> to vector<32xf32>
    %612 = vector.shape_cast %611 : vector<32xf32> to vector<32x1xf32>
    %cst_211 = arith.constant 6.400000e+01 : f32
    %613 = vector.broadcast %cst_211 : f32 to vector<32x1xf32>
    %614 = arith.divf %612, %613 : vector<32x1xf32>
    %615 = vector.broadcast %614 : vector<32x1xf32> to vector<32x64xf32>
    %616 = arith.subf %610, %615 : vector<32x64xf32>
    %617 = arith.mulf %616, %616 : vector<32x64xf32>
    %cst_212 = arith.constant dense<0.000000e+00> : vector<32xf32>
    %618 = vector.multi_reduction <add>, %617, %cst_212 [1] : vector<32x64xf32> to vector<32xf32>
    %619 = vector.shape_cast %618 : vector<32xf32> to vector<32x1xf32>
    %cst_213 = arith.constant 6.400000e+01 : f32
    %620 = vector.broadcast %cst_213 : f32 to vector<32x1xf32>
    %621 = arith.divf %619, %620 : vector<32x1xf32>
    %622 = vector.broadcast %614 : vector<32x1xf32> to vector<32x64xf32>
    %623 = arith.subf %610, %622 : vector<32x64xf32>
    %cst_214 = arith.constant 9.99999974E-6 : f32
    %624 = vector.broadcast %cst_214 : f32 to vector<32x1xf32>
    %625 = arith.addf %621, %624 : vector<32x1xf32>
    %626 = math.rsqrt %625 : vector<32x1xf32>
    %627 = vector.broadcast %626 : vector<32x1xf32> to vector<32x64xf32>
    %628 = arith.mulf %623, %627 : vector<32x64xf32>
    %c2_215 = arith.constant 2 : index
    %c0_216 = arith.constant 0 : index
    %c0_217 = arith.constant 0 : index
    %629 = vector.load %arg10[%c2_215, %c0_216, %c0_217] : memref<4x1x64xf32, #tpu.memory_space<vmem>>, vector<1x1x64xf32>
    %630 = vector.shape_cast %629 : vector<1x1x64xf32> to vector<1x64xf32>
    %631 = vector.broadcast %630 : vector<1x64xf32> to vector<32x64xf32>
    %632 = arith.mulf %628, %631 : vector<32x64xf32>
    %c2_218 = arith.constant 2 : index
    %c0_219 = arith.constant 0 : index
    %c0_220 = arith.constant 0 : index
    %633 = vector.load %arg11[%c2_218, %c0_219, %c0_220] : memref<4x1x64xf32, #tpu.memory_space<vmem>>, vector<1x1x64xf32>
    %634 = vector.shape_cast %633 : vector<1x1x64xf32> to vector<1x64xf32>
    %635 = vector.broadcast %634 : vector<1x64xf32> to vector<32x64xf32>
    %636 = arith.addf %632, %635 : vector<32x64xf32>
    %637 = arith.truncf %636 : vector<32x64xf32> to vector<32x64xbf16>
    %c2_221 = arith.constant 2 : index
    %c0_222 = arith.constant 0 : index
    %c0_223 = arith.constant 0 : index
    %638 = vector.load %arg6[%c2_221, %c0_222, %c0_223] : memref<4x64x128xbf16, #tpu.memory_space<vmem>>, vector<1x64x128xbf16>
    %639 = vector.shape_cast %638 : vector<1x64x128xbf16> to vector<64x128xbf16>
    %cst_224 = arith.constant dense<0.000000e+00> : vector<32x128xf32>
    %640 = tpu.matmul %637, %639, %cst_224 {dimension_numbers = #tpu.dot_dimension_numbers<[1], [0], [0], [1], [0, 0, 1, 1], [], []>} : vector<32x64xbf16>, vector<64x128xbf16>, vector<32x128xf32> -> vector<32x128xf32>
    %c2_225 = arith.constant 2 : index
    %c0_226 = arith.constant 0 : index
    %c0_227 = arith.constant 0 : index
    %641 = vector.load %arg7[%c2_225, %c0_226, %c0_227] : memref<4x1x128xf32, #tpu.memory_space<vmem>>, vector<1x1x128xf32>
    %642 = vector.shape_cast %641 : vector<1x1x128xf32> to vector<1x128xf32>
    %643 = vector.broadcast %642 : vector<1x128xf32> to vector<32x128xf32>
    %644 = arith.addf %640, %643 : vector<32x128xf32>
    %cst_228 = arith.constant 0.000000e+00 : f32
    %645 = vector.broadcast %cst_228 : f32 to vector<32x128xf32>
    %646 = arith.maximumf %644, %645 : vector<32x128xf32>
    %647 = arith.truncf %646 : vector<32x128xf32> to vector<32x128xbf16>
    %c2_229 = arith.constant 2 : index
    %c0_230 = arith.constant 0 : index
    %c0_231 = arith.constant 0 : index
    %648 = vector.load %arg8[%c2_229, %c0_230, %c0_231] : memref<4x128x64xbf16, #tpu.memory_space<vmem>>, vector<1x128x64xbf16>
    %649 = vector.shape_cast %648 : vector<1x128x64xbf16> to vector<128x64xbf16>
    %cst_232 = arith.constant dense<0.000000e+00> : vector<32x64xf32>
    %650 = tpu.matmul %647, %649, %cst_232 {dimension_numbers = #tpu.dot_dimension_numbers<[1], [0], [0], [1], [0, 0, 1, 1], [], []>} : vector<32x128xbf16>, vector<128x64xbf16>, vector<32x64xf32> -> vector<32x64xf32>
    %c2_233 = arith.constant 2 : index
    %c0_234 = arith.constant 0 : index
    %c0_235 = arith.constant 0 : index
    %651 = vector.load %arg9[%c2_233, %c0_234, %c0_235] : memref<4x1x64xf32, #tpu.memory_space<vmem>>, vector<1x1x64xf32>
    %652 = vector.shape_cast %651 : vector<1x1x64xf32> to vector<1x64xf32>
    %653 = vector.broadcast %652 : vector<1x64xf32> to vector<32x64xf32>
    %654 = arith.addf %650, %653 : vector<32x64xf32>
    %655 = arith.addf %636, %654 : vector<32x64xf32>
    %cst_236 = arith.constant dense<0.000000e+00> : vector<32xf32>
    %656 = vector.multi_reduction <add>, %655, %cst_236 [1] : vector<32x64xf32> to vector<32xf32>
    %657 = vector.shape_cast %656 : vector<32xf32> to vector<32x1xf32>
    %cst_237 = arith.constant 6.400000e+01 : f32
    %658 = vector.broadcast %cst_237 : f32 to vector<32x1xf32>
    %659 = arith.divf %657, %658 : vector<32x1xf32>
    %660 = vector.broadcast %659 : vector<32x1xf32> to vector<32x64xf32>
    %661 = arith.subf %655, %660 : vector<32x64xf32>
    %662 = arith.mulf %661, %661 : vector<32x64xf32>
    %cst_238 = arith.constant dense<0.000000e+00> : vector<32xf32>
    %663 = vector.multi_reduction <add>, %662, %cst_238 [1] : vector<32x64xf32> to vector<32xf32>
    %664 = vector.shape_cast %663 : vector<32xf32> to vector<32x1xf32>
    %cst_239 = arith.constant 6.400000e+01 : f32
    %665 = vector.broadcast %cst_239 : f32 to vector<32x1xf32>
    %666 = arith.divf %664, %665 : vector<32x1xf32>
    %667 = vector.broadcast %659 : vector<32x1xf32> to vector<32x64xf32>
    %668 = arith.subf %655, %667 : vector<32x64xf32>
    %cst_240 = arith.constant 9.99999974E-6 : f32
    %669 = vector.broadcast %cst_240 : f32 to vector<32x1xf32>
    %670 = arith.addf %666, %669 : vector<32x1xf32>
    %671 = math.rsqrt %670 : vector<32x1xf32>
    %672 = vector.broadcast %671 : vector<32x1xf32> to vector<32x64xf32>
    %673 = arith.mulf %668, %672 : vector<32x64xf32>
    %c2_241 = arith.constant 2 : index
    %c0_242 = arith.constant 0 : index
    %c0_243 = arith.constant 0 : index
    %674 = vector.load %arg12[%c2_241, %c0_242, %c0_243] : memref<4x1x64xf32, #tpu.memory_space<vmem>>, vector<1x1x64xf32>
    %675 = vector.shape_cast %674 : vector<1x1x64xf32> to vector<1x64xf32>
    %676 = vector.broadcast %675 : vector<1x64xf32> to vector<32x64xf32>
    %677 = arith.mulf %673, %676 : vector<32x64xf32>
    %c2_244 = arith.constant 2 : index
    %c0_245 = arith.constant 0 : index
    %c0_246 = arith.constant 0 : index
    %678 = vector.load %arg13[%c2_244, %c0_245, %c0_246] : memref<4x1x64xf32, #tpu.memory_space<vmem>>, vector<1x1x64xf32>
    %679 = vector.shape_cast %678 : vector<1x1x64xf32> to vector<1x64xf32>
    %680 = vector.broadcast %679 : vector<1x64xf32> to vector<32x64xf32>
    %681 = arith.addf %677, %680 : vector<32x64xf32>
    %682 = arith.truncf %681 : vector<32x64xf32> to vector<32x64xbf16>
    %c3 = arith.constant 3 : index
    %c0_247 = arith.constant 0 : index
    %c0_248 = arith.constant 0 : index
    %683 = vector.load %arg2[%c3, %c0_247, %c0_248] : memref<4x64x192xbf16, #tpu.memory_space<vmem>>, vector<1x64x192xbf16>
    %684 = vector.shape_cast %683 : vector<1x64x192xbf16> to vector<64x192xbf16>
    %cst_249 = arith.constant dense<0.000000e+00> : vector<32x192xf32>
    %685 = tpu.matmul %682, %684, %cst_249 {dimension_numbers = #tpu.dot_dimension_numbers<[1], [0], [0], [1], [0, 0, 1, 1], [], []>} : vector<32x64xbf16>, vector<64x192xbf16>, vector<32x192xf32> -> vector<32x192xf32>
    %c3_250 = arith.constant 3 : index
    %c0_251 = arith.constant 0 : index
    %c0_252 = arith.constant 0 : index
    %686 = vector.load %arg3[%c3_250, %c0_251, %c0_252] : memref<4x1x192xf32, #tpu.memory_space<vmem>>, vector<1x1x192xf32>
    %687 = vector.shape_cast %686 : vector<1x1x192xf32> to vector<1x192xf32>
    %688 = vector.broadcast %687 : vector<1x192xf32> to vector<32x192xf32>
    %689 = arith.addf %685, %688 : vector<32x192xf32>
    %690 = vector.extract_strided_slice %689 {offsets = [0, 0], sizes = [32, 64], strides = [1, 1]} : vector<32x192xf32> to vector<32x64xf32>
    %691 = vector.shape_cast %690 : vector<32x64xf32> to vector<1x32x64xf32>
    %692 = arith.truncf %691 : vector<1x32x64xf32> to vector<1x32x64xbf16>
    %693 = vector.extract_strided_slice %689 {offsets = [0, 64], sizes = [32, 64], strides = [1, 1]} : vector<32x192xf32> to vector<32x64xf32>
    %694 = vector.shape_cast %693 : vector<32x64xf32> to vector<1x32x64xf32>
    %695 = arith.truncf %694 : vector<1x32x64xf32> to vector<1x32x64xbf16>
    %696 = vector.extract_strided_slice %689 {offsets = [0, 128], sizes = [32, 64], strides = [1, 1]} : vector<32x192xf32> to vector<32x64xf32>
    %697 = vector.shape_cast %696 : vector<32x64xf32> to vector<1x32x64xf32>
    %698 = arith.truncf %697 : vector<1x32x64xf32> to vector<1x32x64xbf16>
    %699 = vector.extract_strided_slice %692 {offsets = [0, 0, 0], sizes = [1, 32, 8], strides = [1, 1, 1]} : vector<1x32x64xbf16> to vector<1x32x8xbf16>
    %700 = vector.extract_strided_slice %695 {offsets = [0, 0, 0], sizes = [1, 32, 8], strides = [1, 1, 1]} : vector<1x32x64xbf16> to vector<1x32x8xbf16>
    %701 = vector.extract_strided_slice %698 {offsets = [0, 0, 0], sizes = [1, 32, 8], strides = [1, 1, 1]} : vector<1x32x64xbf16> to vector<1x32x8xbf16>
    "tpu.trace_start"() <{level = 10 : i32, message = "bqd,bkd->bqk"}> : () -> ()
    %cst_253 = arith.constant dense<0.000000e+00> : vector<1x32x32xf32>
    %702 = tpu.matmul %699, %700, %cst_253 {dimension_numbers = #tpu.dot_dimension_numbers<[2], [2], [1], [1], [0, 0, 0, 1, 1, 1], [0], [0]>} : vector<1x32x8xbf16>, vector<1x32x8xbf16>, vector<1x32x32xf32> -> vector<1x32x32xf32>
    "tpu.trace_stop"() : () -> ()
    %cst_254 = arith.constant dense<0xFF800000> : vector<1x32xf32>
    %703 = vector.multi_reduction <maximumf>, %702, %cst_254 [2] : vector<1x32x32xf32> to vector<1x32xf32>
    %704 = vector.shape_cast %703 : vector<1x32xf32> to vector<1x32x1xf32>
    %705 = vector.broadcast %704 : vector<1x32x1xf32> to vector<1x32x32xf32>
    %706 = arith.subf %702, %705 : vector<1x32x32xf32>
    %707 = math.exp %706 : vector<1x32x32xf32>
    %cst_255 = arith.constant dense<0.000000e+00> : vector<1x32xf32>
    %708 = vector.multi_reduction <add>, %707, %cst_255 [2] : vector<1x32x32xf32> to vector<1x32xf32>
    %709 = vector.shape_cast %708 : vector<1x32xf32> to vector<1x32x1xf32>
    %710 = tpu.reciprocal %709 {approx = true} : vector<1x32x1xf32> -> vector<1x32x1xf32>
    %711 = vector.broadcast %710 : vector<1x32x1xf32> to vector<1x32x32xf32>
    %712 = arith.mulf %707, %711 : vector<1x32x32xf32>
    %713 = arith.truncf %712 : vector<1x32x32xf32> to vector<1x32x32xbf16>
    "tpu.trace_start"() <{level = 10 : i32, message = "bqs,bsd->bqd"}> : () -> ()
    %cst_256 = arith.constant dense<0.000000e+00> : vector<1x32x8xf32>
    %714 = tpu.matmul %713, %701, %cst_256 {dimension_numbers = #tpu.dot_dimension_numbers<[2], [1], [1], [2], [0, 0, 0, 1, 1, 2], [0], [0]>} : vector<1x32x32xbf16>, vector<1x32x8xbf16>, vector<1x32x8xf32> -> vector<1x32x8xf32>
    "tpu.trace_stop"() : () -> ()
    %715 = vector.extract_strided_slice %692 {offsets = [0, 0, 8], sizes = [1, 32, 8], strides = [1, 1, 1]} : vector<1x32x64xbf16> to vector<1x32x8xbf16>
    %716 = vector.extract_strided_slice %695 {offsets = [0, 0, 8], sizes = [1, 32, 8], strides = [1, 1, 1]} : vector<1x32x64xbf16> to vector<1x32x8xbf16>
    %717 = vector.extract_strided_slice %698 {offsets = [0, 0, 8], sizes = [1, 32, 8], strides = [1, 1, 1]} : vector<1x32x64xbf16> to vector<1x32x8xbf16>
    "tpu.trace_start"() <{level = 10 : i32, message = "bqd,bkd->bqk"}> : () -> ()
    %cst_257 = arith.constant dense<0.000000e+00> : vector<1x32x32xf32>
    %718 = tpu.matmul %715, %716, %cst_257 {dimension_numbers = #tpu.dot_dimension_numbers<[2], [2], [1], [1], [0, 0, 0, 1, 1, 1], [0], [0]>} : vector<1x32x8xbf16>, vector<1x32x8xbf16>, vector<1x32x32xf32> -> vector<1x32x32xf32>
    "tpu.trace_stop"() : () -> ()
    %cst_258 = arith.constant dense<0xFF800000> : vector<1x32xf32>
    %719 = vector.multi_reduction <maximumf>, %718, %cst_258 [2] : vector<1x32x32xf32> to vector<1x32xf32>
    %720 = vector.shape_cast %719 : vector<1x32xf32> to vector<1x32x1xf32>
    %721 = vector.broadcast %720 : vector<1x32x1xf32> to vector<1x32x32xf32>
    %722 = arith.subf %718, %721 : vector<1x32x32xf32>
    %723 = math.exp %722 : vector<1x32x32xf32>
    %cst_259 = arith.constant dense<0.000000e+00> : vector<1x32xf32>
    %724 = vector.multi_reduction <add>, %723, %cst_259 [2] : vector<1x32x32xf32> to vector<1x32xf32>
    %725 = vector.shape_cast %724 : vector<1x32xf32> to vector<1x32x1xf32>
    %726 = tpu.reciprocal %725 {approx = true} : vector<1x32x1xf32> -> vector<1x32x1xf32>
    %727 = vector.broadcast %726 : vector<1x32x1xf32> to vector<1x32x32xf32>
    %728 = arith.mulf %723, %727 : vector<1x32x32xf32>
    %729 = arith.truncf %728 : vector<1x32x32xf32> to vector<1x32x32xbf16>
    "tpu.trace_start"() <{level = 10 : i32, message = "bqs,bsd->bqd"}> : () -> ()
    %cst_260 = arith.constant dense<0.000000e+00> : vector<1x32x8xf32>
    %730 = tpu.matmul %729, %717, %cst_260 {dimension_numbers = #tpu.dot_dimension_numbers<[2], [1], [1], [2], [0, 0, 0, 1, 1, 2], [0], [0]>} : vector<1x32x32xbf16>, vector<1x32x8xbf16>, vector<1x32x8xf32> -> vector<1x32x8xf32>
    "tpu.trace_stop"() : () -> ()
    %731 = vector.extract_strided_slice %692 {offsets = [0, 0, 16], sizes = [1, 32, 8], strides = [1, 1, 1]} : vector<1x32x64xbf16> to vector<1x32x8xbf16>
    %732 = vector.extract_strided_slice %695 {offsets = [0, 0, 16], sizes = [1, 32, 8], strides = [1, 1, 1]} : vector<1x32x64xbf16> to vector<1x32x8xbf16>
    %733 = vector.extract_strided_slice %698 {offsets = [0, 0, 16], sizes = [1, 32, 8], strides = [1, 1, 1]} : vector<1x32x64xbf16> to vector<1x32x8xbf16>
    "tpu.trace_start"() <{level = 10 : i32, message = "bqd,bkd->bqk"}> : () -> ()
    %cst_261 = arith.constant dense<0.000000e+00> : vector<1x32x32xf32>
    %734 = tpu.matmul %731, %732, %cst_261 {dimension_numbers = #tpu.dot_dimension_numbers<[2], [2], [1], [1], [0, 0, 0, 1, 1, 1], [0], [0]>} : vector<1x32x8xbf16>, vector<1x32x8xbf16>, vector<1x32x32xf32> -> vector<1x32x32xf32>
    "tpu.trace_stop"() : () -> ()
    %cst_262 = arith.constant dense<0xFF800000> : vector<1x32xf32>
    %735 = vector.multi_reduction <maximumf>, %734, %cst_262 [2] : vector<1x32x32xf32> to vector<1x32xf32>
    %736 = vector.shape_cast %735 : vector<1x32xf32> to vector<1x32x1xf32>
    %737 = vector.broadcast %736 : vector<1x32x1xf32> to vector<1x32x32xf32>
    %738 = arith.subf %734, %737 : vector<1x32x32xf32>
    %739 = math.exp %738 : vector<1x32x32xf32>
    %cst_263 = arith.constant dense<0.000000e+00> : vector<1x32xf32>
    %740 = vector.multi_reduction <add>, %739, %cst_263 [2] : vector<1x32x32xf32> to vector<1x32xf32>
    %741 = vector.shape_cast %740 : vector<1x32xf32> to vector<1x32x1xf32>
    %742 = tpu.reciprocal %741 {approx = true} : vector<1x32x1xf32> -> vector<1x32x1xf32>
    %743 = vector.broadcast %742 : vector<1x32x1xf32> to vector<1x32x32xf32>
    %744 = arith.mulf %739, %743 : vector<1x32x32xf32>
    %745 = arith.truncf %744 : vector<1x32x32xf32> to vector<1x32x32xbf16>
    "tpu.trace_start"() <{level = 10 : i32, message = "bqs,bsd->bqd"}> : () -> ()
    %cst_264 = arith.constant dense<0.000000e+00> : vector<1x32x8xf32>
    %746 = tpu.matmul %745, %733, %cst_264 {dimension_numbers = #tpu.dot_dimension_numbers<[2], [1], [1], [2], [0, 0, 0, 1, 1, 2], [0], [0]>} : vector<1x32x32xbf16>, vector<1x32x8xbf16>, vector<1x32x8xf32> -> vector<1x32x8xf32>
    "tpu.trace_stop"() : () -> ()
    %747 = vector.extract_strided_slice %692 {offsets = [0, 0, 24], sizes = [1, 32, 8], strides = [1, 1, 1]} : vector<1x32x64xbf16> to vector<1x32x8xbf16>
    %748 = vector.extract_strided_slice %695 {offsets = [0, 0, 24], sizes = [1, 32, 8], strides = [1, 1, 1]} : vector<1x32x64xbf16> to vector<1x32x8xbf16>
    %749 = vector.extract_strided_slice %698 {offsets = [0, 0, 24], sizes = [1, 32, 8], strides = [1, 1, 1]} : vector<1x32x64xbf16> to vector<1x32x8xbf16>
    "tpu.trace_start"() <{level = 10 : i32, message = "bqd,bkd->bqk"}> : () -> ()
    %cst_265 = arith.constant dense<0.000000e+00> : vector<1x32x32xf32>
    %750 = tpu.matmul %747, %748, %cst_265 {dimension_numbers = #tpu.dot_dimension_numbers<[2], [2], [1], [1], [0, 0, 0, 1, 1, 1], [0], [0]>} : vector<1x32x8xbf16>, vector<1x32x8xbf16>, vector<1x32x32xf32> -> vector<1x32x32xf32>
    "tpu.trace_stop"() : () -> ()
    %cst_266 = arith.constant dense<0xFF800000> : vector<1x32xf32>
    %751 = vector.multi_reduction <maximumf>, %750, %cst_266 [2] : vector<1x32x32xf32> to vector<1x32xf32>
    %752 = vector.shape_cast %751 : vector<1x32xf32> to vector<1x32x1xf32>
    %753 = vector.broadcast %752 : vector<1x32x1xf32> to vector<1x32x32xf32>
    %754 = arith.subf %750, %753 : vector<1x32x32xf32>
    %755 = math.exp %754 : vector<1x32x32xf32>
    %cst_267 = arith.constant dense<0.000000e+00> : vector<1x32xf32>
    %756 = vector.multi_reduction <add>, %755, %cst_267 [2] : vector<1x32x32xf32> to vector<1x32xf32>
    %757 = vector.shape_cast %756 : vector<1x32xf32> to vector<1x32x1xf32>
    %758 = tpu.reciprocal %757 {approx = true} : vector<1x32x1xf32> -> vector<1x32x1xf32>
    %759 = vector.broadcast %758 : vector<1x32x1xf32> to vector<1x32x32xf32>
    %760 = arith.mulf %755, %759 : vector<1x32x32xf32>
    %761 = arith.truncf %760 : vector<1x32x32xf32> to vector<1x32x32xbf16>
    "tpu.trace_start"() <{level = 10 : i32, message = "bqs,bsd->bqd"}> : () -> ()
    %cst_268 = arith.constant dense<0.000000e+00> : vector<1x32x8xf32>
    %762 = tpu.matmul %761, %749, %cst_268 {dimension_numbers = #tpu.dot_dimension_numbers<[2], [1], [1], [2], [0, 0, 0, 1, 1, 2], [0], [0]>} : vector<1x32x32xbf16>, vector<1x32x8xbf16>, vector<1x32x8xf32> -> vector<1x32x8xf32>
    "tpu.trace_stop"() : () -> ()
    %763 = vector.extract_strided_slice %692 {offsets = [0, 0, 32], sizes = [1, 32, 8], strides = [1, 1, 1]} : vector<1x32x64xbf16> to vector<1x32x8xbf16>
    %764 = vector.extract_strided_slice %695 {offsets = [0, 0, 32], sizes = [1, 32, 8], strides = [1, 1, 1]} : vector<1x32x64xbf16> to vector<1x32x8xbf16>
    %765 = vector.extract_strided_slice %698 {offsets = [0, 0, 32], sizes = [1, 32, 8], strides = [1, 1, 1]} : vector<1x32x64xbf16> to vector<1x32x8xbf16>
    "tpu.trace_start"() <{level = 10 : i32, message = "bqd,bkd->bqk"}> : () -> ()
    %cst_269 = arith.constant dense<0.000000e+00> : vector<1x32x32xf32>
    %766 = tpu.matmul %763, %764, %cst_269 {dimension_numbers = #tpu.dot_dimension_numbers<[2], [2], [1], [1], [0, 0, 0, 1, 1, 1], [0], [0]>} : vector<1x32x8xbf16>, vector<1x32x8xbf16>, vector<1x32x32xf32> -> vector<1x32x32xf32>
    "tpu.trace_stop"() : () -> ()
    %cst_270 = arith.constant dense<0xFF800000> : vector<1x32xf32>
    %767 = vector.multi_reduction <maximumf>, %766, %cst_270 [2] : vector<1x32x32xf32> to vector<1x32xf32>
    %768 = vector.shape_cast %767 : vector<1x32xf32> to vector<1x32x1xf32>
    %769 = vector.broadcast %768 : vector<1x32x1xf32> to vector<1x32x32xf32>
    %770 = arith.subf %766, %769 : vector<1x32x32xf32>
    %771 = math.exp %770 : vector<1x32x32xf32>
    %cst_271 = arith.constant dense<0.000000e+00> : vector<1x32xf32>
    %772 = vector.multi_reduction <add>, %771, %cst_271 [2] : vector<1x32x32xf32> to vector<1x32xf32>
    %773 = vector.shape_cast %772 : vector<1x32xf32> to vector<1x32x1xf32>
    %774 = tpu.reciprocal %773 {approx = true} : vector<1x32x1xf32> -> vector<1x32x1xf32>
    %775 = vector.broadcast %774 : vector<1x32x1xf32> to vector<1x32x32xf32>
    %776 = arith.mulf %771, %775 : vector<1x32x32xf32>
    %777 = arith.truncf %776 : vector<1x32x32xf32> to vector<1x32x32xbf16>
    "tpu.trace_start"() <{level = 10 : i32, message = "bqs,bsd->bqd"}> : () -> ()
    %cst_272 = arith.constant dense<0.000000e+00> : vector<1x32x8xf32>
    %778 = tpu.matmul %777, %765, %cst_272 {dimension_numbers = #tpu.dot_dimension_numbers<[2], [1], [1], [2], [0, 0, 0, 1, 1, 2], [0], [0]>} : vector<1x32x32xbf16>, vector<1x32x8xbf16>, vector<1x32x8xf32> -> vector<1x32x8xf32>
    "tpu.trace_stop"() : () -> ()
    %779 = vector.extract_strided_slice %692 {offsets = [0, 0, 40], sizes = [1, 32, 8], strides = [1, 1, 1]} : vector<1x32x64xbf16> to vector<1x32x8xbf16>
    %780 = vector.extract_strided_slice %695 {offsets = [0, 0, 40], sizes = [1, 32, 8], strides = [1, 1, 1]} : vector<1x32x64xbf16> to vector<1x32x8xbf16>
    %781 = vector.extract_strided_slice %698 {offsets = [0, 0, 40], sizes = [1, 32, 8], strides = [1, 1, 1]} : vector<1x32x64xbf16> to vector<1x32x8xbf16>
    "tpu.trace_start"() <{level = 10 : i32, message = "bqd,bkd->bqk"}> : () -> ()
    %cst_273 = arith.constant dense<0.000000e+00> : vector<1x32x32xf32>
    %782 = tpu.matmul %779, %780, %cst_273 {dimension_numbers = #tpu.dot_dimension_numbers<[2], [2], [1], [1], [0, 0, 0, 1, 1, 1], [0], [0]>} : vector<1x32x8xbf16>, vector<1x32x8xbf16>, vector<1x32x32xf32> -> vector<1x32x32xf32>
    "tpu.trace_stop"() : () -> ()
    %cst_274 = arith.constant dense<0xFF800000> : vector<1x32xf32>
    %783 = vector.multi_reduction <maximumf>, %782, %cst_274 [2] : vector<1x32x32xf32> to vector<1x32xf32>
    %784 = vector.shape_cast %783 : vector<1x32xf32> to vector<1x32x1xf32>
    %785 = vector.broadcast %784 : vector<1x32x1xf32> to vector<1x32x32xf32>
    %786 = arith.subf %782, %785 : vector<1x32x32xf32>
    %787 = math.exp %786 : vector<1x32x32xf32>
    %cst_275 = arith.constant dense<0.000000e+00> : vector<1x32xf32>
    %788 = vector.multi_reduction <add>, %787, %cst_275 [2] : vector<1x32x32xf32> to vector<1x32xf32>
    %789 = vector.shape_cast %788 : vector<1x32xf32> to vector<1x32x1xf32>
    %790 = tpu.reciprocal %789 {approx = true} : vector<1x32x1xf32> -> vector<1x32x1xf32>
    %791 = vector.broadcast %790 : vector<1x32x1xf32> to vector<1x32x32xf32>
    %792 = arith.mulf %787, %791 : vector<1x32x32xf32>
    %793 = arith.truncf %792 : vector<1x32x32xf32> to vector<1x32x32xbf16>
    "tpu.trace_start"() <{level = 10 : i32, message = "bqs,bsd->bqd"}> : () -> ()
    %cst_276 = arith.constant dense<0.000000e+00> : vector<1x32x8xf32>
    %794 = tpu.matmul %793, %781, %cst_276 {dimension_numbers = #tpu.dot_dimension_numbers<[2], [1], [1], [2], [0, 0, 0, 1, 1, 2], [0], [0]>} : vector<1x32x32xbf16>, vector<1x32x8xbf16>, vector<1x32x8xf32> -> vector<1x32x8xf32>
    "tpu.trace_stop"() : () -> ()
    %795 = vector.extract_strided_slice %692 {offsets = [0, 0, 48], sizes = [1, 32, 8], strides = [1, 1, 1]} : vector<1x32x64xbf16> to vector<1x32x8xbf16>
    %796 = vector.extract_strided_slice %695 {offsets = [0, 0, 48], sizes = [1, 32, 8], strides = [1, 1, 1]} : vector<1x32x64xbf16> to vector<1x32x8xbf16>
    %797 = vector.extract_strided_slice %698 {offsets = [0, 0, 48], sizes = [1, 32, 8], strides = [1, 1, 1]} : vector<1x32x64xbf16> to vector<1x32x8xbf16>
    "tpu.trace_start"() <{level = 10 : i32, message = "bqd,bkd->bqk"}> : () -> ()
    %cst_277 = arith.constant dense<0.000000e+00> : vector<1x32x32xf32>
    %798 = tpu.matmul %795, %796, %cst_277 {dimension_numbers = #tpu.dot_dimension_numbers<[2], [2], [1], [1], [0, 0, 0, 1, 1, 1], [0], [0]>} : vector<1x32x8xbf16>, vector<1x32x8xbf16>, vector<1x32x32xf32> -> vector<1x32x32xf32>
    "tpu.trace_stop"() : () -> ()
    %cst_278 = arith.constant dense<0xFF800000> : vector<1x32xf32>
    %799 = vector.multi_reduction <maximumf>, %798, %cst_278 [2] : vector<1x32x32xf32> to vector<1x32xf32>
    %800 = vector.shape_cast %799 : vector<1x32xf32> to vector<1x32x1xf32>
    %801 = vector.broadcast %800 : vector<1x32x1xf32> to vector<1x32x32xf32>
    %802 = arith.subf %798, %801 : vector<1x32x32xf32>
    %803 = math.exp %802 : vector<1x32x32xf32>
    %cst_279 = arith.constant dense<0.000000e+00> : vector<1x32xf32>
    %804 = vector.multi_reduction <add>, %803, %cst_279 [2] : vector<1x32x32xf32> to vector<1x32xf32>
    %805 = vector.shape_cast %804 : vector<1x32xf32> to vector<1x32x1xf32>
    %806 = tpu.reciprocal %805 {approx = true} : vector<1x32x1xf32> -> vector<1x32x1xf32>
    %807 = vector.broadcast %806 : vector<1x32x1xf32> to vector<1x32x32xf32>
    %808 = arith.mulf %803, %807 : vector<1x32x32xf32>
    %809 = arith.truncf %808 : vector<1x32x32xf32> to vector<1x32x32xbf16>
    "tpu.trace_start"() <{level = 10 : i32, message = "bqs,bsd->bqd"}> : () -> ()
    %cst_280 = arith.constant dense<0.000000e+00> : vector<1x32x8xf32>
    %810 = tpu.matmul %809, %797, %cst_280 {dimension_numbers = #tpu.dot_dimension_numbers<[2], [1], [1], [2], [0, 0, 0, 1, 1, 2], [0], [0]>} : vector<1x32x32xbf16>, vector<1x32x8xbf16>, vector<1x32x8xf32> -> vector<1x32x8xf32>
    "tpu.trace_stop"() : () -> ()
    %811 = vector.extract_strided_slice %692 {offsets = [0, 0, 56], sizes = [1, 32, 8], strides = [1, 1, 1]} : vector<1x32x64xbf16> to vector<1x32x8xbf16>
    %812 = vector.extract_strided_slice %695 {offsets = [0, 0, 56], sizes = [1, 32, 8], strides = [1, 1, 1]} : vector<1x32x64xbf16> to vector<1x32x8xbf16>
    %813 = vector.extract_strided_slice %698 {offsets = [0, 0, 56], sizes = [1, 32, 8], strides = [1, 1, 1]} : vector<1x32x64xbf16> to vector<1x32x8xbf16>
    "tpu.trace_start"() <{level = 10 : i32, message = "bqd,bkd->bqk"}> : () -> ()
    %cst_281 = arith.constant dense<0.000000e+00> : vector<1x32x32xf32>
    %814 = tpu.matmul %811, %812, %cst_281 {dimension_numbers = #tpu.dot_dimension_numbers<[2], [2], [1], [1], [0, 0, 0, 1, 1, 1], [0], [0]>} : vector<1x32x8xbf16>, vector<1x32x8xbf16>, vector<1x32x32xf32> -> vector<1x32x32xf32>
    "tpu.trace_stop"() : () -> ()
    %cst_282 = arith.constant dense<0xFF800000> : vector<1x32xf32>
    %815 = vector.multi_reduction <maximumf>, %814, %cst_282 [2] : vector<1x32x32xf32> to vector<1x32xf32>
    %816 = vector.shape_cast %815 : vector<1x32xf32> to vector<1x32x1xf32>
    %817 = vector.broadcast %816 : vector<1x32x1xf32> to vector<1x32x32xf32>
    %818 = arith.subf %814, %817 : vector<1x32x32xf32>
    %819 = math.exp %818 : vector<1x32x32xf32>
    %cst_283 = arith.constant dense<0.000000e+00> : vector<1x32xf32>
    %820 = vector.multi_reduction <add>, %819, %cst_283 [2] : vector<1x32x32xf32> to vector<1x32xf32>
    %821 = vector.shape_cast %820 : vector<1x32xf32> to vector<1x32x1xf32>
    %822 = tpu.reciprocal %821 {approx = true} : vector<1x32x1xf32> -> vector<1x32x1xf32>
    %823 = vector.broadcast %822 : vector<1x32x1xf32> to vector<1x32x32xf32>
    %824 = arith.mulf %819, %823 : vector<1x32x32xf32>
    %825 = arith.truncf %824 : vector<1x32x32xf32> to vector<1x32x32xbf16>
    "tpu.trace_start"() <{level = 10 : i32, message = "bqs,bsd->bqd"}> : () -> ()
    %cst_284 = arith.constant dense<0.000000e+00> : vector<1x32x8xf32>
    %826 = tpu.matmul %825, %813, %cst_284 {dimension_numbers = #tpu.dot_dimension_numbers<[2], [1], [1], [2], [0, 0, 0, 1, 1, 2], [0], [0]>} : vector<1x32x32xbf16>, vector<1x32x8xbf16>, vector<1x32x8xf32> -> vector<1x32x8xf32>
    "tpu.trace_stop"() : () -> ()
    %827 = tpu.concatenate %714, %730, %746, %762, %778, %794, %810, %826 in 2 : vector<1x32x8xf32>, vector<1x32x8xf32>, vector<1x32x8xf32>, vector<1x32x8xf32>, vector<1x32x8xf32>, vector<1x32x8xf32>, vector<1x32x8xf32>, vector<1x32x8xf32> -> vector<1x32x64xf32>
    %828 = vector.shape_cast %827 : vector<1x32x64xf32> to vector<32x64xf32>
    %829 = arith.truncf %828 : vector<32x64xf32> to vector<32x64xbf16>
    %c3_285 = arith.constant 3 : index
    %c0_286 = arith.constant 0 : index
    %c0_287 = arith.constant 0 : index
    %830 = vector.load %arg4[%c3_285, %c0_286, %c0_287] : memref<4x64x64xbf16, #tpu.memory_space<vmem>>, vector<1x64x64xbf16>
    %831 = vector.shape_cast %830 : vector<1x64x64xbf16> to vector<64x64xbf16>
    %cst_288 = arith.constant dense<0.000000e+00> : vector<32x64xf32>
    %832 = tpu.matmul %829, %831, %cst_288 {dimension_numbers = #tpu.dot_dimension_numbers<[1], [0], [0], [1], [0, 0, 1, 1], [], []>} : vector<32x64xbf16>, vector<64x64xbf16>, vector<32x64xf32> -> vector<32x64xf32>
    %c3_289 = arith.constant 3 : index
    %c0_290 = arith.constant 0 : index
    %c0_291 = arith.constant 0 : index
    %833 = vector.load %arg5[%c3_289, %c0_290, %c0_291] : memref<4x1x64xf32, #tpu.memory_space<vmem>>, vector<1x1x64xf32>
    %834 = vector.shape_cast %833 : vector<1x1x64xf32> to vector<1x64xf32>
    %835 = vector.broadcast %834 : vector<1x64xf32> to vector<32x64xf32>
    %836 = arith.addf %832, %835 : vector<32x64xf32>
    %837 = arith.addf %681, %836 : vector<32x64xf32>
    %cst_292 = arith.constant dense<0.000000e+00> : vector<32xf32>
    %838 = vector.multi_reduction <add>, %837, %cst_292 [1] : vector<32x64xf32> to vector<32xf32>
    %839 = vector.shape_cast %838 : vector<32xf32> to vector<32x1xf32>
    %cst_293 = arith.constant 6.400000e+01 : f32
    %840 = vector.broadcast %cst_293 : f32 to vector<32x1xf32>
    %841 = arith.divf %839, %840 : vector<32x1xf32>
    %842 = vector.broadcast %841 : vector<32x1xf32> to vector<32x64xf32>
    %843 = arith.subf %837, %842 : vector<32x64xf32>
    %844 = arith.mulf %843, %843 : vector<32x64xf32>
    %cst_294 = arith.constant dense<0.000000e+00> : vector<32xf32>
    %845 = vector.multi_reduction <add>, %844, %cst_294 [1] : vector<32x64xf32> to vector<32xf32>
    %846 = vector.shape_cast %845 : vector<32xf32> to vector<32x1xf32>
    %cst_295 = arith.constant 6.400000e+01 : f32
    %847 = vector.broadcast %cst_295 : f32 to vector<32x1xf32>
    %848 = arith.divf %846, %847 : vector<32x1xf32>
    %849 = vector.broadcast %841 : vector<32x1xf32> to vector<32x64xf32>
    %850 = arith.subf %837, %849 : vector<32x64xf32>
    %cst_296 = arith.constant 9.99999974E-6 : f32
    %851 = vector.broadcast %cst_296 : f32 to vector<32x1xf32>
    %852 = arith.addf %848, %851 : vector<32x1xf32>
    %853 = math.rsqrt %852 : vector<32x1xf32>
    %854 = vector.broadcast %853 : vector<32x1xf32> to vector<32x64xf32>
    %855 = arith.mulf %850, %854 : vector<32x64xf32>
    %c3_297 = arith.constant 3 : index
    %c0_298 = arith.constant 0 : index
    %c0_299 = arith.constant 0 : index
    %856 = vector.load %arg10[%c3_297, %c0_298, %c0_299] : memref<4x1x64xf32, #tpu.memory_space<vmem>>, vector<1x1x64xf32>
    %857 = vector.shape_cast %856 : vector<1x1x64xf32> to vector<1x64xf32>
    %858 = vector.broadcast %857 : vector<1x64xf32> to vector<32x64xf32>
    %859 = arith.mulf %855, %858 : vector<32x64xf32>
    %c3_300 = arith.constant 3 : index
    %c0_301 = arith.constant 0 : index
    %c0_302 = arith.constant 0 : index
    %860 = vector.load %arg11[%c3_300, %c0_301, %c0_302] : memref<4x1x64xf32, #tpu.memory_space<vmem>>, vector<1x1x64xf32>
    %861 = vector.shape_cast %860 : vector<1x1x64xf32> to vector<1x64xf32>
    %862 = vector.broadcast %861 : vector<1x64xf32> to vector<32x64xf32>
    %863 = arith.addf %859, %862 : vector<32x64xf32>
    %864 = arith.truncf %863 : vector<32x64xf32> to vector<32x64xbf16>
    %c3_303 = arith.constant 3 : index
    %c0_304 = arith.constant 0 : index
    %c0_305 = arith.constant 0 : index
    %865 = vector.load %arg6[%c3_303, %c0_304, %c0_305] : memref<4x64x128xbf16, #tpu.memory_space<vmem>>, vector<1x64x128xbf16>
    %866 = vector.shape_cast %865 : vector<1x64x128xbf16> to vector<64x128xbf16>
    %cst_306 = arith.constant dense<0.000000e+00> : vector<32x128xf32>
    %867 = tpu.matmul %864, %866, %cst_306 {dimension_numbers = #tpu.dot_dimension_numbers<[1], [0], [0], [1], [0, 0, 1, 1], [], []>} : vector<32x64xbf16>, vector<64x128xbf16>, vector<32x128xf32> -> vector<32x128xf32>
    %c3_307 = arith.constant 3 : index
    %c0_308 = arith.constant 0 : index
    %c0_309 = arith.constant 0 : index
    %868 = vector.load %arg7[%c3_307, %c0_308, %c0_309] : memref<4x1x128xf32, #tpu.memory_space<vmem>>, vector<1x1x128xf32>
    %869 = vector.shape_cast %868 : vector<1x1x128xf32> to vector<1x128xf32>
    %870 = vector.broadcast %869 : vector<1x128xf32> to vector<32x128xf32>
    %871 = arith.addf %867, %870 : vector<32x128xf32>
    %cst_310 = arith.constant 0.000000e+00 : f32
    %872 = vector.broadcast %cst_310 : f32 to vector<32x128xf32>
    %873 = arith.maximumf %871, %872 : vector<32x128xf32>
    %874 = arith.truncf %873 : vector<32x128xf32> to vector<32x128xbf16>
    %c3_311 = arith.constant 3 : index
    %c0_312 = arith.constant 0 : index
    %c0_313 = arith.constant 0 : index
    %875 = vector.load %arg8[%c3_311, %c0_312, %c0_313] : memref<4x128x64xbf16, #tpu.memory_space<vmem>>, vector<1x128x64xbf16>
    %876 = vector.shape_cast %875 : vector<1x128x64xbf16> to vector<128x64xbf16>
    %cst_314 = arith.constant dense<0.000000e+00> : vector<32x64xf32>
    %877 = tpu.matmul %874, %876, %cst_314 {dimension_numbers = #tpu.dot_dimension_numbers<[1], [0], [0], [1], [0, 0, 1, 1], [], []>} : vector<32x128xbf16>, vector<128x64xbf16>, vector<32x64xf32> -> vector<32x64xf32>
    %c3_315 = arith.constant 3 : index
    %c0_316 = arith.constant 0 : index
    %c0_317 = arith.constant 0 : index
    %878 = vector.load %arg9[%c3_315, %c0_316, %c0_317] : memref<4x1x64xf32, #tpu.memory_space<vmem>>, vector<1x1x64xf32>
    %879 = vector.shape_cast %878 : vector<1x1x64xf32> to vector<1x64xf32>
    %880 = vector.broadcast %879 : vector<1x64xf32> to vector<32x64xf32>
    %881 = arith.addf %877, %880 : vector<32x64xf32>
    %882 = arith.addf %863, %881 : vector<32x64xf32>
    %cst_318 = arith.constant dense<0.000000e+00> : vector<32xf32>
    %883 = vector.multi_reduction <add>, %882, %cst_318 [1] : vector<32x64xf32> to vector<32xf32>
    %884 = vector.shape_cast %883 : vector<32xf32> to vector<32x1xf32>
    %cst_319 = arith.constant 6.400000e+01 : f32
    %885 = vector.broadcast %cst_319 : f32 to vector<32x1xf32>
    %886 = arith.divf %884, %885 : vector<32x1xf32>
    %887 = vector.broadcast %886 : vector<32x1xf32> to vector<32x64xf32>
    %888 = arith.subf %882, %887 : vector<32x64xf32>
    %889 = arith.mulf %888, %888 : vector<32x64xf32>
    %cst_320 = arith.constant dense<0.000000e+00> : vector<32xf32>
    %890 = vector.multi_reduction <add>, %889, %cst_320 [1] : vector<32x64xf32> to vector<32xf32>
    %891 = vector.shape_cast %890 : vector<32xf32> to vector<32x1xf32>
    %cst_321 = arith.constant 6.400000e+01 : f32
    %892 = vector.broadcast %cst_321 : f32 to vector<32x1xf32>
    %893 = arith.divf %891, %892 : vector<32x1xf32>
    %894 = vector.broadcast %886 : vector<32x1xf32> to vector<32x64xf32>
    %895 = arith.subf %882, %894 : vector<32x64xf32>
    %cst_322 = arith.constant 9.99999974E-6 : f32
    %896 = vector.broadcast %cst_322 : f32 to vector<32x1xf32>
    %897 = arith.addf %893, %896 : vector<32x1xf32>
    %898 = math.rsqrt %897 : vector<32x1xf32>
    %899 = vector.broadcast %898 : vector<32x1xf32> to vector<32x64xf32>
    %900 = arith.mulf %895, %899 : vector<32x64xf32>
    %c3_323 = arith.constant 3 : index
    %c0_324 = arith.constant 0 : index
    %c0_325 = arith.constant 0 : index
    %901 = vector.load %arg12[%c3_323, %c0_324, %c0_325] : memref<4x1x64xf32, #tpu.memory_space<vmem>>, vector<1x1x64xf32>
    %902 = vector.shape_cast %901 : vector<1x1x64xf32> to vector<1x64xf32>
    %903 = vector.broadcast %902 : vector<1x64xf32> to vector<32x64xf32>
    %904 = arith.mulf %900, %903 : vector<32x64xf32>
    %c3_326 = arith.constant 3 : index
    %c0_327 = arith.constant 0 : index
    %c0_328 = arith.constant 0 : index
    %905 = vector.load %arg13[%c3_326, %c0_327, %c0_328] : memref<4x1x64xf32, #tpu.memory_space<vmem>>, vector<1x1x64xf32>
    %906 = vector.shape_cast %905 : vector<1x1x64xf32> to vector<1x64xf32>
    %907 = vector.broadcast %906 : vector<1x64xf32> to vector<32x64xf32>
    %908 = arith.addf %904, %907 : vector<32x64xf32>
    %c0_329 = arith.constant 0 : index
    %c0_330 = arith.constant 0 : index
    %909 = vector.load %arg14[%c0_329, %c0_330] : memref<32x64xf32, #tpu.memory_space<vmem>>, vector<32x64xf32>
    tpu.vector_store %arg14[%c0_329, %c0_330], %908 {strides = array<i32>} : memref<32x64xf32, #tpu.memory_space<vmem>>, vector<32x64xf32>,
    return
  }
  func.func @transform_0(%arg0: i32) -> (i32, i32) {
    %c0_i32 = arith.constant 0 : i32
    %c0_i32_0 = arith.constant 0 : i32
    return %arg0, %c0_i32 : i32, i32
  }
  func.func @transform_1(%arg0: i32) -> (i32, i32, i32) {
    %c0_i32 = arith.constant 0 : i32
    %c0_i32_0 = arith.constant 0 : i32
    %c0_i32_1 = arith.constant 0 : i32
    %c0_i32_2 = arith.constant 0 : i32
    return %c0_i32, %c0_i32_0, %c0_i32_1 : i32, i32, i32
  }
  func.func @transform_2(%arg0: i32) -> (i32, i32, i32) {
    %c0_i32 = arith.constant 0 : i32
    %c0_i32_0 = arith.constant 0 : i32
    %c0_i32_1 = arith.constant 0 : i32
    %c0_i32_2 = arith.constant 0 : i32
    return %c0_i32, %c0_i32_0, %c0_i32_1 : i32, i32, i32
  }
  func.func @transform_3(%arg0: i32) -> (i32, i32, i32) {
    %c0_i32 = arith.constant 0 : i32
    %c0_i32_0 = arith.constant 0 : i32
    %c0_i32_1 = arith.constant 0 : i32
    %c0_i32_2 = arith.constant 0 : i32
    return %c0_i32, %c0_i32_0, %c0_i32_1 : i32, i32, i32
  }
  func.func @transform_4(%arg0: i32) -> (i32, i32, i32) {
    %c0_i32 = arith.constant 0 : i32
    %c0_i32_0 = arith.constant 0 : i32
    %c0_i32_1 = arith.constant 0 : i32
    %c0_i32_2 = arith.constant 0 : i32
    return %c0_i32, %c0_i32_0, %c0_i32_1 : i32, i32, i32
  }
  func.func @transform_5(%arg0: i32) -> (i32, i32, i32) {
    %c0_i32 = arith.constant 0 : i32
    %c0_i32_0 = arith.constant 0 : i32
    %c0_i32_1 = arith.constant 0 : i32
    %c0_i32_2 = arith.constant 0 : i32
    return %c0_i32, %c0_i32_0, %c0_i32_1 : i32, i32, i32
  }
  func.func @transform_6(%arg0: i32) -> (i32, i32, i32) {
    %c0_i32 = arith.constant 0 : i32
    %c0_i32_0 = arith.constant 0 : i32
    %c0_i32_1 = arith.constant 0 : i32
    %c0_i32_2 = arith.constant 0 : i32
    return %c0_i32, %c0_i32_0, %c0_i32_1 : i32, i32, i32
  }
  func.func @transform_7(%arg0: i32) -> (i32, i32, i32) {
    %c0_i32 = arith.constant 0 : i32
    %c0_i32_0 = arith.constant 0 : i32
    %c0_i32_1 = arith.constant 0 : i32
    %c0_i32_2 = arith.constant 0 : i32
    return %c0_i32, %c0_i32_0, %c0_i32_1 : i32, i32, i32
  }
  func.func @transform_8(%arg0: i32) -> (i32, i32, i32) {
    %c0_i32 = arith.constant 0 : i32
    %c0_i32_0 = arith.constant 0 : i32
    %c0_i32_1 = arith.constant 0 : i32
    %c0_i32_2 = arith.constant 0 : i32
    return %c0_i32, %c0_i32_0, %c0_i32_1 : i32, i32, i32
  }
  func.func @transform_9(%arg0: i32) -> (i32, i32, i32) {
    %c0_i32 = arith.constant 0 : i32
    %c0_i32_0 = arith.constant 0 : i32
    %c0_i32_1 = arith.constant 0 : i32
    %c0_i32_2 = arith.constant 0 : i32
    return %c0_i32, %c0_i32_0, %c0_i32_1 : i32, i32, i32
  }
  func.func @transform_10(%arg0: i32) -> (i32, i32, i32) {
    %c0_i32 = arith.constant 0 : i32
    %c0_i32_0 = arith.constant 0 : i32
    %c0_i32_1 = arith.constant 0 : i32
    %c0_i32_2 = arith.constant 0 : i32
    return %c0_i32, %c0_i32_0, %c0_i32_1 : i32, i32, i32
  }
  func.func @transform_11(%arg0: i32) -> (i32, i32, i32) {
    %c0_i32 = arith.constant 0 : i32
    %c0_i32_0 = arith.constant 0 : i32
    %c0_i32_1 = arith.constant 0 : i32
    %c0_i32_2 = arith.constant 0 : i32
    return %c0_i32, %c0_i32_0, %c0_i32_1 : i32, i32, i32
  }
  func.func @transform_12(%arg0: i32) -> (i32, i32, i32) {
    %c0_i32 = arith.constant 0 : i32
    %c0_i32_0 = arith.constant 0 : i32
    %c0_i32_1 = arith.constant 0 : i32
    %c0_i32_2 = arith.constant 0 : i32
    return %c0_i32, %c0_i32_0, %c0_i32_1 : i32, i32, i32
  }
  func.func @transform_13(%arg0: i32) -> (i32, i32) {
    %c0_i32 = arith.constant 0 : i32
    %c0_i32_0 = arith.constant 0 : i32
    return %arg0, %c0_i32 : i32, i32
  }
}

</mosaic_0001>

<llo_original>
// kernel: world_model_forward.1
$region0: #{world_model_forward.1}
  #allocation0 [shape = 'u32[]', space=smem, size = 0x4, offset = 0x4, fixed_abs, tag = 'smem constant byte address 0x4 - core index']
  #allocation1 [shape = 'u32[72,128]{1,0:T(1,128)}', space=vmem, size = 0x9000, scoped, tag = 'internal scratch']
  %s0 = inlined_call_operand.hbm [shape: f32[64,64], index: 0, kind: input, shape index: {}]
  %s1 = inlined_call_operand.vmem [shape: bf16[4,64,192], index: 1, kind: input, shape index: {}]
  %s2 = inlined_call_operand.vmem [shape: f32[4,1,192], index: 2, kind: input, shape index: {}]
  %s3 = inlined_call_operand.vmem [shape: bf16[4,64,64], index: 3, kind: input, shape index: {}]
  %s4 = inlined_call_operand.vmem [shape: f32[4,1,64], index: 4, kind: input, shape index: {}]
  %s5 = inlined_call_operand.hbm [shape: bf16[4,64,128], index: 5, kind: input, shape index: {}]
  %s6 = inlined_call_operand.hbm [shape: f32[4,1,128], index: 6, kind: input, shape index: {}]
  %s7 = inlined_call_operand.vmem [shape: bf16[4,128,64], index: 7, kind: input, shape index: {}]
  %s8 = inlined_call_operand.hbm [shape: f32[4,1,64], index: 8, kind: input, shape index: {}]
  %s9 = inlined_call_operand.hbm [shape: f32[4,1,64], index: 9, kind: input, shape index: {}]
  %s10 = inlined_call_operand.hbm [shape: f32[4,1,64], index: 10, kind: input, shape index: {}]
  %s11 = inlined_call_operand.hbm [shape: f32[4,1,64], index: 11, kind: input, shape index: {}]
  %s12 = inlined_call_operand.hbm [shape: f32[4,1,64], index: 12, kind: input, shape index: {}]
  %s13 = inlined_call_operand.hbm [shape: f32[64,64], index: 13, kind: output, shape index: {}]
  %s14 = sld [smem:[#allocation0]]
  $region117: #{world_model_forward.1} parent=0
    _
  %s16 = ssub.s32 1, %s14
  %s17 = scalar_select 0, %s16, %s14
  $region1: #{world_model_forward.1} parent=0
    #allocation2 [shape = 'u8[32768]{0}', space=vmem, size = 0x8000, scoped, tag = 'input window, operand 0']
    #allocation3 [shape = 's32[2]{0}', space=sflag, size = 0x8, scoped, tag = 'scoped memory for world_model_forward.1']
    #allocation4 [shape = 's32[2]{0}', space=sflag, size = 0x8, scoped, tag = 'scoped memory for world_model_forward.1']
    #allocation5 [shape = 'u8[65536]{0}', space=vmem, size = 0x10000, scoped, tag = 'input window, operand 5, single buffered']
    #allocation6 [shape = 's32[1]{0}', space=sflag, size = 0x4, scoped, tag = 'scoped memory for world_model_forward.1']
    #allocation7 [shape = 'u8[2048]{0}', space=vmem, size = 0x800, scoped, tag = 'input window, operand 6, single buffered']
    #allocation8 [shape = 'u8[2048]{0}', space=vmem, size = 0x800, scoped, tag = 'input window, operand 8, single buffered']
    #allocation9 [shape = 's32[1]{0}', space=sflag, size = 0x4, scoped, tag = 'scoped memory for world_model_forward.1']
    #allocation10 [shape = 'u8[2048]{0}', space=vmem, size = 0x800, scoped, tag = 'input window, operand 9, single buffered']
    #allocation11 [shape = 'u8[2048]{0}', space=vmem, size = 0x800, scoped, tag = 'input window, operand 10, single buffered']
    #allocation12 [shape = 's32[1]{0}', space=sflag, size = 0x4, scoped, tag = 'scoped memory for world_model_forward.1']
    #allocation13 [shape = 'u8[2048]{0}', space=vmem, size = 0x800, scoped, tag = 'input window, operand 11, single buffered']
    #allocation14 [shape = 'u8[2048]{0}', space=vmem, size = 0x800, scoped, tag = 'input window, operand 12, single buffered']
    #allocation15 [shape = 's32[1]{0}', space=sflag, size = 0x4, scoped, tag = 'scoped memory for world_model_forward.1']
    #allocation16 [shape = 'u8[32768]{0}', space=vmem, size = 0x8000, scoped, tag = 'output window, operand 0']
    %18 = vsyncpa [#allocation3], 0
    %s19 = scalar_lea.sflag [#allocation3], 1
    %20 = vsyncpa %s19, 0
    %21 = vsyncpa [#allocation6], 0
    %22 = vsyncpa [#allocation9], 0
    %23 = vsyncpa [#allocation12], 0
    %24 = vsyncpa [#allocation15], 0
    %25 = vsyncpa [#allocation4], 0
    %s26 = scalar_lea.sflag [#allocation4], 1
    %27 = vsyncpa %s26, 0
    loop: start=0, step=1, limit=4
    $region2: #{world_model_forward.1} parent=1 // loop_pre_header
      _
    $region3: #{world_model_forward.1} parent=1 // loop_header
      %s29 = sphi 0, %s33
      %p30 = scmp.ge.s32.totalorder %s29, 4
      %s39 = sphi 0, %s41
      %s42 = sphi 0, %s39
      %s43 = sphi 0, %s42
      %s59 = sphi 0, %s43
      %s63 = sphi 0, %s63
      %s65 = sphi 0, %s63
      %s66 = sphi 0, %s65
      %s80 = sphi 0, %s66
      %s84 = sphi 0, %s84
      %s86 = sphi 0, %s84
      %s87 = sphi 0, %s86
      %s101 = sphi 0, %s87
      %s105 = sphi 0, %s105
      %s107 = sphi 0, %s105
      %s108 = sphi 0, %s107
      %s122 = sphi 0, %s108
      %s126 = sphi 0, %s126
      %s128 = sphi 0, %s126
      %s129 = sphi 0, %s128
      %s143 = sphi 0, %s129
      %s147 = sphi 0, %s147
      %s149 = sphi 0, %s147
      %s150 = sphi 0, %s149
      %s164 = sphi 0, %s150
      %s168 = sphi 0, %s168
      %s170 = sphi 0, %s168
      %s171 = sphi 0, %s170
      %s185 = sphi 0, %s171
      %s189 = sphi 0, %s189
      %s191 = sphi 0, %s189
      %s192 = sphi 0, %s191
      %s206 = sphi 0, %s192
      %s210 = sphi 0, %s210
      %s212 = sphi 0, %s210
      %s213 = sphi 0, %s212
      %s227 = sphi 0, %s213
      %s231 = sphi 0, %s231
      %s233 = sphi 0, %s231
      %s234 = sphi 0, %s233
      %s248 = sphi 0, %s234
      %s252 = sphi 0, %s252
      %s254 = sphi 0, %s252
      %s255 = sphi 0, %s254
      %s269 = sphi 0, %s255
      %s273 = sphi 0, %s273
      %s275 = sphi 0, %s273
      %s276 = sphi 0, %s275
      %s290 = sphi 0, %s276
      %s294 = sphi 0, %s294
      %s296 = sphi 0, %s294
      %s297 = sphi 0, %s296
      %s311 = sphi 0, %s297
      %s317 = sphi 0, %s319
      %s320 = sphi 0, %s317
      %s321 = sphi 0, %s320
      %s337 = sphi 0, %s321
    $region4: #{world_model_forward.1} parent=1 // loop_header_branch
      %32 = sbr.rel (%p30) target = $region8
    $region5: #{world_model_forward.1} parent=1 // loop_body
      %s34 = ssub.s32 %s29, 1
      %s35 = ssub.s32 %s29, 2
      %s36 = sadd.s32 %s29, 1
      %s37 = ssub.s32 %s29, %s36
      %p38 = scmp.eq.s32.totalorder %s37, 0
      %s40 = sadd.s32 %s39, 1
      %s41 = scalar_select %p38, %s39, %s40
      %p44 = pneg %p38
      %p45 = scmp.eq.s32.totalorder %s29, 1
      %p46 = por %p44, %p45
      %p47 = scmp.ne.s32.totalorder %s39, %s42
      %p48 = scmp.eq.s32.totalorder %s29, 0
      %p49 = por %p47, %p48
      %p50 = scmp.ne.s32.totalorder %s39, %s42
      %p51 = scmp.eq.s32.totalorder %s34, 1
      %p52 = por %p50, %p51
      %p53 = scmp.ne.s32.totalorder %s42, %s43
      %p54 = scmp.eq.s32.totalorder %s34, 0
      %p55 = por %p53, %p54
      %p56 = scmp.ne.s32.totalorder %s42, %s43
      %p57 = scmp.eq.s32.totalorder %s35, 1
      %p58 = por %p56, %p57
      %p60 = scmp.ne.s32.totalorder %s43, %s59
      %p61 = scmp.eq.s32.totalorder %s35, 0
      %p62 = por %p60, %p61
      %s64 = sadd.s32 %s63, 1
      %p67 = scmp.eq.s32.totalorder %s29, 1
      %p68 = scmp.ne.s32.totalorder %s63, %s65
      %p69 = scmp.eq.s32.totalorder %s29, 0
      %p70 = por %p68, %p69
      %p71 = scmp.ne.s32.totalorder %s63, %s65
      %p72 = scmp.eq.s32.totalorder %s34, 1
      %p73 = por %p71, %p72
      %p74 = scmp.ne.s32.totalorder %s65, %s66
      %p75 = scmp.eq.s32.totalorder %s34, 0
      %p76 = por %p74, %p75
      %p77 = scmp.ne.s32.totalorder %s65, %s66
      %p78 = scmp.eq.s32.totalorder %s35, 1
      %p79 = por %p77, %p78
      %p81 = scmp.ne.s32.totalorder %s66, %s80
      %p82 = scmp.eq.s32.totalorder %s35, 0
      %p83 = por %p81, %p82
      %s85 = sadd.s32 %s84, 1
      %p88 = scmp.eq.s32.totalorder %s29, 1
      %p89 = scmp.ne.s32.totalorder %s84, %s86
      %p90 = scmp.eq.s32.totalorder %s29, 0
      %p91 = por %p89, %p90
      %p92 = scmp.ne.s32.totalorder %s84, %s86
      %p93 = scmp.eq.s32.totalorder %s34, 1
      %p94 = por %p92, %p93
      %p95 = scmp.ne.s32.totalorder %s86, %s87
      %p96 = scmp.eq.s32.totalorder %s34, 0
      %p97 = por %p95, %p96
      %p98 = scmp.ne.s32.totalorder %s86, %s87
      %p99 = scmp.eq.s32.totalorder %s35, 1
      %p100 = por %p98, %p99
      %p102 = scmp.ne.s32.totalorder %s87, %s101
      %p103 = scmp.eq.s32.totalorder %s35, 0
      %p104 = por %p102, %p103
      %s106 = sadd.s32 %s105, 1
      %p109 = scmp.eq.s32.totalorder %s29, 1
      %p110 = scmp.ne.s32.totalorder %s105, %s107
      %p111 = scmp.eq.s32.totalorder %s29, 0
      %p112 = por %p110, %p111
      %p113 = scmp.ne.s32.totalorder %s105, %s107
      %p114 = scmp.eq.s32.totalorder %s34, 1
      %p115 = por %p113, %p114
      %p116 = scmp.ne.s32.totalorder %s107, %s108
      %p117 = scmp.eq.s32.totalorder %s34, 0
      %p118 = por %p116, %p117
      %p119 = scmp.ne.s32.totalorder %s107, %s108
      %p120 = scmp.eq.s32.totalorder %s35, 1
      %p121 = por %p119, %p120
      %p123 = scmp.ne.s32.totalorder %s108, %s122
      %p124 = scmp.eq.s32.totalorder %s35, 0
      %p125 = por %p123, %p124
      %s127 = sadd.s32 %s126, 1
      %p130 = scmp.eq.s32.totalorder %s29, 1
      %p131 = scmp.ne.s32.totalorder %s126, %s128
      %p132 = scmp.eq.s32.totalorder %s29, 0
      %p133 = por %p131, %p132
      %p134 = scmp.ne.s32.totalorder %s126, %s128
      %p135 = scmp.eq.s32.totalorder %s34, 1
      %p136 = por %p134, %p135
      %p137 = scmp.ne.s32.totalorder %s128, %s129
      %p138 = scmp.eq.s32.totalorder %s34, 0
      %p139 = por %p137, %p138
      %p140 = scmp.ne.s32.totalorder %s128, %s129
      %p141 = scmp.eq.s32.totalorder %s35, 1
      %p142 = por %p140, %p141
      %p144 = scmp.ne.s32.totalorder %s129, %s143
      %p145 = scmp.eq.s32.totalorder %s35, 0
      %p146 = por %p144, %p145
      %s148 = sadd.s32 %s147, 1
      %p151 = scmp.eq.s32.totalorder %s29, 1
      %p152 = scmp.ne.s32.totalorder %s147, %s149
      %p153 = scmp.eq.s32.totalorder %s29, 0
      %p154 = por %p152, %p153
      %p155 = scmp.ne.s32.totalorder %s147, %s149
      %p156 = scmp.eq.s32.totalorder %s34, 1
      %p157 = por %p155, %p156
      %p158 = scmp.ne.s32.totalorder %s149, %s150
      %p159 = scmp.eq.s32.totalorder %s34, 0
      %p160 = por %p158, %p159
      %p161 = scmp.ne.s32.totalorder %s149, %s150
      %p162 = scmp.eq.s32.totalorder %s35, 1
      %p163 = por %p161, %p162
      %p165 = scmp.ne.s32.totalorder %s150, %s164
      %p166 = scmp.eq.s32.totalorder %s35, 0
      %p167 = por %p165, %p166
      %s169 = sadd.s32 %s168, 1
      %p172 = scmp.eq.s32.totalorder %s29, 1
      %p173 = scmp.ne.s32.totalorder %s168, %s170
      %p174 = scmp.eq.s32.totalorder %s29, 0
      %p175 = por %p173, %p174
      %p176 = scmp.ne.s32.totalorder %s168, %s170
      %p177 = scmp.eq.s32.totalorder %s34, 1
      %p178 = por %p176, %p177
      %p179 = scmp.ne.s32.totalorder %s170, %s171
      %p180 = scmp.eq.s32.totalorder %s34, 0
      %p181 = por %p179, %p180
      %p182 = scmp.ne.s32.totalorder %s170, %s171
      %p183 = scmp.eq.s32.totalorder %s35, 1
      %p184 = por %p182, %p183
      %p186 = scmp.ne.s32.totalorder %s171, %s185
      %p187 = scmp.eq.s32.totalorder %s35, 0
      %p188 = por %p186, %p187
      %s190 = sadd.s32 %s189, 1
      %p193 = scmp.eq.s32.totalorder %s29, 1
      %p194 = scmp.ne.s32.totalorder %s189, %s191
      %p195 = scmp.eq.s32.totalorder %s29, 0
      %p196 = por %p194, %p195
      %p197 = scmp.ne.s32.totalorder %s189, %s191
      %p198 = scmp.eq.s32.totalorder %s34, 1
      %p199 = por %p197, %p198
      %p200 = scmp.ne.s32.totalorder %s191, %s192
      %p201 = scmp.eq.s32.totalorder %s34, 0
      %p202 = por %p200, %p201
      %p203 = scmp.ne.s32.totalorder %s191, %s192
      %p204 = scmp.eq.s32.totalorder %s35, 1
      %p205 = por %p203, %p204
      %p207 = scmp.ne.s32.totalorder %s192, %s206
      %p208 = scmp.eq.s32.totalorder %s35, 0
      %p209 = por %p207, %p208
      %s211 = sadd.s32 %s210, 1
      %p214 = scmp.eq.s32.totalorder %s29, 1
      %p215 = scmp.ne.s32.totalorder %s210, %s212
      %p216 = scmp.eq.s32.totalorder %s29, 0
      %p217 = por %p215, %p216
      %p218 = scmp.ne.s32.totalorder %s210, %s212
      %p219 = scmp.eq.s32.totalorder %s34, 1
      %p220 = por %p218, %p219
      %p221 = scmp.ne.s32.totalorder %s212, %s213
      %p222 = scmp.eq.s32.totalorder %s34, 0
      %p223 = por %p221, %p222
      %p224 = scmp.ne.s32.totalorder %s212, %s213
      %p225 = scmp.eq.s32.totalorder %s35, 1
      %p226 = por %p224, %p225
      %p228 = scmp.ne.s32.totalorder %s213, %s227
      %p229 = scmp.eq.s32.totalorder %s35, 0
      %p230 = por %p228, %p229
      %s232 = sadd.s32 %s231, 1
      %p235 = scmp.eq.s32.totalorder %s29, 1
      %p236 = scmp.ne.s32.totalorder %s231, %s233
      %p237 = scmp.eq.s32.totalorder %s29, 0
      %p238 = por %p236, %p237
      %p239 = scmp.ne.s32.totalorder %s231, %s233
      %p240 = scmp.eq.s32.totalorder %s34, 1
      %p241 = por %p239, %p240
      %p242 = scmp.ne.s32.totalorder %s233, %s234
      %p243 = scmp.eq.s32.totalorder %s34, 0
      %p244 = por %p242, %p243
      %p245 = scmp.ne.s32.totalorder %s233, %s234
      %p246 = scmp.eq.s32.totalorder %s35, 1
      %p247 = por %p245, %p246
      %p249 = scmp.ne.s32.totalorder %s234, %s248
      %p250 = scmp.eq.s32.totalorder %s35, 0
      %p251 = por %p249, %p250
      %s253 = sadd.s32 %s252, 1
      %p256 = scmp.eq.s32.totalorder %s29, 1
      %p257 = scmp.ne.s32.totalorder %s252, %s254
      %p258 = scmp.eq.s32.totalorder %s29, 0
      %p259 = por %p257, %p258
      %p260 = scmp.ne.s32.totalorder %s252, %s254
      %p261 = scmp.eq.s32.totalorder %s34, 1
      %p262 = por %p260, %p261
      %p263 = scmp.ne.s32.totalorder %s254, %s255
      %p264 = scmp.eq.s32.totalorder %s34, 0
      %p265 = por %p263, %p264
      %p266 = scmp.ne.s32.totalorder %s254, %s255
      %p267 = scmp.eq.s32.totalorder %s35, 1
      %p268 = por %p266, %p267
      %p270 = scmp.ne.s32.totalorder %s255, %s269
      %p271 = scmp.eq.s32.totalorder %s35, 0
      %p272 = por %p270, %p271
      %s274 = sadd.s32 %s273, 1
      %p277 = scmp.eq.s32.totalorder %s29, 1
      %p278 = scmp.ne.s32.totalorder %s273, %s275
      %p279 = scmp.eq.s32.totalorder %s29, 0
      %p280 = por %p278, %p279
      %p281 = scmp.ne.s32.totalorder %s273, %s275
      %p282 = scmp.eq.s32.totalorder %s34, 1
      %p283 = por %p281, %p282
      %p284 = scmp.ne.s32.totalorder %s275, %s276
      %p285 = scmp.eq.s32.totalorder %s34, 0
      %p286 = por %p284, %p285
      %p287 = scmp.ne.s32.totalorder %s275, %s276
      %p288 = scmp.eq.s32.totalorder %s35, 1
      %p289 = por %p287, %p288
      %p291 = scmp.ne.s32.totalorder %s276, %s290
      %p292 = scmp.eq.s32.totalorder %s35, 0
      %p293 = por %p291, %p292
      %s295 = sadd.s32 %s294, 1
      %p298 = scmp.eq.s32.totalorder %s29, 1
      %p299 = scmp.ne.s32.totalorder %s294, %s296
      %p300 = scmp.eq.s32.totalorder %s29, 0
      %p301 = por %p299, %p300
      %p302 = scmp.ne.s32.totalorder %s294, %s296
      %p303 = scmp.eq.s32.totalorder %s34, 1
      %p304 = por %p302, %p303
      %p305 = scmp.ne.s32.totalorder %s296, %s297
      %p306 = scmp.eq.s32.totalorder %s34, 0
      %p307 = por %p305, %p306
      %p308 = scmp.ne.s32.totalorder %s296, %s297
      %p309 = scmp.eq.s32.totalorder %s35, 1
      %p310 = por %p308, %p309
      %p312 = scmp.ne.s32.totalorder %s297, %s311
      %p313 = scmp.eq.s32.totalorder %s35, 0
      %p314 = por %p312, %p313
      %s315 = ssub.s32 %s29, %s36
      %p316 = scmp.eq.s32.totalorder %s315, 0
      %s318 = sadd.s32 %s317, 1
      %s319 = scalar_select %p316, %s317, %s318
      %p322 = pneg %p316
      %p323 = scmp.eq.s32.totalorder %s29, 1
      %p324 = por %p322, %p323
      %p325 = scmp.ne.s32.totalorder %s317, %s320
      %p326 = scmp.eq.s32.totalorder %s29, 0
      %p327 = por %p325, %p326
      %p328 = scmp.ne.s32.totalorder %s317, %s320
      %p329 = scmp.eq.s32.totalorder %s34, 1
      %p330 = por %p328, %p329
      %p331 = scmp.ne.s32.totalorder %s320, %s321
      %p332 = scmp.eq.s32.totalorder %s34, 0
      %p333 = por %p331, %p332
      %p334 = scmp.ne.s32.totalorder %s320, %s321
      %p335 = scmp.eq.s32.totalorder %s35, 1
      %p336 = por %p334, %p335
      %p338 = scmp.ne.s32.totalorder %s321, %s337
      %p339 = scmp.eq.s32.totalorder %s35, 0
      %p340 = por %p338, %p339
      %p341 = scmp.le.s32.totalorder 1, %s29
      %p342 = scmp.lt.s32.totalorder %s29, 3
      %p343 = pnand %p341, %p342
      %p344 = pneg %p343
      // Predicated region
      $region9: #{world_model_forward.1} parent=5 // pred_check
        _
      $region10: #{world_model_forward.1} parent=5 // pred_check_branch
        %346 = sbr.rel (%p343) target = $region12
      $region11: #{world_model_forward.1} parent=5 // pred_region
        %s347 = ssub.s32 %s29, 1
        // Predicated region
        $region13: #{world_model_forward.1} parent=11 // pred_check
          %p348 = pneg %p76
        $region14: #{world_model_forward.1} parent=11 // pred_check_branch
          %350 = sbr.rel (%p348) target = $region16
        $region15: #{world_model_forward.1} parent=11 // pred_region
          _
        $region16: #{world_model_forward.1} parent=11 // pred_fallthru
          _
        // Predicated region
        $region17: #{world_model_forward.1} parent=11 // pred_check
          %p351 = pneg %p97
        $region18: #{world_model_forward.1} parent=11 // pred_check_branch
          %353 = sbr.rel (%p351) target = $region20
        $region19: #{world_model_forward.1} parent=11 // pred_region
          _
        $region20: #{world_model_forward.1} parent=11 // pred_fallthru
          _
        // Predicated region
        $region21: #{world_model_forward.1} parent=11 // pred_check
          %p354 = pneg %p118
        $region22: #{world_model_forward.1} parent=11 // pred_check_branch
          %356 = sbr.rel (%p354) target = $region24
        $region23: #{world_model_forward.1} parent=11 // pred_region
          _
        $region24: #{world_model_forward.1} parent=11 // pred_fallthru
          _
        // Predicated region
        $region25: #{world_model_forward.1} parent=11 // pred_check
          %p357 = pneg %p139
        $region26: #{world_model_forward.1} parent=11 // pred_check_branch
          %359 = sbr.rel (%p357) target = $region28
        $region27: #{world_model_forward.1} parent=11 // pred_region
          _
        $region28: #{world_model_forward.1} parent=11 // pred_fallthru
          _
        // Predicated region
        $region29: #{world_model_forward.1} parent=11 // pred_check
          %p360 = pneg %p160
        $region30: #{world_model_forward.1} parent=11 // pred_check_branch
          %362 = sbr.rel (%p360) target = $region32
        $region31: #{world_model_forward.1} parent=11 // pred_region
          %364 = vsyncadd [#allocation6], 0
          %s365 = sshll.u32 %s5, 4
          %s366 = int_to_ptr.hbm [resolvable:$true] %s365
          %s367 = sshll.u32 [#allocation5], 4
          %s368 = int_to_ptr.vmem [resolvable:$true] %s367
          %373 = dma.hbm_to_vmem [thread:$0]  %s366, 2048, %s368, [#allocation6], 64, 64, 4
        $region32: #{world_model_forward.1} parent=11 // pred_fallthru
          _
        // Predicated region
        $region33: #{world_model_forward.1} parent=11 // pred_check
          %p374 = pneg %p181
        $region34: #{world_model_forward.1} parent=11 // pred_check_branch
          %376 = sbr.rel (%p374) target = $region36
        $region35: #{world_model_forward.1} parent=11 // pred_region
          %378 = vsyncadd [#allocation6], 0
          %s379 = sshll.u32 %s6, 4
          %s380 = int_to_ptr.hbm [resolvable:$true] %s379
          %s381 = sshll.u32 [#allocation7], 4
          %s382 = int_to_ptr.vmem [resolvable:$true] %s381
          %387 = dma.hbm_to_vmem [thread:$0]  %s380, 64, %s382, [#allocation6], 16, 16, 1
        $region36: #{world_model_forward.1} parent=11 // pred_fallthru
          _
        // Predicated region
        $region37: #{world_model_forward.1} parent=11 // pred_check
          %p388 = pneg %p202
        $region38: #{world_model_forward.1} parent=11 // pred_check_branch
          %390 = sbr.rel (%p388) target = $region40
        $region39: #{world_model_forward.1} parent=11 // pred_region
          _
        $region40: #{world_model_forward.1} parent=11 // pred_fallthru
          _
        // Predicated region
        $region41: #{world_model_forward.1} parent=11 // pred_check
          %p391 = pneg %p223
        $region42: #{world_model_forward.1} parent=11 // pred_check_branch
          %393 = sbr.rel (%p391) target = $region44
        $region43: #{world_model_forward.1} parent=11 // pred_region
          %395 = vsyncadd [#allocation9], 0
          %s396 = sshll.u32 %s8, 4
          %s397 = int_to_ptr.hbm [resolvable:$true] %s396
          %s398 = sshll.u32 [#allocation8], 4
          %s399 = int_to_ptr.vmem [resolvable:$true] %s398
          %404 = dma.hbm_to_vmem [thread:$0]  %s397, 64, %s399, [#allocation9], 16, 16, 1
        $region44: #{world_model_forward.1} parent=11 // pred_fallthru
          _
        // Predicated region
        $region45: #{world_model_forward.1} parent=11 // pred_check
          %p405 = pneg %p244
        $region46: #{world_model_forward.1} parent=11 // pred_check_branch
          %407 = sbr.rel (%p405) target = $region48
        $region47: #{world_model_forward.1} parent=11 // pred_region
          %409 = vsyncadd [#allocation9], 0
          %s410 = sshll.u32 %s9, 4
          %s411 = int_to_ptr.hbm [resolvable:$true] %s410
          %s412 = sshll.u32 [#allocation10], 4
          %s413 = int_to_ptr.vmem [resolvable:$true] %s412
          %418 = dma.hbm_to_vmem [thread:$0]  %s411, 64, %s413, [#allocation9], 16, 16, 1
        $region48: #{world_model_forward.1} parent=11 // pred_fallthru
          _
        // Predicated region
        $region49: #{world_model_forward.1} parent=11 // pred_check
          %p419 = pneg %p265
        $region50: #{world_model_forward.1} parent=11 // pred_check_branch
          %421 = sbr.rel (%p419) target = $region52
        $region51: #{world_model_forward.1} parent=11 // pred_region
          %423 = vsyncadd [#allocation12], 0
          %s424 = sshll.u32 %s10, 4
          %s425 = int_to_ptr.hbm [resolvable:$true] %s424
          %s426 = sshll.u32 [#allocation11], 4
          %s427 = int_to_ptr.vmem [resolvable:$true] %s426
          %432 = dma.hbm_to_vmem [thread:$0]  %s425, 64, %s427, [#allocation12], 16, 16, 1
        $region52: #{world_model_forward.1} parent=11 // pred_fallthru
          _
        // Predicated region
        $region53: #{world_model_forward.1} parent=11 // pred_check
          %p433 = pneg %p286
        $region54: #{world_model_forward.1} parent=11 // pred_check_branch
          %435 = sbr.rel (%p433) target = $region56
        $region55: #{world_model_forward.1} parent=11 // pred_region
          %437 = vsyncadd [#allocation12], 0
          %s438 = sshll.u32 %s11, 4
          %s439 = int_to_ptr.hbm [resolvable:$true] %s438
          %s440 = sshll.u32 [#allocation13], 4
          %s441 = int_to_ptr.vmem [resolvable:$true] %s440
          %446 = dma.hbm_to_vmem [thread:$0]  %s439, 64, %s441, [#allocation12], 16, 16, 1
        $region56: #{world_model_forward.1} parent=11 // pred_fallthru
          _
        // Predicated region
        $region57: #{world_model_forward.1} parent=11 // pred_check
          %p447 = pneg %p307
        $region58: #{world_model_forward.1} parent=11 // pred_check_branch
          %449 = sbr.rel (%p447) target = $region60
        $region59: #{world_model_forward.1} parent=11 // pred_region
          %451 = vsyncadd [#allocation15], 0
          %s452 = sshll.u32 %s12, 4
          %s453 = int_to_ptr.hbm [resolvable:$true] %s452
          %s454 = sshll.u32 [#allocation14], 4
          %s455 = int_to_ptr.vmem [resolvable:$true] %s454
          %460 = dma.hbm_to_vmem [thread:$0]  %s453, 64, %s455, [#allocation15], 16, 16, 1
        $region60: #{world_model_forward.1} parent=11 // pred_fallthru
          _
      $region12: #{world_model_forward.1} parent=5 // pred_fallthru
        _
      %p461 = scmp.lt.s32.totalorder %s29, 2
      // Predicated region
      $region61: #{world_model_forward.1} parent=5 // pred_check
        %p462 = pneg %p461
      $region62: #{world_model_forward.1} parent=5 // pred_check_branch
        %464 = sbr.rel (%p462) target = $region64
      $region63: #{world_model_forward.1} parent=5 // pred_region
        // Predicated region
        $region65: #{world_model_forward.1} parent=63 // pred_check
          %p465 = pneg %p49
        $region66: #{world_model_forward.1} parent=63 // pred_check_branch
          %467 = sbr.rel (%p465) target = $region68
        $region67: #{world_model_forward.1} parent=63 // pred_region
          %s468 = sand.u32 %s39, 1
          %s469 = scalar_lea.sflag [#allocation3], %s468
          %s470 = sand.u32 %s39, 1
          %s471 = smul.addr %s470, 32
          %s472 = scalar_lea.vmem [#allocation2], %s471
          %s473 = smul.u32 4, %s29
          %475 = vsyncadd %s469, 0
          %s476 = smul.addr %s473, 8
          %s477 = scalar_lea.hbm %s0, %s476
          %s478 = sshll.u32 %s477, 4
          %s479 = int_to_ptr.hbm [resolvable:$true] %s478
          %s480 = sshll.u32 %s472, 4
          %s481 = int_to_ptr.vmem [resolvable:$true] %s480
          %486 = dma.hbm_to_vmem [thread:$0]  %s479, 512, %s481, %s469, 128, 128, 8
        $region68: #{world_model_forward.1} parent=63 // pred_fallthru
          _
      $region64: #{world_model_forward.1} parent=5 // pred_fallthru
        _
      %p487 = scmp.le.s32.totalorder 1, %s29
      %p488 = scmp.lt.s32.totalorder %s29, 3
      %p489 = pnand %p487, %p488
      %p490 = pneg %p489
      // Predicated region
      $region69: #{world_model_forward.1} parent=5 // pred_check
        _
      $region70: #{world_model_forward.1} parent=5 // pred_check_branch
        %492 = sbr.rel (%p489) target = $region72
      $region71: #{world_model_forward.1} parent=5 // pred_region
        %s493 = ssub.s32 %s29, 1
        %s494 = sand.u32 %s42, 1
        %s495 = scalar_lea.sflag [#allocation3], %s494
        %s496 = sand.u32 %s42, 1
        %s497 = smul.addr %s496, 32
        %s498 = scalar_lea.vmem [#allocation2], %s497
        // Predicated region
        $region73: #{world_model_forward.1} parent=71 // pred_check
          %p499 = pneg %p55
        $region74: #{world_model_forward.1} parent=71 // pred_check_branch
          %501 = sbr.rel (%p499) target = $region76
        $region75: #{world_model_forward.1} parent=71 // pred_region
          %503 = dma.done %s495, 512
        $region76: #{world_model_forward.1} parent=71 // pred_fallthru
          _
        // Predicated region
        $region77: #{world_model_forward.1} parent=71 // pred_check
          %p504 = pneg %p160
        $region78: #{world_model_forward.1} parent=71 // pred_check_branch
          %506 = sbr.rel (%p504) target = $region80
        $region79: #{world_model_forward.1} parent=71 // pred_region
          %508 = dma.done [#allocation6], 2048
        $region80: #{world_model_forward.1} parent=71 // pred_fallthru
          _
        // Predicated region
        $region81: #{world_model_forward.1} parent=71 // pred_check
          %p509 = pneg %p181
        $region82: #{world_model_forward.1} parent=71 // pred_check_branch
          %511 = sbr.rel (%p509) target = $region84
        $region83: #{world_model_forward.1} parent=71 // pred_region
          %513 = dma.done [#allocation6], 64
        $region84: #{world_model_forward.1} parent=71 // pred_fallthru
          _
        // Predicated region
        $region85: #{world_model_forward.1} parent=71 // pred_check
          %p514 = pneg %p223
        $region86: #{world_model_forward.1} parent=71 // pred_check_branch
          %516 = sbr.rel (%p514) target = $region88
        $region87: #{world_model_forward.1} parent=71 // pred_region
          %518 = dma.done [#allocation9], 64
        $region88: #{world_model_forward.1} parent=71 // pred_fallthru
          _
        // Predicated region
        $region89: #{world_model_forward.1} parent=71 // pred_check
          %p519 = pneg %p244
        $region90: #{world_model_forward.1} parent=71 // pred_check_branch
          %521 = sbr.rel (%p519) target = $region92
        $region91: #{world_model_forward.1} parent=71 // pred_region
          %523 = dma.done [#allocation9], 64
        $region92: #{world_model_forward.1} parent=71 // pred_fallthru
          _
        // Predicated region
        $region93: #{world_model_forward.1} parent=71 // pred_check
          %p524 = pneg %p265
        $region94: #{world_model_forward.1} parent=71 // pred_check_branch
          %526 = sbr.rel (%p524) target = $region96
        $region95: #{world_model_forward.1} parent=71 // pred_region
          %528 = dma.done [#allocation12], 64
        $region96: #{world_model_forward.1} parent=71 // pred_fallthru
          _
        // Predicated region
        $region97: #{world_model_forward.1} parent=71 // pred_check
          %p529 = pneg %p286
        $region98: #{world_model_forward.1} parent=71 // pred_check_branch
          %531 = sbr.rel (%p529) target = $region100
        $region99: #{world_model_forward.1} parent=71 // pred_region
          %533 = dma.done [#allocation12], 64
        $region100: #{world_model_forward.1} parent=71 // pred_fallthru
          _
        // Predicated region
        $region101: #{world_model_forward.1} parent=71 // pred_check
          %p534 = pneg %p307
        $region102: #{world_model_forward.1} parent=71 // pred_check_branch
          %536 = sbr.rel (%p534) target = $region104
        $region103: #{world_model_forward.1} parent=71 // pred_region
          %538 = dma.done [#allocation15], 64
        $region104: #{world_model_forward.1} parent=71 // pred_fallthru
          _
        %s539 = sand.u32 %s42, 1
        %s540 = scalar_lea.sflag [#allocation3], %s539
        %s541 = sand.u32 %s42, 1
        %s542 = smul.addr %s541, 32
        %s543 = scalar_lea.vmem [#allocation2], %s542
        %p544 = pneg %p55
        %p545 = pneg %p52
        %p546 = pneg %p76
        %p547 = pneg %p73
        %p548 = pneg %p97
        %p549 = pneg %p94
        %p550 = pneg %p118
        %p551 = pneg %p115
        %p552 = pneg %p139
        %p553 = pneg %p136
        %p554 = pneg %p160
        %p555 = pneg %p157
        %p556 = pneg %p181
        %p557 = pneg %p178
        %p558 = pneg %p202
        %p559 = pneg %p199
        %p560 = pneg %p223
        %p561 = pneg %p220
        %p562 = pneg %p244
        %p563 = pneg %p241
        %p564 = pneg %p265
        %p565 = pneg %p262
        %p566 = pneg %p286
        %p567 = pneg %p283
        %p568 = pneg %p307
        %p569 = pneg %p304
        %p570 = pneg %p333
        %p571 = pneg %p330
        %s572 = sand.u32 %s320, 1
        %s573 = scalar_lea.sflag [#allocation4], %s572
        %s574 = sand.u32 %s320, 1
        %s575 = smul.addr %s574, 32
        %s576 = scalar_lea.vmem [#allocation16], %s575
        %s577 = smul.u32 4, %s34
        %s578 = smul.u32 4, %s34
        %v580 = vld [vmem:[%s498] sm:$0xff]
        %v581 = vld [vmem:[%s498 + $0x8] sm:$0xff]
        %v582 = vld [vmem:[%s498 + $0x10] sm:$0xff]
        %v583 = vld [vmem:[%s498 + $0x18] sm:$0xff]
        %v584 = vpack.c.bf16 %v581, %v580
        %v585 = vpack.c.bf16 %v583, %v582
        %v586 = vld [vmem:[%s1] sm:$0xff]
        %v587 = vld [vmem:[%s1 + $0x8] sm:$0xff]
        %v588 = vld [vmem:[%s1 + $0x10] sm:$0xff]
        %v589 = vld [vmem:[%s1 + $0x18] sm:$0xff]
        %v590 = vld [vmem:[%s1 + $0x20] sm:$0xff]
        %v591 = vld [vmem:[%s1 + $0x28] sm:$0xff]
        %v592 = vld [vmem:[%s1 + $0x30] sm:$0xff]
        %v593 = vld [vmem:[%s1 + $0x38] sm:$0xff]
        %v594 = vld [vmem:[%s2] sm:$0x3]
        %v596 = vperm.slane %v594, 0
        %v597 = vperm.slane %v594, 1
        %v608 = vunpack.c.l.b16 %v586
        %v609 = vunpack.c.h.b16 %v586
        %v610 = vunpack.c.l.b16 %v587
        %v611 = vunpack.c.h.b16 %v587
        %v612 = vunpack.c.l.b16 %v588
        %v613 = vunpack.c.h.b16 %v588
        %v614 = vunpack.c.l.b16 %v589
        %v615 = vunpack.c.h.b16 %v589
        %v616 = vunpack.c.l.b16 %v590
        %v617 = vunpack.c.h.b16 %v590
        %v618 = vunpack.c.l.b16 %v591
        %v619 = vunpack.c.h.b16 %v591
        %v620 = vunpack.c.l.b16 %v592
        %v621 = vunpack.c.h.b16 %v592
        %v622 = vunpack.c.l.b16 %v593
        %v623 = vunpack.c.h.b16 %v593
        %v624 = vpack.c.b16 %v610, %v608
        %v625 = vpack.c.b16 %v611, %v609
        %v626 = vpack.c.b16 %v614, %v612
        %v627 = vpack.c.b16 %v615, %v613
        %v628 = vpack.c.b16 %v618, %v616
        %v629 = vpack.c.b16 %v619, %v617
        %v630 = vpack.c.b16 %v622, %v620
        %v631 = vpack.c.b16 %v623, %v621
        %vm640 = vcmask 523264
        %v642 = vsel %vm640, %v584, 0
        %v645 = vsel %vm640, %v585, 0
        %647 = vmatpush.bf16.msra.mxu0 0
        %648 = vmatpush.bf16.msra.mxu0 0
        %649 = vmatpush.bf16.msra.mxu0 0
        %650 = vmatpush.bf16.msra.mxu0 0
        %651 = vmatpush.bf16.msra.mxu0 %v630
        %652 = vmatpush.bf16.msra.mxu0 %v628
        %653 = vmatpush.bf16.msra.mxu0 %v626
        %654 = vmatpush.bf16.msra.mxu0 %v624
        %655 = vmatmul.bf16.gmra.mxu0 %v642
        %v656 = vpop.f32.mrf.mxu0
        %v657 = vadd.f32 %v596, %v656
        %v658 = vpop.f32.mrf.mxu0
        %v659 = vadd.f32 %v596, %v658
        %660 = vmatmul.bf16.gmra.mxu0 %v645
        %v661 = vpop.f32.mrf.mxu0
        %v662 = vadd.f32 %v596, %v661
        %v663 = vpop.f32.mrf.mxu0
        %v664 = vadd.f32 %v596, %v663
        %665 = vdwg.mxu0
        %666 = vmatpush.bf16.msra.mxu0 0
        %667 = vmatpush.bf16.msra.mxu0 0
        %668 = vmatpush.bf16.msra.mxu0 0
        %669 = vmatpush.bf16.msra.mxu0 0
        %670 = vmatpush.bf16.msra.mxu0 %v631
        %671 = vmatpush.bf16.msra.mxu0 %v629
        %672 = vmatpush.bf16.msra.mxu0 %v627
        %673 = vmatpush.bf16.msra.mxu0 %v625
        %674 = vmatmul.bf16.gmra.mxu0 %v642
        %v675 = vpop.f32.mrf.mxu0
        %v676 = vadd.f32 %v597, %v675
        %v677 = vpop.f32.mrf.mxu0
        %v678 = vadd.f32 %v597, %v677
        %679 = vmatmul.bf16.gmra.mxu0 %v645
        %v680 = vpop.f32.mrf.mxu0
        %v681 = vadd.f32 %v597, %v680
        %v682 = vpop.f32.mrf.mxu0
        %v683 = vadd.f32 %v597, %v682
        %684 = vdwg.mxu0
        %v685 = vpack.c.bf16 %v657, %v657
        %v686 = vpack.c.bf16 %v659, %v659
        %v687 = vpack.c.bf16 %v662, %v662
        %v688 = vpack.c.bf16 %v664, %v664
        %v689 = vpack.c.bf16 %v676, %v676
        %v690 = vpack.c.bf16 %v678, %v678
        %v691 = vpack.c.bf16 %v681, %v681
        %v692 = vpack.c.bf16 %v683, %v683
        %v697 = vunpack.c.l.b16 %v685
        %v698 = vunpack.c.l.b16 %v686
        %v699 = vunpack.c.l.b16 %v687
        %v700 = vunpack.c.l.b16 %v688
        %v701 = vpack.c.b16 %v698, %v697
        %v702 = vpack.c.b16 %v700, %v699
        %703 = vrot.lane.b32.xlu0 %v701, 64
        %v704 = vpop.permute.xlu0 %703
        %705 = vrot.lane.b32.xlu0 %v702, 64
        %v706 = vpop.permute.xlu0 %705
        %vm707 = vcmask 64512
        %v709 = vsel %vm707, %v701, 0
        %v712 = vsel %vm707, %v702, 0
        %v715 = vsel %vm707, %v704, 0
        %v718 = vsel %vm707, %v706, 0
        %720 = vmatpush.bf16.xpose.msra.mxu0 0
        %721 = vmatpush.bf16.xpose.msra.mxu0 0
        %722 = vmatpush.bf16.xpose.msra.mxu0 0
        %723 = vmatpush.bf16.xpose.msra.mxu0 0
        %724 = vmatpush.bf16.xpose.msra.mxu0 0
        %725 = vmatpush.bf16.xpose.msra.mxu0 0
        %726 = vmatpush.bf16.xpose.msra.mxu0 %v718
        %727 = vmatpush.bf16.xpose.msra.mxu0 %v715
        %728 = vmatmul.bf16.gmra.mxu0 %v709
        %v729 = vpop.f32.mrf.mxu0
        %v730 = vadd.f32 0.0, %v729
        %v731 = vpop.f32.mrf.mxu0
        %v732 = vadd.f32 0.0, %v731
        %733 = vmatmul.bf16.gmra.mxu0 %v712
        %v734 = vpop.f32.mrf.mxu0
        %v735 = vadd.f32 0.0, %v734
        %v736 = vpop.f32.mrf.mxu0
        %v737 = vadd.f32 0.0, %v736
        %738 = vdwg.mxu0
        %vm739 = vcmask 261120
        %v740 = vsel %vm739, %v730, -inf
        %741 = vmax.xlane.f32.xlu0 %v740
        %v742 = vpop.xlane.xlu0 %741
        %v743 = vsel %vm739, %v732, -inf
        %744 = vmax.xlane.f32.xlu0 %v743
        %v745 = vpop.xlane.xlu0 %744
        %v746 = vsel %vm739, %v735, -inf
        %747 = vmax.xlane.f32.xlu0 %v746
        %v748 = vpop.xlane.xlu0 %747
        %v749 = vsel %vm739, %v737, -inf
        %750 = vmax.xlane.f32.xlu0 %v749
        %v751 = vpop.xlane.xlu0 %750
        %v752 = vsub.f32 %v730, %v742
        %v753 = vsub.f32 %v732, %v745
        %v754 = vsub.f32 %v735, %v748
        %v755 = vsub.f32 %v737, %v751
        %v756 = vmul.f32 %v752, 1.442695
        %v757 = vpow.pop %v756
        %v758 = vmul.f32 %v753, 1.442695
        %v759 = vpow.pop %v758
        %v760 = vmul.f32 %v754, 1.442695
        %v761 = vpow.pop %v760
        %v762 = vmul.f32 %v755, 1.442695
        %v763 = vpow.pop %v762
        %v764 = vsel %vm739, %v757, 0.0
        %765 = vadd.xlane.f32.xlu0 %v764
        %v766 = vpop.xlane.xlu0 %765
        %v767 = vsel %vm739, %v759, 0.0
        %768 = vadd.xlane.f32.xlu0 %v767
        %v769 = vpop.xlane.xlu0 %768
        %v770 = vsel %vm739, %v761, 0.0
        %771 = vadd.xlane.f32.xlu0 %v770
        %v772 = vpop.xlane.xlu0 %771
        %v773 = vsel %vm739, %v763, 0.0
        %774 = vadd.xlane.f32.xlu0 %v773
        %v775 = vpop.xlane.xlu0 %774
        %v776 = vrcp.pop %v766
        %v777 = vrcp.pop %v769
        %v778 = vrcp.pop %v772
        %v779 = vrcp.pop %v775
        %v780 = vmul.f32 %v757, %v776
        %v781 = vmul.f32 %v759, %v777
        %v782 = vmul.f32 %v761, %v778
        %v783 = vmul.f32 %v763, %v779
        %v784 = vpack.c.bf16 %v780, %v780
        %v785 = vpack.c.bf16 %v781, %v781
        %v786 = vpack.c.bf16 %v782, %v782
        %v787 = vpack.c.bf16 %v783, %v783
        %v792 = vunpack.c.l.b16 %v784
        %v793 = vunpack.c.l.b16 %v785
        %v794 = vunpack.c.l.b16 %v786
        %v795 = vunpack.c.l.b16 %v787
        %v796 = vpack.c.b16 %v793, %v792
        %v797 = vpack.c.b16 %v795, %v794
        %v802 = vunpack.c.l.b16 %v689
        %v803 = vunpack.c.l.b16 %v690
        %v804 = vunpack.c.l.b16 %v691
        %v805 = vunpack.c.l.b16 %v692
        %v806 = vpack.c.b16 %v803, %v802
        %v807 = vpack.c.b16 %v805, %v804
        %v811 = vsel %vm739, %v796, 0
        %v814 = vsel %vm739, %v797, 0
        %816 = vmatpush.bf16.msra.mxu0 0
        %817 = vmatpush.bf16.msra.mxu0 0
        %818 = vmatpush.bf16.msra.mxu0 0
        %819 = vmatpush.bf16.msra.mxu0 0
        %820 = vmatpush.bf16.msra.mxu0 0
        %821 = vmatpush.bf16.msra.mxu0 0
        %822 = vmatpush.bf16.msra.mxu0 %v807
        %823 = vmatpush.bf16.msra.mxu0 %v806
        %824 = vmatmul.bf16.gmra.mxu0 %v811
        %v825 = vpop.f32.mrf.mxu0
        %v826 = vadd.f32 0.0, %v825
        %v827 = vpop.f32.mrf.mxu0
        %v828 = vadd.f32 0.0, %v827
        %829 = vmatmul.bf16.gmra.mxu0 %v814
        %v830 = vpop.f32.mrf.mxu0
        %v831 = vadd.f32 0.0, %v830
        %v832 = vpop.f32.mrf.mxu0
        %v833 = vadd.f32 0.0, %v832
        %834 = vdwg.mxu0
        %835 = vrot.lane.b32.xlu0 %v701, 120
        %v836 = vpop.permute.xlu0 %835
        %837 = vrot.lane.b32.xlu0 %v702, 120
        %v838 = vpop.permute.xlu0 %837
        %839 = vrot.lane.b32.xlu0 %v701, 56
        %v840 = vpop.permute.xlu0 %839
        %841 = vrot.lane.b32.xlu0 %v702, 56
        %v842 = vpop.permute.xlu0 %841
        %v844 = vsel %vm707, %v836, 0
        %v847 = vsel %vm707, %v838, 0
        %v850 = vsel %vm707, %v840, 0
        %v853 = vsel %vm707, %v842, 0
        %855 = vmatpush.bf16.xpose.msra.mxu0 0
        %856 = vmatpush.bf16.xpose.msra.mxu0 0
        %857 = vmatpush.bf16.xpose.msra.mxu0 0
        %858 = vmatpush.bf16.xpose.msra.mxu0 0
        %859 = vmatpush.bf16.xpose.msra.mxu0 0
        %860 = vmatpush.bf16.xpose.msra.mxu0 0
        %861 = vmatpush.bf16.xpose.msra.mxu0 %v853
        %862 = vmatpush.bf16.xpose.msra.mxu0 %v850
        %863 = vmatmul.bf16.gmra.mxu0 %v844
        %v864 = vpop.f32.mrf.mxu0
        %v865 = vadd.f32 0.0, %v864
        %v866 = vpop.f32.mrf.mxu0
        %v867 = vadd.f32 0.0, %v866
        %868 = vmatmul.bf16.gmra.mxu0 %v847
        %v869 = vpop.f32.mrf.mxu0
        %v870 = vadd.f32 0.0, %v869
        %v871 = vpop.f32.mrf.mxu0
        %v872 = vadd.f32 0.0, %v871
        %873 = vdwg.mxu0
        %v874 = vsel %vm739, %v865, -inf
        %875 = vmax.xlane.f32.xlu0 %v874
        %v876 = vpop.xlane.xlu0 %875
        %v877 = vsel %vm739, %v867, -inf
        %878 = vmax.xlane.f32.xlu0 %v877
        %v879 = vpop.xlane.xlu0 %878
        %v880 = vsel %vm739, %v870, -inf
        %881 = vmax.xlane.f32.xlu0 %v880
        %v882 = vpop.xlane.xlu0 %881
        %v883 = vsel %vm739, %v872, -inf
        %884 = vmax.xlane.f32.xlu0 %v883
        %v885 = vpop.xlane.xlu0 %884
        %v886 = vsub.f32 %v865, %v876
        %v887 = vsub.f32 %v867, %v879
        %v888 = vsub.f32 %v870, %v882
        %v889 = vsub.f32 %v872, %v885
        %v890 = vmul.f32 %v886, 1.442695
        %v891 = vpow.pop %v890
        %v892 = vmul.f32 %v887, 1.442695
        %v893 = vpow.pop %v892
        %v894 = vmul.f32 %v888, 1.442695
        %v895 = vpow.pop %v894
        %v896 = vmul.f32 %v889, 1.442695
        %v897 = vpow.pop %v896
        %v898 = vsel %vm739, %v891, 0.0
        %899 = vadd.xlane.f32.xlu0 %v898
        %v900 = vpop.xlane.xlu0 %899
        %v901 = vsel %vm739, %v893, 0.0
        %902 = vadd.xlane.f32.xlu0 %v901
        %v903 = vpop.xlane.xlu0 %902
        %v904 = vsel %vm739, %v895, 0.0
        %905 = vadd.xlane.f32.xlu0 %v904
        %v906 = vpop.xlane.xlu0 %905
        %v907 = vsel %vm739, %v897, 0.0
        %908 = vadd.xlane.f32.xlu0 %v907
        %v909 = vpop.xlane.xlu0 %908
        %v910 = vrcp.pop %v900
        %v911 = vrcp.pop %v903
        %v912 = vrcp.pop %v906
        %v913 = vrcp.pop %v909
        %v914 = vmul.f32 %v891, %v910
        %v915 = vmul.f32 %v893, %v911
        %v916 = vmul.f32 %v895, %v912
        %v917 = vmul.f32 %v897, %v913
        %v918 = vpack.c.bf16 %v914, %v914
        %v919 = vpack.c.bf16 %v915, %v915
        %v920 = vpack.c.bf16 %v916, %v916
        %v921 = vpack.c.bf16 %v917, %v917
        %v926 = vunpack.c.l.b16 %v918
        %v927 = vunpack.c.l.b16 %v919
        %v928 = vunpack.c.l.b16 %v920
        %v929 = vunpack.c.l.b16 %v921
        %v930 = vpack.c.b16 %v927, %v926
        %v931 = vpack.c.b16 %v929, %v928
        %932 = vrot.lane.b32.xlu0 %v806, 120
        %v933 = vpop.permute.xlu0 %932
        %934 = vrot.lane.b32.xlu0 %v807, 120
        %v935 = vpop.permute.xlu0 %934
        %v939 = vsel %vm739, %v930, 0
        %v942 = vsel %vm739, %v931, 0
        %944 = vmatpush.bf16.msra.mxu0 0
        %945 = vmatpush.bf16.msra.mxu0 0
        %946 = vmatpush.bf16.msra.mxu0 0
        %947 = vmatpush.bf16.msra.mxu0 0
        %948 = vmatpush.bf16.msra.mxu0 0
        %949 = vmatpush.bf16.msra.mxu0 0
        %950 = vmatpush.bf16.msra.mxu0 %v935
        %951 = vmatpush.bf16.msra.mxu0 %v933
        %952 = vmatmul.bf16.gmra.mxu0 %v939
        %v953 = vpop.f32.mrf.mxu0
        %v954 = vadd.f32 0.0, %v953
        %v955 = vpop.f32.mrf.mxu0
        %v956 = vadd.f32 0.0, %v955
        %957 = vmatmul.bf16.gmra.mxu0 %v942
        %v958 = vpop.f32.mrf.mxu0
        %v959 = vadd.f32 0.0, %v958
        %v960 = vpop.f32.mrf.mxu0
        %v961 = vadd.f32 0.0, %v960
        %962 = vdwg.mxu0
        %963 = vrot.lane.b32.xlu0 %v701, 112
        %v964 = vpop.permute.xlu0 %963
        %965 = vrot.lane.b32.xlu0 %v702, 112
        %v966 = vpop.permute.xlu0 %965
        %967 = vrot.lane.b32.xlu0 %v701, 48
        %v968 = vpop.permute.xlu0 %967
        %969 = vrot.lane.b32.xlu0 %v702, 48
        %v970 = vpop.permute.xlu0 %969
        %v972 = vsel %vm707, %v964, 0
        %v975 = vsel %vm707, %v966, 0
        %v978 = vsel %vm707, %v968, 0
        %v981 = vsel %vm707, %v970, 0
        %983 = vmatpush.bf16.xpose.msra.mxu0 0
        %984 = vmatpush.bf16.xpose.msra.mxu0 0
        %985 = vmatpush.bf16.xpose.msra.mxu0 0
        %986 = vmatpush.bf16.xpose.msra.mxu0 0
        %987 = vmatpush.bf16.xpose.msra.mxu0 0
        %988 = vmatpush.bf16.xpose.msra.mxu0 0
        %989 = vmatpush.bf16.xpose.msra.mxu0 %v981
        %990 = vmatpush.bf16.xpose.msra.mxu0 %v978
        %991 = vmatmul.bf16.gmra.mxu0 %v972
        %v992 = vpop.f32.mrf.mxu0
        %v993 = vadd.f32 0.0, %v992
        %v994 = vpop.f32.mrf.mxu0
        %v995 = vadd.f32 0.0, %v994
        %996 = vmatmul.bf16.gmra.mxu0 %v975
        %v997 = vpop.f32.mrf.mxu0
        %v998 = vadd.f32 0.0, %v997
        %v999 = vpop.f32.mrf.mxu0
        %v1000 = vadd.f32 0.0, %v999
        %1001 = vdwg.mxu0
        %v1002 = vsel %vm739, %v993, -inf
        %1003 = vmax.xlane.f32.xlu0 %v1002
        %v1004 = vpop.xlane.xlu0 %1003
        %v1005 = vsel %vm739, %v995, -inf
        %1006 = vmax.xlane.f32.xlu0 %v1005
        %v1007 = vpop.xlane.xlu0 %1006
        %v1008 = vsel %vm739, %v998, -inf
        %1009 = vmax.xlane.f32.xlu0 %v1008
        %v1010 = vpop.xlane.xlu0 %1009
        %v1011 = vsel %vm739, %v1000, -inf
        %1012 = vmax.xlane.f32.xlu0 %v1011
        %v1013 = vpop.xlane.xlu0 %1012
        %v1014 = vsub.f32 %v993, %v1004
        %v1015 = vsub.f32 %v995, %v1007
        %v1016 = vsub.f32 %v998, %v1010
        %v1017 = vsub.f32 %v1000, %v1013
        %v1018 = vmul.f32 %v1014, 1.442695
        %v1019 = vpow.pop %v1018
        %v1020 = vmul.f32 %v1015, 1.442695
        %v1021 = vpow.pop %v1020
        %v1022 = vmul.f32 %v1016, 1.442695
        %v1023 = vpow.pop %v1022
        %v1024 = vmul.f32 %v1017, 1.442695
        %v1025 = vpow.pop %v1024
        %v1026 = vsel %vm739, %v1019, 0.0
        %1027 = vadd.xlane.f32.xlu0 %v1026
        %v1028 = vpop.xlane.xlu0 %1027
        %v1029 = vsel %vm739, %v1021, 0.0
        %1030 = vadd.xlane.f32.xlu0 %v1029
        %v1031 = vpop.xlane.xlu0 %1030
        %v1032 = vsel %vm739, %v1023, 0.0
        %1033 = vadd.xlane.f32.xlu0 %v1032
        %v1034 = vpop.xlane.xlu0 %1033
        %v1035 = vsel %vm739, %v1025, 0.0
        %1036 = vadd.xlane.f32.xlu0 %v1035
        %v1037 = vpop.xlane.xlu0 %1036
        %v1038 = vrcp.pop %v1028
        %v1039 = vrcp.pop %v1031
        %v1040 = vrcp.pop %v1034
        %v1041 = vrcp.pop %v1037
        %v1042 = vmul.f32 %v1019, %v1038
        %v1043 = vmul.f32 %v1021, %v1039
        %v1044 = vmul.f32 %v1023, %v1040
        %v1045 = vmul.f32 %v1025, %v1041
        %v1046 = vpack.c.bf16 %v1042, %v1042
        %v1047 = vpack.c.bf16 %v1043, %v1043
        %v1048 = vpack.c.bf16 %v1044, %v1044
        %v1049 = vpack.c.bf16 %v1045, %v1045
        %v1054 = vunpack.c.l.b16 %v1046
        %v1055 = vunpack.c.l.b16 %v1047
        %v1056 = vunpack.c.l.b16 %v1048
        %v1057 = vunpack.c.l.b16 %v1049
        %v1058 = vpack.c.b16 %v1055, %v1054
        %v1059 = vpack.c.b16 %v1057, %v1056
        %1060 = vrot.lane.b32.xlu0 %v806, 112
        %v1061 = vpop.permute.xlu0 %1060
        %1062 = vrot.lane.b32.xlu0 %v807, 112
        %v1063 = vpop.permute.xlu0 %1062
        %v1067 = vsel %vm739, %v1058, 0
        %v1070 = vsel %vm739, %v1059, 0
        %1072 = vmatpush.bf16.msra.mxu0 0
        %1073 = vmatpush.bf16.msra.mxu0 0
        %1074 = vmatpush.bf16.msra.mxu0 0
        %1075 = vmatpush.bf16.msra.mxu0 0
        %1076 = vmatpush.bf16.msra.mxu0 0
        %1077 = vmatpush.bf16.msra.mxu0 0
        %1078 = vmatpush.bf16.msra.mxu0 %v1063
        %1079 = vmatpush.bf16.msra.mxu0 %v1061
        %1080 = vmatmul.bf16.gmra.mxu0 %v1067
        %v1081 = vpop.f32.mrf.mxu0
        %v1082 = vadd.f32 0.0, %v1081
        %v1083 = vpop.f32.mrf.mxu0
        %v1084 = vadd.f32 0.0, %v1083
        %1085 = vmatmul.bf16.gmra.mxu0 %v1070
        %v1086 = vpop.f32.mrf.mxu0
        %v1087 = vadd.f32 0.0, %v1086
        %v1088 = vpop.f32.mrf.mxu0
        %v1089 = vadd.f32 0.0, %v1088
        %1090 = vdwg.mxu0
        %1091 = vrot.lane.b32.xlu0 %v701, 104
        %v1092 = vpop.permute.xlu0 %1091
        %1093 = vrot.lane.b32.xlu0 %v702, 104
        %v1094 = vpop.permute.xlu0 %1093
        %1095 = vrot.lane.b32.xlu0 %v701, 40
        %v1096 = vpop.permute.xlu0 %1095
        %1097 = vrot.lane.b32.xlu0 %v702, 40
        %v1098 = vpop.permute.xlu0 %1097
        %v1100 = vsel %vm707, %v1092, 0
        %v1103 = vsel %vm707, %v1094, 0
        %v1106 = vsel %vm707, %v1096, 0
        %v1109 = vsel %vm707, %v1098, 0
        %1111 = vmatpush.bf16.xpose.msra.mxu0 0
        %1112 = vmatpush.bf16.xpose.msra.mxu0 0
        %1113 = vmatpush.bf16.xpose.msra.mxu0 0
        %1114 = vmatpush.bf16.xpose.msra.mxu0 0
        %1115 = vmatpush.bf16.xpose.msra.mxu0 0
        %1116 = vmatpush.bf16.xpose.msra.mxu0 0
        %1117 = vmatpush.bf16.xpose.msra.mxu0 %v1109
        %1118 = vmatpush.bf16.xpose.msra.mxu0 %v1106
        %1119 = vmatmul.bf16.gmra.mxu0 %v1100
        %v1120 = vpop.f32.mrf.mxu0
        %v1121 = vadd.f32 0.0, %v1120
        %v1122 = vpop.f32.mrf.mxu0
        %v1123 = vadd.f32 0.0, %v1122
        %1124 = vmatmul.bf16.gmra.mxu0 %v1103
        %v1125 = vpop.f32.mrf.mxu0
        %v1126 = vadd.f32 0.0, %v1125
        %v1127 = vpop.f32.mrf.mxu0
        %v1128 = vadd.f32 0.0, %v1127
        %1129 = vdwg.mxu0
        %v1130 = vsel %vm739, %v1121, -inf
        %1131 = vmax.xlane.f32.xlu0 %v1130
        %v1132 = vpop.xlane.xlu0 %1131
        %v1133 = vsel %vm739, %v1123, -inf
        %1134 = vmax.xlane.f32.xlu0 %v1133
        %v1135 = vpop.xlane.xlu0 %1134
        %v1136 = vsel %vm739, %v1126, -inf
        %1137 = vmax.xlane.f32.xlu0 %v1136
        %v1138 = vpop.xlane.xlu0 %1137
        %v1139 = vsel %vm739, %v1128, -inf
        %1140 = vmax.xlane.f32.xlu0 %v1139
        %v1141 = vpop.xlane.xlu0 %1140
        %v1142 = vsub.f32 %v1121, %v1132
        %v1143 = vsub.f32 %v1123, %v1135
        %v1144 = vsub.f32 %v1126, %v1138
        %v1145 = vsub.f32 %v1128, %v1141
        %v1146 = vmul.f32 %v1142, 1.442695
        %v1147 = vpow.pop %v1146
        %v1148 = vmul.f32 %v1143, 1.442695
        %v1149 = vpow.pop %v1148
        %v1150 = vmul.f32 %v1144, 1.442695
        %v1151 = vpow.pop %v1150
        %v1152 = vmul.f32 %v1145, 1.442695
        %v1153 = vpow.pop %v1152
        %v1154 = vsel %vm739, %v1147, 0.0
        %1155 = vadd.xlane.f32.xlu0 %v1154
        %v1156 = vpop.xlane.xlu0 %1155
        %v1157 = vsel %vm739, %v1149, 0.0
        %1158 = vadd.xlane.f32.xlu0 %v1157
        %v1159 = vpop.xlane.xlu0 %1158
        %v1160 = vsel %vm739, %v1151, 0.0
        %1161 = vadd.xlane.f32.xlu0 %v1160
        %v1162 = vpop.xlane.xlu0 %1161
        %v1163 = vsel %vm739, %v1153, 0.0
        %1164 = vadd.xlane.f32.xlu0 %v1163
        %v1165 = vpop.xlane.xlu0 %1164
        %v1166 = vrcp.pop %v1156
        %v1167 = vrcp.pop %v1159
        %v1168 = vrcp.pop %v1162
        %v1169 = vrcp.pop %v1165
        %v1170 = vmul.f32 %v1147, %v1166
        %v1171 = vmul.f32 %v1149, %v1167
        %v1172 = vmul.f32 %v1151, %v1168
        %v1173 = vmul.f32 %v1153, %v1169
        %v1174 = vpack.c.bf16 %v1170, %v1170
        %v1175 = vpack.c.bf16 %v1171, %v1171
        %v1176 = vpack.c.bf16 %v1172, %v1172
        %v1177 = vpack.c.bf16 %v1173, %v1173
        %v1182 = vunpack.c.l.b16 %v1174
        %v1183 = vunpack.c.l.b16 %v1175
        %v1184 = vunpack.c.l.b16 %v1176
        %v1185 = vunpack.c.l.b16 %v1177
        %v1186 = vpack.c.b16 %v1183, %v1182
        %v1187 = vpack.c.b16 %v1185, %v1184
        %1188 = vrot.lane.b32.xlu0 %v806, 104
        %v1189 = vpop.permute.xlu0 %1188
        %1190 = vrot.lane.b32.xlu0 %v807, 104
        %v1191 = vpop.permute.xlu0 %1190
        %v1195 = vsel %vm739, %v1186, 0
        %v1198 = vsel %vm739, %v1187, 0
        %1200 = vmatpush.bf16.msra.mxu0 0
        %1201 = vmatpush.bf16.msra.mxu0 0
        %1202 = vmatpush.bf16.msra.mxu0 0
        %1203 = vmatpush.bf16.msra.mxu0 0
        %1204 = vmatpush.bf16.msra.mxu0 0
        %1205 = vmatpush.bf16.msra.mxu0 0
        %1206 = vmatpush.bf16.msra.mxu0 %v1191
        %1207 = vmatpush.bf16.msra.mxu0 %v1189
        %1208 = vmatmul.bf16.gmra.mxu0 %v1195
        %v1209 = vpop.f32.mrf.mxu0
        %v1210 = vadd.f32 0.0, %v1209
        %v1211 = vpop.f32.mrf.mxu0
        %v1212 = vadd.f32 0.0, %v1211
        %1213 = vmatmul.bf16.gmra.mxu0 %v1198
        %v1214 = vpop.f32.mrf.mxu0
        %v1215 = vadd.f32 0.0, %v1214
        %v1216 = vpop.f32.mrf.mxu0
        %v1217 = vadd.f32 0.0, %v1216
        %1218 = vdwg.mxu0
        %1219 = vrot.lane.b32.xlu0 %v701, 96
        %v1220 = vpop.permute.xlu0 %1219
        %1221 = vrot.lane.b32.xlu0 %v702, 96
        %v1222 = vpop.permute.xlu0 %1221
        %1223 = vrot.lane.b32.xlu0 %v701, 32
        %v1224 = vpop.permute.xlu0 %1223
        %1225 = vrot.lane.b32.xlu0 %v702, 32
        %v1226 = vpop.permute.xlu0 %1225
        %v1228 = vsel %vm707, %v1220, 0
        %v1231 = vsel %vm707, %v1222, 0
        %v1234 = vsel %vm707, %v1224, 0
        %v1237 = vsel %vm707, %v1226, 0
        %1239 = vmatpush.bf16.xpose.msra.mxu0 0
        %1240 = vmatpush.bf16.xpose.msra.mxu0 0
        %1241 = vmatpush.bf16.xpose.msra.mxu0 0
        %1242 = vmatpush.bf16.xpose.msra.mxu0 0
        %1243 = vmatpush.bf16.xpose.msra.mxu0 0
        %1244 = vmatpush.bf16.xpose.msra.mxu0 0
        %1245 = vmatpush.bf16.xpose.msra.mxu0 %v1237
        %1246 = vmatpush.bf16.xpose.msra.mxu0 %v1234
        %1247 = vmatmul.bf16.gmra.mxu0 %v1228
        %v1248 = vpop.f32.mrf.mxu0
        %v1249 = vadd.f32 0.0, %v1248
        %v1250 = vpop.f32.mrf.mxu0
        %v1251 = vadd.f32 0.0, %v1250
        %1252 = vmatmul.bf16.gmra.mxu0 %v1231
        %v1253 = vpop.f32.mrf.mxu0
        %v1254 = vadd.f32 0.0, %v1253
        %v1255 = vpop.f32.mrf.mxu0
        %v1256 = vadd.f32 0.0, %v1255
        %1257 = vdwg.mxu0
        %v1258 = vsel %vm739, %v1249, -inf
        %1259 = vmax.xlane.f32.xlu0 %v1258
        %v1260 = vpop.xlane.xlu0 %1259
        %v1261 = vsel %vm739, %v1251, -inf
        %1262 = vmax.xlane.f32.xlu0 %v1261
        %v1263 = vpop.xlane.xlu0 %1262
        %v1264 = vsel %vm739, %v1254, -inf
        %1265 = vmax.xlane.f32.xlu0 %v1264
        %v1266 = vpop.xlane.xlu0 %1265
        %v1267 = vsel %vm739, %v1256, -inf
        %1268 = vmax.xlane.f32.xlu0 %v1267
        %v1269 = vpop.xlane.xlu0 %1268
        %v1270 = vsub.f32 %v1249, %v1260
        %v1271 = vsub.f32 %v1251, %v1263
        %v1272 = vsub.f32 %v1254, %v1266
        %v1273 = vsub.f32 %v1256, %v1269
        %v1274 = vmul.f32 %v1270, 1.442695
        %v1275 = vpow.pop %v1274
        %v1276 = vmul.f32 %v1271, 1.442695
        %v1277 = vpow.pop %v1276
        %v1278 = vmul.f32 %v1272, 1.442695
        %v1279 = vpow.pop %v1278
        %v1280 = vmul.f32 %v1273, 1.442695
        %v1281 = vpow.pop %v1280
        %v1282 = vsel %vm739, %v1275, 0.0
        %1283 = vadd.xlane.f32.xlu0 %v1282
        %v1284 = vpop.xlane.xlu0 %1283
        %v1285 = vsel %vm739, %v1277, 0.0
        %1286 = vadd.xlane.f32.xlu0 %v1285
        %v1287 = vpop.xlane.xlu0 %1286
        %v1288 = vsel %vm739, %v1279, 0.0
        %1289 = vadd.xlane.f32.xlu0 %v1288
        %v1290 = vpop.xlane.xlu0 %1289
        %v1291 = vsel %vm739, %v1281, 0.0
        %1292 = vadd.xlane.f32.xlu0 %v1291
        %v1293 = vpop.xlane.xlu0 %1292
        %v1294 = vrcp.pop %v1284
        %v1295 = vrcp.pop %v1287
        %v1296 = vrcp.pop %v1290
        %v1297 = vrcp.pop %v1293
        %v1298 = vmul.f32 %v1275, %v1294
        %v1299 = vmul.f32 %v1277, %v1295
        %v1300 = vmul.f32 %v1279, %v1296
        %v1301 = vmul.f32 %v1281, %v1297
        %v1302 = vpack.c.bf16 %v1298, %v1298
        %v1303 = vpack.c.bf16 %v1299, %v1299
        %v1304 = vpack.c.bf16 %v1300, %v1300
        %v1305 = vpack.c.bf16 %v1301, %v1301
        %v1310 = vunpack.c.l.b16 %v1302
        %v1311 = vunpack.c.l.b16 %v1303
        %v1312 = vunpack.c.l.b16 %v1304
        %v1313 = vunpack.c.l.b16 %v1305
        %v1314 = vpack.c.b16 %v1311, %v1310
        %v1315 = vpack.c.b16 %v1313, %v1312
        %1316 = vrot.lane.b32.xlu0 %v806, 96
        %v1317 = vpop.permute.xlu0 %1316
        %1318 = vrot.lane.b32.xlu0 %v807, 96
        %v1319 = vpop.permute.xlu0 %1318
        %v1323 = vsel %vm739, %v1314, 0
        %v1326 = vsel %vm739, %v1315, 0
        %1328 = vmatpush.bf16.msra.mxu0 0
        %1329 = vmatpush.bf16.msra.mxu0 0
        %1330 = vmatpush.bf16.msra.mxu0 0
        %1331 = vmatpush.bf16.msra.mxu0 0
        %1332 = vmatpush.bf16.msra.mxu0 0
        %1333 = vmatpush.bf16.msra.mxu0 0
        %1334 = vmatpush.bf16.msra.mxu0 %v1319
        %1335 = vmatpush.bf16.msra.mxu0 %v1317
        %1336 = vmatmul.bf16.gmra.mxu0 %v1323
        %v1337 = vpop.f32.mrf.mxu0
        %v1338 = vadd.f32 0.0, %v1337
        %v1339 = vpop.f32.mrf.mxu0
        %v1340 = vadd.f32 0.0, %v1339
        %1341 = vmatmul.bf16.gmra.mxu0 %v1326
        %v1342 = vpop.f32.mrf.mxu0
        %v1343 = vadd.f32 0.0, %v1342
        %v1344 = vpop.f32.mrf.mxu0
        %v1345 = vadd.f32 0.0, %v1344
        %1346 = vdwg.mxu0
        %1347 = vrot.lane.b32.xlu0 %v701, 88
        %v1348 = vpop.permute.xlu0 %1347
        %1349 = vrot.lane.b32.xlu0 %v702, 88
        %v1350 = vpop.permute.xlu0 %1349
        %1351 = vrot.lane.b32.xlu0 %v701, 24
        %v1352 = vpop.permute.xlu0 %1351
        %1353 = vrot.lane.b32.xlu0 %v702, 24
        %v1354 = vpop.permute.xlu0 %1353
        %v1356 = vsel %vm707, %v1348, 0
        %v1359 = vsel %vm707, %v1350, 0
        %v1362 = vsel %vm707, %v1352, 0
        %v1365 = vsel %vm707, %v1354, 0
        %1367 = vmatpush.bf16.xpose.msra.mxu0 0
        %1368 = vmatpush.bf16.xpose.msra.mxu0 0
        %1369 = vmatpush.bf16.xpose.msra.mxu0 0
        %1370 = vmatpush.bf16.xpose.msra.mxu0 0
        %1371 = vmatpush.bf16.xpose.msra.mxu0 0
        %1372 = vmatpush.bf16.xpose.msra.mxu0 0
        %1373 = vmatpush.bf16.xpose.msra.mxu0 %v1365
        %1374 = vmatpush.bf16.xpose.msra.mxu0 %v1362
        %1375 = vmatmul.bf16.gmra.mxu0 %v1356
        %v1376 = vpop.f32.mrf.mxu0
        %v1377 = vadd.f32 0.0, %v1376
        %v1378 = vpop.f32.mrf.mxu0
        %v1379 = vadd.f32 0.0, %v1378
        %1380 = vmatmul.bf16.gmra.mxu0 %v1359
        %v1381 = vpop.f32.mrf.mxu0
        %v1382 = vadd.f32 0.0, %v1381
        %v1383 = vpop.f32.mrf.mxu0
        %v1384 = vadd.f32 0.0, %v1383
        %1385 = vdwg.mxu0
        %v1386 = vsel %vm739, %v1377, -inf
        %1387 = vmax.xlane.f32.xlu0 %v1386
        %v1388 = vpop.xlane.xlu0 %1387
        %v1389 = vsel %vm739, %v1379, -inf
        %1390 = vmax.xlane.f32.xlu0 %v1389
        %v1391 = vpop.xlane.xlu0 %1390
        %v1392 = vsel %vm739, %v1382, -inf
        %1393 = vmax.xlane.f32.xlu0 %v1392
        %v1394 = vpop.xlane.xlu0 %1393
        %v1395 = vsel %vm739, %v1384, -inf
        %1396 = vmax.xlane.f32.xlu0 %v1395
        %v1397 = vpop.xlane.xlu0 %1396
        %v1398 = vsub.f32 %v1377, %v1388
        %v1399 = vsub.f32 %v1379, %v1391
        %v1400 = vsub.f32 %v1382, %v1394
        %v1401 = vsub.f32 %v1384, %v1397
        %v1402 = vmul.f32 %v1398, 1.442695
        %v1403 = vpow.pop %v1402
        %v1404 = vmul.f32 %v1399, 1.442695
        %v1405 = vpow.pop %v1404
        %v1406 = vmul.f32 %v1400, 1.442695
        %v1407 = vpow.pop %v1406
        %v1408 = vmul.f32 %v1401, 1.442695
        %v1409 = vpow.pop %v1408
        %v1410 = vsel %vm739, %v1403, 0.0
        %1411 = vadd.xlane.f32.xlu0 %v1410
        %v1412 = vpop.xlane.xlu0 %1411
        %v1413 = vsel %vm739, %v1405, 0.0
        %1414 = vadd.xlane.f32.xlu0 %v1413
        %v1415 = vpop.xlane.xlu0 %1414
        %v1416 = vsel %vm739, %v1407, 0.0
        %1417 = vadd.xlane.f32.xlu0 %v1416
        %v1418 = vpop.xlane.xlu0 %1417
        %v1419 = vsel %vm739, %v1409, 0.0
        %1420 = vadd.xlane.f32.xlu0 %v1419
        %v1421 = vpop.xlane.xlu0 %1420
        %v1422 = vrcp.pop %v1412
        %v1423 = vrcp.pop %v1415
        %v1424 = vrcp.pop %v1418
        %v1425 = vrcp.pop %v1421
        %v1426 = vmul.f32 %v1403, %v1422
        %v1427 = vmul.f32 %v1405, %v1423
        %v1428 = vmul.f32 %v1407, %v1424
        %v1429 = vmul.f32 %v1409, %v1425
        %v1430 = vpack.c.bf16 %v1426, %v1426
        %v1431 = vpack.c.bf16 %v1427, %v1427
        %v1432 = vpack.c.bf16 %v1428, %v1428
        %v1433 = vpack.c.bf16 %v1429, %v1429
        %v1438 = vunpack.c.l.b16 %v1430
        %v1439 = vunpack.c.l.b16 %v1431
        %v1440 = vunpack.c.l.b16 %v1432
        %v1441 = vunpack.c.l.b16 %v1433
        %v1442 = vpack.c.b16 %v1439, %v1438
        %v1443 = vpack.c.b16 %v1441, %v1440
        %1444 = vrot.lane.b32.xlu0 %v806, 88
        %v1445 = vpop.permute.xlu0 %1444
        %1446 = vrot.lane.b32.xlu0 %v807, 88
        %v1447 = vpop.permute.xlu0 %1446
        %v1451 = vsel %vm739, %v1442, 0
        %v1454 = vsel %vm739, %v1443, 0
        %1456 = vmatpush.bf16.msra.mxu0 0
        %1457 = vmatpush.bf16.msra.mxu0 0
        %1458 = vmatpush.bf16.msra.mxu0 0
        %1459 = vmatpush.bf16.msra.mxu0 0
        %1460 = vmatpush.bf16.msra.mxu0 0
        %1461 = vmatpush.bf16.msra.mxu0 0
        %1462 = vmatpush.bf16.msra.mxu0 %v1447
        %1463 = vmatpush.bf16.msra.mxu0 %v1445
        %1464 = vmatmul.bf16.gmra.mxu0 %v1451
        %v1465 = vpop.f32.mrf.mxu0
        %v1466 = vadd.f32 0.0, %v1465
        %v1467 = vpop.f32.mrf.mxu0
        %v1468 = vadd.f32 0.0, %v1467
        %1469 = vmatmul.bf16.gmra.mxu0 %v1454
        %v1470 = vpop.f32.mrf.mxu0
        %v1471 = vadd.f32 0.0, %v1470
        %v1472 = vpop.f32.mrf.mxu0
        %v1473 = vadd.f32 0.0, %v1472
        %1474 = vdwg.mxu0
        %1475 = vrot.lane.b32.xlu0 %v701, 80
        %v1476 = vpop.permute.xlu0 %1475
        %1477 = vrot.lane.b32.xlu0 %v702, 80
        %v1478 = vpop.permute.xlu0 %1477
        %1479 = vrot.lane.b32.xlu0 %v701, 16
        %v1480 = vpop.permute.xlu0 %1479
        %1481 = vrot.lane.b32.xlu0 %v702, 16
        %v1482 = vpop.permute.xlu0 %1481
        %v1484 = vsel %vm707, %v1476, 0
        %v1487 = vsel %vm707, %v1478, 0
        %v1490 = vsel %vm707, %v1480, 0
        %v1493 = vsel %vm707, %v1482, 0
        %1495 = vmatpush.bf16.xpose.msra.mxu0 0
        %1496 = vmatpush.bf16.xpose.msra.mxu0 0
        %1497 = vmatpush.bf16.xpose.msra.mxu0 0
        %1498 = vmatpush.bf16.xpose.msra.mxu0 0
        %1499 = vmatpush.bf16.xpose.msra.mxu0 0
        %1500 = vmatpush.bf16.xpose.msra.mxu0 0
        %1501 = vmatpush.bf16.xpose.msra.mxu0 %v1493
        %1502 = vmatpush.bf16.xpose.msra.mxu0 %v1490
        %1503 = vmatmul.bf16.gmra.mxu0 %v1484
        %v1504 = vpop.f32.mrf.mxu0
        %v1505 = vadd.f32 0.0, %v1504
        %v1506 = vpop.f32.mrf.mxu0
        %v1507 = vadd.f32 0.0, %v1506
        %1508 = vmatmul.bf16.gmra.mxu0 %v1487
        %v1509 = vpop.f32.mrf.mxu0
        %v1510 = vadd.f32 0.0, %v1509
        %v1511 = vpop.f32.mrf.mxu0
        %v1512 = vadd.f32 0.0, %v1511
        %1513 = vdwg.mxu0
        %v1514 = vsel %vm739, %v1505, -inf
        %1515 = vmax.xlane.f32.xlu0 %v1514
        %v1516 = vpop.xlane.xlu0 %1515
        %v1517 = vsel %vm739, %v1507, -inf
        %1518 = vmax.xlane.f32.xlu0 %v1517
        %v1519 = vpop.xlane.xlu0 %1518
        %v1520 = vsel %vm739, %v1510, -inf
        %1521 = vmax.xlane.f32.xlu0 %v1520
        %v1522 = vpop.xlane.xlu0 %1521
        %v1523 = vsel %vm739, %v1512, -inf
        %1524 = vmax.xlane.f32.xlu0 %v1523
        %v1525 = vpop.xlane.xlu0 %1524
        %v1526 = vsub.f32 %v1505, %v1516
        %v1527 = vsub.f32 %v1507, %v1519
        %v1528 = vsub.f32 %v1510, %v1522
        %v1529 = vsub.f32 %v1512, %v1525
        %v1530 = vmul.f32 %v1526, 1.442695
        %v1531 = vpow.pop %v1530
        %v1532 = vmul.f32 %v1527, 1.442695
        %v1533 = vpow.pop %v1532
        %v1534 = vmul.f32 %v1528, 1.442695
        %v1535 = vpow.pop %v1534
        %v1536 = vmul.f32 %v1529, 1.442695
        %v1537 = vpow.pop %v1536
        %v1538 = vsel %vm739, %v1531, 0.0
        %1539 = vadd.xlane.f32.xlu0 %v1538
        %v1540 = vpop.xlane.xlu0 %1539
        %v1541 = vsel %vm739, %v1533, 0.0
        %1542 = vadd.xlane.f32.xlu0 %v1541
        %v1543 = vpop.xlane.xlu0 %1542
        %v1544 = vsel %vm739, %v1535, 0.0
        %1545 = vadd.xlane.f32.xlu0 %v1544
        %v1546 = vpop.xlane.xlu0 %1545
        %v1547 = vsel %vm739, %v1537, 0.0
        %1548 = vadd.xlane.f32.xlu0 %v1547
        %v1549 = vpop.xlane.xlu0 %1548
        %v1550 = vrcp.pop %v1540
        %v1551 = vrcp.pop %v1543
        %v1552 = vrcp.pop %v1546
        %v1553 = vrcp.pop %v1549
        %v1554 = vmul.f32 %v1531, %v1550
        %v1555 = vmul.f32 %v1533, %v1551
        %v1556 = vmul.f32 %v1535, %v1552
        %v1557 = vmul.f32 %v1537, %v1553
        %v1558 = vpack.c.bf16 %v1554, %v1554
        %v1559 = vpack.c.bf16 %v1555, %v1555
        %v1560 = vpack.c.bf16 %v1556, %v1556
        %v1561 = vpack.c.bf16 %v1557, %v1557
        %v1566 = vunpack.c.l.b16 %v1558
        %v1567 = vunpack.c.l.b16 %v1559
        %v1568 = vunpack.c.l.b16 %v1560
        %v1569 = vunpack.c.l.b16 %v1561
        %v1570 = vpack.c.b16 %v1567, %v1566
        %v1571 = vpack.c.b16 %v1569, %v1568
        %1572 = vrot.lane.b32.xlu0 %v806, 80
        %v1573 = vpop.permute.xlu0 %1572
        %1574 = vrot.lane.b32.xlu0 %v807, 80
        %v1575 = vpop.permute.xlu0 %1574
        %v1579 = vsel %vm739, %v1570, 0
        %v1582 = vsel %vm739, %v1571, 0
        %1584 = vmatpush.bf16.msra.mxu0 0
        %1585 = vmatpush.bf16.msra.mxu0 0
        %1586 = vmatpush.bf16.msra.mxu0 0
        %1587 = vmatpush.bf16.msra.mxu0 0
        %1588 = vmatpush.bf16.msra.mxu0 0
        %1589 = vmatpush.bf16.msra.mxu0 0
        %1590 = vmatpush.bf16.msra.mxu0 %v1575
        %1591 = vmatpush.bf16.msra.mxu0 %v1573
        %1592 = vmatmul.bf16.gmra.mxu0 %v1579
        %v1593 = vpop.f32.mrf.mxu0
        %v1594 = vadd.f32 0.0, %v1593
        %v1595 = vpop.f32.mrf.mxu0
        %v1596 = vadd.f32 0.0, %v1595
        %1597 = vmatmul.bf16.gmra.mxu0 %v1582
        %v1598 = vpop.f32.mrf.mxu0
        %v1599 = vadd.f32 0.0, %v1598
        %v1600 = vpop.f32.mrf.mxu0
        %v1601 = vadd.f32 0.0, %v1600
        %1602 = vdwg.mxu0
        %1603 = vrot.lane.b32.xlu0 %v701, 72
        %v1604 = vpop.permute.xlu0 %1603
        %1605 = vrot.lane.b32.xlu0 %v702, 72
        %v1606 = vpop.permute.xlu0 %1605
        %1607 = vrot.lane.b32.xlu0 %v701, 8
        %v1608 = vpop.permute.xlu0 %1607
        %1609 = vrot.lane.b32.xlu0 %v702, 8
        %v1610 = vpop.permute.xlu0 %1609
        %v1612 = vsel %vm707, %v1604, 0
        %v1615 = vsel %vm707, %v1606, 0
        %v1618 = vsel %vm707, %v1608, 0
        %v1621 = vsel %vm707, %v1610, 0
        %1623 = vmatpush.bf16.xpose.msra.mxu0 0
        %1624 = vmatpush.bf16.xpose.msra.mxu0 0
        %1625 = vmatpush.bf16.xpose.msra.mxu0 0
        %1626 = vmatpush.bf16.xpose.msra.mxu0 0
        %1627 = vmatpush.bf16.xpose.msra.mxu0 0
        %1628 = vmatpush.bf16.xpose.msra.mxu0 0
        %1629 = vmatpush.bf16.xpose.msra.mxu0 %v1621
        %1630 = vmatpush.bf16.xpose.msra.mxu0 %v1618
        %1631 = vmatmul.bf16.gmra.mxu0 %v1612
        %v1632 = vpop.f32.mrf.mxu0
        %v1633 = vadd.f32 0.0, %v1632
        %v1634 = vpop.f32.mrf.mxu0
        %v1635 = vadd.f32 0.0, %v1634
        %1636 = vmatmul.bf16.gmra.mxu0 %v1615
        %v1637 = vpop.f32.mrf.mxu0
        %v1638 = vadd.f32 0.0, %v1637
        %v1639 = vpop.f32.mrf.mxu0
        %v1640 = vadd.f32 0.0, %v1639
        %1641 = vdwg.mxu0
        %v1642 = vsel %vm739, %v1633, -inf
        %1643 = vmax.xlane.f32.xlu0 %v1642
        %v1644 = vpop.xlane.xlu0 %1643
        %v1645 = vsel %vm739, %v1635, -inf
        %1646 = vmax.xlane.f32.xlu0 %v1645
        %v1647 = vpop.xlane.xlu0 %1646
        %v1648 = vsel %vm739, %v1638, -inf
        %1649 = vmax.xlane.f32.xlu0 %v1648
        %v1650 = vpop.xlane.xlu0 %1649
        %v1651 = vsel %vm739, %v1640, -inf
        %1652 = vmax.xlane.f32.xlu0 %v1651
        %v1653 = vpop.xlane.xlu0 %1652
        %v1654 = vsub.f32 %v1633, %v1644
        %v1655 = vsub.f32 %v1635, %v1647
        %v1656 = vsub.f32 %v1638, %v1650
        %v1657 = vsub.f32 %v1640, %v1653
        %v1658 = vmul.f32 %v1654, 1.442695
        %v1659 = vpow.pop %v1658
        %v1660 = vmul.f32 %v1655, 1.442695
        %v1661 = vpow.pop %v1660
        %v1662 = vmul.f32 %v1656, 1.442695
        %v1663 = vpow.pop %v1662
        %v1664 = vmul.f32 %v1657, 1.442695
        %v1665 = vpow.pop %v1664
        %v1666 = vsel %vm739, %v1659, 0.0
        %1667 = vadd.xlane.f32.xlu0 %v1666
        %v1668 = vpop.xlane.xlu0 %1667
        %v1669 = vsel %vm739, %v1661, 0.0
        %1670 = vadd.xlane.f32.xlu0 %v1669
        %v1671 = vpop.xlane.xlu0 %1670
        %v1672 = vsel %vm739, %v1663, 0.0
        %1673 = vadd.xlane.f32.xlu0 %v1672
        %v1674 = vpop.xlane.xlu0 %1673
        %v1675 = vsel %vm739, %v1665, 0.0
        %1676 = vadd.xlane.f32.xlu0 %v1675
        %v1677 = vpop.xlane.xlu0 %1676
        %v1678 = vrcp.pop %v1668
        %v1679 = vrcp.pop %v1671
        %v1680 = vrcp.pop %v1674
        %v1681 = vrcp.pop %v1677
        %v1682 = vmul.f32 %v1659, %v1678
        %v1683 = vmul.f32 %v1661, %v1679
        %v1684 = vmul.f32 %v1663, %v1680
        %v1685 = vmul.f32 %v1665, %v1681
        %v1686 = vpack.c.bf16 %v1682, %v1682
        %v1687 = vpack.c.bf16 %v1683, %v1683
        %v1688 = vpack.c.bf16 %v1684, %v1684
        %v1689 = vpack.c.bf16 %v1685, %v1685
        %v1694 = vunpack.c.l.b16 %v1686
        %v1695 = vunpack.c.l.b16 %v1687
        %v1696 = vunpack.c.l.b16 %v1688
        %v1697 = vunpack.c.l.b16 %v1689
        %v1698 = vpack.c.b16 %v1695, %v1694
        %v1699 = vpack.c.b16 %v1697, %v1696
        %1700 = vrot.lane.b32.xlu0 %v806, 72
        %v1701 = vpop.permute.xlu0 %1700
        %1702 = vrot.lane.b32.xlu0 %v807, 72
        %v1703 = vpop.permute.xlu0 %1702
        %v1707 = vsel %vm739, %v1698, 0
        %v1710 = vsel %vm739, %v1699, 0
        %1712 = vmatpush.bf16.msra.mxu0 0
        %1713 = vmatpush.bf16.msra.mxu0 0
        %1714 = vmatpush.bf16.msra.mxu0 0
        %1715 = vmatpush.bf16.msra.mxu0 0
        %1716 = vmatpush.bf16.msra.mxu0 0
        %1717 = vmatpush.bf16.msra.mxu0 0
        %1718 = vmatpush.bf16.msra.mxu0 %v1703
        %1719 = vmatpush.bf16.msra.mxu0 %v1701
        %1720 = vmatmul.bf16.gmra.mxu0 %v1707
        %v1721 = vpop.f32.mrf.mxu0
        %v1722 = vadd.f32 0.0, %v1721
        %v1723 = vpop.f32.mrf.mxu0
        %v1724 = vadd.f32 0.0, %v1723
        %1725 = vmatmul.bf16.gmra.mxu0 %v1710
        %v1726 = vpop.f32.mrf.mxu0
        %v1727 = vadd.f32 0.0, %v1726
        %v1728 = vpop.f32.mrf.mxu0
        %v1729 = vadd.f32 0.0, %v1728
        %1730 = vdwg.mxu0
        %1735 = vrot.lane.b32.xlu0 %v954, 8
        %v1736 = vpop.permute.xlu0 %1735
        %1737 = vrot.lane.b32.xlu0 %v956, 8
        %v1738 = vpop.permute.xlu0 %1737
        %1739 = vrot.lane.b32.xlu0 %v959, 8
        %v1740 = vpop.permute.xlu0 %1739
        %1741 = vrot.lane.b32.xlu0 %v961, 8
        %v1742 = vpop.permute.xlu0 %1741
        %1751 = vrot.lane.b32.xlu0 %v1082, 16
        %v1752 = vpop.permute.xlu0 %1751
        %1753 = vrot.lane.b32.xlu0 %v1084, 16
        %v1754 = vpop.permute.xlu0 %1753
        %1755 = vrot.lane.b32.xlu0 %v1087, 16
        %v1756 = vpop.permute.xlu0 %1755
        %1757 = vrot.lane.b32.xlu0 %v1089, 16
        %v1758 = vpop.permute.xlu0 %1757
        %1767 = vrot.lane.b32.xlu0 %v1210, 24
        %v1768 = vpop.permute.xlu0 %1767
        %1769 = vrot.lane.b32.xlu0 %v1212, 24
        %v1770 = vpop.permute.xlu0 %1769
        %1771 = vrot.lane.b32.xlu0 %v1215, 24
        %v1772 = vpop.permute.xlu0 %1771
        %1773 = vrot.lane.b32.xlu0 %v1217, 24
        %v1774 = vpop.permute.xlu0 %1773
        %1783 = vrot.lane.b32.xlu0 %v1338, 32
        %v1784 = vpop.permute.xlu0 %1783
        %1785 = vrot.lane.b32.xlu0 %v1340, 32
        %v1786 = vpop.permute.xlu0 %1785
        %1787 = vrot.lane.b32.xlu0 %v1343, 32
        %v1788 = vpop.permute.xlu0 %1787
        %1789 = vrot.lane.b32.xlu0 %v1345, 32
        %v1790 = vpop.permute.xlu0 %1789
        %1799 = vrot.lane.b32.xlu0 %v1466, 40
        %v1800 = vpop.permute.xlu0 %1799
        %1801 = vrot.lane.b32.xlu0 %v1468, 40
        %v1802 = vpop.permute.xlu0 %1801
        %1803 = vrot.lane.b32.xlu0 %v1471, 40
        %v1804 = vpop.permute.xlu0 %1803
        %1805 = vrot.lane.b32.xlu0 %v1473, 40
        %v1806 = vpop.permute.xlu0 %1805
        %1815 = vrot.lane.b32.xlu0 %v1594, 48
        %v1816 = vpop.permute.xlu0 %1815
        %1817 = vrot.lane.b32.xlu0 %v1596, 48
        %v1818 = vpop.permute.xlu0 %1817
        %1819 = vrot.lane.b32.xlu0 %v1599, 48
        %v1820 = vpop.permute.xlu0 %1819
        %1821 = vrot.lane.b32.xlu0 %v1601, 48
        %v1822 = vpop.permute.xlu0 %1821
        %1831 = vrot.lane.b32.xlu0 %v1722, 56
        %v1832 = vpop.permute.xlu0 %1831
        %1833 = vrot.lane.b32.xlu0 %v1724, 56
        %v1834 = vpop.permute.xlu0 %1833
        %1835 = vrot.lane.b32.xlu0 %v1727, 56
        %v1836 = vpop.permute.xlu0 %1835
        %1837 = vrot.lane.b32.xlu0 %v1729, 56
        %v1838 = vpop.permute.xlu0 %1837
        %v1843 = vsel %vm707, %v826, %v1736
        %v1844 = vsel %vm707, %v828, %v1738
        %v1845 = vsel %vm707, %v831, %v1740
        %v1846 = vsel %vm707, %v833, %v1742
        %vm1847 = vcmask 130048
        %v1848 = vsel %vm1847, %v1843, %v1752
        %v1849 = vsel %vm1847, %v1844, %v1754
        %v1850 = vsel %vm1847, %v1845, %v1756
        %v1851 = vsel %vm1847, %v1846, %v1758
        %vm1852 = vcmask 195584
        %v1853 = vsel %vm1852, %v1848, %v1768
        %v1854 = vsel %vm1852, %v1849, %v1770
        %v1855 = vsel %vm1852, %v1850, %v1772
        %v1856 = vsel %vm1852, %v1851, %v1774
        %v1857 = vsel %vm739, %v1853, %v1784
        %v1858 = vsel %vm739, %v1854, %v1786
        %v1859 = vsel %vm739, %v1855, %v1788
        %v1860 = vsel %vm739, %v1856, %v1790
        %vm1861 = vcmask 326656
        %v1862 = vsel %vm1861, %v1857, %v1800
        %v1863 = vsel %vm1861, %v1858, %v1802
        %v1864 = vsel %vm1861, %v1859, %v1804
        %v1865 = vsel %vm1861, %v1860, %v1806
        %vm1866 = vcmask 392192
        %v1867 = vsel %vm1866, %v1862, %v1816
        %v1868 = vsel %vm1866, %v1863, %v1818
        %v1869 = vsel %vm1866, %v1864, %v1820
        %v1870 = vsel %vm1866, %v1865, %v1822
        %vm1871 = vcmask 457728
        %v1872 = vsel %vm1871, %v1867, %v1832
        %v1873 = vsel %vm1871, %v1868, %v1834
        %v1874 = vsel %vm1871, %v1869, %v1836
        %v1875 = vsel %vm1871, %v1870, %v1838
        %v1876 = vpack.c.bf16 %v1873, %v1872
        %v1877 = vpack.c.bf16 %v1875, %v1874
        %v1878 = vld [vmem:[%s3] sm:$0xf]
        %v1879 = vld [vmem:[%s3 + $0x4] sm:$0xf]
        %v1880 = vld [vmem:[%s3 + $0x8] sm:$0xf]
        %v1881 = vld [vmem:[%s3 + $0xc] sm:$0xf]
        %v1882 = vld [vmem:[%s3 + $0x10] sm:$0xf]
        %v1883 = vld [vmem:[%s3 + $0x14] sm:$0xf]
        %v1884 = vld [vmem:[%s3 + $0x18] sm:$0xf]
        %v1885 = vld [vmem:[%s3 + $0x1c] sm:$0xf]
        %v1886 = vld [vmem:[%s4] sm:$0x1]
        %v1888 = vperm.slane %v1886, 0
        %v1898 = vunpack.c.l.b16 %v1878
        %v1899 = vunpack.c.l.b16 %v1879
        %v1900 = vunpack.c.l.b16 %v1880
        %v1901 = vunpack.c.l.b16 %v1881
        %v1902 = vunpack.c.l.b16 %v1882
        %v1903 = vunpack.c.l.b16 %v1883
        %v1904 = vunpack.c.l.b16 %v1884
        %v1905 = vunpack.c.l.b16 %v1885
        %v1906 = vpack.c.b16 %v1899, %v1898
        %v1907 = vpack.c.b16 %v1901, %v1900
        %v1908 = vpack.c.b16 %v1903, %v1902
        %v1909 = vpack.c.b16 %v1905, %v1904
        %v1915 = vsel %vm640, %v1876, 0
        %v1918 = vsel %vm640, %v1877, 0
        %1920 = vmatpush.bf16.msra.mxu0 0
        %1921 = vmatpush.bf16.msra.mxu0 0
        %1922 = vmatpush.bf16.msra.mxu0 0
        %1923 = vmatpush.bf16.msra.mxu0 0
        %1924 = vmatpush.bf16.msra.mxu0 %v1909
        %1925 = vmatpush.bf16.msra.mxu0 %v1908
        %1926 = vmatpush.bf16.msra.mxu0 %v1907
        %1927 = vmatpush.bf16.msra.mxu0 %v1906
        %1928 = vmatmul.bf16.gmra.mxu0 %v1915
        %v1929 = vpop.f32.mrf.mxu0
        %v1930 = vadd.f32 %v1888, %v1929
        %v1931 = vpop.f32.mrf.mxu0
        %v1932 = vadd.f32 %v1888, %v1931
        %1933 = vmatmul.bf16.gmra.mxu0 %v1918
        %v1934 = vpop.f32.mrf.mxu0
        %v1935 = vadd.f32 %v1888, %v1934
        %v1936 = vpop.f32.mrf.mxu0
        %v1937 = vadd.f32 %v1888, %v1936
        %1938 = vdwg.mxu0
        %v1939 = vadd.f32 %v580, %v1930
        %v1940 = vadd.f32 %v581, %v1932
        %v1941 = vadd.f32 %v582, %v1935
        %v1942 = vadd.f32 %v583, %v1937
        %v1943 = vsel %vm640, %v1939, 0.0
        %1944 = vadd.xlane.f32.xlu0 %v1943
        %v1945 = vpop.xlane.xlu0 %1944
        %v1946 = vsel %vm640, %v1940, 0.0
        %1947 = vadd.xlane.f32.xlu0 %v1946
        %v1948 = vpop.xlane.xlu0 %1947
        %v1949 = vsel %vm640, %v1941, 0.0
        %1950 = vadd.xlane.f32.xlu0 %v1949
        %v1951 = vpop.xlane.xlu0 %1950
        %v1952 = vsel %vm640, %v1942, 0.0
        %1953 = vadd.xlane.f32.xlu0 %v1952
        %v1954 = vpop.xlane.xlu0 %1953
        %v1955 = vrcp.pop 64.0
        %v1956 = vmul.f32 64.0, %v1955
        %v1957 = vsub.f32 1.0, %v1956
        %v1958 = vmul.f32 %v1955, %v1957
        %v1959 = vadd.f32 %v1955, %v1958
        %vm1960 = vweird.f32 %v1955
        %v1961 = vsel %vm1960, %v1955, %v1959
        %v1962 = vmul.f32 %v1945, %v1961
        %v1963 = vmul.f32 %v1948, %v1961
        %v1964 = vmul.f32 %v1951, %v1961
        %v1965 = vmul.f32 %v1954, %v1961
        %v1966 = vsub.f32 %v1939, %v1962
        %v1967 = vsub.f32 %v1940, %v1963
        %v1968 = vsub.f32 %v1941, %v1964
        %v1969 = vsub.f32 %v1942, %v1965
        %v1970 = vmul.f32 %v1966, %v1966
        %v1971 = vmul.f32 %v1967, %v1967
        %v1972 = vmul.f32 %v1968, %v1968
        %v1973 = vmul.f32 %v1969, %v1969
        %v1974 = vsel %vm640, %v1970, 0.0
        %1975 = vadd.xlane.f32.xlu0 %v1974
        %v1976 = vpop.xlane.xlu0 %1975
        %v1977 = vsel %vm640, %v1971, 0.0
        %1978 = vadd.xlane.f32.xlu0 %v1977
        %v1979 = vpop.xlane.xlu0 %1978
        %v1980 = vsel %vm640, %v1972, 0.0
        %1981 = vadd.xlane.f32.xlu0 %v1980
        %v1982 = vpop.xlane.xlu0 %1981
        %v1983 = vsel %vm640, %v1973, 0.0
        %1984 = vadd.xlane.f32.xlu0 %v1983
        %v1985 = vpop.xlane.xlu0 %1984
        %v1986 = vmul.f32 %v1976, %v1961
        %v1987 = vmul.f32 %v1979, %v1961
        %v1988 = vmul.f32 %v1982, %v1961
        %v1989 = vmul.f32 %v1985, %v1961
        %v1990 = vadd.f32 %v1986, 1e-05
        %v1991 = vadd.f32 %v1987, 1e-05
        %v1992 = vadd.f32 %v1988, 1e-05
        %v1993 = vadd.f32 %v1989, 1e-05
        %v1994 = vrsqrt.pop %v1990
        %v1995 = vmul.f32 %v1994, %v1990
        %v1996 = vmul.f32 %v1995, %v1994
        %v1997 = vmul.f32 0.5, %v1996
        %v1998 = vsub.f32 1.5, %v1997
        %v1999 = vmul.f32 %v1994, %v1998
        %vm2000 = vweird.f32 %v1990
        %vm2001 = vweird.f32 %v1994
        %vm2002 = vmor %vm2000, %vm2001
        %v2003 = vsel %vm2002, %v1994, %v1999
        %v2004 = vrsqrt.pop %v1991
        %v2005 = vmul.f32 %v2004, %v1991
        %v2006 = vmul.f32 %v2005, %v2004
        %v2007 = vmul.f32 0.5, %v2006
        %v2008 = vsub.f32 1.5, %v2007
        %v2009 = vmul.f32 %v2004, %v2008
        %vm2010 = vweird.f32 %v1991
        %vm2011 = vweird.f32 %v2004
        %vm2012 = vmor %vm2010, %vm2011
        %v2013 = vsel %vm2012, %v2004, %v2009
        %v2014 = vrsqrt.pop %v1992
        %v2015 = vmul.f32 %v2014, %v1992
        %v2016 = vmul.f32 %v2015, %v2014
        %v2017 = vmul.f32 0.5, %v2016
        %v2018 = vsub.f32 1.5, %v2017
        %v2019 = vmul.f32 %v2014, %v2018
        %vm2020 = vweird.f32 %v1992
        %vm2021 = vweird.f32 %v2014
        %vm2022 = vmor %vm2020, %vm2021
        %v2023 = vsel %vm2022, %v2014, %v2019
        %v2024 = vrsqrt.pop %v1993
        %v2025 = vmul.f32 %v2024, %v1993
        %v2026 = vmul.f32 %v2025, %v2024
        %v2027 = vmul.f32 0.5, %v2026
        %v2028 = vsub.f32 1.5, %v2027
        %v2029 = vmul.f32 %v2024, %v2028
        %vm2030 = vweird.f32 %v1993
        %vm2031 = vweird.f32 %v2024
        %vm2032 = vmor %vm2030, %vm2031
        %v2033 = vsel %vm2032, %v2024, %v2029
        %v2034 = vmul.f32 %v1966, %v2003
        %v2035 = vmul.f32 %v1967, %v2013
        %v2036 = vmul.f32 %v1968, %v2023
        %v2037 = vmul.f32 %v1969, %v2033
        %v2038 = vld [vmem:[#allocation10] sm:$0x1]
        %v2040 = vperm.slane %v2038, 0
        %v2042 = vmul.f32 %v2034, %v2040
        %v2043 = vmul.f32 %v2035, %v2040
        %v2044 = vmul.f32 %v2036, %v2040
        %v2045 = vmul.f32 %v2037, %v2040
        %v2046 = vld [vmem:[#allocation11] sm:$0x1]
        %v2048 = vperm.slane %v2046, 0
        %v2050 = vadd.f32 %v2042, %v2048
        %v2051 = vadd.f32 %v2043, %v2048
        %v2052 = vadd.f32 %v2044, %v2048
        %v2053 = vadd.f32 %v2045, %v2048
        %v2054 = vpack.c.bf16 %v2051, %v2050
        %v2055 = vpack.c.bf16 %v2053, %v2052
        %v2056 = vld [vmem:[#allocation5] sm:$0xf]
        %v2057 = vld [vmem:[#allocation5 + $0x4] sm:$0xf]
        %v2058 = vld [vmem:[#allocation5 + $0x8] sm:$0xf]
        %v2059 = vld [vmem:[#allocation5 + $0xc] sm:$0xf]
        %v2060 = vld [vmem:[#allocation5 + $0x10] sm:$0xf]
        %v2061 = vld [vmem:[#allocation5 + $0x14] sm:$0xf]
        %v2062 = vld [vmem:[#allocation5 + $0x18] sm:$0xf]
        %v2063 = vld [vmem:[#allocation5 + $0x1c] sm:$0xf]
        %v2064 = vld [vmem:[#allocation7] sm:$0x1]
        %v2066 = vperm.slane %v2064, 0
        %v2076 = vunpack.c.l.b16 %v2056
        %v2077 = vunpack.c.l.b16 %v2057
        %v2078 = vunpack.c.l.b16 %v2058
        %v2079 = vunpack.c.l.b16 %v2059
        %v2080 = vunpack.c.l.b16 %v2060
        %v2081 = vunpack.c.l.b16 %v2061
        %v2082 = vunpack.c.l.b16 %v2062
        %v2083 = vunpack.c.l.b16 %v2063
        %v2084 = vpack.c.b16 %v2077, %v2076
        %v2085 = vpack.c.b16 %v2079, %v2078
        %v2086 = vpack.c.b16 %v2081, %v2080
        %v2087 = vpack.c.b16 %v2083, %v2082
        %v2093 = vsel %vm640, %v2054, 0
        %v2096 = vsel %vm640, %v2055, 0
        %2098 = vmatpush.bf16.msra.mxu0 0
        %2099 = vmatpush.bf16.msra.mxu0 0
        %2100 = vmatpush.bf16.msra.mxu0 0
        %2101 = vmatpush.bf16.msra.mxu0 0
        %2102 = vmatpush.bf16.msra.mxu0 %v2087
        %2103 = vmatpush.bf16.msra.mxu0 %v2086
        %2104 = vmatpush.bf16.msra.mxu0 %v2085
        %2105 = vmatpush.bf16.msra.mxu0 %v2084
        %2106 = vmatmul.bf16.gmra.mxu0 %v2093
        %v2107 = vpop.f32.mrf.mxu0
        %v2108 = vadd.f32 %v2066, %v2107
        %v2109 = vpop.f32.mrf.mxu0
        %v2110 = vadd.f32 %v2066, %v2109
        %2111 = vmatmul.bf16.gmra.mxu0 %v2096
        %v2112 = vpop.f32.mrf.mxu0
        %v2113 = vadd.f32 %v2066, %v2112
        %v2114 = vpop.f32.mrf.mxu0
        %v2115 = vadd.f32 %v2066, %v2114
        %2116 = vdwg.mxu0
        %v2117 = vmax.f32 %v2108, 0.0
        %v2118 = vmax.f32 %v2110, 0.0
        %v2119 = vmax.f32 %v2113, 0.0
        %v2120 = vmax.f32 %v2115, 0.0
        %v2121 = vpack.c.bf16 %v2118, %v2117
        %v2122 = vpack.c.bf16 %v2120, %v2119
        %v2123 = vld [vmem:[%s7] sm:$0xf]
        %v2124 = vld [vmem:[%s7 + $0x4] sm:$0xf]
        %v2125 = vld [vmem:[%s7 + $0x8] sm:$0xf]
        %v2126 = vld [vmem:[%s7 + $0xc] sm:$0xf]
        %v2127 = vld [vmem:[%s7 + $0x10] sm:$0xf]
        %v2128 = vld [vmem:[%s7 + $0x14] sm:$0xf]
        %v2129 = vld [vmem:[%s7 + $0x18] sm:$0xf]
        %v2130 = vld [vmem:[%s7 + $0x1c] sm:$0xf]
        %v2131 = vld [vmem:[%s7 + $0x20] sm:$0xf]
        %v2132 = vld [vmem:[%s7 + $0x24] sm:$0xf]
        %v2133 = vld [vmem:[%s7 + $0x28] sm:$0xf]
        %v2134 = vld [vmem:[%s7 + $0x2c] sm:$0xf]
        %v2135 = vld [vmem:[%s7 + $0x30] sm:$0xf]
        %v2136 = vld [vmem:[%s7 + $0x34] sm:$0xf]
        %v2137 = vld [vmem:[%s7 + $0x38] sm:$0xf]
        %v2138 = vld [vmem:[%s7 + $0x3c] sm:$0xf]
        %v2139 = vld [vmem:[#allocation8] sm:$0x1]
        %v2141 = vperm.slane %v2139, 0
        %v2159 = vunpack.c.l.b16 %v2123
        %v2160 = vunpack.c.l.b16 %v2124
        %v2161 = vunpack.c.l.b16 %v2125
        %v2162 = vunpack.c.l.b16 %v2126
        %v2163 = vunpack.c.l.b16 %v2127
        %v2164 = vunpack.c.l.b16 %v2128
        %v2165 = vunpack.c.l.b16 %v2129
        %v2166 = vunpack.c.l.b16 %v2130
        %v2167 = vunpack.c.l.b16 %v2131
        %v2168 = vunpack.c.l.b16 %v2132
        %v2169 = vunpack.c.l.b16 %v2133
        %v2170 = vunpack.c.l.b16 %v2134
        %v2171 = vunpack.c.l.b16 %v2135
        %v2172 = vunpack.c.l.b16 %v2136
        %v2173 = vunpack.c.l.b16 %v2137
        %v2174 = vunpack.c.l.b16 %v2138
        %v2175 = vpack.c.b16 %v2160, %v2159
        %v2176 = vpack.c.b16 %v2162, %v2161
        %v2177 = vpack.c.b16 %v2164, %v2163
        %v2178 = vpack.c.b16 %v2166, %v2165
        %v2179 = vpack.c.b16 %v2168, %v2167
        %v2180 = vpack.c.b16 %v2170, %v2169
        %v2181 = vpack.c.b16 %v2172, %v2171
        %v2182 = vpack.c.b16 %v2174, %v2173
        %2191 = vmatpush.bf16.msra.mxu0 %v2182
        %2192 = vmatpush.bf16.msra.mxu0 %v2181
        %2193 = vmatpush.bf16.msra.mxu0 %v2180
        %2194 = vmatpush.bf16.msra.mxu0 %v2179
        %2195 = vmatpush.bf16.msra.mxu0 %v2178
        %2196 = vmatpush.bf16.msra.mxu0 %v2177
        %2197 = vmatpush.bf16.msra.mxu0 %v2176
        %2198 = vmatpush.bf16.msra.mxu0 %v2175
        %2199 = vmatmul.bf16.gmra.mxu0 %v2121
        %v2200 = vpop.f32.mrf.mxu0
        %v2201 = vadd.f32 %v2141, %v2200
        %v2202 = vpop.f32.mrf.mxu0
        %v2203 = vadd.f32 %v2141, %v2202
        %2204 = vmatmul.bf16.gmra.mxu0 %v2122
        %v2205 = vpop.f32.mrf.mxu0
        %v2206 = vadd.f32 %v2141, %v2205
        %v2207 = vpop.f32.mrf.mxu0
        %v2208 = vadd.f32 %v2141, %v2207
        %2209 = vdwg.mxu0
        %v2210 = vadd.f32 %v2050, %v2201
        %v2211 = vadd.f32 %v2051, %v2203
        %v2212 = vadd.f32 %v2052, %v2206
        %v2213 = vadd.f32 %v2053, %v2208
        %v2214 = vsel %vm640, %v2210, 0.0
        %2215 = vadd.xlane.f32.xlu0 %v2214
        %v2216 = vpop.xlane.xlu0 %2215
        %v2217 = vsel %vm640, %v2211, 0.0
        %2218 = vadd.xlane.f32.xlu0 %v2217
        %v2219 = vpop.xlane.xlu0 %2218
        %v2220 = vsel %vm640, %v2212, 0.0
        %2221 = vadd.xlane.f32.xlu0 %v2220
        %v2222 = vpop.xlane.xlu0 %2221
        %v2223 = vsel %vm640, %v2213, 0.0
        %2224 = vadd.xlane.f32.xlu0 %v2223
        %v2225 = vpop.xlane.xlu0 %2224
        %v2226 = vmul.f32 %v2216, %v1961
        %v2227 = vmul.f32 %v2219, %v1961
        %v2228 = vmul.f32 %v2222, %v1961
        %v2229 = vmul.f32 %v2225, %v1961
        %v2230 = vsub.f32 %v2210, %v2226
        %v2231 = vsub.f32 %v2211, %v2227
        %v2232 = vsub.f32 %v2212, %v2228
        %v2233 = vsub.f32 %v2213, %v2229
        %v2234 = vmul.f32 %v2230, %v2230
        %v2235 = vmul.f32 %v2231, %v2231
        %v2236 = vmul.f32 %v2232, %v2232
        %v2237 = vmul.f32 %v2233, %v2233
        %v2238 = vsel %vm640, %v2234, 0.0
        %2239 = vadd.xlane.f32.xlu0 %v2238
        %v2240 = vpop.xlane.xlu0 %2239
        %v2241 = vsel %vm640, %v2235, 0.0
        %2242 = vadd.xlane.f32.xlu0 %v2241
        %v2243 = vpop.xlane.xlu0 %2242
        %v2244 = vsel %vm640, %v2236, 0.0
        %2245 = vadd.xlane.f32.xlu0 %v2244
        %v2246 = vpop.xlane.xlu0 %2245
        %v2247 = vsel %vm640, %v2237, 0.0
        %2248 = vadd.xlane.f32.xlu0 %v2247
        %v2249 = vpop.xlane.xlu0 %2248
        %v2250 = vmul.f32 %v2240, %v1961
        %v2251 = vmul.f32 %v2243, %v1961
        %v2252 = vmul.f32 %v2246, %v1961
        %v2253 = vmul.f32 %v2249, %v1961
        %v2254 = vadd.f32 %v2250, 1e-05
        %v2255 = vadd.f32 %v2251, 1e-05
        %v2256 = vadd.f32 %v2252, 1e-05
        %v2257 = vadd.f32 %v2253, 1e-05
        %v2258 = vrsqrt.pop %v2254
        %v2259 = vmul.f32 %v2258, %v2254
        %v2260 = vmul.f32 %v2259, %v2258
        %v2261 = vmul.f32 0.5, %v2260
        %v2262 = vsub.f32 1.5, %v2261
        %v2263 = vmul.f32 %v2258, %v2262
        %vm2264 = vweird.f32 %v2254
        %vm2265 = vweird.f32 %v2258
        %vm2266 = vmor %vm2264, %vm2265
        %v2267 = vsel %vm2266, %v2258, %v2263
        %v2268 = vrsqrt.pop %v2255
        %v2269 = vmul.f32 %v2268, %v2255
        %v2270 = vmul.f32 %v2269, %v2268
        %v2271 = vmul.f32 0.5, %v2270
        %v2272 = vsub.f32 1.5, %v2271
        %v2273 = vmul.f32 %v2268, %v2272
        %vm2274 = vweird.f32 %v2255
        %vm2275 = vweird.f32 %v2268
        %vm2276 = vmor %vm2274, %vm2275
        %v2277 = vsel %vm2276, %v2268, %v2273
        %v2278 = vrsqrt.pop %v2256
        %v2279 = vmul.f32 %v2278, %v2256
        %v2280 = vmul.f32 %v2279, %v2278
        %v2281 = vmul.f32 0.5, %v2280
        %v2282 = vsub.f32 1.5, %v2281
        %v2283 = vmul.f32 %v2278, %v2282
        %vm2284 = vweird.f32 %v2256
        %vm2285 = vweird.f32 %v2278
        %vm2286 = vmor %vm2284, %vm2285
        %v2287 = vsel %vm2286, %v2278, %v2283
        %v2288 = vrsqrt.pop %v2257
        %v2289 = vmul.f32 %v2288, %v2257
        %v2290 = vmul.f32 %v2289, %v2288
        %v2291 = vmul.f32 0.5, %v2290
        %v2292 = vsub.f32 1.5, %v2291
        %v2293 = vmul.f32 %v2288, %v2292
        %vm2294 = vweird.f32 %v2257
        %vm2295 = vweird.f32 %v2288
        %vm2296 = vmor %vm2294, %vm2295
        %v2297 = vsel %vm2296, %v2288, %v2293
        %v2298 = vmul.f32 %v2230, %v2267
        %v2299 = vmul.f32 %v2231, %v2277
        %v2300 = vmul.f32 %v2232, %v2287
        %v2301 = vmul.f32 %v2233, %v2297
        %v2302 = vld [vmem:[#allocation13] sm:$0x1]
        %v2304 = vperm.slane %v2302, 0
        %v2306 = vmul.f32 %v2298, %v2304
        %v2307 = vmul.f32 %v2299, %v2304
        %v2308 = vmul.f32 %v2300, %v2304
        %v2309 = vmul.f32 %v2301, %v2304
        %v2310 = vld [vmem:[#allocation14] sm:$0x1]
        %v2312 = vperm.slane %v2310, 0
        %v2314 = vadd.f32 %v2306, %v2312
        %v2315 = vadd.f32 %v2307, %v2312
        %v2316 = vadd.f32 %v2308, %v2312
        %v2317 = vadd.f32 %v2309, %v2312
        %v2318 = vpack.c.bf16 %v2315, %v2314
        %v2319 = vpack.c.bf16 %v2317, %v2316
        %s2320 = scalar_lea.vmem %s1, 64
        %v2321 = vld [vmem:[%s2320] sm:$0xff]
        %v2322 = vld [vmem:[%s2320 + $0x8] sm:$0xff]
        %v2323 = vld [vmem:[%s2320 + $0x10] sm:$0xff]
        %v2324 = vld [vmem:[%s2320 + $0x18] sm:$0xff]
        %v2325 = vld [vmem:[%s2320 + $0x20] sm:$0xff]
        %v2326 = vld [vmem:[%s2320 + $0x28] sm:$0xff]
        %v2327 = vld [vmem:[%s2320 + $0x30] sm:$0xff]
        %v2328 = vld [vmem:[%s2320 + $0x38] sm:$0xff]
        %s2329 = scalar_lea.vmem %s2, 2
        %v2330 = vld [vmem:[%s2329] sm:$0x3]
        %v2332 = vperm.slane %v2330, 0
        %v2333 = vperm.slane %v2330, 1
        %v2344 = vunpack.c.l.b16 %v2321
        %v2345 = vunpack.c.h.b16 %v2321
        %v2346 = vunpack.c.l.b16 %v2322
        %v2347 = vunpack.c.h.b16 %v2322
        %v2348 = vunpack.c.l.b16 %v2323
        %v2349 = vunpack.c.h.b16 %v2323
        %v2350 = vunpack.c.l.b16 %v2324
        %v2351 = vunpack.c.h.b16 %v2324
        %v2352 = vunpack.c.l.b16 %v2325
        %v2353 = vunpack.c.h.b16 %v2325
        %v2354 = vunpack.c.l.b16 %v2326
        %v2355 = vunpack.c.h.b16 %v2326
        %v2356 = vunpack.c.l.b16 %v2327
        %v2357 = vunpack.c.h.b16 %v2327
        %v2358 = vunpack.c.l.b16 %v2328
        %v2359 = vunpack.c.h.b16 %v2328
        %v2360 = vpack.c.b16 %v2346, %v2344
        %v2361 = vpack.c.b16 %v2347, %v2345
        %v2362 = vpack.c.b16 %v2350, %v2348
        %v2363 = vpack.c.b16 %v2351, %v2349
        %v2364 = vpack.c.b16 %v2354, %v2352
        %v2365 = vpack.c.b16 %v2355, %v2353
        %v2366 = vpack.c.b16 %v2358, %v2356
        %v2367 = vpack.c.b16 %v2359, %v2357
        %v2377 = vsel %vm640, %v2318, 0
        %v2380 = vsel %vm640, %v2319, 0
        %2382 = vmatpush.bf16.msra.mxu0 0
        %2383 = vmatpush.bf16.msra.mxu0 0
        %2384 = vmatpush.bf16.msra.mxu0 0
        %2385 = vmatpush.bf16.msra.mxu0 0
        %2386 = vmatpush.bf16.msra.mxu0 %v2366
        %2387 = vmatpush.bf16.msra.mxu0 %v2364
        %2388 = vmatpush.bf16.msra.mxu0 %v2362
        %2389 = vmatpush.bf16.msra.mxu0 %v2360
        %2390 = vmatmul.bf16.gmra.mxu0 %v2377
        %v2391 = vpop.f32.mrf.mxu0
        %v2392 = vadd.f32 %v2332, %v2391
        %v2393 = vpop.f32.mrf.mxu0
        %v2394 = vadd.f32 %v2332, %v2393
        %2395 = vmatmul.bf16.gmra.mxu0 %v2380
        %v2396 = vpop.f32.mrf.mxu0
        %v2397 = vadd.f32 %v2332, %v2396
        %v2398 = vpop.f32.mrf.mxu0
        %v2399 = vadd.f32 %v2332, %v2398
        %2400 = vdwg.mxu0
        %2401 = vmatpush.bf16.msra.mxu0 0
        %2402 = vmatpush.bf16.msra.mxu0 0
        %2403 = vmatpush.bf16.msra.mxu0 0
        %2404 = vmatpush.bf16.msra.mxu0 0
        %2405 = vmatpush.bf16.msra.mxu0 %v2367
        %2406 = vmatpush.bf16.msra.mxu0 %v2365
        %2407 = vmatpush.bf16.msra.mxu0 %v2363
        %2408 = vmatpush.bf16.msra.mxu0 %v2361
        %2409 = vmatmul.bf16.gmra.mxu0 %v2377
        %v2410 = vpop.f32.mrf.mxu0
        %v2411 = vadd.f32 %v2333, %v2410
        %v2412 = vpop.f32.mrf.mxu0
        %v2413 = vadd.f32 %v2333, %v2412
        %2414 = vmatmul.bf16.gmra.mxu0 %v2380
        %v2415 = vpop.f32.mrf.mxu0
        %v2416 = vadd.f32 %v2333, %v2415
        %v2417 = vpop.f32.mrf.mxu0
        %v2418 = vadd.f32 %v2333, %v2417
        %2419 = vdwg.mxu0
        %v2420 = vpack.c.bf16 %v2392, %v2392
        %v2421 = vpack.c.bf16 %v2394, %v2394
        %v2422 = vpack.c.bf16 %v2397, %v2397
        %v2423 = vpack.c.bf16 %v2399, %v2399
        %v2424 = vpack.c.bf16 %v2411, %v2411
        %v2425 = vpack.c.bf16 %v2413, %v2413
        %v2426 = vpack.c.bf16 %v2416, %v2416
        %v2427 = vpack.c.bf16 %v2418, %v2418
        %v2432 = vunpack.c.l.b16 %v2420
        %v2433 = vunpack.c.l.b16 %v2421
        %v2434 = vunpack.c.l.b16 %v2422
        %v2435 = vunpack.c.l.b16 %v2423
        %v2436 = vpack.c.b16 %v2433, %v2432
        %v2437 = vpack.c.b16 %v2435, %v2434
        %2438 = vrot.lane.b32.xlu0 %v2436, 64
        %v2439 = vpop.permute.xlu0 %2438
        %2440 = vrot.lane.b32.xlu0 %v2437, 64
        %v2441 = vpop.permute.xlu0 %2440
        %v2443 = vsel %vm707, %v2436, 0
        %v2446 = vsel %vm707, %v2437, 0
        %v2449 = vsel %vm707, %v2439, 0
        %v2452 = vsel %vm707, %v2441, 0
        %2454 = vmatpush.bf16.xpose.msra.mxu0 0
        %2455 = vmatpush.bf16.xpose.msra.mxu0 0
        %2456 = vmatpush.bf16.xpose.msra.mxu0 0
        %2457 = vmatpush.bf16.xpose.msra.mxu0 0
        %2458 = vmatpush.bf16.xpose.msra.mxu0 0
        %2459 = vmatpush.bf16.xpose.msra.mxu0 0
        %2460 = vmatpush.bf16.xpose.msra.mxu0 %v2452
        %2461 = vmatpush.bf16.xpose.msra.mxu0 %v2449
        %2462 = vmatmul.bf16.gmra.mxu0 %v2443
        %v2463 = vpop.f32.mrf.mxu0
        %v2464 = vadd.f32 0.0, %v2463
        %v2465 = vpop.f32.mrf.mxu0
        %v2466 = vadd.f32 0.0, %v2465
        %2467 = vmatmul.bf16.gmra.mxu0 %v2446
        %v2468 = vpop.f32.mrf.mxu0
        %v2469 = vadd.f32 0.0, %v2468
        %v2470 = vpop.f32.mrf.mxu0
        %v2471 = vadd.f32 0.0, %v2470
        %2472 = vdwg.mxu0
        %v2473 = vsel %vm739, %v2464, -inf
        %2474 = vmax.xlane.f32.xlu0 %v2473
        %v2475 = vpop.xlane.xlu0 %2474
        %v2476 = vsel %vm739, %v2466, -inf
        %2477 = vmax.xlane.f32.xlu0 %v2476
        %v2478 = vpop.xlane.xlu0 %2477
        %v2479 = vsel %vm739, %v2469, -inf
        %2480 = vmax.xlane.f32.xlu0 %v2479
        %v2481 = vpop.xlane.xlu0 %2480
        %v2482 = vsel %vm739, %v2471, -inf
        %2483 = vmax.xlane.f32.xlu0 %v2482
        %v2484 = vpop.xlane.xlu0 %2483
        %v2485 = vsub.f32 %v2464, %v2475
        %v2486 = vsub.f32 %v2466, %v2478
        %v2487 = vsub.f32 %v2469, %v2481
        %v2488 = vsub.f32 %v2471, %v2484
        %v2489 = vmul.f32 %v2485, 1.442695
        %v2490 = vpow.pop %v2489
        %v2491 = vmul.f32 %v2486, 1.442695
        %v2492 = vpow.pop %v2491
        %v2493 = vmul.f32 %v2487, 1.442695
        %v2494 = vpow.pop %v2493
        %v2495 = vmul.f32 %v2488, 1.442695
        %v2496 = vpow.pop %v2495
        %v2497 = vsel %vm739, %v2490, 0.0
        %2498 = vadd.xlane.f32.xlu0 %v2497
        %v2499 = vpop.xlane.xlu0 %2498
        %v2500 = vsel %vm739, %v2492, 0.0
        %2501 = vadd.xlane.f32.xlu0 %v2500
        %v2502 = vpop.xlane.xlu0 %2501
        %v2503 = vsel %vm739, %v2494, 0.0
        %2504 = vadd.xlane.f32.xlu0 %v2503
        %v2505 = vpop.xlane.xlu0 %2504
        %v2506 = vsel %vm739, %v2496, 0.0
        %2507 = vadd.xlane.f32.xlu0 %v2506
        %v2508 = vpop.xlane.xlu0 %2507
        %v2509 = vrcp.pop %v2499
        %v2510 = vrcp.pop %v2502
        %v2511 = vrcp.pop %v2505
        %v2512 = vrcp.pop %v2508
        %v2513 = vmul.f32 %v2490, %v2509
        %v2514 = vmul.f32 %v2492, %v2510
        %v2515 = vmul.f32 %v2494, %v2511
        %v2516 = vmul.f32 %v2496, %v2512
        %v2517 = vpack.c.bf16 %v2513, %v2513
        %v2518 = vpack.c.bf16 %v2514, %v2514
        %v2519 = vpack.c.bf16 %v2515, %v2515
        %v2520 = vpack.c.bf16 %v2516, %v2516
        %v2525 = vunpack.c.l.b16 %v2517
        %v2526 = vunpack.c.l.b16 %v2518
        %v2527 = vunpack.c.l.b16 %v2519
        %v2528 = vunpack.c.l.b16 %v2520
        %v2529 = vpack.c.b16 %v2526, %v2525
        %v2530 = vpack.c.b16 %v2528, %v2527
        %v2535 = vunpack.c.l.b16 %v2424
        %v2536 = vunpack.c.l.b16 %v2425
        %v2537 = vunpack.c.l.b16 %v2426
        %v2538 = vunpack.c.l.b16 %v2427
        %v2539 = vpack.c.b16 %v2536, %v2535
        %v2540 = vpack.c.b16 %v2538, %v2537
        %v2544 = vsel %vm739, %v2529, 0
        %v2547 = vsel %vm739, %v2530, 0
        %2549 = vmatpush.bf16.msra.mxu0 0
        %2550 = vmatpush.bf16.msra.mxu0 0
        %2551 = vmatpush.bf16.msra.mxu0 0
        %2552 = vmatpush.bf16.msra.mxu0 0
        %2553 = vmatpush.bf16.msra.mxu0 0
        %2554 = vmatpush.bf16.msra.mxu0 0
        %2555 = vmatpush.bf16.msra.mxu0 %v2540
        %2556 = vmatpush.bf16.msra.mxu0 %v2539
        %2557 = vmatmul.bf16.gmra.mxu0 %v2544
        %v2558 = vpop.f32.mrf.mxu0
        %v2559 = vadd.f32 0.0, %v2558
        %v2560 = vpop.f32.mrf.mxu0
        %v2561 = vadd.f32 0.0, %v2560
        %2562 = vmatmul.bf16.gmra.mxu0 %v2547
        %v2563 = vpop.f32.mrf.mxu0
        %v2564 = vadd.f32 0.0, %v2563
        %v2565 = vpop.f32.mrf.mxu0
        %v2566 = vadd.f32 0.0, %v2565
        %2567 = vdwg.mxu0
        %2568 = vrot.lane.b32.xlu0 %v2436, 120
        %v2569 = vpop.permute.xlu0 %2568
        %2570 = vrot.lane.b32.xlu0 %v2437, 120
        %v2571 = vpop.permute.xlu0 %2570
        %2572 = vrot.lane.b32.xlu0 %v2436, 56
        %v2573 = vpop.permute.xlu0 %2572
        %2574 = vrot.lane.b32.xlu0 %v2437, 56
        %v2575 = vpop.permute.xlu0 %2574
        %v2577 = vsel %vm707, %v2569, 0
        %v2580 = vsel %vm707, %v2571, 0
        %v2583 = vsel %vm707, %v2573, 0
        %v2586 = vsel %vm707, %v2575, 0
        %2588 = vmatpush.bf16.xpose.msra.mxu0 0
        %2589 = vmatpush.bf16.xpose.msra.mxu0 0
        %2590 = vmatpush.bf16.xpose.msra.mxu0 0
        %2591 = vmatpush.bf16.xpose.msra.mxu0 0
        %2592 = vmatpush.bf16.xpose.msra.mxu0 0
        %2593 = vmatpush.bf16.xpose.msra.mxu0 0
        %2594 = vmatpush.bf16.xpose.msra.mxu0 %v2586
        %2595 = vmatpush.bf16.xpose.msra.mxu0 %v2583
        %2596 = vmatmul.bf16.gmra.mxu0 %v2577
        %v2597 = vpop.f32.mrf.mxu0
        %v2598 = vadd.f32 0.0, %v2597
        %v2599 = vpop.f32.mrf.mxu0
        %v2600 = vadd.f32 0.0, %v2599
        %2601 = vmatmul.bf16.gmra.mxu0 %v2580
        %v2602 = vpop.f32.mrf.mxu0
        %v2603 = vadd.f32 0.0, %v2602
        %v2604 = vpop.f32.mrf.mxu0
        %v2605 = vadd.f32 0.0, %v2604
        %2606 = vdwg.mxu0
        %v2607 = vsel %vm739, %v2598, -inf
        %2608 = vmax.xlane.f32.xlu0 %v2607
        %v2609 = vpop.xlane.xlu0 %2608
        %v2610 = vsel %vm739, %v2600, -inf
        %2611 = vmax.xlane.f32.xlu0 %v2610
        %v2612 = vpop.xlane.xlu0 %2611
        %v2613 = vsel %vm739, %v2603, -inf
        %2614 = vmax.xlane.f32.xlu0 %v2613
        %v2615 = vpop.xlane.xlu0 %2614
        %v2616 = vsel %vm739, %v2605, -inf
        %2617 = vmax.xlane.f32.xlu0 %v2616
        %v2618 = vpop.xlane.xlu0 %2617
        %v2619 = vsub.f32 %v2598, %v2609
        %v2620 = vsub.f32 %v2600, %v2612
        %v2621 = vsub.f32 %v2603, %v2615
        %v2622 = vsub.f32 %v2605, %v2618
        %v2623 = vmul.f32 %v2619, 1.442695
        %v2624 = vpow.pop %v2623
        %v2625 = vmul.f32 %v2620, 1.442695
        %v2626 = vpow.pop %v2625
        %v2627 = vmul.f32 %v2621, 1.442695
        %v2628 = vpow.pop %v2627
        %v2629 = vmul.f32 %v2622, 1.442695
        %v2630 = vpow.pop %v2629
        %v2631 = vsel %vm739, %v2624, 0.0
        %2632 = vadd.xlane.f32.xlu0 %v2631
        %v2633 = vpop.xlane.xlu0 %2632
        %v2634 = vsel %vm739, %v2626, 0.0
        %2635 = vadd.xlane.f32.xlu0 %v2634
        %v2636 = vpop.xlane.xlu0 %2635
        %v2637 = vsel %vm739, %v2628, 0.0
        %2638 = vadd.xlane.f32.xlu0 %v2637
        %v2639 = vpop.xlane.xlu0 %2638
        %v2640 = vsel %vm739, %v2630, 0.0
        %2641 = vadd.xlane.f32.xlu0 %v2640
        %v2642 = vpop.xlane.xlu0 %2641
        %v2643 = vrcp.pop %v2633
        %v2644 = vrcp.pop %v2636
        %v2645 = vrcp.pop %v2639
        %v2646 = vrcp.pop %v2642
        %v2647 = vmul.f32 %v2624, %v2643
        %v2648 = vmul.f32 %v2626, %v2644
        %v2649 = vmul.f32 %v2628, %v2645
        %v2650 = vmul.f32 %v2630, %v2646
        %v2651 = vpack.c.bf16 %v2647, %v2647
        %v2652 = vpack.c.bf16 %v2648, %v2648
        %v2653 = vpack.c.bf16 %v2649, %v2649
        %v2654 = vpack.c.bf16 %v2650, %v2650
        %v2659 = vunpack.c.l.b16 %v2651
        %v2660 = vunpack.c.l.b16 %v2652
        %v2661 = vunpack.c.l.b16 %v2653
        %v2662 = vunpack.c.l.b16 %v2654
        %v2663 = vpack.c.b16 %v2660, %v2659
        %v2664 = vpack.c.b16 %v2662, %v2661
        %2665 = vrot.lane.b32.xlu0 %v2539, 120
        %v2666 = vpop.permute.xlu0 %2665
        %2667 = vrot.lane.b32.xlu0 %v2540, 120
        %v2668 = vpop.permute.xlu0 %2667
        %v2672 = vsel %vm739, %v2663, 0
        %v2675 = vsel %vm739, %v2664, 0
        %2677 = vmatpush.bf16.msra.mxu0 0
        %2678 = vmatpush.bf16.msra.mxu0 0
        %2679 = vmatpush.bf16.msra.mxu0 0
        %2680 = vmatpush.bf16.msra.mxu0 0
        %2681 = vmatpush.bf16.msra.mxu0 0
        %2682 = vmatpush.bf16.msra.mxu0 0
        %2683 = vmatpush.bf16.msra.mxu0 %v2668
        %2684 = vmatpush.bf16.msra.mxu0 %v2666
        %2685 = vmatmul.bf16.gmra.mxu0 %v2672
        %v2686 = vpop.f32.mrf.mxu0
        %v2687 = vadd.f32 0.0, %v2686
        %v2688 = vpop.f32.mrf.mxu0
        %v2689 = vadd.f32 0.0, %v2688
        %2690 = vmatmul.bf16.gmra.mxu0 %v2675
        %v2691 = vpop.f32.mrf.mxu0
        %v2692 = vadd.f32 0.0, %v2691
        %v2693 = vpop.f32.mrf.mxu0
        %v2694 = vadd.f32 0.0, %v2693
        %2695 = vdwg.mxu0
        %2696 = vrot.lane.b32.xlu0 %v2436, 112
        %v2697 = vpop.permute.xlu0 %2696
        %2698 = vrot.lane.b32.xlu0 %v2437, 112
        %v2699 = vpop.permute.xlu0 %2698
        %2700 = vrot.lane.b32.xlu0 %v2436, 48
        %v2701 = vpop.permute.xlu0 %2700
        %2702 = vrot.lane.b32.xlu0 %v2437, 48
        %v2703 = vpop.permute.xlu0 %2702
        %v2705 = vsel %vm707, %v2697, 0
        %v2708 = vsel %vm707, %v2699, 0
        %v2711 = vsel %vm707, %v2701, 0
        %v2714 = vsel %vm707, %v2703, 0
        %2716 = vmatpush.bf16.xpose.msra.mxu0 0
        %2717 = vmatpush.bf16.xpose.msra.mxu0 0
        %2718 = vmatpush.bf16.xpose.msra.mxu0 0
        %2719 = vmatpush.bf16.xpose.msra.mxu0 0
        %2720 = vmatpush.bf16.xpose.msra.mxu0 0
        %2721 = vmatpush.bf16.xpose.msra.mxu0 0
        %2722 = vmatpush.bf16.xpose.msra.mxu0 %v2714
        %2723 = vmatpush.bf16.xpose.msra.mxu0 %v2711
        %2724 = vmatmul.bf16.gmra.mxu0 %v2705
        %v2725 = vpop.f32.mrf.mxu0
        %v2726 = vadd.f32 0.0, %v2725
        %v2727 = vpop.f32.mrf.mxu0
        %v2728 = vadd.f32 0.0, %v2727
        %2729 = vmatmul.bf16.gmra.mxu0 %v2708
        %v2730 = vpop.f32.mrf.mxu0
        %v2731 = vadd.f32 0.0, %v2730
        %v2732 = vpop.f32.mrf.mxu0
        %v2733 = vadd.f32 0.0, %v2732
        %2734 = vdwg.mxu0
        %v2735 = vsel %vm739, %v2726, -inf
        %2736 = vmax.xlane.f32.xlu0 %v2735
        %v2737 = vpop.xlane.xlu0 %2736
        %v2738 = vsel %vm739, %v2728, -inf
        %2739 = vmax.xlane.f32.xlu0 %v2738
        %v2740 = vpop.xlane.xlu0 %2739
        %v2741 = vsel %vm739, %v2731, -inf
        %2742 = vmax.xlane.f32.xlu0 %v2741
        %v2743 = vpop.xlane.xlu0 %2742
        %v2744 = vsel %vm739, %v2733, -inf
        %2745 = vmax.xlane.f32.xlu0 %v2744
        %v2746 = vpop.xlane.xlu0 %2745
        %v2747 = vsub.f32 %v2726, %v2737
        %v2748 = vsub.f32 %v2728, %v2740
        %v2749 = vsub.f32 %v2731, %v2743
        %v2750 = vsub.f32 %v2733, %v2746
        %v2751 = vmul.f32 %v2747, 1.442695
        %v2752 = vpow.pop %v2751
        %v2753 = vmul.f32 %v2748, 1.442695
        %v2754 = vpow.pop %v2753
        %v2755 = vmul.f32 %v2749, 1.442695
        %v2756 = vpow.pop %v2755
        %v2757 = vmul.f32 %v2750, 1.442695
        %v2758 = vpow.pop %v2757
        %v2759 = vsel %vm739, %v2752, 0.0
        %2760 = vadd.xlane.f32.xlu0 %v2759
        %v2761 = vpop.xlane.xlu0 %2760
        %v2762 = vsel %vm739, %v2754, 0.0
        %2763 = vadd.xlane.f32.xlu0 %v2762
        %v2764 = vpop.xlane.xlu0 %2763
        %v2765 = vsel %vm739, %v2756, 0.0
        %2766 = vadd.xlane.f32.xlu0 %v2765
        %v2767 = vpop.xlane.xlu0 %2766
        %v2768 = vsel %vm739, %v2758, 0.0
        %2769 = vadd.xlane.f32.xlu0 %v2768
        %v2770 = vpop.xlane.xlu0 %2769
        %v2771 = vrcp.pop %v2761
        %v2772 = vrcp.pop %v2764
        %v2773 = vrcp.pop %v2767
        %v2774 = vrcp.pop %v2770
        %v2775 = vmul.f32 %v2752, %v2771
        %v2776 = vmul.f32 %v2754, %v2772
        %v2777 = vmul.f32 %v2756, %v2773
        %v2778 = vmul.f32 %v2758, %v2774
        %v2779 = vpack.c.bf16 %v2775, %v2775
        %v2780 = vpack.c.bf16 %v2776, %v2776
        %v2781 = vpack.c.bf16 %v2777, %v2777
        %v2782 = vpack.c.bf16 %v2778, %v2778
        %v2787 = vunpack.c.l.b16 %v2779
        %v2788 = vunpack.c.l.b16 %v2780
        %v2789 = vunpack.c.l.b16 %v2781
        %v2790 = vunpack.c.l.b16 %v2782
        %v2791 = vpack.c.b16 %v2788, %v2787
        %v2792 = vpack.c.b16 %v2790, %v2789
        %2793 = vrot.lane.b32.xlu0 %v2539, 112
        %v2794 = vpop.permute.xlu0 %2793
        %2795 = vrot.lane.b32.xlu0 %v2540, 112
        %v2796 = vpop.permute.xlu0 %2795
        %v2800 = vsel %vm739, %v2791, 0
        %v2803 = vsel %vm739, %v2792, 0
        %2805 = vmatpush.bf16.msra.mxu0 0
        %2806 = vmatpush.bf16.msra.mxu0 0
        %2807 = vmatpush.bf16.msra.mxu0 0
        %2808 = vmatpush.bf16.msra.mxu0 0
        %2809 = vmatpush.bf16.msra.mxu0 0
        %2810 = vmatpush.bf16.msra.mxu0 0
        %2811 = vmatpush.bf16.msra.mxu0 %v2796
        %2812 = vmatpush.bf16.msra.mxu0 %v2794
        %2813 = vmatmul.bf16.gmra.mxu0 %v2800
        %v2814 = vpop.f32.mrf.mxu0
        %v2815 = vadd.f32 0.0, %v2814
        %v2816 = vpop.f32.mrf.mxu0
        %v2817 = vadd.f32 0.0, %v2816
        %2818 = vmatmul.bf16.gmra.mxu0 %v2803
        %v2819 = vpop.f32.mrf.mxu0
        %v2820 = vadd.f32 0.0, %v2819
        %v2821 = vpop.f32.mrf.mxu0
        %v2822 = vadd.f32 0.0, %v2821
        %2823 = vdwg.mxu0
        %2824 = vrot.lane.b32.xlu0 %v2436, 104
        %v2825 = vpop.permute.xlu0 %2824
        %2826 = vrot.lane.b32.xlu0 %v2437, 104
        %v2827 = vpop.permute.xlu0 %2826
        %2828 = vrot.lane.b32.xlu0 %v2436, 40
        %v2829 = vpop.permute.xlu0 %2828
        %2830 = vrot.lane.b32.xlu0 %v2437, 40
        %v2831 = vpop.permute.xlu0 %2830
        %v2833 = vsel %vm707, %v2825, 0
        %v2836 = vsel %vm707, %v2827, 0
        %v2839 = vsel %vm707, %v2829, 0
        %v2842 = vsel %vm707, %v2831, 0
        %2844 = vmatpush.bf16.xpose.msra.mxu0 0
        %2845 = vmatpush.bf16.xpose.msra.mxu0 0
        %2846 = vmatpush.bf16.xpose.msra.mxu0 0
        %2847 = vmatpush.bf16.xpose.msra.mxu0 0
        %2848 = vmatpush.bf16.xpose.msra.mxu0 0
        %2849 = vmatpush.bf16.xpose.msra.mxu0 0
        %2850 = vmatpush.bf16.xpose.msra.mxu0 %v2842
        %2851 = vmatpush.bf16.xpose.msra.mxu0 %v2839
        %2852 = vmatmul.bf16.gmra.mxu0 %v2833
        %v2853 = vpop.f32.mrf.mxu0
        %v2854 = vadd.f32 0.0, %v2853
        %v2855 = vpop.f32.mrf.mxu0
        %v2856 = vadd.f32 0.0, %v2855
        %2857 = vmatmul.bf16.gmra.mxu0 %v2836
        %v2858 = vpop.f32.mrf.mxu0
        %v2859 = vadd.f32 0.0, %v2858
        %v2860 = vpop.f32.mrf.mxu0
        %v2861 = vadd.f32 0.0, %v2860
        %2862 = vdwg.mxu0
        %v2863 = vsel %vm739, %v2854, -inf
        %2864 = vmax.xlane.f32.xlu0 %v2863
        %v2865 = vpop.xlane.xlu0 %2864
        %v2866 = vsel %vm739, %v2856, -inf
        %2867 = vmax.xlane.f32.xlu0 %v2866
        %v2868 = vpop.xlane.xlu0 %2867
        %v2869 = vsel %vm739, %v2859, -inf
        %2870 = vmax.xlane.f32.xlu0 %v2869
        %v2871 = vpop.xlane.xlu0 %2870
        %v2872 = vsel %vm739, %v2861, -inf
        %2873 = vmax.xlane.f32.xlu0 %v2872
        %v2874 = vpop.xlane.xlu0 %2873
        %v2875 = vsub.f32 %v2854, %v2865
        %v2876 = vsub.f32 %v2856, %v2868
        %v2877 = vsub.f32 %v2859, %v2871
        %v2878 = vsub.f32 %v2861, %v2874
        %v2879 = vmul.f32 %v2875, 1.442695
        %v2880 = vpow.pop %v2879
        %v2881 = vmul.f32 %v2876, 1.442695
        %v2882 = vpow.pop %v2881
        %v2883 = vmul.f32 %v2877, 1.442695
        %v2884 = vpow.pop %v2883
        %v2885 = vmul.f32 %v2878, 1.442695
        %v2886 = vpow.pop %v2885
        %v2887 = vsel %vm739, %v2880, 0.0
        %2888 = vadd.xlane.f32.xlu0 %v2887
        %v2889 = vpop.xlane.xlu0 %2888
        %v2890 = vsel %vm739, %v2882, 0.0
        %2891 = vadd.xlane.f32.xlu0 %v2890
        %v2892 = vpop.xlane.xlu0 %2891
        %v2893 = vsel %vm739, %v2884, 0.0
        %2894 = vadd.xlane.f32.xlu0 %v2893
        %v2895 = vpop.xlane.xlu0 %2894
        %v2896 = vsel %vm739, %v2886, 0.0
        %2897 = vadd.xlane.f32.xlu0 %v2896
        %v2898 = vpop.xlane.xlu0 %2897
        %v2899 = vrcp.pop %v2889
        %v2900 = vrcp.pop %v2892
        %v2901 = vrcp.pop %v2895
        %v2902 = vrcp.pop %v2898
        %v2903 = vmul.f32 %v2880, %v2899
        %v2904 = vmul.f32 %v2882, %v2900
        %v2905 = vmul.f32 %v2884, %v2901
        %v2906 = vmul.f32 %v2886, %v2902
        %v2907 = vpack.c.bf16 %v2903, %v2903
        %v2908 = vpack.c.bf16 %v2904, %v2904
        %v2909 = vpack.c.bf16 %v2905, %v2905
        %v2910 = vpack.c.bf16 %v2906, %v2906
        %v2915 = vunpack.c.l.b16 %v2907
        %v2916 = vunpack.c.l.b16 %v2908
        %v2917 = vunpack.c.l.b16 %v2909
        %v2918 = vunpack.c.l.b16 %v2910
        %v2919 = vpack.c.b16 %v2916, %v2915
        %v2920 = vpack.c.b16 %v2918, %v2917
        %2921 = vrot.lane.b32.xlu0 %v2539, 104
        %v2922 = vpop.permute.xlu0 %2921
        %2923 = vrot.lane.b32.xlu0 %v2540, 104
        %v2924 = vpop.permute.xlu0 %2923
        %v2928 = vsel %vm739, %v2919, 0
        %v2931 = vsel %vm739, %v2920, 0
        %2933 = vmatpush.bf16.msra.mxu0 0
        %2934 = vmatpush.bf16.msra.mxu0 0
        %2935 = vmatpush.bf16.msra.mxu0 0
        %2936 = vmatpush.bf16.msra.mxu0 0
        %2937 = vmatpush.bf16.msra.mxu0 0
        %2938 = vmatpush.bf16.msra.mxu0 0
        %2939 = vmatpush.bf16.msra.mxu0 %v2924
        %2940 = vmatpush.bf16.msra.mxu0 %v2922
        %2941 = vmatmul.bf16.gmra.mxu0 %v2928
        %v2942 = vpop.f32.mrf.mxu0
        %v2943 = vadd.f32 0.0, %v2942
        %v2944 = vpop.f32.mrf.mxu0
        %v2945 = vadd.f32 0.0, %v2944
        %2946 = vmatmul.bf16.gmra.mxu0 %v2931
        %v2947 = vpop.f32.mrf.mxu0
        %v2948 = vadd.f32 0.0, %v2947
        %v2949 = vpop.f32.mrf.mxu0
        %v2950 = vadd.f32 0.0, %v2949
        %2951 = vdwg.mxu0
        %2952 = vrot.lane.b32.xlu0 %v2436, 96
        %v2953 = vpop.permute.xlu0 %2952
        %2954 = vrot.lane.b32.xlu0 %v2437, 96
        %v2955 = vpop.permute.xlu0 %2954
        %2956 = vrot.lane.b32.xlu0 %v2436, 32
        %v2957 = vpop.permute.xlu0 %2956
        %2958 = vrot.lane.b32.xlu0 %v2437, 32
        %v2959 = vpop.permute.xlu0 %2958
        %v2961 = vsel %vm707, %v2953, 0
        %v2964 = vsel %vm707, %v2955, 0
        %v2967 = vsel %vm707, %v2957, 0
        %v2970 = vsel %vm707, %v2959, 0
        %2972 = vmatpush.bf16.xpose.msra.mxu0 0
        %2973 = vmatpush.bf16.xpose.msra.mxu0 0
        %2974 = vmatpush.bf16.xpose.msra.mxu0 0
        %2975 = vmatpush.bf16.xpose.msra.mxu0 0
        %2976 = vmatpush.bf16.xpose.msra.mxu0 0
        %2977 = vmatpush.bf16.xpose.msra.mxu0 0
        %2978 = vmatpush.bf16.xpose.msra.mxu0 %v2970
        %2979 = vmatpush.bf16.xpose.msra.mxu0 %v2967
        %2980 = vmatmul.bf16.gmra.mxu0 %v2961
        %v2981 = vpop.f32.mrf.mxu0
        %v2982 = vadd.f32 0.0, %v2981
        %v2983 = vpop.f32.mrf.mxu0
        %v2984 = vadd.f32 0.0, %v2983
        %2985 = vmatmul.bf16.gmra.mxu0 %v2964
        %v2986 = vpop.f32.mrf.mxu0
        %v2987 = vadd.f32 0.0, %v2986
        %v2988 = vpop.f32.mrf.mxu0
        %v2989 = vadd.f32 0.0, %v2988
        %2990 = vdwg.mxu0
        %v2991 = vsel %vm739, %v2982, -inf
        %2992 = vmax.xlane.f32.xlu0 %v2991
        %v2993 = vpop.xlane.xlu0 %2992
        %v2994 = vsel %vm739, %v2984, -inf
        %2995 = vmax.xlane.f32.xlu0 %v2994
        %v2996 = vpop.xlane.xlu0 %2995
        %v2997 = vsel %vm739, %v2987, -inf
        %2998 = vmax.xlane.f32.xlu0 %v2997
        %v2999 = vpop.xlane.xlu0 %2998
        %v3000 = vsel %vm739, %v2989, -inf
        %3001 = vmax.xlane.f32.xlu0 %v3000
        %v3002 = vpop.xlane.xlu0 %3001
        %v3003 = vsub.f32 %v2982, %v2993
        %v3004 = vsub.f32 %v2984, %v2996
        %v3005 = vsub.f32 %v2987, %v2999
        %v3006 = vsub.f32 %v2989, %v3002
        %v3007 = vmul.f32 %v3003, 1.442695
        %v3008 = vpow.pop %v3007
        %v3009 = vmul.f32 %v3004, 1.442695
        %v3010 = vpow.pop %v3009
        %v3011 = vmul.f32 %v3005, 1.442695
        %v3012 = vpow.pop %v3011
        %v3013 = vmul.f32 %v3006, 1.442695
        %v3014 = vpow.pop %v3013
        %v3015 = vsel %vm739, %v3008, 0.0
        %3016 = vadd.xlane.f32.xlu0 %v3015
        %v3017 = vpop.xlane.xlu0 %3016
        %v3018 = vsel %vm739, %v3010, 0.0
        %3019 = vadd.xlane.f32.xlu0 %v3018
        %v3020 = vpop.xlane.xlu0 %3019
        %v3021 = vsel %vm739, %v3012, 0.0
        %3022 = vadd.xlane.f32.xlu0 %v3021
        %v3023 = vpop.xlane.xlu0 %3022
        %v3024 = vsel %vm739, %v3014, 0.0
        %3025 = vadd.xlane.f32.xlu0 %v3024
        %v3026 = vpop.xlane.xlu0 %3025
        %v3027 = vrcp.pop %v3017
        %v3028 = vrcp.pop %v3020
        %v3029 = vrcp.pop %v3023
        %v3030 = vrcp.pop %v3026
        %v3031 = vmul.f32 %v3008, %v3027
        %v3032 = vmul.f32 %v3010, %v3028
        %v3033 = vmul.f32 %v3012, %v3029
        %v3034 = vmul.f32 %v3014, %v3030
        %v3035 = vpack.c.bf16 %v3031, %v3031
        %v3036 = vpack.c.bf16 %v3032, %v3032
        %v3037 = vpack.c.bf16 %v3033, %v3033
        %v3038 = vpack.c.bf16 %v3034, %v3034
        %v3043 = vunpack.c.l.b16 %v3035
        %v3044 = vunpack.c.l.b16 %v3036
        %v3045 = vunpack.c.l.b16 %v3037
        %v3046 = vunpack.c.l.b16 %v3038
        %v3047 = vpack.c.b16 %v3044, %v3043
        %v3048 = vpack.c.b16 %v3046, %v3045
        %3049 = vrot.lane.b32.xlu0 %v2539, 96
        %v3050 = vpop.permute.xlu0 %3049
        %3051 = vrot.lane.b32.xlu0 %v2540, 96
        %v3052 = vpop.permute.xlu0 %3051
        %v3056 = vsel %vm739, %v3047, 0
        %v3059 = vsel %vm739, %v3048, 0
        %3061 = vmatpush.bf16.msra.mxu0 0
        %3062 = vmatpush.bf16.msra.mxu0 0
        %3063 = vmatpush.bf16.msra.mxu0 0
        %3064 = vmatpush.bf16.msra.mxu0 0
        %3065 = vmatpush.bf16.msra.mxu0 0
        %3066 = vmatpush.bf16.msra.mxu0 0
        %3067 = vmatpush.bf16.msra.mxu0 %v3052
        %3068 = vmatpush.bf16.msra.mxu0 %v3050
        %3069 = vmatmul.bf16.gmra.mxu0 %v3056
        %v3070 = vpop.f32.mrf.mxu0
        %v3071 = vadd.f32 0.0, %v3070
        %v3072 = vpop.f32.mrf.mxu0
        %v3073 = vadd.f32 0.0, %v3072
        %3074 = vmatmul.bf16.gmra.mxu0 %v3059
        %v3075 = vpop.f32.mrf.mxu0
        %v3076 = vadd.f32 0.0, %v3075
        %v3077 = vpop.f32.mrf.mxu0
        %v3078 = vadd.f32 0.0, %v3077
        %3079 = vdwg.mxu0
        %3080 = vrot.lane.b32.xlu0 %v2436, 88
        %v3081 = vpop.permute.xlu0 %3080
        %3082 = vrot.lane.b32.xlu0 %v2437, 88
        %v3083 = vpop.permute.xlu0 %3082
        %3084 = vrot.lane.b32.xlu0 %v2436, 24
        %v3085 = vpop.permute.xlu0 %3084
        %3086 = vrot.lane.b32.xlu0 %v2437, 24
        %v3087 = vpop.permute.xlu0 %3086
        %v3089 = vsel %vm707, %v3081, 0
        %v3092 = vsel %vm707, %v3083, 0
        %v3095 = vsel %vm707, %v3085, 0
        %v3098 = vsel %vm707, %v3087, 0
        %3100 = vmatpush.bf16.xpose.msra.mxu0 0
        %3101 = vmatpush.bf16.xpose.msra.mxu0 0
        %3102 = vmatpush.bf16.xpose.msra.mxu0 0
        %3103 = vmatpush.bf16.xpose.msra.mxu0 0
        %3104 = vmatpush.bf16.xpose.msra.mxu0 0
        %3105 = vmatpush.bf16.xpose.msra.mxu0 0
        %3106 = vmatpush.bf16.xpose.msra.mxu0 %v3098
        %3107 = vmatpush.bf16.xpose.msra.mxu0 %v3095
        %3108 = vmatmul.bf16.gmra.mxu0 %v3089
        %v3109 = vpop.f32.mrf.mxu0
        %v3110 = vadd.f32 0.0, %v3109
        %v3111 = vpop.f32.mrf.mxu0
        %v3112 = vadd.f32 0.0, %v3111
        %3113 = vmatmul.bf16.gmra.mxu0 %v3092
        %v3114 = vpop.f32.mrf.mxu0
        %v3115 = vadd.f32 0.0, %v3114
        %v3116 = vpop.f32.mrf.mxu0
        %v3117 = vadd.f32 0.0, %v3116
        %3118 = vdwg.mxu0
        %v3119 = vsel %vm739, %v3110, -inf
        %3120 = vmax.xlane.f32.xlu0 %v3119
        %v3121 = vpop.xlane.xlu0 %3120
        %v3122 = vsel %vm739, %v3112, -inf
        %3123 = vmax.xlane.f32.xlu0 %v3122
        %v3124 = vpop.xlane.xlu0 %3123
        %v3125 = vsel %vm739, %v3115, -inf
        %3126 = vmax.xlane.f32.xlu0 %v3125
        %v3127 = vpop.xlane.xlu0 %3126
        %v3128 = vsel %vm739, %v3117, -inf
        %3129 = vmax.xlane.f32.xlu0 %v3128
        %v3130 = vpop.xlane.xlu0 %3129
        %v3131 = vsub.f32 %v3110, %v3121
        %v3132 = vsub.f32 %v3112, %v3124
        %v3133 = vsub.f32 %v3115, %v3127
        %v3134 = vsub.f32 %v3117, %v3130
        %v3135 = vmul.f32 %v3131, 1.442695
        %v3136 = vpow.pop %v3135
        %v3137 = vmul.f32 %v3132, 1.442695
        %v3138 = vpow.pop %v3137
        %v3139 = vmul.f32 %v3133, 1.442695
        %v3140 = vpow.pop %v3139
        %v3141 = vmul.f32 %v3134, 1.442695
        %v3142 = vpow.pop %v3141
        %v3143 = vsel %vm739, %v3136, 0.0
        %3144 = vadd.xlane.f32.xlu0 %v3143
        %v3145 = vpop.xlane.xlu0 %3144
        %v3146 = vsel %vm739, %v3138, 0.0
        %3147 = vadd.xlane.f32.xlu0 %v3146
        %v3148 = vpop.xlane.xlu0 %3147
        %v3149 = vsel %vm739, %v3140, 0.0
        %3150 = vadd.xlane.f32.xlu0 %v3149
        %v3151 = vpop.xlane.xlu0 %3150
        %v3152 = vsel %vm739, %v3142, 0.0
        %3153 = vadd.xlane.f32.xlu0 %v3152
        %v3154 = vpop.xlane.xlu0 %3153
        %v3155 = vrcp.pop %v3145
        %v3156 = vrcp.pop %v3148
        %v3157 = vrcp.pop %v3151
        %v3158 = vrcp.pop %v3154
        %v3159 = vmul.f32 %v3136, %v3155
        %v3160 = vmul.f32 %v3138, %v3156
        %v3161 = vmul.f32 %v3140, %v3157
        %v3162 = vmul.f32 %v3142, %v3158
        %v3163 = vpack.c.bf16 %v3159, %v3159
        %v3164 = vpack.c.bf16 %v3160, %v3160
        %v3165 = vpack.c.bf16 %v3161, %v3161
        %v3166 = vpack.c.bf16 %v3162, %v3162
        %v3171 = vunpack.c.l.b16 %v3163
        %v3172 = vunpack.c.l.b16 %v3164
        %v3173 = vunpack.c.l.b16 %v3165
        %v3174 = vunpack.c.l.b16 %v3166
        %v3175 = vpack.c.b16 %v3172, %v3171
        %v3176 = vpack.c.b16 %v3174, %v3173
        %3177 = vrot.lane.b32.xlu0 %v2539, 88
        %v3178 = vpop.permute.xlu0 %3177
        %3179 = vrot.lane.b32.xlu0 %v2540, 88
        %v3180 = vpop.permute.xlu0 %3179
        %v3184 = vsel %vm739, %v3175, 0
        %v3187 = vsel %vm739, %v3176, 0
        %3189 = vmatpush.bf16.msra.mxu0 0
        %3190 = vmatpush.bf16.msra.mxu0 0
        %3191 = vmatpush.bf16.msra.mxu0 0
        %3192 = vmatpush.bf16.msra.mxu0 0
        %3193 = vmatpush.bf16.msra.mxu0 0
        %3194 = vmatpush.bf16.msra.mxu0 0
        %3195 = vmatpush.bf16.msra.mxu0 %v3180
        %3196 = vmatpush.bf16.msra.mxu0 %v3178
        %3197 = vmatmul.bf16.gmra.mxu0 %v3184
        %v3198 = vpop.f32.mrf.mxu0
        %v3199 = vadd.f32 0.0, %v3198
        %v3200 = vpop.f32.mrf.mxu0
        %v3201 = vadd.f32 0.0, %v3200
        %3202 = vmatmul.bf16.gmra.mxu0 %v3187
        %v3203 = vpop.f32.mrf.mxu0
        %v3204 = vadd.f32 0.0, %v3203
        %v3205 = vpop.f32.mrf.mxu0
        %v3206 = vadd.f32 0.0, %v3205
        %3207 = vdwg.mxu0
        %3208 = vrot.lane.b32.xlu0 %v2436, 80
        %v3209 = vpop.permute.xlu0 %3208
        %3210 = vrot.lane.b32.xlu0 %v2437, 80
        %v3211 = vpop.permute.xlu0 %3210
        %3212 = vrot.lane.b32.xlu0 %v2436, 16
        %v3213 = vpop.permute.xlu0 %3212
        %3214 = vrot.lane.b32.xlu0 %v2437, 16
        %v3215 = vpop.permute.xlu0 %3214
        %v3217 = vsel %vm707, %v3209, 0
        %v3220 = vsel %vm707, %v3211, 0
        %v3223 = vsel %vm707, %v3213, 0
        %v3226 = vsel %vm707, %v3215, 0
        %3228 = vmatpush.bf16.xpose.msra.mxu0 0
        %3229 = vmatpush.bf16.xpose.msra.mxu0 0
        %3230 = vmatpush.bf16.xpose.msra.mxu0 0
        %3231 = vmatpush.bf16.xpose.msra.mxu0 0
        %3232 = vmatpush.bf16.xpose.msra.mxu0 0
        %3233 = vmatpush.bf16.xpose.msra.mxu0 0
        %3234 = vmatpush.bf16.xpose.msra.mxu0 %v3226
        %3235 = vmatpush.bf16.xpose.msra.mxu0 %v3223
        %3236 = vmatmul.bf16.gmra.mxu0 %v3217
        %v3237 = vpop.f32.mrf.mxu0
        %v3238 = vadd.f32 0.0, %v3237
        %v3239 = vpop.f32.mrf.mxu0
        %v3240 = vadd.f32 0.0, %v3239
        %3241 = vmatmul.bf16.gmra.mxu0 %v3220
        %v3242 = vpop.f32.mrf.mxu0
        %v3243 = vadd.f32 0.0, %v3242
        %v3244 = vpop.f32.mrf.mxu0
        %v3245 = vadd.f32 0.0, %v3244
        %3246 = vdwg.mxu0
        %v3247 = vsel %vm739, %v3238, -inf
        %3248 = vmax.xlane.f32.xlu0 %v3247
        %v3249 = vpop.xlane.xlu0 %3248
        %v3250 = vsel %vm739, %v3240, -inf
        %3251 = vmax.xlane.f32.xlu0 %v3250
        %v3252 = vpop.xlane.xlu0 %3251
        %v3253 = vsel %vm739, %v3243, -inf
        %3254 = vmax.xlane.f32.xlu0 %v3253
        %v3255 = vpop.xlane.xlu0 %3254
        %v3256 = vsel %vm739, %v3245, -inf
        %3257 = vmax.xlane.f32.xlu0 %v3256
        %v3258 = vpop.xlane.xlu0 %3257
        %v3259 = vsub.f32 %v3238, %v3249
        %v3260 = vsub.f32 %v3240, %v3252
        %v3261 = vsub.f32 %v3243, %v3255
        %v3262 = vsub.f32 %v3245, %v3258
        %v3263 = vmul.f32 %v3259, 1.442695
        %v3264 = vpow.pop %v3263
        %v3265 = vmul.f32 %v3260, 1.442695
        %v3266 = vpow.pop %v3265
        %v3267 = vmul.f32 %v3261, 1.442695
        %v3268 = vpow.pop %v3267
        %v3269 = vmul.f32 %v3262, 1.442695
        %v3270 = vpow.pop %v3269
        %v3271 = vsel %vm739, %v3264, 0.0
        %3272 = vadd.xlane.f32.xlu0 %v3271
        %v3273 = vpop.xlane.xlu0 %3272
        %v3274 = vsel %vm739, %v3266, 0.0
        %3275 = vadd.xlane.f32.xlu0 %v3274
        %v3276 = vpop.xlane.xlu0 %3275
        %v3277 = vsel %vm739, %v3268, 0.0
        %3278 = vadd.xlane.f32.xlu0 %v3277
        %v3279 = vpop.xlane.xlu0 %3278
        %v3280 = vsel %vm739, %v3270, 0.0
        %3281 = vadd.xlane.f32.xlu0 %v3280
        %v3282 = vpop.xlane.xlu0 %3281
        %v3283 = vrcp.pop %v3273
        %v3284 = vrcp.pop %v3276
        %v3285 = vrcp.pop %v3279
        %v3286 = vrcp.pop %v3282
        %v3287 = vmul.f32 %v3264, %v3283
        %v3288 = vmul.f32 %v3266, %v3284
        %v3289 = vmul.f32 %v3268, %v3285
        %v3290 = vmul.f32 %v3270, %v3286
        %v3291 = vpack.c.bf16 %v3287, %v3287
        %v3292 = vpack.c.bf16 %v3288, %v3288
        %v3293 = vpack.c.bf16 %v3289, %v3289
        %v3294 = vpack.c.bf16 %v3290, %v3290
        %v3299 = vunpack.c.l.b16 %v3291
        %v3300 = vunpack.c.l.b16 %v3292
        %v3301 = vunpack.c.l.b16 %v3293
        %v3302 = vunpack.c.l.b16 %v3294
        %v3303 = vpack.c.b16 %v3300, %v3299
        %v3304 = vpack.c.b16 %v3302, %v3301
        %3305 = vrot.lane.b32.xlu0 %v2539, 80
        %v3306 = vpop.permute.xlu0 %3305
        %3307 = vrot.lane.b32.xlu0 %v2540, 80
        %v3308 = vpop.permute.xlu0 %3307
        %v3312 = vsel %vm739, %v3303, 0
        %v3315 = vsel %vm739, %v3304, 0
        %3317 = vmatpush.bf16.msra.mxu0 0
        %3318 = vmatpush.bf16.msra.mxu0 0
        %3319 = vmatpush.bf16.msra.mxu0 0
        %3320 = vmatpush.bf16.msra.mxu0 0
        %3321 = vmatpush.bf16.msra.mxu0 0
        %3322 = vmatpush.bf16.msra.mxu0 0
        %3323 = vmatpush.bf16.msra.mxu0 %v3308
        %3324 = vmatpush.bf16.msra.mxu0 %v3306
        %3325 = vmatmul.bf16.gmra.mxu0 %v3312
        %v3326 = vpop.f32.mrf.mxu0
        %v3327 = vadd.f32 0.0, %v3326
        %v3328 = vpop.f32.mrf.mxu0
        %v3329 = vadd.f32 0.0, %v3328
        %3330 = vmatmul.bf16.gmra.mxu0 %v3315
        %v3331 = vpop.f32.mrf.mxu0
        %v3332 = vadd.f32 0.0, %v3331
        %v3333 = vpop.f32.mrf.mxu0
        %v3334 = vadd.f32 0.0, %v3333
        %3335 = vdwg.mxu0
        %3336 = vrot.lane.b32.xlu0 %v2436, 72
        %v3337 = vpop.permute.xlu0 %3336
        %3338 = vrot.lane.b32.xlu0 %v2437, 72
        %v3339 = vpop.permute.xlu0 %3338
        %3340 = vrot.lane.b32.xlu0 %v2436, 8
        %v3341 = vpop.permute.xlu0 %3340
        %3342 = vrot.lane.b32.xlu0 %v2437, 8
        %v3343 = vpop.permute.xlu0 %3342
        %v3345 = vsel %vm707, %v3337, 0
        %v3348 = vsel %vm707, %v3339, 0
        %v3351 = vsel %vm707, %v3341, 0
        %v3354 = vsel %vm707, %v3343, 0
        %3356 = vmatpush.bf16.xpose.msra.mxu0 0
        %3357 = vmatpush.bf16.xpose.msra.mxu0 0
        %3358 = vmatpush.bf16.xpose.msra.mxu0 0
        %3359 = vmatpush.bf16.xpose.msra.mxu0 0
        %3360 = vmatpush.bf16.xpose.msra.mxu0 0
        %3361 = vmatpush.bf16.xpose.msra.mxu0 0
        %3362 = vmatpush.bf16.xpose.msra.mxu0 %v3354
        %3363 = vmatpush.bf16.xpose.msra.mxu0 %v3351
        %3364 = vmatmul.bf16.gmra.mxu0 %v3345
        %v3365 = vpop.f32.mrf.mxu0
        %v3366 = vadd.f32 0.0, %v3365
        %v3367 = vpop.f32.mrf.mxu0
        %v3368 = vadd.f32 0.0, %v3367
        %3369 = vmatmul.bf16.gmra.mxu0 %v3348
        %v3370 = vpop.f32.mrf.mxu0
        %v3371 = vadd.f32 0.0, %v3370
        %v3372 = vpop.f32.mrf.mxu0
        %v3373 = vadd.f32 0.0, %v3372
        %3374 = vdwg.mxu0
        %v3375 = vsel %vm739, %v3366, -inf
        %3376 = vmax.xlane.f32.xlu0 %v3375
        %v3377 = vpop.xlane.xlu0 %3376
        %v3378 = vsel %vm739, %v3368, -inf
        %3379 = vmax.xlane.f32.xlu0 %v3378
        %v3380 = vpop.xlane.xlu0 %3379
        %v3381 = vsel %vm739, %v3371, -inf
        %3382 = vmax.xlane.f32.xlu0 %v3381
        %v3383 = vpop.xlane.xlu0 %3382
        %v3384 = vsel %vm739, %v3373, -inf
        %3385 = vmax.xlane.f32.xlu0 %v3384
        %v3386 = vpop.xlane.xlu0 %3385
        %v3387 = vsub.f32 %v3366, %v3377
        %v3388 = vsub.f32 %v3368, %v3380
        %v3389 = vsub.f32 %v3371, %v3383
        %v3390 = vsub.f32 %v3373, %v3386
        %v3391 = vmul.f32 %v3387, 1.442695
        %v3392 = vpow.pop %v3391
        %v3393 = vmul.f32 %v3388, 1.442695
        %v3394 = vpow.pop %v3393
        %v3395 = vmul.f32 %v3389, 1.442695
        %v3396 = vpow.pop %v3395
        %v3397 = vmul.f32 %v3390, 1.442695
        %v3398 = vpow.pop %v3397
        %v3399 = vsel %vm739, %v3392, 0.0
        %3400 = vadd.xlane.f32.xlu0 %v3399
        %v3401 = vpop.xlane.xlu0 %3400
        %v3402 = vsel %vm739, %v3394, 0.0
        %3403 = vadd.xlane.f32.xlu0 %v3402
        %v3404 = vpop.xlane.xlu0 %3403
        %v3405 = vsel %vm739, %v3396, 0.0
        %3406 = vadd.xlane.f32.xlu0 %v3405
        %v3407 = vpop.xlane.xlu0 %3406
        %v3408 = vsel %vm739, %v3398, 0.0
        %3409 = vadd.xlane.f32.xlu0 %v3408
        %v3410 = vpop.xlane.xlu0 %3409
        %v3411 = vrcp.pop %v3401
        %v3412 = vrcp.pop %v3404
        %v3413 = vrcp.pop %v3407
        %v3414 = vrcp.pop %v3410
        %v3415 = vmul.f32 %v3392, %v3411
        %v3416 = vmul.f32 %v3394, %v3412
        %v3417 = vmul.f32 %v3396, %v3413
        %v3418 = vmul.f32 %v3398, %v3414
        %v3419 = vpack.c.bf16 %v3415, %v3415
        %v3420 = vpack.c.bf16 %v3416, %v3416
        %v3421 = vpack.c.bf16 %v3417, %v3417
        %v3422 = vpack.c.bf16 %v3418, %v3418
        %v3427 = vunpack.c.l.b16 %v3419
        %v3428 = vunpack.c.l.b16 %v3420
        %v3429 = vunpack.c.l.b16 %v3421
        %v3430 = vunpack.c.l.b16 %v3422
        %v3431 = vpack.c.b16 %v3428, %v3427
        %v3432 = vpack.c.b16 %v3430, %v3429
        %3433 = vrot.lane.b32.xlu0 %v2539, 72
        %v3434 = vpop.permute.xlu0 %3433
        %3435 = vrot.lane.b32.xlu0 %v2540, 72
        %v3436 = vpop.permute.xlu0 %3435
        %v3440 = vsel %vm739, %v3431, 0
        %v3443 = vsel %vm739, %v3432, 0
        %3445 = vmatpush.bf16.msra.mxu0 0
        %3446 = vmatpush.bf16.msra.mxu0 0
        %3447 = vmatpush.bf16.msra.mxu0 0
        %3448 = vmatpush.bf16.msra.mxu0 0
        %3449 = vmatpush.bf16.msra.mxu0 0
        %3450 = vmatpush.bf16.msra.mxu0 0
        %3451 = vmatpush.bf16.msra.mxu0 %v3436
        %3452 = vmatpush.bf16.msra.mxu0 %v3434
        %3453 = vmatmul.bf16.gmra.mxu0 %v3440
        %v3454 = vpop.f32.mrf.mxu0
        %v3455 = vadd.f32 0.0, %v3454
        %v3456 = vpop.f32.mrf.mxu0
        %v3457 = vadd.f32 0.0, %v3456
        %3458 = vmatmul.bf16.gmra.mxu0 %v3443
        %v3459 = vpop.f32.mrf.mxu0
        %v3460 = vadd.f32 0.0, %v3459
        %v3461 = vpop.f32.mrf.mxu0
        %v3462 = vadd.f32 0.0, %v3461
        %3463 = vdwg.mxu0
        %3468 = vrot.lane.b32.xlu0 %v2687, 8
        %v3469 = vpop.permute.xlu0 %3468
        %3470 = vrot.lane.b32.xlu0 %v2689, 8
        %v3471 = vpop.permute.xlu0 %3470
        %3472 = vrot.lane.b32.xlu0 %v2692, 8
        %v3473 = vpop.permute.xlu0 %3472
        %3474 = vrot.lane.b32.xlu0 %v2694, 8
        %v3475 = vpop.permute.xlu0 %3474
        %3484 = vrot.lane.b32.xlu0 %v2815, 16
        %v3485 = vpop.permute.xlu0 %3484
        %3486 = vrot.lane.b32.xlu0 %v2817, 16
        %v3487 = vpop.permute.xlu0 %3486
        %3488 = vrot.lane.b32.xlu0 %v2820, 16
        %v3489 = vpop.permute.xlu0 %3488
        %3490 = vrot.lane.b32.xlu0 %v2822, 16
        %v3491 = vpop.permute.xlu0 %3490
        %3500 = vrot.lane.b32.xlu0 %v2943, 24
        %v3501 = vpop.permute.xlu0 %3500
        %3502 = vrot.lane.b32.xlu0 %v2945, 24
        %v3503 = vpop.permute.xlu0 %3502
        %3504 = vrot.lane.b32.xlu0 %v2948, 24
        %v3505 = vpop.permute.xlu0 %3504
        %3506 = vrot.lane.b32.xlu0 %v2950, 24
        %v3507 = vpop.permute.xlu0 %3506
        %3516 = vrot.lane.b32.xlu0 %v3071, 32
        %v3517 = vpop.permute.xlu0 %3516
        %3518 = vrot.lane.b32.xlu0 %v3073, 32
        %v3519 = vpop.permute.xlu0 %3518
        %3520 = vrot.lane.b32.xlu0 %v3076, 32
        %v3521 = vpop.permute.xlu0 %3520
        %3522 = vrot.lane.b32.xlu0 %v3078, 32
        %v3523 = vpop.permute.xlu0 %3522
        %3532 = vrot.lane.b32.xlu0 %v3199, 40
        %v3533 = vpop.permute.xlu0 %3532
        %3534 = vrot.lane.b32.xlu0 %v3201, 40
        %v3535 = vpop.permute.xlu0 %3534
        %3536 = vrot.lane.b32.xlu0 %v3204, 40
        %v3537 = vpop.permute.xlu0 %3536
        %3538 = vrot.lane.b32.xlu0 %v3206, 40
        %v3539 = vpop.permute.xlu0 %3538
        %3548 = vrot.lane.b32.xlu0 %v3327, 48
        %v3549 = vpop.permute.xlu0 %3548
        %3550 = vrot.lane.b32.xlu0 %v3329, 48
        %v3551 = vpop.permute.xlu0 %3550
        %3552 = vrot.lane.b32.xlu0 %v3332, 48
        %v3553 = vpop.permute.xlu0 %3552
        %3554 = vrot.lane.b32.xlu0 %v3334, 48
        %v3555 = vpop.permute.xlu0 %3554
        %3564 = vrot.lane.b32.xlu0 %v3455, 56
        %v3565 = vpop.permute.xlu0 %3564
        %3566 = vrot.lane.b32.xlu0 %v3457, 56
        %v3567 = vpop.permute.xlu0 %3566
        %3568 = vrot.lane.b32.xlu0 %v3460, 56
        %v3569 = vpop.permute.xlu0 %3568
        %3570 = vrot.lane.b32.xlu0 %v3462, 56
        %v3571 = vpop.permute.xlu0 %3570
        %v3576 = vsel %vm707, %v2559, %v3469
        %v3577 = vsel %vm707, %v2561, %v3471
        %v3578 = vsel %vm707, %v2564, %v3473
        %v3579 = vsel %vm707, %v2566, %v3475
        %v3580 = vsel %vm1847, %v3576, %v3485
        %v3581 = vsel %vm1847, %v3577, %v3487
        %v3582 = vsel %vm1847, %v3578, %v3489
        %v3583 = vsel %vm1847, %v3579, %v3491
        %v3584 = vsel %vm1852, %v3580, %v3501
        %v3585 = vsel %vm1852, %v3581, %v3503
        %v3586 = vsel %vm1852, %v3582, %v3505
        %v3587 = vsel %vm1852, %v3583, %v3507
        %v3588 = vsel %vm739, %v3584, %v3517
        %v3589 = vsel %vm739, %v3585, %v3519
        %v3590 = vsel %vm739, %v3586, %v3521
        %v3591 = vsel %vm739, %v3587, %v3523
        %v3592 = vsel %vm1861, %v3588, %v3533
        %v3593 = vsel %vm1861, %v3589, %v3535
        %v3594 = vsel %vm1861, %v3590, %v3537
        %v3595 = vsel %vm1861, %v3591, %v3539
        %v3596 = vsel %vm1866, %v3592, %v3549
        %v3597 = vsel %vm1866, %v3593, %v3551
        %v3598 = vsel %vm1866, %v3594, %v3553
        %v3599 = vsel %vm1866, %v3595, %v3555
        %v3600 = vsel %vm1871, %v3596, %v3565
        %v3601 = vsel %vm1871, %v3597, %v3567
        %v3602 = vsel %vm1871, %v3598, %v3569
        %v3603 = vsel %vm1871, %v3599, %v3571
        %v3604 = vpack.c.bf16 %v3601, %v3600
        %v3605 = vpack.c.bf16 %v3603, %v3602
        %s3606 = scalar_lea.vmem %s3, 32
        %v3607 = vld [vmem:[%s3606] sm:$0xf]
        %v3608 = vld [vmem:[%s3606 + $0x4] sm:$0xf]
        %v3609 = vld [vmem:[%s3606 + $0x8] sm:$0xf]
        %v3610 = vld [vmem:[%s3606 + $0xc] sm:$0xf]
        %v3611 = vld [vmem:[%s3606 + $0x10] sm:$0xf]
        %v3612 = vld [vmem:[%s3606 + $0x14] sm:$0xf]
        %v3613 = vld [vmem:[%s3606 + $0x18] sm:$0xf]
        %v3614 = vld [vmem:[%s3606 + $0x1c] sm:$0xf]
        %s3615 = scalar_lea.vmem %s4, 1
        %v3616 = vld [vmem:[%s3615] sm:$0x1]
        %v3618 = vperm.slane %v3616, 0
        %v3628 = vunpack.c.l.b16 %v3607
        %v3629 = vunpack.c.l.b16 %v3608
        %v3630 = vunpack.c.l.b16 %v3609
        %v3631 = vunpack.c.l.b16 %v3610
        %v3632 = vunpack.c.l.b16 %v3611
        %v3633 = vunpack.c.l.b16 %v3612
        %v3634 = vunpack.c.l.b16 %v3613
        %v3635 = vunpack.c.l.b16 %v3614
        %v3636 = vpack.c.b16 %v3629, %v3628
        %v3637 = vpack.c.b16 %v3631, %v3630
        %v3638 = vpack.c.b16 %v3633, %v3632
        %v3639 = vpack.c.b16 %v3635, %v3634
        %v3645 = vsel %vm640, %v3604, 0
        %v3648 = vsel %vm640, %v3605, 0
        %3650 = vmatpush.bf16.msra.mxu0 0
        %3651 = vmatpush.bf16.msra.mxu0 0
        %3652 = vmatpush.bf16.msra.mxu0 0
        %3653 = vmatpush.bf16.msra.mxu0 0
        %3654 = vmatpush.bf16.msra.mxu0 %v3639
        %3655 = vmatpush.bf16.msra.mxu0 %v3638
        %3656 = vmatpush.bf16.msra.mxu0 %v3637
        %3657 = vmatpush.bf16.msra.mxu0 %v3636
        %3658 = vmatmul.bf16.gmra.mxu0 %v3645
        %v3659 = vpop.f32.mrf.mxu0
        %v3660 = vadd.f32 %v3618, %v3659
        %v3661 = vpop.f32.mrf.mxu0
        %v3662 = vadd.f32 %v3618, %v3661
        %3663 = vmatmul.bf16.gmra.mxu0 %v3648
        %v3664 = vpop.f32.mrf.mxu0
        %v3665 = vadd.f32 %v3618, %v3664
        %v3666 = vpop.f32.mrf.mxu0
        %v3667 = vadd.f32 %v3618, %v3666
        %3668 = vdwg.mxu0
        %v3669 = vadd.f32 %v2314, %v3660
        %v3670 = vadd.f32 %v2315, %v3662
        %v3671 = vadd.f32 %v2316, %v3665
        %v3672 = vadd.f32 %v2317, %v3667
        %v3673 = vsel %vm640, %v3669, 0.0
        %3674 = vadd.xlane.f32.xlu0 %v3673
        %v3675 = vpop.xlane.xlu0 %3674
        %v3676 = vsel %vm640, %v3670, 0.0
        %3677 = vadd.xlane.f32.xlu0 %v3676
        %v3678 = vpop.xlane.xlu0 %3677
        %v3679 = vsel %vm640, %v3671, 0.0
        %3680 = vadd.xlane.f32.xlu0 %v3679
        %v3681 = vpop.xlane.xlu0 %3680
        %v3682 = vsel %vm640, %v3672, 0.0
        %3683 = vadd.xlane.f32.xlu0 %v3682
        %v3684 = vpop.xlane.xlu0 %3683
        %v3685 = vmul.f32 %v3675, %v1961
        %v3686 = vmul.f32 %v3678, %v1961
        %v3687 = vmul.f32 %v3681, %v1961
        %v3688 = vmul.f32 %v3684, %v1961
        %v3689 = vsub.f32 %v3669, %v3685
        %v3690 = vsub.f32 %v3670, %v3686
        %v3691 = vsub.f32 %v3671, %v3687
        %v3692 = vsub.f32 %v3672, %v3688
        %v3693 = vmul.f32 %v3689, %v3689
        %v3694 = vmul.f32 %v3690, %v3690
        %v3695 = vmul.f32 %v3691, %v3691
        %v3696 = vmul.f32 %v3692, %v3692
        %v3697 = vsel %vm640, %v3693, 0.0
        %3698 = vadd.xlane.f32.xlu0 %v3697
        %v3699 = vpop.xlane.xlu0 %3698
        %v3700 = vsel %vm640, %v3694, 0.0
        %3701 = vadd.xlane.f32.xlu0 %v3700
        %v3702 = vpop.xlane.xlu0 %3701
        %v3703 = vsel %vm640, %v3695, 0.0
        %3704 = vadd.xlane.f32.xlu0 %v3703
        %v3705 = vpop.xlane.xlu0 %3704
        %v3706 = vsel %vm640, %v3696, 0.0
        %3707 = vadd.xlane.f32.xlu0 %v3706
        %v3708 = vpop.xlane.xlu0 %3707
        %v3709 = vmul.f32 %v3699, %v1961
        %v3710 = vmul.f32 %v3702, %v1961
        %v3711 = vmul.f32 %v3705, %v1961
        %v3712 = vmul.f32 %v3708, %v1961
        %v3713 = vadd.f32 %v3709, 1e-05
        %v3714 = vadd.f32 %v3710, 1e-05
        %v3715 = vadd.f32 %v3711, 1e-05
        %v3716 = vadd.f32 %v3712, 1e-05
        %v3717 = vrsqrt.pop %v3713
        %v3718 = vmul.f32 %v3717, %v3713
        %v3719 = vmul.f32 %v3718, %v3717
        %v3720 = vmul.f32 0.5, %v3719
        %v3721 = vsub.f32 1.5, %v3720
        %v3722 = vmul.f32 %v3717, %v3721
        %vm3723 = vweird.f32 %v3713
        %vm3724 = vweird.f32 %v3717
        %vm3725 = vmor %vm3723, %vm3724
        %v3726 = vsel %vm3725, %v3717, %v3722
        %v3727 = vrsqrt.pop %v3714
        %v3728 = vmul.f32 %v3727, %v3714
        %v3729 = vmul.f32 %v3728, %v3727
        %v3730 = vmul.f32 0.5, %v3729
        %v3731 = vsub.f32 1.5, %v3730
        %v3732 = vmul.f32 %v3727, %v3731
        %vm3733 = vweird.f32 %v3714
        %vm3734 = vweird.f32 %v3727
        %vm3735 = vmor %vm3733, %vm3734
        %v3736 = vsel %vm3735, %v3727, %v3732
        %v3737 = vrsqrt.pop %v3715
        %v3738 = vmul.f32 %v3737, %v3715
        %v3739 = vmul.f32 %v3738, %v3737
        %v3740 = vmul.f32 0.5, %v3739
        %v3741 = vsub.f32 1.5, %v3740
        %v3742 = vmul.f32 %v3737, %v3741
        %vm3743 = vweird.f32 %v3715
        %vm3744 = vweird.f32 %v3737
        %vm3745 = vmor %vm3743, %vm3744
        %v3746 = vsel %vm3745, %v3737, %v3742
        %v3747 = vrsqrt.pop %v3716
        %v3748 = vmul.f32 %v3747, %v3716
        %v3749 = vmul.f32 %v3748, %v3747
        %v3750 = vmul.f32 0.5, %v3749
        %v3751 = vsub.f32 1.5, %v3750
        %v3752 = vmul.f32 %v3747, %v3751
        %vm3753 = vweird.f32 %v3716
        %vm3754 = vweird.f32 %v3747
        %vm3755 = vmor %vm3753, %vm3754
        %v3756 = vsel %vm3755, %v3747, %v3752
        %v3757 = vmul.f32 %v3689, %v3726
        %v3758 = vmul.f32 %v3690, %v3736
        %v3759 = vmul.f32 %v3691, %v3746
        %v3760 = vmul.f32 %v3692, %v3756
        %s3761 = scalar_lea.vmem [#allocation10], 1
        %v3762 = vld [vmem:[%s3761] sm:$0x1]
        %v3764 = vperm.slane %v3762, 0
        %v3766 = vmul.f32 %v3757, %v3764
        %v3767 = vmul.f32 %v3758, %v3764
        %v3768 = vmul.f32 %v3759, %v3764
        %v3769 = vmul.f32 %v3760, %v3764
        %s3770 = scalar_lea.vmem [#allocation11], 1
        %v3771 = vld [vmem:[%s3770] sm:$0x1]
        %v3773 = vperm.slane %v3771, 0
        %v3775 = vadd.f32 %v3766, %v3773
        %v3776 = vadd.f32 %v3767, %v3773
        %v3777 = vadd.f32 %v3768, %v3773
        %v3778 = vadd.f32 %v3769, %v3773
        %v3779 = vpack.c.bf16 %v3776, %v3775
        %v3780 = vpack.c.bf16 %v3778, %v3777
        %s3781 = scalar_lea.vmem [#allocation5], 32
        %v3782 = vld [vmem:[%s3781] sm:$0xf]
        %v3783 = vld [vmem:[%s3781 + $0x4] sm:$0xf]
        %v3784 = vld [vmem:[%s3781 + $0x8] sm:$0xf]
        %v3785 = vld [vmem:[%s3781 + $0xc] sm:$0xf]
        %v3786 = vld [vmem:[%s3781 + $0x10] sm:$0xf]
        %v3787 = vld [vmem:[%s3781 + $0x14] sm:$0xf]
        %v3788 = vld [vmem:[%s3781 + $0x18] sm:$0xf]
        %v3789 = vld [vmem:[%s3781 + $0x1c] sm:$0xf]
        %s3790 = scalar_lea.vmem [#allocation7], 1
        %v3791 = vld [vmem:[%s3790] sm:$0x1]
        %v3793 = vperm.slane %v3791, 0
        %v3803 = vunpack.c.l.b16 %v3782
        %v3804 = vunpack.c.l.b16 %v3783
        %v3805 = vunpack.c.l.b16 %v3784
        %v3806 = vunpack.c.l.b16 %v3785
        %v3807 = vunpack.c.l.b16 %v3786
        %v3808 = vunpack.c.l.b16 %v3787
        %v3809 = vunpack.c.l.b16 %v3788
        %v3810 = vunpack.c.l.b16 %v3789
        %v3811 = vpack.c.b16 %v3804, %v3803
        %v3812 = vpack.c.b16 %v3806, %v3805
        %v3813 = vpack.c.b16 %v3808, %v3807
        %v3814 = vpack.c.b16 %v3810, %v3809
        %v3820 = vsel %vm640, %v3779, 0
        %v3823 = vsel %vm640, %v3780, 0
        %3825 = vmatpush.bf16.msra.mxu0 0
        %3826 = vmatpush.bf16.msra.mxu0 0
        %3827 = vmatpush.bf16.msra.mxu0 0
        %3828 = vmatpush.bf16.msra.mxu0 0
        %3829 = vmatpush.bf16.msra.mxu0 %v3814
        %3830 = vmatpush.bf16.msra.mxu0 %v3813
        %3831 = vmatpush.bf16.msra.mxu0 %v3812
        %3832 = vmatpush.bf16.msra.mxu0 %v3811
        %3833 = vmatmul.bf16.gmra.mxu0 %v3820
        %v3834 = vpop.f32.mrf.mxu0
        %v3835 = vadd.f32 %v3793, %v3834
        %v3836 = vpop.f32.mrf.mxu0
        %v3837 = vadd.f32 %v3793, %v3836
        %3838 = vmatmul.bf16.gmra.mxu0 %v3823
        %v3839 = vpop.f32.mrf.mxu0
        %v3840 = vadd.f32 %v3793, %v3839
        %v3841 = vpop.f32.mrf.mxu0
        %v3842 = vadd.f32 %v3793, %v3841
        %3843 = vdwg.mxu0
        %v3844 = vmax.f32 %v3835, 0.0
        %v3845 = vmax.f32 %v3837, 0.0
        %v3846 = vmax.f32 %v3840, 0.0
        %v3847 = vmax.f32 %v3842, 0.0
        %v3848 = vpack.c.bf16 %v3845, %v3844
        %v3849 = vpack.c.bf16 %v3847, %v3846
        %s3850 = scalar_lea.vmem %s7, 64
        %v3851 = vld [vmem:[%s3850] sm:$0xf]
        %v3852 = vld [vmem:[%s3850 + $0x4] sm:$0xf]
        %v3853 = vld [vmem:[%s3850 + $0x8] sm:$0xf]
        %v3854 = vld [vmem:[%s3850 + $0xc] sm:$0xf]
        %v3855 = vld [vmem:[%s3850 + $0x10] sm:$0xf]
        %v3856 = vld [vmem:[%s3850 + $0x14] sm:$0xf]
        %v3857 = vld [vmem:[%s3850 + $0x18] sm:$0xf]
        %v3858 = vld [vmem:[%s3850 + $0x1c] sm:$0xf]
        %v3859 = vld [vmem:[%s3850 + $0x20] sm:$0xf]
        %v3860 = vld [vmem:[%s3850 + $0x24] sm:$0xf]
        %v3861 = vld [vmem:[%s3850 + $0x28] sm:$0xf]
        %v3862 = vld [vmem:[%s3850 + $0x2c] sm:$0xf]
        %v3863 = vld [vmem:[%s3850 + $0x30] sm:$0xf]
        %v3864 = vld [vmem:[%s3850 + $0x34] sm:$0xf]
        %v3865 = vld [vmem:[%s3850 + $0x38] sm:$0xf]
        %v3866 = vld [vmem:[%s3850 + $0x3c] sm:$0xf]
        %s3867 = scalar_lea.vmem [#allocation8], 1
        %v3868 = vld [vmem:[%s3867] sm:$0x1]
        %v3870 = vperm.slane %v3868, 0
        %v3888 = vunpack.c.l.b16 %v3851
        %v3889 = vunpack.c.l.b16 %v3852
        %v3890 = vunpack.c.l.b16 %v3853
        %v3891 = vunpack.c.l.b16 %v3854
        %v3892 = vunpack.c.l.b16 %v3855
        %v3893 = vunpack.c.l.b16 %v3856
        %v3894 = vunpack.c.l.b16 %v3857
        %v3895 = vunpack.c.l.b16 %v3858
        %v3896 = vunpack.c.l.b16 %v3859
        %v3897 = vunpack.c.l.b16 %v3860
        %v3898 = vunpack.c.l.b16 %v3861
        %v3899 = vunpack.c.l.b16 %v3862
        %v3900 = vunpack.c.l.b16 %v3863
        %v3901 = vunpack.c.l.b16 %v3864
        %v3902 = vunpack.c.l.b16 %v3865
        %v3903 = vunpack.c.l.b16 %v3866
        %v3904 = vpack.c.b16 %v3889, %v3888
        %v3905 = vpack.c.b16 %v3891, %v3890
        %v3906 = vpack.c.b16 %v3893, %v3892
        %v3907 = vpack.c.b16 %v3895, %v3894
        %v3908 = vpack.c.b16 %v3897, %v3896
        %v3909 = vpack.c.b16 %v3899, %v3898
        %v3910 = vpack.c.b16 %v3901, %v3900
        %v3911 = vpack.c.b16 %v3903, %v3902
        %3920 = vmatpush.bf16.msra.mxu0 %v3911
        %3921 = vmatpush.bf16.msra.mxu0 %v3910
        %3922 = vmatpush.bf16.msra.mxu0 %v3909
        %3923 = vmatpush.bf16.msra.mxu0 %v3908
        %3924 = vmatpush.bf16.msra.mxu0 %v3907
        %3925 = vmatpush.bf16.msra.mxu0 %v3906
        %3926 = vmatpush.bf16.msra.mxu0 %v3905
        %3927 = vmatpush.bf16.msra.mxu0 %v3904
        %3928 = vmatmul.bf16.gmra.mxu0 %v3848
        %v3929 = vpop.f32.mrf.mxu0
        %v3930 = vadd.f32 %v3870, %v3929
        %v3931 = vpop.f32.mrf.mxu0
        %v3932 = vadd.f32 %v3870, %v3931
        %3933 = vmatmul.bf16.gmra.mxu0 %v3849
        %v3934 = vpop.f32.mrf.mxu0
        %v3935 = vadd.f32 %v3870, %v3934
        %v3936 = vpop.f32.mrf.mxu0
        %v3937 = vadd.f32 %v3870, %v3936
        %3938 = vdwg.mxu0
        %v3939 = vadd.f32 %v3775, %v3930
        %v3940 = vadd.f32 %v3776, %v3932
        %v3941 = vadd.f32 %v3777, %v3935
        %v3942 = vadd.f32 %v3778, %v3937
        %v3943 = vsel %vm640, %v3939, 0.0
        %3944 = vadd.xlane.f32.xlu0 %v3943
        %v3945 = vpop.xlane.xlu0 %3944
        %v3946 = vsel %vm640, %v3940, 0.0
        %3947 = vadd.xlane.f32.xlu0 %v3946
        %v3948 = vpop.xlane.xlu0 %3947
        %v3949 = vsel %vm640, %v3941, 0.0
        %3950 = vadd.xlane.f32.xlu0 %v3949
        %v3951 = vpop.xlane.xlu0 %3950
        %v3952 = vsel %vm640, %v3942, 0.0
        %3953 = vadd.xlane.f32.xlu0 %v3952
        %v3954 = vpop.xlane.xlu0 %3953
        %v3955 = vmul.f32 %v3945, %v1961
        %v3956 = vmul.f32 %v3948, %v1961
        %v3957 = vmul.f32 %v3951, %v1961
        %v3958 = vmul.f32 %v3954, %v1961
        %v3959 = vsub.f32 %v3939, %v3955
        %v3960 = vsub.f32 %v3940, %v3956
        %v3961 = vsub.f32 %v3941, %v3957
        %v3962 = vsub.f32 %v3942, %v3958
        %v3963 = vmul.f32 %v3959, %v3959
        %v3964 = vmul.f32 %v3960, %v3960
        %v3965 = vmul.f32 %v3961, %v3961
        %v3966 = vmul.f32 %v3962, %v3962
        %v3967 = vsel %vm640, %v3963, 0.0
        %3968 = vadd.xlane.f32.xlu0 %v3967
        %v3969 = vpop.xlane.xlu0 %3968
        %v3970 = vsel %vm640, %v3964, 0.0
        %3971 = vadd.xlane.f32.xlu0 %v3970
        %v3972 = vpop.xlane.xlu0 %3971
        %v3973 = vsel %vm640, %v3965, 0.0
        %3974 = vadd.xlane.f32.xlu0 %v3973
        %v3975 = vpop.xlane.xlu0 %3974
        %v3976 = vsel %vm640, %v3966, 0.0
        %3977 = vadd.xlane.f32.xlu0 %v3976
        %v3978 = vpop.xlane.xlu0 %3977
        %v3979 = vmul.f32 %v3969, %v1961
        %v3980 = vmul.f32 %v3972, %v1961
        %v3981 = vmul.f32 %v3975, %v1961
        %v3982 = vmul.f32 %v3978, %v1961
        %v3983 = vadd.f32 %v3979, 1e-05
        %v3984 = vadd.f32 %v3980, 1e-05
        %v3985 = vadd.f32 %v3981, 1e-05
        %v3986 = vadd.f32 %v3982, 1e-05
        %v3987 = vrsqrt.pop %v3983
        %v3988 = vmul.f32 %v3987, %v3983
        %v3989 = vmul.f32 %v3988, %v3987
        %v3990 = vmul.f32 0.5, %v3989
        %v3991 = vsub.f32 1.5, %v3990
        %v3992 = vmul.f32 %v3987, %v3991
        %vm3993 = vweird.f32 %v3983
        %vm3994 = vweird.f32 %v3987
        %vm3995 = vmor %vm3993, %vm3994
        %v3996 = vsel %vm3995, %v3987, %v3992
        %v3997 = vrsqrt.pop %v3984
        %v3998 = vmul.f32 %v3997, %v3984
        %v3999 = vmul.f32 %v3998, %v3997
        %v4000 = vmul.f32 0.5, %v3999
        %v4001 = vsub.f32 1.5, %v4000
        %v4002 = vmul.f32 %v3997, %v4001
        %vm4003 = vweird.f32 %v3984
        %vm4004 = vweird.f32 %v3997
        %vm4005 = vmor %vm4003, %vm4004
        %v4006 = vsel %vm4005, %v3997, %v4002
        %v4007 = vrsqrt.pop %v3985
        %v4008 = vmul.f32 %v4007, %v3985
        %v4009 = vmul.f32 %v4008, %v4007
        %v4010 = vmul.f32 0.5, %v4009
        %v4011 = vsub.f32 1.5, %v4010
        %v4012 = vmul.f32 %v4007, %v4011
        %vm4013 = vweird.f32 %v3985
        %vm4014 = vweird.f32 %v4007
        %vm4015 = vmor %vm4013, %vm4014
        %v4016 = vsel %vm4015, %v4007, %v4012
        %v4017 = vrsqrt.pop %v3986
        %v4018 = vmul.f32 %v4017, %v3986
        %v4019 = vmul.f32 %v4018, %v4017
        %v4020 = vmul.f32 0.5, %v4019
        %v4021 = vsub.f32 1.5, %v4020
        %v4022 = vmul.f32 %v4017, %v4021
        %vm4023 = vweird.f32 %v3986
        %vm4024 = vweird.f32 %v4017
        %vm4025 = vmor %vm4023, %vm4024
        %v4026 = vsel %vm4025, %v4017, %v4022
        %v4027 = vmul.f32 %v3959, %v3996
        %v4028 = vmul.f32 %v3960, %v4006
        %v4029 = vmul.f32 %v3961, %v4016
        %v4030 = vmul.f32 %v3962, %v4026
        %s4031 = scalar_lea.vmem [#allocation13], 1
        %v4032 = vld [vmem:[%s4031] sm:$0x1]
        %v4034 = vperm.slane %v4032, 0
        %v4036 = vmul.f32 %v4027, %v4034
        %v4037 = vmul.f32 %v4028, %v4034
        %v4038 = vmul.f32 %v4029, %v4034
        %v4039 = vmul.f32 %v4030, %v4034
        %s4040 = scalar_lea.vmem [#allocation14], 1
        %v4041 = vld [vmem:[%s4040] sm:$0x1]
        %v4043 = vperm.slane %v4041, 0
        %v4045 = vadd.f32 %v4036, %v4043
        %v4046 = vadd.f32 %v4037, %v4043
        %v4047 = vadd.f32 %v4038, %v4043
        %v4048 = vadd.f32 %v4039, %v4043
        %v4049 = vpack.c.bf16 %v4046, %v4045
        %v4050 = vpack.c.bf16 %v4048, %v4047
        %s4051 = scalar_lea.vmem %s1, 128
        %v4052 = vld [vmem:[%s4051] sm:$0xff]
        %v4053 = vld [vmem:[%s4051 + $0x8] sm:$0xff]
        %v4054 = vld [vmem:[%s4051 + $0x10] sm:$0xff]
        %v4055 = vld [vmem:[%s4051 + $0x18] sm:$0xff]
        %v4056 = vld [vmem:[%s4051 + $0x20] sm:$0xff]
        %v4057 = vld [vmem:[%s4051 + $0x28] sm:$0xff]
        %v4058 = vld [vmem:[%s4051 + $0x30] sm:$0xff]
        %v4059 = vld [vmem:[%s4051 + $0x38] sm:$0xff]
        %s4060 = scalar_lea.vmem %s2, 4
        %v4061 = vld [vmem:[%s4060] sm:$0x3]
        %v4063 = vperm.slane %v4061, 0
        %v4064 = vperm.slane %v4061, 1
        %v4075 = vunpack.c.l.b16 %v4052
        %v4076 = vunpack.c.h.b16 %v4052
        %v4077 = vunpack.c.l.b16 %v4053
        %v4078 = vunpack.c.h.b16 %v4053
        %v4079 = vunpack.c.l.b16 %v4054
        %v4080 = vunpack.c.h.b16 %v4054
        %v4081 = vunpack.c.l.b16 %v4055
        %v4082 = vunpack.c.h.b16 %v4055
        %v4083 = vunpack.c.l.b16 %v4056
        %v4084 = vunpack.c.h.b16 %v4056
        %v4085 = vunpack.c.l.b16 %v4057
        %v4086 = vunpack.c.h.b16 %v4057
        %v4087 = vunpack.c.l.b16 %v4058
        %v4088 = vunpack.c.h.b16 %v4058
        %v4089 = vunpack.c.l.b16 %v4059
        %v4090 = vunpack.c.h.b16 %v4059
        %v4091 = vpack.c.b16 %v4077, %v4075
        %v4092 = vpack.c.b16 %v4078, %v4076
        %v4093 = vpack.c.b16 %v4081, %v4079
        %v4094 = vpack.c.b16 %v4082, %v4080
        %v4095 = vpack.c.b16 %v4085, %v4083
        %v4096 = vpack.c.b16 %v4086, %v4084
        %v4097 = vpack.c.b16 %v4089, %v4087
        %v4098 = vpack.c.b16 %v4090, %v4088
        %v4108 = vsel %vm640, %v4049, 0
        %v4111 = vsel %vm640, %v4050, 0
        %4113 = vmatpush.bf16.msra.mxu0 0
        %4114 = vmatpush.bf16.msra.mxu0 0
        %4115 = vmatpush.bf16.msra.mxu0 0
        %4116 = vmatpush.bf16.msra.mxu0 0
        %4117 = vmatpush.bf16.msra.mxu0 %v4097
        %4118 = vmatpush.bf16.msra.mxu0 %v4095
        %4119 = vmatpush.bf16.msra.mxu0 %v4093
        %4120 = vmatpush.bf16.msra.mxu0 %v4091
        %4121 = vmatmul.bf16.gmra.mxu0 %v4108
        %v4122 = vpop.f32.mrf.mxu0
        %v4123 = vadd.f32 %v4063, %v4122
        %v4124 = vpop.f32.mrf.mxu0
        %v4125 = vadd.f32 %v4063, %v4124
        %4126 = vmatmul.bf16.gmra.mxu0 %v4111
        %v4127 = vpop.f32.mrf.mxu0
        %v4128 = vadd.f32 %v4063, %v4127
        %v4129 = vpop.f32.mrf.mxu0
        %v4130 = vadd.f32 %v4063, %v4129
        %4131 = vdwg.mxu0
        %4132 = vmatpush.bf16.msra.mxu0 0
        %4133 = vmatpush.bf16.msra.mxu0 0
        %4134 = vmatpush.bf16.msra.mxu0 0
        %4135 = vmatpush.bf16.msra.mxu0 0
        %4136 = vmatpush.bf16.msra.mxu0 %v4098
        %4137 = vmatpush.bf16.msra.mxu0 %v4096
        %4138 = vmatpush.bf16.msra.mxu0 %v4094
        %4139 = vmatpush.bf16.msra.mxu0 %v4092
        %4140 = vmatmul.bf16.gmra.mxu0 %v4108
        %v4141 = vpop.f32.mrf.mxu0
        %v4142 = vadd.f32 %v4064, %v4141
        %v4143 = vpop.f32.mrf.mxu0
        %v4144 = vadd.f32 %v4064, %v4143
        %4145 = vmatmul.bf16.gmra.mxu0 %v4111
        %v4146 = vpop.f32.mrf.mxu0
        %v4147 = vadd.f32 %v4064, %v4146
        %v4148 = vpop.f32.mrf.mxu0
        %v4149 = vadd.f32 %v4064, %v4148
        %4150 = vdwg.mxu0
        %v4151 = vpack.c.bf16 %v4123, %v4123
        %v4152 = vpack.c.bf16 %v4125, %v4125
        %v4153 = vpack.c.bf16 %v4128, %v4128
        %v4154 = vpack.c.bf16 %v4130, %v4130
        %v4155 = vpack.c.bf16 %v4142, %v4142
        %v4156 = vpack.c.bf16 %v4144, %v4144
        %v4157 = vpack.c.bf16 %v4147, %v4147
        %v4158 = vpack.c.bf16 %v4149, %v4149
        %v4163 = vunpack.c.l.b16 %v4151
        %v4164 = vunpack.c.l.b16 %v4152
        %v4165 = vunpack.c.l.b16 %v4153
        %v4166 = vunpack.c.l.b16 %v4154
        %v4167 = vpack.c.b16 %v4164, %v4163
        %v4168 = vpack.c.b16 %v4166, %v4165
        %4169 = vrot.lane.b32.xlu0 %v4167, 64
        %v4170 = vpop.permute.xlu0 %4169
        %4171 = vrot.lane.b32.xlu0 %v4168, 64
        %v4172 = vpop.permute.xlu0 %4171
        %v4174 = vsel %vm707, %v4167, 0
        %v4177 = vsel %vm707, %v4168, 0
        %v4180 = vsel %vm707, %v4170, 0
        %v4183 = vsel %vm707, %v4172, 0
        %4185 = vmatpush.bf16.xpose.msra.mxu0 0
        %4186 = vmatpush.bf16.xpose.msra.mxu0 0
        %4187 = vmatpush.bf16.xpose.msra.mxu0 0
        %4188 = vmatpush.bf16.xpose.msra.mxu0 0
        %4189 = vmatpush.bf16.xpose.msra.mxu0 0
        %4190 = vmatpush.bf16.xpose.msra.mxu0 0
        %4191 = vmatpush.bf16.xpose.msra.mxu0 %v4183
        %4192 = vmatpush.bf16.xpose.msra.mxu0 %v4180
        %4193 = vmatmul.bf16.gmra.mxu0 %v4174
        %v4194 = vpop.f32.mrf.mxu0
        %v4195 = vadd.f32 0.0, %v4194
        %v4196 = vpop.f32.mrf.mxu0
        %v4197 = vadd.f32 0.0, %v4196
        %4198 = vmatmul.bf16.gmra.mxu0 %v4177
        %v4199 = vpop.f32.mrf.mxu0
        %v4200 = vadd.f32 0.0, %v4199
        %v4201 = vpop.f32.mrf.mxu0
        %v4202 = vadd.f32 0.0, %v4201
        %4203 = vdwg.mxu0
        %v4204 = vsel %vm739, %v4195, -inf
        %4205 = vmax.xlane.f32.xlu0 %v4204
        %v4206 = vpop.xlane.xlu0 %4205
        %v4207 = vsel %vm739, %v4197, -inf
        %4208 = vmax.xlane.f32.xlu0 %v4207
        %v4209 = vpop.xlane.xlu0 %4208
        %v4210 = vsel %vm739, %v4200, -inf
        %4211 = vmax.xlane.f32.xlu0 %v4210
        %v4212 = vpop.xlane.xlu0 %4211
        %v4213 = vsel %vm739, %v4202, -inf
        %4214 = vmax.xlane.f32.xlu0 %v4213
        %v4215 = vpop.xlane.xlu0 %4214
        %v4216 = vsub.f32 %v4195, %v4206
        %v4217 = vsub.f32 %v4197, %v4209
        %v4218 = vsub.f32 %v4200, %v4212
        %v4219 = vsub.f32 %v4202, %v4215
        %v4220 = vmul.f32 %v4216, 1.442695
        %v4221 = vpow.pop %v4220
        %v4222 = vmul.f32 %v4217, 1.442695
        %v4223 = vpow.pop %v4222
        %v4224 = vmul.f32 %v4218, 1.442695
        %v4225 = vpow.pop %v4224
        %v4226 = vmul.f32 %v4219, 1.442695
        %v4227 = vpow.pop %v4226
        %v4228 = vsel %vm739, %v4221, 0.0
        %4229 = vadd.xlane.f32.xlu0 %v4228
        %v4230 = vpop.xlane.xlu0 %4229
        %v4231 = vsel %vm739, %v4223, 0.0
        %4232 = vadd.xlane.f32.xlu0 %v4231
        %v4233 = vpop.xlane.xlu0 %4232
        %v4234 = vsel %vm739, %v4225, 0.0
        %4235 = vadd.xlane.f32.xlu0 %v4234
        %v4236 = vpop.xlane.xlu0 %4235
        %v4237 = vsel %vm739, %v4227, 0.0
        %4238 = vadd.xlane.f32.xlu0 %v4237
        %v4239 = vpop.xlane.xlu0 %4238
        %v4240 = vrcp.pop %v4230
        %v4241 = vrcp.pop %v4233
        %v4242 = vrcp.pop %v4236
        %v4243 = vrcp.pop %v4239
        %v4244 = vmul.f32 %v4221, %v4240
        %v4245 = vmul.f32 %v4223, %v4241
        %v4246 = vmul.f32 %v4225, %v4242
        %v4247 = vmul.f32 %v4227, %v4243
        %v4248 = vpack.c.bf16 %v4244, %v4244
        %v4249 = vpack.c.bf16 %v4245, %v4245
        %v4250 = vpack.c.bf16 %v4246, %v4246
        %v4251 = vpack.c.bf16 %v4247, %v4247
        %v4256 = vunpack.c.l.b16 %v4248
        %v4257 = vunpack.c.l.b16 %v4249
        %v4258 = vunpack.c.l.b16 %v4250
        %v4259 = vunpack.c.l.b16 %v4251
        %v4260 = vpack.c.b16 %v4257, %v4256
        %v4261 = vpack.c.b16 %v4259, %v4258
        %v4266 = vunpack.c.l.b16 %v4155
        %v4267 = vunpack.c.l.b16 %v4156
        %v4268 = vunpack.c.l.b16 %v4157
        %v4269 = vunpack.c.l.b16 %v4158
        %v4270 = vpack.c.b16 %v4267, %v4266
        %v4271 = vpack.c.b16 %v4269, %v4268
        %v4275 = vsel %vm739, %v4260, 0
        %v4278 = vsel %vm739, %v4261, 0
        %4280 = vmatpush.bf16.msra.mxu0 0
        %4281 = vmatpush.bf16.msra.mxu0 0
        %4282 = vmatpush.bf16.msra.mxu0 0
        %4283 = vmatpush.bf16.msra.mxu0 0
        %4284 = vmatpush.bf16.msra.mxu0 0
        %4285 = vmatpush.bf16.msra.mxu0 0
        %4286 = vmatpush.bf16.msra.mxu0 %v4271
        %4287 = vmatpush.bf16.msra.mxu0 %v4270
        %4288 = vmatmul.bf16.gmra.mxu0 %v4275
        %v4289 = vpop.f32.mrf.mxu0
        %v4290 = vadd.f32 0.0, %v4289
        %v4291 = vpop.f32.mrf.mxu0
        %v4292 = vadd.f32 0.0, %v4291
        %4293 = vmatmul.bf16.gmra.mxu0 %v4278
        %v4294 = vpop.f32.mrf.mxu0
        %v4295 = vadd.f32 0.0, %v4294
        %v4296 = vpop.f32.mrf.mxu0
        %v4297 = vadd.f32 0.0, %v4296
        %4298 = vdwg.mxu0
        %4299 = vrot.lane.b32.xlu0 %v4167, 120
        %v4300 = vpop.permute.xlu0 %4299
        %4301 = vrot.lane.b32.xlu0 %v4168, 120
        %v4302 = vpop.permute.xlu0 %4301
        %4303 = vrot.lane.b32.xlu0 %v4167, 56
        %v4304 = vpop.permute.xlu0 %4303
        %4305 = vrot.lane.b32.xlu0 %v4168, 56
        %v4306 = vpop.permute.xlu0 %4305
        %v4308 = vsel %vm707, %v4300, 0
        %v4311 = vsel %vm707, %v4302, 0
        %v4314 = vsel %vm707, %v4304, 0
        %v4317 = vsel %vm707, %v4306, 0
        %4319 = vmatpush.bf16.xpose.msra.mxu0 0
        %4320 = vmatpush.bf16.xpose.msra.mxu0 0
        %4321 = vmatpush.bf16.xpose.msra.mxu0 0
        %4322 = vmatpush.bf16.xpose.msra.mxu0 0
        %4323 = vmatpush.bf16.xpose.msra.mxu0 0
        %4324 = vmatpush.bf16.xpose.msra.mxu0 0
        %4325 = vmatpush.bf16.xpose.msra.mxu0 %v4317
        %4326 = vmatpush.bf16.xpose.msra.mxu0 %v4314
        %4327 = vmatmul.bf16.gmra.mxu0 %v4308
        %v4328 = vpop.f32.mrf.mxu0
        %v4329 = vadd.f32 0.0, %v4328
        %v4330 = vpop.f32.mrf.mxu0
        %v4331 = vadd.f32 0.0, %v4330
        %4332 = vmatmul.bf16.gmra.mxu0 %v4311
        %v4333 = vpop.f32.mrf.mxu0
        %v4334 = vadd.f32 0.0, %v4333
        %v4335 = vpop.f32.mrf.mxu0
        %v4336 = vadd.f32 0.0, %v4335
        %4337 = vdwg.mxu0
        %v4338 = vsel %vm739, %v4329, -inf
        %4339 = vmax.xlane.f32.xlu0 %v4338
        %v4340 = vpop.xlane.xlu0 %4339
        %v4341 = vsel %vm739, %v4331, -inf
        %4342 = vmax.xlane.f32.xlu0 %v4341
        %v4343 = vpop.xlane.xlu0 %4342
        %v4344 = vsel %vm739, %v4334, -inf
        %4345 = vmax.xlane.f32.xlu0 %v4344
        %v4346 = vpop.xlane.xlu0 %4345
        %v4347 = vsel %vm739, %v4336, -inf
        %4348 = vmax.xlane.f32.xlu0 %v4347
        %v4349 = vpop.xlane.xlu0 %4348
        %v4350 = vsub.f32 %v4329, %v4340
        %v4351 = vsub.f32 %v4331, %v4343
        %v4352 = vsub.f32 %v4334, %v4346
        %v4353 = vsub.f32 %v4336, %v4349
        %v4354 = vmul.f32 %v4350, 1.442695
        %v4355 = vpow.pop %v4354
        %v4356 = vmul.f32 %v4351, 1.442695
        %v4357 = vpow.pop %v4356
        %v4358 = vmul.f32 %v4352, 1.442695
        %v4359 = vpow.pop %v4358
        %v4360 = vmul.f32 %v4353, 1.442695
        %v4361 = vpow.pop %v4360
        %v4362 = vsel %vm739, %v4355, 0.0
        %4363 = vadd.xlane.f32.xlu0 %v4362
        %v4364 = vpop.xlane.xlu0 %4363
        %v4365 = vsel %vm739, %v4357, 0.0
        %4366 = vadd.xlane.f32.xlu0 %v4365
        %v4367 = vpop.xlane.xlu0 %4366
        %v4368 = vsel %vm739, %v4359, 0.0
        %4369 = vadd.xlane.f32.xlu0 %v4368
        %v4370 = vpop.xlane.xlu0 %4369
        %v4371 = vsel %vm739, %v4361, 0.0
        %4372 = vadd.xlane.f32.xlu0 %v4371
        %v4373 = vpop.xlane.xlu0 %4372
        %v4374 = vrcp.pop %v4364
        %v4375 = vrcp.pop %v4367
        %v4376 = vrcp.pop %v4370
        %v4377 = vrcp.pop %v4373
        %v4378 = vmul.f32 %v4355, %v4374
        %v4379 = vmul.f32 %v4357, %v4375
        %v4380 = vmul.f32 %v4359, %v4376
        %v4381 = vmul.f32 %v4361, %v4377
        %v4382 = vpack.c.bf16 %v4378, %v4378
        %v4383 = vpack.c.bf16 %v4379, %v4379
        %v4384 = vpack.c.bf16 %v4380, %v4380
        %v4385 = vpack.c.bf16 %v4381, %v4381
        %v4390 = vunpack.c.l.b16 %v4382
        %v4391 = vunpack.c.l.b16 %v4383
        %v4392 = vunpack.c.l.b16 %v4384
        %v4393 = vunpack.c.l.b16 %v4385
        %v4394 = vpack.c.b16 %v4391, %v4390
        %v4395 = vpack.c.b16 %v4393, %v4392
        %4396 = vrot.lane.b32.xlu0 %v4270, 120
        %v4397 = vpop.permute.xlu0 %4396
        %4398 = vrot.lane.b32.xlu0 %v4271, 120
        %v4399 = vpop.permute.xlu0 %4398
        %v4403 = vsel %vm739, %v4394, 0
        %v4406 = vsel %vm739, %v4395, 0
        %4408 = vmatpush.bf16.msra.mxu0 0
        %4409 = vmatpush.bf16.msra.mxu0 0
        %4410 = vmatpush.bf16.msra.mxu0 0
        %4411 = vmatpush.bf16.msra.mxu0 0
        %4412 = vmatpush.bf16.msra.mxu0 0
        %4413 = vmatpush.bf16.msra.mxu0 0
        %4414 = vmatpush.bf16.msra.mxu0 %v4399
        %4415 = vmatpush.bf16.msra.mxu0 %v4397
        %4416 = vmatmul.bf16.gmra.mxu0 %v4403
        %v4417 = vpop.f32.mrf.mxu0
        %v4418 = vadd.f32 0.0, %v4417
        %v4419 = vpop.f32.mrf.mxu0
        %v4420 = vadd.f32 0.0, %v4419
        %4421 = vmatmul.bf16.gmra.mxu0 %v4406
        %v4422 = vpop.f32.mrf.mxu0
        %v4423 = vadd.f32 0.0, %v4422
        %v4424 = vpop.f32.mrf.mxu0
        %v4425 = vadd.f32 0.0, %v4424
        %4426 = vdwg.mxu0
        %4427 = vrot.lane.b32.xlu0 %v4167, 112
        %v4428 = vpop.permute.xlu0 %4427
        %4429 = vrot.lane.b32.xlu0 %v4168, 112
        %v4430 = vpop.permute.xlu0 %4429
        %4431 = vrot.lane.b32.xlu0 %v4167, 48
        %v4432 = vpop.permute.xlu0 %4431
        %4433 = vrot.lane.b32.xlu0 %v4168, 48
        %v4434 = vpop.permute.xlu0 %4433
        %v4436 = vsel %vm707, %v4428, 0
        %v4439 = vsel %vm707, %v4430, 0
        %v4442 = vsel %vm707, %v4432, 0
        %v4445 = vsel %vm707, %v4434, 0
        %4447 = vmatpush.bf16.xpose.msra.mxu0 0
        %4448 = vmatpush.bf16.xpose.msra.mxu0 0
        %4449 = vmatpush.bf16.xpose.msra.mxu0 0
        %4450 = vmatpush.bf16.xpose.msra.mxu0 0
        %4451 = vmatpush.bf16.xpose.msra.mxu0 0
        %4452 = vmatpush.bf16.xpose.msra.mxu0 0
        %4453 = vmatpush.bf16.xpose.msra.mxu0 %v4445
        %4454 = vmatpush.bf16.xpose.msra.mxu0 %v4442
        %4455 = vmatmul.bf16.gmra.mxu0 %v4436
        %v4456 = vpop.f32.mrf.mxu0
        %v4457 = vadd.f32 0.0, %v4456
        %v4458 = vpop.f32.mrf.mxu0
        %v4459 = vadd.f32 0.0, %v4458
        %4460 = vmatmul.bf16.gmra.mxu0 %v4439
        %v4461 = vpop.f32.mrf.mxu0
        %v4462 = vadd.f32 0.0, %v4461
        %v4463 = vpop.f32.mrf.mxu0
        %v4464 = vadd.f32 0.0, %v4463
        %4465 = vdwg.mxu0
        %v4466 = vsel %vm739, %v4457, -inf
        %4467 = vmax.xlane.f32.xlu0 %v4466
        %v4468 = vpop.xlane.xlu0 %4467
        %v4469 = vsel %vm739, %v4459, -inf
        %4470 = vmax.xlane.f32.xlu0 %v4469
        %v4471 = vpop.xlane.xlu0 %4470
        %v4472 = vsel %vm739, %v4462, -inf
        %4473 = vmax.xlane.f32.xlu0 %v4472
        %v4474 = vpop.xlane.xlu0 %4473
        %v4475 = vsel %vm739, %v4464, -inf
        %4476 = vmax.xlane.f32.xlu0 %v4475
        %v4477 = vpop.xlane.xlu0 %4476
        %v4478 = vsub.f32 %v4457, %v4468
        %v4479 = vsub.f32 %v4459, %v4471
        %v4480 = vsub.f32 %v4462, %v4474
        %v4481 = vsub.f32 %v4464, %v4477
        %v4482 = vmul.f32 %v4478, 1.442695
        %v4483 = vpow.pop %v4482
        %v4484 = vmul.f32 %v4479, 1.442695
        %v4485 = vpow.pop %v4484
        %v4486 = vmul.f32 %v4480, 1.442695
        %v4487 = vpow.pop %v4486
        %v4488 = vmul.f32 %v4481, 1.442695
        %v4489 = vpow.pop %v4488
        %v4490 = vsel %vm739, %v4483, 0.0
        %4491 = vadd.xlane.f32.xlu0 %v4490
        %v4492 = vpop.xlane.xlu0 %4491
        %v4493 = vsel %vm739, %v4485, 0.0
        %4494 = vadd.xlane.f32.xlu0 %v4493
        %v4495 = vpop.xlane.xlu0 %4494
        %v4496 = vsel %vm739, %v4487, 0.0
        %4497 = vadd.xlane.f32.xlu0 %v4496
        %v4498 = vpop.xlane.xlu0 %4497
        %v4499 = vsel %vm739, %v4489, 0.0
        %4500 = vadd.xlane.f32.xlu0 %v4499
        %v4501 = vpop.xlane.xlu0 %4500
        %v4502 = vrcp.pop %v4492
        %v4503 = vrcp.pop %v4495
        %v4504 = vrcp.pop %v4498
        %v4505 = vrcp.pop %v4501
        %v4506 = vmul.f32 %v4483, %v4502
        %v4507 = vmul.f32 %v4485, %v4503
        %v4508 = vmul.f32 %v4487, %v4504
        %v4509 = vmul.f32 %v4489, %v4505
        %v4510 = vpack.c.bf16 %v4506, %v4506
        %v4511 = vpack.c.bf16 %v4507, %v4507
        %v4512 = vpack.c.bf16 %v4508, %v4508
        %v4513 = vpack.c.bf16 %v4509, %v4509
        %v4518 = vunpack.c.l.b16 %v4510
        %v4519 = vunpack.c.l.b16 %v4511
        %v4520 = vunpack.c.l.b16 %v4512
        %v4521 = vunpack.c.l.b16 %v4513
        %v4522 = vpack.c.b16 %v4519, %v4518
        %v4523 = vpack.c.b16 %v4521, %v4520
        %4524 = vrot.lane.b32.xlu0 %v4270, 112
        %v4525 = vpop.permute.xlu0 %4524
        %4526 = vrot.lane.b32.xlu0 %v4271, 112
        %v4527 = vpop.permute.xlu0 %4526
        %v4531 = vsel %vm739, %v4522, 0
        %v4534 = vsel %vm739, %v4523, 0
        %4536 = vmatpush.bf16.msra.mxu0 0
        %4537 = vmatpush.bf16.msra.mxu0 0
        %4538 = vmatpush.bf16.msra.mxu0 0
        %4539 = vmatpush.bf16.msra.mxu0 0
        %4540 = vmatpush.bf16.msra.mxu0 0
        %4541 = vmatpush.bf16.msra.mxu0 0
        %4542 = vmatpush.bf16.msra.mxu0 %v4527
        %4543 = vmatpush.bf16.msra.mxu0 %v4525
        %4544 = vmatmul.bf16.gmra.mxu0 %v4531
        %v4545 = vpop.f32.mrf.mxu0
        %v4546 = vadd.f32 0.0, %v4545
        %v4547 = vpop.f32.mrf.mxu0
        %v4548 = vadd.f32 0.0, %v4547
        %4549 = vmatmul.bf16.gmra.mxu0 %v4534
        %v4550 = vpop.f32.mrf.mxu0
        %v4551 = vadd.f32 0.0, %v4550
        %v4552 = vpop.f32.mrf.mxu0
        %v4553 = vadd.f32 0.0, %v4552
        %4554 = vdwg.mxu0
        %4555 = vrot.lane.b32.xlu0 %v4167, 104
        %v4556 = vpop.permute.xlu0 %4555
        %4557 = vrot.lane.b32.xlu0 %v4168, 104
        %v4558 = vpop.permute.xlu0 %4557
        %4559 = vrot.lane.b32.xlu0 %v4167, 40
        %v4560 = vpop.permute.xlu0 %4559
        %4561 = vrot.lane.b32.xlu0 %v4168, 40
        %v4562 = vpop.permute.xlu0 %4561
        %v4564 = vsel %vm707, %v4556, 0
        %v4567 = vsel %vm707, %v4558, 0
        %v4570 = vsel %vm707, %v4560, 0
        %v4573 = vsel %vm707, %v4562, 0
        %4575 = vmatpush.bf16.xpose.msra.mxu0 0
        %4576 = vmatpush.bf16.xpose.msra.mxu0 0
        %4577 = vmatpush.bf16.xpose.msra.mxu0 0
        %4578 = vmatpush.bf16.xpose.msra.mxu0 0
        %4579 = vmatpush.bf16.xpose.msra.mxu0 0
        %4580 = vmatpush.bf16.xpose.msra.mxu0 0
        %4581 = vmatpush.bf16.xpose.msra.mxu0 %v4573
        %4582 = vmatpush.bf16.xpose.msra.mxu0 %v4570
        %4583 = vmatmul.bf16.gmra.mxu0 %v4564
        %v4584 = vpop.f32.mrf.mxu0
        %v4585 = vadd.f32 0.0, %v4584
        %v4586 = vpop.f32.mrf.mxu0
        %v4587 = vadd.f32 0.0, %v4586
        %4588 = vmatmul.bf16.gmra.mxu0 %v4567
        %v4589 = vpop.f32.mrf.mxu0
        %v4590 = vadd.f32 0.0, %v4589
        %v4591 = vpop.f32.mrf.mxu0
        %v4592 = vadd.f32 0.0, %v4591
        %4593 = vdwg.mxu0
        %v4594 = vsel %vm739, %v4585, -inf
        %4595 = vmax.xlane.f32.xlu0 %v4594
        %v4596 = vpop.xlane.xlu0 %4595
        %v4597 = vsel %vm739, %v4587, -inf
        %4598 = vmax.xlane.f32.xlu0 %v4597
        %v4599 = vpop.xlane.xlu0 %4598
        %v4600 = vsel %vm739, %v4590, -inf
        %4601 = vmax.xlane.f32.xlu0 %v4600
        %v4602 = vpop.xlane.xlu0 %4601
        %v4603 = vsel %vm739, %v4592, -inf
        %4604 = vmax.xlane.f32.xlu0 %v4603
        %v4605 = vpop.xlane.xlu0 %4604
        %v4606 = vsub.f32 %v4585, %v4596
        %v4607 = vsub.f32 %v4587, %v4599
        %v4608 = vsub.f32 %v4590, %v4602
        %v4609 = vsub.f32 %v4592, %v4605
        %v4610 = vmul.f32 %v4606, 1.442695
        %v4611 = vpow.pop %v4610
        %v4612 = vmul.f32 %v4607, 1.442695
        %v4613 = vpow.pop %v4612
        %v4614 = vmul.f32 %v4608, 1.442695
        %v4615 = vpow.pop %v4614
        %v4616 = vmul.f32 %v4609, 1.442695
        %v4617 = vpow.pop %v4616
        %v4618 = vsel %vm739, %v4611, 0.0
        %4619 = vadd.xlane.f32.xlu0 %v4618
        %v4620 = vpop.xlane.xlu0 %4619
        %v4621 = vsel %vm739, %v4613, 0.0
        %4622 = vadd.xlane.f32.xlu0 %v4621
        %v4623 = vpop.xlane.xlu0 %4622
        %v4624 = vsel %vm739, %v4615, 0.0
        %4625 = vadd.xlane.f32.xlu0 %v4624
        %v4626 = vpop.xlane.xlu0 %4625
        %v4627 = vsel %vm739, %v4617, 0.0
        %4628 = vadd.xlane.f32.xlu0 %v4627
        %v4629 = vpop.xlane.xlu0 %4628
        %v4630 = vrcp.pop %v4620
        %v4631 = vrcp.pop %v4623
        %v4632 = vrcp.pop %v4626
        %v4633 = vrcp.pop %v4629
        %v4634 = vmul.f32 %v4611, %v4630
        %v4635 = vmul.f32 %v4613, %v4631
        %v4636 = vmul.f32 %v4615, %v4632
        %v4637 = vmul.f32 %v4617, %v4633
        %v4638 = vpack.c.bf16 %v4634, %v4634
        %v4639 = vpack.c.bf16 %v4635, %v4635
        %v4640 = vpack.c.bf16 %v4636, %v4636
        %v4641 = vpack.c.bf16 %v4637, %v4637
        %v4646 = vunpack.c.l.b16 %v4638
        %v4647 = vunpack.c.l.b16 %v4639
        %v4648 = vunpack.c.l.b16 %v4640
        %v4649 = vunpack.c.l.b16 %v4641
        %v4650 = vpack.c.b16 %v4647, %v4646
        %v4651 = vpack.c.b16 %v4649, %v4648
        %4652 = vrot.lane.b32.xlu0 %v4270, 104
        %v4653 = vpop.permute.xlu0 %4652
        %4654 = vrot.lane.b32.xlu0 %v4271, 104
        %v4655 = vpop.permute.xlu0 %4654
        %v4659 = vsel %vm739, %v4650, 0
        %v4662 = vsel %vm739, %v4651, 0
        %4664 = vmatpush.bf16.msra.mxu0 0
        %4665 = vmatpush.bf16.msra.mxu0 0
        %4666 = vmatpush.bf16.msra.mxu0 0
        %4667 = vmatpush.bf16.msra.mxu0 0
        %4668 = vmatpush.bf16.msra.mxu0 0
        %4669 = vmatpush.bf16.msra.mxu0 0
        %4670 = vmatpush.bf16.msra.mxu0 %v4655
        %4671 = vmatpush.bf16.msra.mxu0 %v4653
        %4672 = vmatmul.bf16.gmra.mxu0 %v4659
        %v4673 = vpop.f32.mrf.mxu0
        %v4674 = vadd.f32 0.0, %v4673
        %v4675 = vpop.f32.mrf.mxu0
        %v4676 = vadd.f32 0.0, %v4675
        %4677 = vmatmul.bf16.gmra.mxu0 %v4662
        %v4678 = vpop.f32.mrf.mxu0
        %v4679 = vadd.f32 0.0, %v4678
        %v4680 = vpop.f32.mrf.mxu0
        %v4681 = vadd.f32 0.0, %v4680
        %4682 = vdwg.mxu0
        %4683 = vrot.lane.b32.xlu0 %v4167, 96
        %v4684 = vpop.permute.xlu0 %4683
        %4685 = vrot.lane.b32.xlu0 %v4168, 96
        %v4686 = vpop.permute.xlu0 %4685
        %4687 = vrot.lane.b32.xlu0 %v4167, 32
        %v4688 = vpop.permute.xlu0 %4687
        %4689 = vrot.lane.b32.xlu0 %v4168, 32
        %v4690 = vpop.permute.xlu0 %4689
        %v4692 = vsel %vm707, %v4684, 0
        %v4695 = vsel %vm707, %v4686, 0
        %v4698 = vsel %vm707, %v4688, 0
        %v4701 = vsel %vm707, %v4690, 0
        %4703 = vmatpush.bf16.xpose.msra.mxu0 0
        %4704 = vmatpush.bf16.xpose.msra.mxu0 0
        %4705 = vmatpush.bf16.xpose.msra.mxu0 0
        %4706 = vmatpush.bf16.xpose.msra.mxu0 0
        %4707 = vmatpush.bf16.xpose.msra.mxu0 0
        %4708 = vmatpush.bf16.xpose.msra.mxu0 0
        %4709 = vmatpush.bf16.xpose.msra.mxu0 %v4701
        %4710 = vmatpush.bf16.xpose.msra.mxu0 %v4698
        %4711 = vmatmul.bf16.gmra.mxu0 %v4692
        %v4712 = vpop.f32.mrf.mxu0
        %v4713 = vadd.f32 0.0, %v4712
        %v4714 = vpop.f32.mrf.mxu0
        %v4715 = vadd.f32 0.0, %v4714
        %4716 = vmatmul.bf16.gmra.mxu0 %v4695
        %v4717 = vpop.f32.mrf.mxu0
        %v4718 = vadd.f32 0.0, %v4717
        %v4719 = vpop.f32.mrf.mxu0
        %v4720 = vadd.f32 0.0, %v4719
        %4721 = vdwg.mxu0
        %v4722 = vsel %vm739, %v4713, -inf
        %4723 = vmax.xlane.f32.xlu0 %v4722
        %v4724 = vpop.xlane.xlu0 %4723
        %v4725 = vsel %vm739, %v4715, -inf
        %4726 = vmax.xlane.f32.xlu0 %v4725
        %v4727 = vpop.xlane.xlu0 %4726
        %v4728 = vsel %vm739, %v4718, -inf
        %4729 = vmax.xlane.f32.xlu0 %v4728
        %v4730 = vpop.xlane.xlu0 %4729
        %v4731 = vsel %vm739, %v4720, -inf
        %4732 = vmax.xlane.f32.xlu0 %v4731
        %v4733 = vpop.xlane.xlu0 %4732
        %v4734 = vsub.f32 %v4713, %v4724
        %v4735 = vsub.f32 %v4715, %v4727
        %v4736 = vsub.f32 %v4718, %v4730
        %v4737 = vsub.f32 %v4720, %v4733
        %v4738 = vmul.f32 %v4734, 1.442695
        %v4739 = vpow.pop %v4738
        %v4740 = vmul.f32 %v4735, 1.442695
        %v4741 = vpow.pop %v4740
        %v4742 = vmul.f32 %v4736, 1.442695
        %v4743 = vpow.pop %v4742
        %v4744 = vmul.f32 %v4737, 1.442695
        %v4745 = vpow.pop %v4744
        %v4746 = vsel %vm739, %v4739, 0.0
        %4747 = vadd.xlane.f32.xlu0 %v4746
        %v4748 = vpop.xlane.xlu0 %4747
        %v4749 = vsel %vm739, %v4741, 0.0
        %4750 = vadd.xlane.f32.xlu0 %v4749
        %v4751 = vpop.xlane.xlu0 %4750
        %v4752 = vsel %vm739, %v4743, 0.0
        %4753 = vadd.xlane.f32.xlu0 %v4752
        %v4754 = vpop.xlane.xlu0 %4753
        %v4755 = vsel %vm739, %v4745, 0.0
        %4756 = vadd.xlane.f32.xlu0 %v4755
        %v4757 = vpop.xlane.xlu0 %4756
        %v4758 = vrcp.pop %v4748
        %v4759 = vrcp.pop %v4751
        %v4760 = vrcp.pop %v4754
        %v4761 = vrcp.pop %v4757
        %v4762 = vmul.f32 %v4739, %v4758
        %v4763 = vmul.f32 %v4741, %v4759
        %v4764 = vmul.f32 %v4743, %v4760
        %v4765 = vmul.f32 %v4745, %v4761
        %v4766 = vpack.c.bf16 %v4762, %v4762
        %v4767 = vpack.c.bf16 %v4763, %v4763
        %v4768 = vpack.c.bf16 %v4764, %v4764
        %v4769 = vpack.c.bf16 %v4765, %v4765
        %v4774 = vunpack.c.l.b16 %v4766
        %v4775 = vunpack.c.l.b16 %v4767
        %v4776 = vunpack.c.l.b16 %v4768
        %v4777 = vunpack.c.l.b16 %v4769
        %v4778 = vpack.c.b16 %v4775, %v4774
        %v4779 = vpack.c.b16 %v4777, %v4776
        %4780 = vrot.lane.b32.xlu0 %v4270, 96
        %v4781 = vpop.permute.xlu0 %4780
        %4782 = vrot.lane.b32.xlu0 %v4271, 96
        %v4783 = vpop.permute.xlu0 %4782
        %v4787 = vsel %vm739, %v4778, 0
        %v4790 = vsel %vm739, %v4779, 0
        %4792 = vmatpush.bf16.msra.mxu0 0
        %4793 = vmatpush.bf16.msra.mxu0 0
        %4794 = vmatpush.bf16.msra.mxu0 0
        %4795 = vmatpush.bf16.msra.mxu0 0
        %4796 = vmatpush.bf16.msra.mxu0 0
        %4797 = vmatpush.bf16.msra.mxu0 0
        %4798 = vmatpush.bf16.msra.mxu0 %v4783
        %4799 = vmatpush.bf16.msra.mxu0 %v4781
        %4800 = vmatmul.bf16.gmra.mxu0 %v4787
        %v4801 = vpop.f32.mrf.mxu0
        %v4802 = vadd.f32 0.0, %v4801
        %v4803 = vpop.f32.mrf.mxu0
        %v4804 = vadd.f32 0.0, %v4803
        %4805 = vmatmul.bf16.gmra.mxu0 %v4790
        %v4806 = vpop.f32.mrf.mxu0
        %v4807 = vadd.f32 0.0, %v4806
        %v4808 = vpop.f32.mrf.mxu0
        %v4809 = vadd.f32 0.0, %v4808
        %4810 = vdwg.mxu0
        %4811 = vrot.lane.b32.xlu0 %v4167, 88
        %v4812 = vpop.permute.xlu0 %4811
        %4813 = vrot.lane.b32.xlu0 %v4168, 88
        %v4814 = vpop.permute.xlu0 %4813
        %4815 = vrot.lane.b32.xlu0 %v4167, 24
        %v4816 = vpop.permute.xlu0 %4815
        %4817 = vrot.lane.b32.xlu0 %v4168, 24
        %v4818 = vpop.permute.xlu0 %4817
        %v4820 = vsel %vm707, %v4812, 0
        %v4823 = vsel %vm707, %v4814, 0
        %v4826 = vsel %vm707, %v4816, 0
        %v4829 = vsel %vm707, %v4818, 0
        %4831 = vmatpush.bf16.xpose.msra.mxu0 0
        %4832 = vmatpush.bf16.xpose.msra.mxu0 0
        %4833 = vmatpush.bf16.xpose.msra.mxu0 0
        %4834 = vmatpush.bf16.xpose.msra.mxu0 0
        %4835 = vmatpush.bf16.xpose.msra.mxu0 0
        %4836 = vmatpush.bf16.xpose.msra.mxu0 0
        %4837 = vmatpush.bf16.xpose.msra.mxu0 %v4829
        %4838 = vmatpush.bf16.xpose.msra.mxu0 %v4826
        %4839 = vmatmul.bf16.gmra.mxu0 %v4820
        %v4840 = vpop.f32.mrf.mxu0
        %v4841 = vadd.f32 0.0, %v4840
        %v4842 = vpop.f32.mrf.mxu0
        %v4843 = vadd.f32 0.0, %v4842
        %4844 = vmatmul.bf16.gmra.mxu0 %v4823
        %v4845 = vpop.f32.mrf.mxu0
        %v4846 = vadd.f32 0.0, %v4845
        %v4847 = vpop.f32.mrf.mxu0
        %v4848 = vadd.f32 0.0, %v4847
        %4849 = vdwg.mxu0
        %v4850 = vsel %vm739, %v4841, -inf
        %4851 = vmax.xlane.f32.xlu0 %v4850
        %v4852 = vpop.xlane.xlu0 %4851
        %v4853 = vsel %vm739, %v4843, -inf
        %4854 = vmax.xlane.f32.xlu0 %v4853
        %v4855 = vpop.xlane.xlu0 %4854
        %v4856 = vsel %vm739, %v4846, -inf
        %4857 = vmax.xlane.f32.xlu0 %v4856
        %v4858 = vpop.xlane.xlu0 %4857
        %v4859 = vsel %vm739, %v4848, -inf
        %4860 = vmax.xlane.f32.xlu0 %v4859
        %v4861 = vpop.xlane.xlu0 %4860
        %v4862 = vsub.f32 %v4841, %v4852
        %v4863 = vsub.f32 %v4843, %v4855
        %v4864 = vsub.f32 %v4846, %v4858
        %v4865 = vsub.f32 %v4848, %v4861
        %v4866 = vmul.f32 %v4862, 1.442695
        %v4867 = vpow.pop %v4866
        %v4868 = vmul.f32 %v4863, 1.442695
        %v4869 = vpow.pop %v4868
        %v4870 = vmul.f32 %v4864, 1.442695
        %v4871 = vpow.pop %v4870
        %v4872 = vmul.f32 %v4865, 1.442695
        %v4873 = vpow.pop %v4872
        %v4874 = vsel %vm739, %v4867, 0.0
        %4875 = vadd.xlane.f32.xlu0 %v4874
        %v4876 = vpop.xlane.xlu0 %4875
        %v4877 = vsel %vm739, %v4869, 0.0
        %4878 = vadd.xlane.f32.xlu0 %v4877
        %v4879 = vpop.xlane.xlu0 %4878
        %v4880 = vsel %vm739, %v4871, 0.0
        %4881 = vadd.xlane.f32.xlu0 %v4880
        %v4882 = vpop.xlane.xlu0 %4881
        %v4883 = vsel %vm739, %v4873, 0.0
        %4884 = vadd.xlane.f32.xlu0 %v4883
        %v4885 = vpop.xlane.xlu0 %4884
        %v4886 = vrcp.pop %v4876
        %v4887 = vrcp.pop %v4879
        %v4888 = vrcp.pop %v4882
        %v4889 = vrcp.pop %v4885
        %v4890 = vmul.f32 %v4867, %v4886
        %v4891 = vmul.f32 %v4869, %v4887
        %v4892 = vmul.f32 %v4871, %v4888
        %v4893 = vmul.f32 %v4873, %v4889
        %v4894 = vpack.c.bf16 %v4890, %v4890
        %v4895 = vpack.c.bf16 %v4891, %v4891
        %v4896 = vpack.c.bf16 %v4892, %v4892
        %v4897 = vpack.c.bf16 %v4893, %v4893
        %v4902 = vunpack.c.l.b16 %v4894
        %v4903 = vunpack.c.l.b16 %v4895
        %v4904 = vunpack.c.l.b16 %v4896
        %v4905 = vunpack.c.l.b16 %v4897
        %v4906 = vpack.c.b16 %v4903, %v4902
        %v4907 = vpack.c.b16 %v4905, %v4904
        %4908 = vrot.lane.b32.xlu0 %v4270, 88
        %v4909 = vpop.permute.xlu0 %4908
        %4910 = vrot.lane.b32.xlu0 %v4271, 88
        %v4911 = vpop.permute.xlu0 %4910
        %v4915 = vsel %vm739, %v4906, 0
        %v4918 = vsel %vm739, %v4907, 0
        %4920 = vmatpush.bf16.msra.mxu0 0
        %4921 = vmatpush.bf16.msra.mxu0 0
        %4922 = vmatpush.bf16.msra.mxu0 0
        %4923 = vmatpush.bf16.msra.mxu0 0
        %4924 = vmatpush.bf16.msra.mxu0 0
        %4925 = vmatpush.bf16.msra.mxu0 0
        %4926 = vmatpush.bf16.msra.mxu0 %v4911
        %4927 = vmatpush.bf16.msra.mxu0 %v4909
        %4928 = vmatmul.bf16.gmra.mxu0 %v4915
        %v4929 = vpop.f32.mrf.mxu0
        %v4930 = vadd.f32 0.0, %v4929
        %v4931 = vpop.f32.mrf.mxu0
        %v4932 = vadd.f32 0.0, %v4931
        %4933 = vmatmul.bf16.gmra.mxu0 %v4918
        %v4934 = vpop.f32.mrf.mxu0
        %v4935 = vadd.f32 0.0, %v4934
        %v4936 = vpop.f32.mrf.mxu0
        %v4937 = vadd.f32 0.0, %v4936
        %4938 = vdwg.mxu0
        %4939 = vrot.lane.b32.xlu0 %v4167, 80
        %v4940 = vpop.permute.xlu0 %4939
        %4941 = vrot.lane.b32.xlu0 %v4168, 80
        %v4942 = vpop.permute.xlu0 %4941
        %4943 = vrot.lane.b32.xlu0 %v4167, 16
        %v4944 = vpop.permute.xlu0 %4943
        %4945 = vrot.lane.b32.xlu0 %v4168, 16
        %v4946 = vpop.permute.xlu0 %4945
        %v4948 = vsel %vm707, %v4940, 0
        %v4951 = vsel %vm707, %v4942, 0
        %v4954 = vsel %vm707, %v4944, 0
        %v4957 = vsel %vm707, %v4946, 0
        %4959 = vmatpush.bf16.xpose.msra.mxu0 0
        %4960 = vmatpush.bf16.xpose.msra.mxu0 0
        %4961 = vmatpush.bf16.xpose.msra.mxu0 0
        %4962 = vmatpush.bf16.xpose.msra.mxu0 0
        %4963 = vmatpush.bf16.xpose.msra.mxu0 0
        %4964 = vmatpush.bf16.xpose.msra.mxu0 0
        %4965 = vmatpush.bf16.xpose.msra.mxu0 %v4957
        %4966 = vmatpush.bf16.xpose.msra.mxu0 %v4954
        %4967 = vmatmul.bf16.gmra.mxu0 %v4948
        %v4968 = vpop.f32.mrf.mxu0
        %v4969 = vadd.f32 0.0, %v4968
        %v4970 = vpop.f32.mrf.mxu0
        %v4971 = vadd.f32 0.0, %v4970
        %4972 = vmatmul.bf16.gmra.mxu0 %v4951
        %v4973 = vpop.f32.mrf.mxu0
        %v4974 = vadd.f32 0.0, %v4973
        %v4975 = vpop.f32.mrf.mxu0
        %v4976 = vadd.f32 0.0, %v4975
        %4977 = vdwg.mxu0
        %v4978 = vsel %vm739, %v4969, -inf
        %4979 = vmax.xlane.f32.xlu0 %v4978
        %v4980 = vpop.xlane.xlu0 %4979
        %v4981 = vsel %vm739, %v4971, -inf
        %4982 = vmax.xlane.f32.xlu0 %v4981
        %v4983 = vpop.xlane.xlu0 %4982
        %v4984 = vsel %vm739, %v4974, -inf
        %4985 = vmax.xlane.f32.xlu0 %v4984
        %v4986 = vpop.xlane.xlu0 %4985
        %v4987 = vsel %vm739, %v4976, -inf
        %4988 = vmax.xlane.f32.xlu0 %v4987
        %v4989 = vpop.xlane.xlu0 %4988
        %v4990 = vsub.f32 %v4969, %v4980
        %v4991 = vsub.f32 %v4971, %v4983
        %v4992 = vsub.f32 %v4974, %v4986
        %v4993 = vsub.f32 %v4976, %v4989
        %v4994 = vmul.f32 %v4990, 1.442695
        %v4995 = vpow.pop %v4994
        %v4996 = vmul.f32 %v4991, 1.442695
        %v4997 = vpow.pop %v4996
        %v4998 = vmul.f32 %v4992, 1.442695
        %v4999 = vpow.pop %v4998
        %v5000 = vmul.f32 %v4993, 1.442695
        %v5001 = vpow.pop %v5000
        %v5002 = vsel %vm739, %v4995, 0.0
        %5003 = vadd.xlane.f32.xlu0 %v5002
        %v5004 = vpop.xlane.xlu0 %5003
        %v5005 = vsel %vm739, %v4997, 0.0
        %5006 = vadd.xlane.f32.xlu0 %v5005
        %v5007 = vpop.xlane.xlu0 %5006
        %v5008 = vsel %vm739, %v4999, 0.0
        %5009 = vadd.xlane.f32.xlu0 %v5008
        %v5010 = vpop.xlane.xlu0 %5009
        %v5011 = vsel %vm739, %v5001, 0.0
        %5012 = vadd.xlane.f32.xlu0 %v5011
        %v5013 = vpop.xlane.xlu0 %5012
        %v5014 = vrcp.pop %v5004
        %v5015 = vrcp.pop %v5007
        %v5016 = vrcp.pop %v5010
        %v5017 = vrcp.pop %v5013
        %v5018 = vmul.f32 %v4995, %v5014
        %v5019 = vmul.f32 %v4997, %v5015
        %v5020 = vmul.f32 %v4999, %v5016
        %v5021 = vmul.f32 %v5001, %v5017
        %v5022 = vpack.c.bf16 %v5018, %v5018
        %v5023 = vpack.c.bf16 %v5019, %v5019
        %v5024 = vpack.c.bf16 %v5020, %v5020
        %v5025 = vpack.c.bf16 %v5021, %v5021
        %v5030 = vunpack.c.l.b16 %v5022
        %v5031 = vunpack.c.l.b16 %v5023
        %v5032 = vunpack.c.l.b16 %v5024
        %v5033 = vunpack.c.l.b16 %v5025
        %v5034 = vpack.c.b16 %v5031, %v5030
        %v5035 = vpack.c.b16 %v5033, %v5032
        %5036 = vrot.lane.b32.xlu0 %v4270, 80
        %v5037 = vpop.permute.xlu0 %5036
        %5038 = vrot.lane.b32.xlu0 %v4271, 80
        %v5039 = vpop.permute.xlu0 %5038
        %v5043 = vsel %vm739, %v5034, 0
        %v5046 = vsel %vm739, %v5035, 0
        %5048 = vmatpush.bf16.msra.mxu0 0
        %5049 = vmatpush.bf16.msra.mxu0 0
        %5050 = vmatpush.bf16.msra.mxu0 0
        %5051 = vmatpush.bf16.msra.mxu0 0
        %5052 = vmatpush.bf16.msra.mxu0 0
        %5053 = vmatpush.bf16.msra.mxu0 0
        %5054 = vmatpush.bf16.msra.mxu0 %v5039
        %5055 = vmatpush.bf16.msra.mxu0 %v5037
        %5056 = vmatmul.bf16.gmra.mxu0 %v5043
        %v5057 = vpop.f32.mrf.mxu0
        %v5058 = vadd.f32 0.0, %v5057
        %v5059 = vpop.f32.mrf.mxu0
        %v5060 = vadd.f32 0.0, %v5059
        %5061 = vmatmul.bf16.gmra.mxu0 %v5046
        %v5062 = vpop.f32.mrf.mxu0
        %v5063 = vadd.f32 0.0, %v5062
        %v5064 = vpop.f32.mrf.mxu0
        %v5065 = vadd.f32 0.0, %v5064
        %5066 = vdwg.mxu0
        %5067 = vrot.lane.b32.xlu0 %v4167, 72
        %v5068 = vpop.permute.xlu0 %5067
        %5069 = vrot.lane.b32.xlu0 %v4168, 72
        %v5070 = vpop.permute.xlu0 %5069
        %5071 = vrot.lane.b32.xlu0 %v4167, 8
        %v5072 = vpop.permute.xlu0 %5071
        %5073 = vrot.lane.b32.xlu0 %v4168, 8
        %v5074 = vpop.permute.xlu0 %5073
        %v5076 = vsel %vm707, %v5068, 0
        %v5079 = vsel %vm707, %v5070, 0
        %v5082 = vsel %vm707, %v5072, 0
        %v5085 = vsel %vm707, %v5074, 0
        %5087 = vmatpush.bf16.xpose.msra.mxu0 0
        %5088 = vmatpush.bf16.xpose.msra.mxu0 0
        %5089 = vmatpush.bf16.xpose.msra.mxu0 0
        %5090 = vmatpush.bf16.xpose.msra.mxu0 0
        %5091 = vmatpush.bf16.xpose.msra.mxu0 0
        %5092 = vmatpush.bf16.xpose.msra.mxu0 0
        %5093 = vmatpush.bf16.xpose.msra.mxu0 %v5085
        %5094 = vmatpush.bf16.xpose.msra.mxu0 %v5082
        %5095 = vmatmul.bf16.gmra.mxu0 %v5076
        %v5096 = vpop.f32.mrf.mxu0
        %v5097 = vadd.f32 0.0, %v5096
        %v5098 = vpop.f32.mrf.mxu0
        %v5099 = vadd.f32 0.0, %v5098
        %5100 = vmatmul.bf16.gmra.mxu0 %v5079
        %v5101 = vpop.f32.mrf.mxu0
        %v5102 = vadd.f32 0.0, %v5101
        %v5103 = vpop.f32.mrf.mxu0
        %v5104 = vadd.f32 0.0, %v5103
        %5105 = vdwg.mxu0
        %v5106 = vsel %vm739, %v5097, -inf
        %5107 = vmax.xlane.f32.xlu0 %v5106
        %v5108 = vpop.xlane.xlu0 %5107
        %v5109 = vsel %vm739, %v5099, -inf
        %5110 = vmax.xlane.f32.xlu0 %v5109
        %v5111 = vpop.xlane.xlu0 %5110
        %v5112 = vsel %vm739, %v5102, -inf
        %5113 = vmax.xlane.f32.xlu0 %v5112
        %v5114 = vpop.xlane.xlu0 %5113
        %v5115 = vsel %vm739, %v5104, -inf
        %5116 = vmax.xlane.f32.xlu0 %v5115
        %v5117 = vpop.xlane.xlu0 %5116
        %v5118 = vsub.f32 %v5097, %v5108
        %v5119 = vsub.f32 %v5099, %v5111
        %v5120 = vsub.f32 %v5102, %v5114
        %v5121 = vsub.f32 %v5104, %v5117
        %v5122 = vmul.f32 %v5118, 1.442695
        %v5123 = vpow.pop %v5122
        %v5124 = vmul.f32 %v5119, 1.442695
        %v5125 = vpow.pop %v5124
        %v5126 = vmul.f32 %v5120, 1.442695
        %v5127 = vpow.pop %v5126
        %v5128 = vmul.f32 %v5121, 1.442695
        %v5129 = vpow.pop %v5128
        %v5130 = vsel %vm739, %v5123, 0.0
        %5131 = vadd.xlane.f32.xlu0 %v5130
        %v5132 = vpop.xlane.xlu0 %5131
        %v5133 = vsel %vm739, %v5125, 0.0
        %5134 = vadd.xlane.f32.xlu0 %v5133
        %v5135 = vpop.xlane.xlu0 %5134
        %v5136 = vsel %vm739, %v5127, 0.0
        %5137 = vadd.xlane.f32.xlu0 %v5136
        %v5138 = vpop.xlane.xlu0 %5137
        %v5139 = vsel %vm739, %v5129, 0.0
        %5140 = vadd.xlane.f32.xlu0 %v5139
        %v5141 = vpop.xlane.xlu0 %5140
        %v5142 = vrcp.pop %v5132
        %v5143 = vrcp.pop %v5135
        %v5144 = vrcp.pop %v5138
        %v5145 = vrcp.pop %v5141
        %v5146 = vmul.f32 %v5123, %v5142
        %v5147 = vmul.f32 %v5125, %v5143
        %v5148 = vmul.f32 %v5127, %v5144
        %v5149 = vmul.f32 %v5129, %v5145
        %v5150 = vpack.c.bf16 %v5146, %v5146
        %v5151 = vpack.c.bf16 %v5147, %v5147
        %v5152 = vpack.c.bf16 %v5148, %v5148
        %v5153 = vpack.c.bf16 %v5149, %v5149
        %v5158 = vunpack.c.l.b16 %v5150
        %v5159 = vunpack.c.l.b16 %v5151
        %v5160 = vunpack.c.l.b16 %v5152
        %v5161 = vunpack.c.l.b16 %v5153
        %v5162 = vpack.c.b16 %v5159, %v5158
        %v5163 = vpack.c.b16 %v5161, %v5160
        %5164 = vrot.lane.b32.xlu0 %v4270, 72
        %v5165 = vpop.permute.xlu0 %5164
        %5166 = vrot.lane.b32.xlu0 %v4271, 72
        %v5167 = vpop.permute.xlu0 %5166
        %v5171 = vsel %vm739, %v5162, 0
        %v5174 = vsel %vm739, %v5163, 0
        %5176 = vmatpush.bf16.msra.mxu0 0
        %5177 = vmatpush.bf16.msra.mxu0 0
        %5178 = vmatpush.bf16.msra.mxu0 0
        %5179 = vmatpush.bf16.msra.mxu0 0
        %5180 = vmatpush.bf16.msra.mxu0 0
        %5181 = vmatpush.bf16.msra.mxu0 0
        %5182 = vmatpush.bf16.msra.mxu0 %v5167
        %5183 = vmatpush.bf16.msra.mxu0 %v5165
        %5184 = vmatmul.bf16.gmra.mxu0 %v5171
        %v5185 = vpop.f32.mrf.mxu0
        %v5186 = vadd.f32 0.0, %v5185
        %v5187 = vpop.f32.mrf.mxu0
        %v5188 = vadd.f32 0.0, %v5187
        %5189 = vmatmul.bf16.gmra.mxu0 %v5174
        %v5190 = vpop.f32.mrf.mxu0
        %v5191 = vadd.f32 0.0, %v5190
        %v5192 = vpop.f32.mrf.mxu0
        %v5193 = vadd.f32 0.0, %v5192
        %5194 = vdwg.mxu0
        %5199 = vrot.lane.b32.xlu0 %v4418, 8
        %v5200 = vpop.permute.xlu0 %5199
        %5201 = vrot.lane.b32.xlu0 %v4420, 8
        %v5202 = vpop.permute.xlu0 %5201
        %5203 = vrot.lane.b32.xlu0 %v4423, 8
        %v5204 = vpop.permute.xlu0 %5203
        %5205 = vrot.lane.b32.xlu0 %v4425, 8
        %v5206 = vpop.permute.xlu0 %5205
        %5215 = vrot.lane.b32.xlu0 %v4546, 16
        %v5216 = vpop.permute.xlu0 %5215
        %5217 = vrot.lane.b32.xlu0 %v4548, 16
        %v5218 = vpop.permute.xlu0 %5217
        %5219 = vrot.lane.b32.xlu0 %v4551, 16
        %v5220 = vpop.permute.xlu0 %5219
        %5221 = vrot.lane.b32.xlu0 %v4553, 16
        %v5222 = vpop.permute.xlu0 %5221
        %5231 = vrot.lane.b32.xlu0 %v4674, 24
        %v5232 = vpop.permute.xlu0 %5231
        %5233 = vrot.lane.b32.xlu0 %v4676, 24
        %v5234 = vpop.permute.xlu0 %5233
        %5235 = vrot.lane.b32.xlu0 %v4679, 24
        %v5236 = vpop.permute.xlu0 %5235
        %5237 = vrot.lane.b32.xlu0 %v4681, 24
        %v5238 = vpop.permute.xlu0 %5237
        %5247 = vrot.lane.b32.xlu0 %v4802, 32
        %v5248 = vpop.permute.xlu0 %5247
        %5249 = vrot.lane.b32.xlu0 %v4804, 32
        %v5250 = vpop.permute.xlu0 %5249
        %5251 = vrot.lane.b32.xlu0 %v4807, 32
        %v5252 = vpop.permute.xlu0 %5251
        %5253 = vrot.lane.b32.xlu0 %v4809, 32
        %v5254 = vpop.permute.xlu0 %5253
        %5263 = vrot.lane.b32.xlu0 %v4930, 40
        %v5264 = vpop.permute.xlu0 %5263
        %5265 = vrot.lane.b32.xlu0 %v4932, 40
        %v5266 = vpop.permute.xlu0 %5265
        %5267 = vrot.lane.b32.xlu0 %v4935, 40
        %v5268 = vpop.permute.xlu0 %5267
        %5269 = vrot.lane.b32.xlu0 %v4937, 40
        %v5270 = vpop.permute.xlu0 %5269
        %5279 = vrot.lane.b32.xlu0 %v5058, 48
        %v5280 = vpop.permute.xlu0 %5279
        %5281 = vrot.lane.b32.xlu0 %v5060, 48
        %v5282 = vpop.permute.xlu0 %5281
        %5283 = vrot.lane.b32.xlu0 %v5063, 48
        %v5284 = vpop.permute.xlu0 %5283
        %5285 = vrot.lane.b32.xlu0 %v5065, 48
        %v5286 = vpop.permute.xlu0 %5285
        %5295 = vrot.lane.b32.xlu0 %v5186, 56
        %v5296 = vpop.permute.xlu0 %5295
        %5297 = vrot.lane.b32.xlu0 %v5188, 56
        %v5298 = vpop.permute.xlu0 %5297
        %5299 = vrot.lane.b32.xlu0 %v5191, 56
        %v5300 = vpop.permute.xlu0 %5299
        %5301 = vrot.lane.b32.xlu0 %v5193, 56
        %v5302 = vpop.permute.xlu0 %5301
        %v5307 = vsel %vm707, %v4290, %v5200
        %v5308 = vsel %vm707, %v4292, %v5202
        %v5309 = vsel %vm707, %v4295, %v5204
        %v5310 = vsel %vm707, %v4297, %v5206
        %v5311 = vsel %vm1847, %v5307, %v5216
        %v5312 = vsel %vm1847, %v5308, %v5218
        %v5313 = vsel %vm1847, %v5309, %v5220
        %v5314 = vsel %vm1847, %v5310, %v5222
        %v5315 = vsel %vm1852, %v5311, %v5232
        %v5316 = vsel %vm1852, %v5312, %v5234
        %v5317 = vsel %vm1852, %v5313, %v5236
        %v5318 = vsel %vm1852, %v5314, %v5238
        %v5319 = vsel %vm739, %v5315, %v5248
        %v5320 = vsel %vm739, %v5316, %v5250
        %v5321 = vsel %vm739, %v5317, %v5252
        %v5322 = vsel %vm739, %v5318, %v5254
        %v5323 = vsel %vm1861, %v5319, %v5264
        %v5324 = vsel %vm1861, %v5320, %v5266
        %v5325 = vsel %vm1861, %v5321, %v5268
        %v5326 = vsel %vm1861, %v5322, %v5270
        %v5327 = vsel %vm1866, %v5323, %v5280
        %v5328 = vsel %vm1866, %v5324, %v5282
        %v5329 = vsel %vm1866, %v5325, %v5284
        %v5330 = vsel %vm1866, %v5326, %v5286
        %v5331 = vsel %vm1871, %v5327, %v5296
        %v5332 = vsel %vm1871, %v5328, %v5298
        %v5333 = vsel %vm1871, %v5329, %v5300
        %v5334 = vsel %vm1871, %v5330, %v5302
        %v5335 = vpack.c.bf16 %v5332, %v5331
        %v5336 = vpack.c.bf16 %v5334, %v5333
        %s5337 = scalar_lea.vmem %s3, 64
        %v5338 = vld [vmem:[%s5337] sm:$0xf]
        %v5339 = vld [vmem:[%s5337 + $0x4] sm:$0xf]
        %v5340 = vld [vmem:[%s5337 + $0x8] sm:$0xf]
        %v5341 = vld [vmem:[%s5337 + $0xc] sm:$0xf]
        %v5342 = vld [vmem:[%s5337 + $0x10] sm:$0xf]
        %v5343 = vld [vmem:[%s5337 + $0x14] sm:$0xf]
        %v5344 = vld [vmem:[%s5337 + $0x18] sm:$0xf]
        %v5345 = vld [vmem:[%s5337 + $0x1c] sm:$0xf]
        %s5346 = scalar_lea.vmem %s4, 2
        %v5347 = vld [vmem:[%s5346] sm:$0x1]
        %v5349 = vperm.slane %v5347, 0
        %v5359 = vunpack.c.l.b16 %v5338
        %v5360 = vunpack.c.l.b16 %v5339
        %v5361 = vunpack.c.l.b16 %v5340
        %v5362 = vunpack.c.l.b16 %v5341
        %v5363 = vunpack.c.l.b16 %v5342
        %v5364 = vunpack.c.l.b16 %v5343
        %v5365 = vunpack.c.l.b16 %v5344
        %v5366 = vunpack.c.l.b16 %v5345
        %v5367 = vpack.c.b16 %v5360, %v5359
        %v5368 = vpack.c.b16 %v5362, %v5361
        %v5369 = vpack.c.b16 %v5364, %v5363
        %v5370 = vpack.c.b16 %v5366, %v5365
        %v5376 = vsel %vm640, %v5335, 0
        %v5379 = vsel %vm640, %v5336, 0
        %5381 = vmatpush.bf16.msra.mxu0 0
        %5382 = vmatpush.bf16.msra.mxu0 0
        %5383 = vmatpush.bf16.msra.mxu0 0
        %5384 = vmatpush.bf16.msra.mxu0 0
        %5385 = vmatpush.bf16.msra.mxu0 %v5370
        %5386 = vmatpush.bf16.msra.mxu0 %v5369
        %5387 = vmatpush.bf16.msra.mxu0 %v5368
        %5388 = vmatpush.bf16.msra.mxu0 %v5367
        %5389 = vmatmul.bf16.gmra.mxu0 %v5376
        %v5390 = vpop.f32.mrf.mxu0
        %v5391 = vadd.f32 %v5349, %v5390
        %v5392 = vpop.f32.mrf.mxu0
        %v5393 = vadd.f32 %v5349, %v5392
        %5394 = vmatmul.bf16.gmra.mxu0 %v5379
        %v5395 = vpop.f32.mrf.mxu0
        %v5396 = vadd.f32 %v5349, %v5395
        %v5397 = vpop.f32.mrf.mxu0
        %v5398 = vadd.f32 %v5349, %v5397
        %5399 = vdwg.mxu0
        %v5400 = vadd.f32 %v4045, %v5391
        %v5401 = vadd.f32 %v4046, %v5393
        %v5402 = vadd.f32 %v4047, %v5396
        %v5403 = vadd.f32 %v4048, %v5398
        %v5404 = vsel %vm640, %v5400, 0.0
        %5405 = vadd.xlane.f32.xlu0 %v5404
        %v5406 = vpop.xlane.xlu0 %5405
        %v5407 = vsel %vm640, %v5401, 0.0
        %5408 = vadd.xlane.f32.xlu0 %v5407
        %v5409 = vpop.xlane.xlu0 %5408
        %v5410 = vsel %vm640, %v5402, 0.0
        %5411 = vadd.xlane.f32.xlu0 %v5410
        %v5412 = vpop.xlane.xlu0 %5411
        %v5413 = vsel %vm640, %v5403, 0.0
        %5414 = vadd.xlane.f32.xlu0 %v5413
        %v5415 = vpop.xlane.xlu0 %5414
        %v5416 = vmul.f32 %v5406, %v1961
        %v5417 = vmul.f32 %v5409, %v1961
        %v5418 = vmul.f32 %v5412, %v1961
        %v5419 = vmul.f32 %v5415, %v1961
        %v5420 = vsub.f32 %v5400, %v5416
        %v5421 = vsub.f32 %v5401, %v5417
        %v5422 = vsub.f32 %v5402, %v5418
        %v5423 = vsub.f32 %v5403, %v5419
        %v5424 = vmul.f32 %v5420, %v5420
        %v5425 = vmul.f32 %v5421, %v5421
        %v5426 = vmul.f32 %v5422, %v5422
        %v5427 = vmul.f32 %v5423, %v5423
        %v5428 = vsel %vm640, %v5424, 0.0
        %5429 = vadd.xlane.f32.xlu0 %v5428
        %v5430 = vpop.xlane.xlu0 %5429
        %v5431 = vsel %vm640, %v5425, 0.0
        %5432 = vadd.xlane.f32.xlu0 %v5431
        %v5433 = vpop.xlane.xlu0 %5432
        %v5434 = vsel %vm640, %v5426, 0.0
        %5435 = vadd.xlane.f32.xlu0 %v5434
        %v5436 = vpop.xlane.xlu0 %5435
        %v5437 = vsel %vm640, %v5427, 0.0
        %5438 = vadd.xlane.f32.xlu0 %v5437
        %v5439 = vpop.xlane.xlu0 %5438
        %v5440 = vmul.f32 %v5430, %v1961
        %v5441 = vmul.f32 %v5433, %v1961
        %v5442 = vmul.f32 %v5436, %v1961
        %v5443 = vmul.f32 %v5439, %v1961
        %v5444 = vadd.f32 %v5440, 1e-05
        %v5445 = vadd.f32 %v5441, 1e-05
        %v5446 = vadd.f32 %v5442, 1e-05
        %v5447 = vadd.f32 %v5443, 1e-05
        %v5448 = vrsqrt.pop %v5444
        %v5449 = vmul.f32 %v5448, %v5444
        %v5450 = vmul.f32 %v5449, %v5448
        %v5451 = vmul.f32 0.5, %v5450
        %v5452 = vsub.f32 1.5, %v5451
        %v5453 = vmul.f32 %v5448, %v5452
        %vm5454 = vweird.f32 %v5444
        %vm5455 = vweird.f32 %v5448
        %vm5456 = vmor %vm5454, %vm5455
        %v5457 = vsel %vm5456, %v5448, %v5453
        %v5458 = vrsqrt.pop %v5445
        %v5459 = vmul.f32 %v5458, %v5445
        %v5460 = vmul.f32 %v5459, %v5458
        %v5461 = vmul.f32 0.5, %v5460
        %v5462 = vsub.f32 1.5, %v5461
        %v5463 = vmul.f32 %v5458, %v5462
        %vm5464 = vweird.f32 %v5445
        %vm5465 = vweird.f32 %v5458
        %vm5466 = vmor %vm5464, %vm5465
        %v5467 = vsel %vm5466, %v5458, %v5463
        %v5468 = vrsqrt.pop %v5446
        %v5469 = vmul.f32 %v5468, %v5446
        %v5470 = vmul.f32 %v5469, %v5468
        %v5471 = vmul.f32 0.5, %v5470
        %v5472 = vsub.f32 1.5, %v5471
        %v5473 = vmul.f32 %v5468, %v5472
        %vm5474 = vweird.f32 %v5446
        %vm5475 = vweird.f32 %v5468
        %vm5476 = vmor %vm5474, %vm5475
        %v5477 = vsel %vm5476, %v5468, %v5473
        %v5478 = vrsqrt.pop %v5447
        %v5479 = vmul.f32 %v5478, %v5447
        %v5480 = vmul.f32 %v5479, %v5478
        %v5481 = vmul.f32 0.5, %v5480
        %v5482 = vsub.f32 1.5, %v5481
        %v5483 = vmul.f32 %v5478, %v5482
        %vm5484 = vweird.f32 %v5447
        %vm5485 = vweird.f32 %v5478
        %vm5486 = vmor %vm5484, %vm5485
        %v5487 = vsel %vm5486, %v5478, %v5483
        %v5488 = vmul.f32 %v5420, %v5457
        %v5489 = vmul.f32 %v5421, %v5467
        %v5490 = vmul.f32 %v5422, %v5477
        %v5491 = vmul.f32 %v5423, %v5487
        %s5492 = scalar_lea.vmem [#allocation10], 2
        %v5493 = vld [vmem:[%s5492] sm:$0x1]
        %v5495 = vperm.slane %v5493, 0
        %v5497 = vmul.f32 %v5488, %v5495
        %v5498 = vmul.f32 %v5489, %v5495
        %v5499 = vmul.f32 %v5490, %v5495
        %v5500 = vmul.f32 %v5491, %v5495
        %s5501 = scalar_lea.vmem [#allocation11], 2
        %v5502 = vld [vmem:[%s5501] sm:$0x1]
        %v5504 = vperm.slane %v5502, 0
        %v5506 = vadd.f32 %v5497, %v5504
        %v5507 = vadd.f32 %v5498, %v5504
        %v5508 = vadd.f32 %v5499, %v5504
        %v5509 = vadd.f32 %v5500, %v5504
        %v5510 = vpack.c.bf16 %v5507, %v5506
        %v5511 = vpack.c.bf16 %v5509, %v5508
        %s5512 = scalar_lea.vmem [#allocation5], 64
        %v5513 = vld [vmem:[%s5512] sm:$0xf]
        %v5514 = vld [vmem:[%s5512 + $0x4] sm:$0xf]
        %v5515 = vld [vmem:[%s5512 + $0x8] sm:$0xf]
        %v5516 = vld [vmem:[%s5512 + $0xc] sm:$0xf]
        %v5517 = vld [vmem:[%s5512 + $0x10] sm:$0xf]
        %v5518 = vld [vmem:[%s5512 + $0x14] sm:$0xf]
        %v5519 = vld [vmem:[%s5512 + $0x18] sm:$0xf]
        %v5520 = vld [vmem:[%s5512 + $0x1c] sm:$0xf]
        %s5521 = scalar_lea.vmem [#allocation7], 2
        %v5522 = vld [vmem:[%s5521] sm:$0x1]
        %v5524 = vperm.slane %v5522, 0
        %v5534 = vunpack.c.l.b16 %v5513
        %v5535 = vunpack.c.l.b16 %v5514
        %v5536 = vunpack.c.l.b16 %v5515
        %v5537 = vunpack.c.l.b16 %v5516
        %v5538 = vunpack.c.l.b16 %v5517
        %v5539 = vunpack.c.l.b16 %v5518
        %v5540 = vunpack.c.l.b16 %v5519
        %v5541 = vunpack.c.l.b16 %v5520
        %v5542 = vpack.c.b16 %v5535, %v5534
        %v5543 = vpack.c.b16 %v5537, %v5536
        %v5544 = vpack.c.b16 %v5539, %v5538
        %v5545 = vpack.c.b16 %v5541, %v5540
        %v5551 = vsel %vm640, %v5510, 0
        %v5554 = vsel %vm640, %v5511, 0
        %5556 = vmatpush.bf16.msra.mxu0 0
        %5557 = vmatpush.bf16.msra.mxu0 0
        %5558 = vmatpush.bf16.msra.mxu0 0
        %5559 = vmatpush.bf16.msra.mxu0 0
        %5560 = vmatpush.bf16.msra.mxu0 %v5545
        %5561 = vmatpush.bf16.msra.mxu0 %v5544
        %5562 = vmatpush.bf16.msra.mxu0 %v5543
        %5563 = vmatpush.bf16.msra.mxu0 %v5542
        %5564 = vmatmul.bf16.gmra.mxu0 %v5551
        %v5565 = vpop.f32.mrf.mxu0
        %v5566 = vadd.f32 %v5524, %v5565
        %v5567 = vpop.f32.mrf.mxu0
        %v5568 = vadd.f32 %v5524, %v5567
        %5569 = vmatmul.bf16.gmra.mxu0 %v5554
        %v5570 = vpop.f32.mrf.mxu0
        %v5571 = vadd.f32 %v5524, %v5570
        %v5572 = vpop.f32.mrf.mxu0
        %v5573 = vadd.f32 %v5524, %v5572
        %5574 = vdwg.mxu0
        %v5575 = vmax.f32 %v5566, 0.0
        %v5576 = vmax.f32 %v5568, 0.0
        %v5577 = vmax.f32 %v5571, 0.0
        %v5578 = vmax.f32 %v5573, 0.0
        %v5579 = vpack.c.bf16 %v5576, %v5575
        %v5580 = vpack.c.bf16 %v5578, %v5577
        %s5581 = scalar_lea.vmem %s7, 128
        %v5582 = vld [vmem:[%s5581] sm:$0xf]
        %v5583 = vld [vmem:[%s5581 + $0x4] sm:$0xf]
        %v5584 = vld [vmem:[%s5581 + $0x8] sm:$0xf]
        %v5585 = vld [vmem:[%s5581 + $0xc] sm:$0xf]
        %v5586 = vld [vmem:[%s5581 + $0x10] sm:$0xf]
        %v5587 = vld [vmem:[%s5581 + $0x14] sm:$0xf]
        %v5588 = vld [vmem:[%s5581 + $0x18] sm:$0xf]
        %v5589 = vld [vmem:[%s5581 + $0x1c] sm:$0xf]
        %v5590 = vld [vmem:[%s5581 + $0x20] sm:$0xf]
        %v5591 = vld [vmem:[%s5581 + $0x24] sm:$0xf]
        %v5592 = vld [vmem:[%s5581 + $0x28] sm:$0xf]
        %v5593 = vld [vmem:[%s5581 + $0x2c] sm:$0xf]
        %v5594 = vld [vmem:[%s5581 + $0x30] sm:$0xf]
        %v5595 = vld [vmem:[%s5581 + $0x34] sm:$0xf]
        %v5596 = vld [vmem:[%s5581 + $0x38] sm:$0xf]
        %v5597 = vld [vmem:[%s5581 + $0x3c] sm:$0xf]
        %s5598 = scalar_lea.vmem [#allocation8], 2
        %v5599 = vld [vmem:[%s5598] sm:$0x1]
        %v5601 = vperm.slane %v5599, 0
        %v5619 = vunpack.c.l.b16 %v5582
        %v5620 = vunpack.c.l.b16 %v5583
        %v5621 = vunpack.c.l.b16 %v5584
        %v5622 = vunpack.c.l.b16 %v5585
        %v5623 = vunpack.c.l.b16 %v5586
        %v5624 = vunpack.c.l.b16 %v5587
        %v5625 = vunpack.c.l.b16 %v5588
        %v5626 = vunpack.c.l.b16 %v5589
        %v5627 = vunpack.c.l.b16 %v5590
        %v5628 = vunpack.c.l.b16 %v5591
        %v5629 = vunpack.c.l.b16 %v5592
        %v5630 = vunpack.c.l.b16 %v5593
        %v5631 = vunpack.c.l.b16 %v5594
        %v5632 = vunpack.c.l.b16 %v5595
        %v5633 = vunpack.c.l.b16 %v5596
        %v5634 = vunpack.c.l.b16 %v5597
        %v5635 = vpack.c.b16 %v5620, %v5619
        %v5636 = vpack.c.b16 %v5622, %v5621
        %v5637 = vpack.c.b16 %v5624, %v5623
        %v5638 = vpack.c.b16 %v5626, %v5625
        %v5639 = vpack.c.b16 %v5628, %v5627
        %v5640 = vpack.c.b16 %v5630, %v5629
        %v5641 = vpack.c.b16 %v5632, %v5631
        %v5642 = vpack.c.b16 %v5634, %v5633
        %5651 = vmatpush.bf16.msra.mxu0 %v5642
        %5652 = vmatpush.bf16.msra.mxu0 %v5641
        %5653 = vmatpush.bf16.msra.mxu0 %v5640
        %5654 = vmatpush.bf16.msra.mxu0 %v5639
        %5655 = vmatpush.bf16.msra.mxu0 %v5638
        %5656 = vmatpush.bf16.msra.mxu0 %v5637
        %5657 = vmatpush.bf16.msra.mxu0 %v5636
        %5658 = vmatpush.bf16.msra.mxu0 %v5635
        %5659 = vmatmul.bf16.gmra.mxu0 %v5579
        %v5660 = vpop.f32.mrf.mxu0
        %v5661 = vadd.f32 %v5601, %v5660
        %v5662 = vpop.f32.mrf.mxu0
        %v5663 = vadd.f32 %v5601, %v5662
        %5664 = vmatmul.bf16.gmra.mxu0 %v5580
        %v5665 = vpop.f32.mrf.mxu0
        %v5666 = vadd.f32 %v5601, %v5665
        %v5667 = vpop.f32.mrf.mxu0
        %v5668 = vadd.f32 %v5601, %v5667
        %5669 = vdwg.mxu0
        %v5670 = vadd.f32 %v5506, %v5661
        %v5671 = vadd.f32 %v5507, %v5663
        %v5672 = vadd.f32 %v5508, %v5666
        %v5673 = vadd.f32 %v5509, %v5668
        %v5674 = vsel %vm640, %v5670, 0.0
        %5675 = vadd.xlane.f32.xlu0 %v5674
        %v5676 = vpop.xlane.xlu0 %5675
        %v5677 = vsel %vm640, %v5671, 0.0
        %5678 = vadd.xlane.f32.xlu0 %v5677
        %v5679 = vpop.xlane.xlu0 %5678
        %v5680 = vsel %vm640, %v5672, 0.0
        %5681 = vadd.xlane.f32.xlu0 %v5680
        %v5682 = vpop.xlane.xlu0 %5681
        %v5683 = vsel %vm640, %v5673, 0.0
        %5684 = vadd.xlane.f32.xlu0 %v5683
        %v5685 = vpop.xlane.xlu0 %5684
        %v5686 = vmul.f32 %v5676, %v1961
        %v5687 = vmul.f32 %v5679, %v1961
        %v5688 = vmul.f32 %v5682, %v1961
        %v5689 = vmul.f32 %v5685, %v1961
        %v5690 = vsub.f32 %v5670, %v5686
        %v5691 = vsub.f32 %v5671, %v5687
        %v5692 = vsub.f32 %v5672, %v5688
        %v5693 = vsub.f32 %v5673, %v5689
        %v5694 = vmul.f32 %v5690, %v5690
        %v5695 = vmul.f32 %v5691, %v5691
        %v5696 = vmul.f32 %v5692, %v5692
        %v5697 = vmul.f32 %v5693, %v5693
        %v5698 = vsel %vm640, %v5694, 0.0
        %5699 = vadd.xlane.f32.xlu0 %v5698
        %v5700 = vpop.xlane.xlu0 %5699
        %v5701 = vsel %vm640, %v5695, 0.0
        %5702 = vadd.xlane.f32.xlu0 %v5701
        %v5703 = vpop.xlane.xlu0 %5702
        %v5704 = vsel %vm640, %v5696, 0.0
        %5705 = vadd.xlane.f32.xlu0 %v5704
        %v5706 = vpop.xlane.xlu0 %5705
        %v5707 = vsel %vm640, %v5697, 0.0
        %5708 = vadd.xlane.f32.xlu0 %v5707
        %v5709 = vpop.xlane.xlu0 %5708
        %v5710 = vmul.f32 %v5700, %v1961
        %v5711 = vmul.f32 %v5703, %v1961
        %v5712 = vmul.f32 %v5706, %v1961
        %v5713 = vmul.f32 %v5709, %v1961
        %v5714 = vadd.f32 %v5710, 1e-05
        %v5715 = vadd.f32 %v5711, 1e-05
        %v5716 = vadd.f32 %v5712, 1e-05
        %v5717 = vadd.f32 %v5713, 1e-05
        %v5718 = vrsqrt.pop %v5714
        %v5719 = vmul.f32 %v5718, %v5714
        %v5720 = vmul.f32 %v5719, %v5718
        %v5721 = vmul.f32 0.5, %v5720
        %v5722 = vsub.f32 1.5, %v5721
        %v5723 = vmul.f32 %v5718, %v5722
        %vm5724 = vweird.f32 %v5714
        %vm5725 = vweird.f32 %v5718
        %vm5726 = vmor %vm5724, %vm5725
        %v5727 = vsel %vm5726, %v5718, %v5723
        %v5728 = vrsqrt.pop %v5715
        %v5729 = vmul.f32 %v5728, %v5715
        %v5730 = vmul.f32 %v5729, %v5728
        %v5731 = vmul.f32 0.5, %v5730
        %v5732 = vsub.f32 1.5, %v5731
        %v5733 = vmul.f32 %v5728, %v5732
        %vm5734 = vweird.f32 %v5715
        %vm5735 = vweird.f32 %v5728
        %vm5736 = vmor %vm5734, %vm5735
        %v5737 = vsel %vm5736, %v5728, %v5733
        %v5738 = vrsqrt.pop %v5716
        %v5739 = vmul.f32 %v5738, %v5716
        %v5740 = vmul.f32 %v5739, %v5738
        %v5741 = vmul.f32 0.5, %v5740
        %v5742 = vsub.f32 1.5, %v5741
        %v5743 = vmul.f32 %v5738, %v5742
        %vm5744 = vweird.f32 %v5716
        %vm5745 = vweird.f32 %v5738
        %vm5746 = vmor %vm5744, %vm5745
        %v5747 = vsel %vm5746, %v5738, %v5743
        %v5748 = vrsqrt.pop %v5717
        %v5749 = vmul.f32 %v5748, %v5717
        %v5750 = vmul.f32 %v5749, %v5748
        %v5751 = vmul.f32 0.5, %v5750
        %v5752 = vsub.f32 1.5, %v5751
        %v5753 = vmul.f32 %v5748, %v5752
        %vm5754 = vweird.f32 %v5717
        %vm5755 = vweird.f32 %v5748
        %vm5756 = vmor %vm5754, %vm5755
        %v5757 = vsel %vm5756, %v5748, %v5753
        %v5758 = vmul.f32 %v5690, %v5727
        %v5759 = vmul.f32 %v5691, %v5737
        %v5760 = vmul.f32 %v5692, %v5747
        %v5761 = vmul.f32 %v5693, %v5757
        %s5762 = scalar_lea.vmem [#allocation13], 2
        %v5763 = vld [vmem:[%s5762] sm:$0x1]
        %v5765 = vperm.slane %v5763, 0
        %v5767 = vmul.f32 %v5758, %v5765
        %v5768 = vmul.f32 %v5759, %v5765
        %v5769 = vmul.f32 %v5760, %v5765
        %v5770 = vmul.f32 %v5761, %v5765
        %s5771 = scalar_lea.vmem [#allocation14], 2
        %v5772 = vld [vmem:[%s5771] sm:$0x1]
        %v5774 = vperm.slane %v5772, 0
        %v5776 = vadd.f32 %v5767, %v5774
        %v5777 = vadd.f32 %v5768, %v5774
        %v5778 = vadd.f32 %v5769, %v5774
        %v5779 = vadd.f32 %v5770, %v5774
        %v5780 = vpack.c.bf16 %v5777, %v5776
        %v5781 = vpack.c.bf16 %v5779, %v5778
        %s5782 = scalar_lea.vmem %s1, 192
        %v5783 = vld [vmem:[%s5782] sm:$0xff]
        %v5784 = vld [vmem:[%s5782 + $0x8] sm:$0xff]
        %v5785 = vld [vmem:[%s5782 + $0x10] sm:$0xff]
        %v5786 = vld [vmem:[%s5782 + $0x18] sm:$0xff]
        %v5787 = vld [vmem:[%s5782 + $0x20] sm:$0xff]
        %v5788 = vld [vmem:[%s5782 + $0x28] sm:$0xff]
        %v5789 = vld [vmem:[%s5782 + $0x30] sm:$0xff]
        %v5790 = vld [vmem:[%s5782 + $0x38] sm:$0xff]
        %s5791 = scalar_lea.vmem %s2, 6
        %v5792 = vld [vmem:[%s5791] sm:$0x3]
        %v5794 = vperm.slane %v5792, 0
        %v5795 = vperm.slane %v5792, 1
        %v5806 = vunpack.c.l.b16 %v5783
        %v5807 = vunpack.c.h.b16 %v5783
        %v5808 = vunpack.c.l.b16 %v5784
        %v5809 = vunpack.c.h.b16 %v5784
        %v5810 = vunpack.c.l.b16 %v5785
        %v5811 = vunpack.c.h.b16 %v5785
        %v5812 = vunpack.c.l.b16 %v5786
        %v5813 = vunpack.c.h.b16 %v5786
        %v5814 = vunpack.c.l.b16 %v5787
        %v5815 = vunpack.c.h.b16 %v5787
        %v5816 = vunpack.c.l.b16 %v5788
        %v5817 = vunpack.c.h.b16 %v5788
        %v5818 = vunpack.c.l.b16 %v5789
        %v5819 = vunpack.c.h.b16 %v5789
        %v5820 = vunpack.c.l.b16 %v5790
        %v5821 = vunpack.c.h.b16 %v5790
        %v5822 = vpack.c.b16 %v5808, %v5806
        %v5823 = vpack.c.b16 %v5809, %v5807
        %v5824 = vpack.c.b16 %v5812, %v5810
        %v5825 = vpack.c.b16 %v5813, %v5811
        %v5826 = vpack.c.b16 %v5816, %v5814
        %v5827 = vpack.c.b16 %v5817, %v5815
        %v5828 = vpack.c.b16 %v5820, %v5818
        %v5829 = vpack.c.b16 %v5821, %v5819
        %v5839 = vsel %vm640, %v5780, 0
        %v5842 = vsel %vm640, %v5781, 0
        %5844 = vmatpush.bf16.msra.mxu0 0
        %5845 = vmatpush.bf16.msra.mxu0 0
        %5846 = vmatpush.bf16.msra.mxu0 0
        %5847 = vmatpush.bf16.msra.mxu0 0
        %5848 = vmatpush.bf16.msra.mxu0 %v5828
        %5849 = vmatpush.bf16.msra.mxu0 %v5826
        %5850 = vmatpush.bf16.msra.mxu0 %v5824
        %5851 = vmatpush.bf16.msra.mxu0 %v5822
        %5852 = vmatmul.bf16.gmra.mxu0 %v5839
        %v5853 = vpop.f32.mrf.mxu0
        %v5854 = vadd.f32 %v5794, %v5853
        %v5855 = vpop.f32.mrf.mxu0
        %v5856 = vadd.f32 %v5794, %v5855
        %5857 = vmatmul.bf16.gmra.mxu0 %v5842
        %v5858 = vpop.f32.mrf.mxu0
        %v5859 = vadd.f32 %v5794, %v5858
        %v5860 = vpop.f32.mrf.mxu0
        %v5861 = vadd.f32 %v5794, %v5860
        %5862 = vdwg.mxu0
        %5863 = vmatpush.bf16.msra.mxu0 0
        %5864 = vmatpush.bf16.msra.mxu0 0
        %5865 = vmatpush.bf16.msra.mxu0 0
        %5866 = vmatpush.bf16.msra.mxu0 0
        %5867 = vmatpush.bf16.msra.mxu0 %v5829
        %5868 = vmatpush.bf16.msra.mxu0 %v5827
        %5869 = vmatpush.bf16.msra.mxu0 %v5825
        %5870 = vmatpush.bf16.msra.mxu0 %v5823
        %5871 = vmatmul.bf16.gmra.mxu0 %v5839
        %v5872 = vpop.f32.mrf.mxu0
        %v5873 = vadd.f32 %v5795, %v5872
        %v5874 = vpop.f32.mrf.mxu0
        %v5875 = vadd.f32 %v5795, %v5874
        %5876 = vmatmul.bf16.gmra.mxu0 %v5842
        %v5877 = vpop.f32.mrf.mxu0
        %v5878 = vadd.f32 %v5795, %v5877
        %v5879 = vpop.f32.mrf.mxu0
        %v5880 = vadd.f32 %v5795, %v5879
        %5881 = vdwg.mxu0
        %v5882 = vpack.c.bf16 %v5854, %v5854
        %v5883 = vpack.c.bf16 %v5856, %v5856
        %v5884 = vpack.c.bf16 %v5859, %v5859
        %v5885 = vpack.c.bf16 %v5861, %v5861
        %v5886 = vpack.c.bf16 %v5873, %v5873
        %v5887 = vpack.c.bf16 %v5875, %v5875
        %v5888 = vpack.c.bf16 %v5878, %v5878
        %v5889 = vpack.c.bf16 %v5880, %v5880
        %v5894 = vunpack.c.l.b16 %v5882
        %v5895 = vunpack.c.l.b16 %v5883
        %v5896 = vunpack.c.l.b16 %v5884
        %v5897 = vunpack.c.l.b16 %v5885
        %v5898 = vpack.c.b16 %v5895, %v5894
        %v5899 = vpack.c.b16 %v5897, %v5896
        %5900 = vrot.lane.b32.xlu0 %v5898, 64
        %v5901 = vpop.permute.xlu0 %5900
        %5902 = vrot.lane.b32.xlu0 %v5899, 64
        %v5903 = vpop.permute.xlu0 %5902
        %v5905 = vsel %vm707, %v5898, 0
        %v5908 = vsel %vm707, %v5899, 0
        %v5911 = vsel %vm707, %v5901, 0
        %v5914 = vsel %vm707, %v5903, 0
        %5916 = vmatpush.bf16.xpose.msra.mxu0 0
        %5917 = vmatpush.bf16.xpose.msra.mxu0 0
        %5918 = vmatpush.bf16.xpose.msra.mxu0 0
        %5919 = vmatpush.bf16.xpose.msra.mxu0 0
        %5920 = vmatpush.bf16.xpose.msra.mxu0 0
        %5921 = vmatpush.bf16.xpose.msra.mxu0 0
        %5922 = vmatpush.bf16.xpose.msra.mxu0 %v5914
        %5923 = vmatpush.bf16.xpose.msra.mxu0 %v5911
        %5924 = vmatmul.bf16.gmra.mxu0 %v5905
        %v5925 = vpop.f32.mrf.mxu0
        %v5926 = vadd.f32 0.0, %v5925
        %v5927 = vpop.f32.mrf.mxu0
        %v5928 = vadd.f32 0.0, %v5927
        %5929 = vmatmul.bf16.gmra.mxu0 %v5908
        %v5930 = vpop.f32.mrf.mxu0
        %v5931 = vadd.f32 0.0, %v5930
        %v5932 = vpop.f32.mrf.mxu0
        %v5933 = vadd.f32 0.0, %v5932
        %5934 = vdwg.mxu0
        %v5935 = vsel %vm739, %v5926, -inf
        %5936 = vmax.xlane.f32.xlu0 %v5935
        %v5937 = vpop.xlane.xlu0 %5936
        %v5938 = vsel %vm739, %v5928, -inf
        %5939 = vmax.xlane.f32.xlu0 %v5938
        %v5940 = vpop.xlane.xlu0 %5939
        %v5941 = vsel %vm739, %v5931, -inf
        %5942 = vmax.xlane.f32.xlu0 %v5941
        %v5943 = vpop.xlane.xlu0 %5942
        %v5944 = vsel %vm739, %v5933, -inf
        %5945 = vmax.xlane.f32.xlu0 %v5944
        %v5946 = vpop.xlane.xlu0 %5945
        %v5947 = vsub.f32 %v5926, %v5937
        %v5948 = vsub.f32 %v5928, %v5940
        %v5949 = vsub.f32 %v5931, %v5943
        %v5950 = vsub.f32 %v5933, %v5946
        %v5951 = vmul.f32 %v5947, 1.442695
        %v5952 = vpow.pop %v5951
        %v5953 = vmul.f32 %v5948, 1.442695
        %v5954 = vpow.pop %v5953
        %v5955 = vmul.f32 %v5949, 1.442695
        %v5956 = vpow.pop %v5955
        %v5957 = vmul.f32 %v5950, 1.442695
        %v5958 = vpow.pop %v5957
        %v5959 = vsel %vm739, %v5952, 0.0
        %5960 = vadd.xlane.f32.xlu0 %v5959
        %v5961 = vpop.xlane.xlu0 %5960
        %v5962 = vsel %vm739, %v5954, 0.0
        %5963 = vadd.xlane.f32.xlu0 %v5962
        %v5964 = vpop.xlane.xlu0 %5963
        %v5965 = vsel %vm739, %v5956, 0.0
        %5966 = vadd.xlane.f32.xlu0 %v5965
        %v5967 = vpop.xlane.xlu0 %5966
        %v5968 = vsel %vm739, %v5958, 0.0
        %5969 = vadd.xlane.f32.xlu0 %v5968
        %v5970 = vpop.xlane.xlu0 %5969
        %v5971 = vrcp.pop %v5961
        %v5972 = vrcp.pop %v5964
        %v5973 = vrcp.pop %v5967
        %v5974 = vrcp.pop %v5970
        %v5975 = vmul.f32 %v5952, %v5971
        %v5976 = vmul.f32 %v5954, %v5972
        %v5977 = vmul.f32 %v5956, %v5973
        %v5978 = vmul.f32 %v5958, %v5974
        %v5979 = vpack.c.bf16 %v5975, %v5975
        %v5980 = vpack.c.bf16 %v5976, %v5976
        %v5981 = vpack.c.bf16 %v5977, %v5977
        %v5982 = vpack.c.bf16 %v5978, %v5978
        %v5987 = vunpack.c.l.b16 %v5979
        %v5988 = vunpack.c.l.b16 %v5980
        %v5989 = vunpack.c.l.b16 %v5981
        %v5990 = vunpack.c.l.b16 %v5982
        %v5991 = vpack.c.b16 %v5988, %v5987
        %v5992 = vpack.c.b16 %v5990, %v5989
        %v5997 = vunpack.c.l.b16 %v5886
        %v5998 = vunpack.c.l.b16 %v5887
        %v5999 = vunpack.c.l.b16 %v5888
        %v6000 = vunpack.c.l.b16 %v5889
        %v6001 = vpack.c.b16 %v5998, %v5997
        %v6002 = vpack.c.b16 %v6000, %v5999
        %v6006 = vsel %vm739, %v5991, 0
        %v6009 = vsel %vm739, %v5992, 0
        %6011 = vmatpush.bf16.msra.mxu0 0
        %6012 = vmatpush.bf16.msra.mxu0 0
        %6013 = vmatpush.bf16.msra.mxu0 0
        %6014 = vmatpush.bf16.msra.mxu0 0
        %6015 = vmatpush.bf16.msra.mxu0 0
        %6016 = vmatpush.bf16.msra.mxu0 0
        %6017 = vmatpush.bf16.msra.mxu0 %v6002
        %6018 = vmatpush.bf16.msra.mxu0 %v6001
        %6019 = vmatmul.bf16.gmra.mxu0 %v6006
        %v6020 = vpop.f32.mrf.mxu0
        %v6021 = vadd.f32 0.0, %v6020
        %v6022 = vpop.f32.mrf.mxu0
        %v6023 = vadd.f32 0.0, %v6022
        %6024 = vmatmul.bf16.gmra.mxu0 %v6009
        %v6025 = vpop.f32.mrf.mxu0
        %v6026 = vadd.f32 0.0, %v6025
        %v6027 = vpop.f32.mrf.mxu0
        %v6028 = vadd.f32 0.0, %v6027
        %6029 = vdwg.mxu0
        %6030 = vrot.lane.b32.xlu0 %v5898, 120
        %v6031 = vpop.permute.xlu0 %6030
        %6032 = vrot.lane.b32.xlu0 %v5899, 120
        %v6033 = vpop.permute.xlu0 %6032
        %6034 = vrot.lane.b32.xlu0 %v5898, 56
        %v6035 = vpop.permute.xlu0 %6034
        %6036 = vrot.lane.b32.xlu0 %v5899, 56
        %v6037 = vpop.permute.xlu0 %6036
        %v6039 = vsel %vm707, %v6031, 0
        %v6042 = vsel %vm707, %v6033, 0
        %v6045 = vsel %vm707, %v6035, 0
        %v6048 = vsel %vm707, %v6037, 0
        %6050 = vmatpush.bf16.xpose.msra.mxu0 0
        %6051 = vmatpush.bf16.xpose.msra.mxu0 0
        %6052 = vmatpush.bf16.xpose.msra.mxu0 0
        %6053 = vmatpush.bf16.xpose.msra.mxu0 0
        %6054 = vmatpush.bf16.xpose.msra.mxu0 0
        %6055 = vmatpush.bf16.xpose.msra.mxu0 0
        %6056 = vmatpush.bf16.xpose.msra.mxu0 %v6048
        %6057 = vmatpush.bf16.xpose.msra.mxu0 %v6045
        %6058 = vmatmul.bf16.gmra.mxu0 %v6039
        %v6059 = vpop.f32.mrf.mxu0
        %v6060 = vadd.f32 0.0, %v6059
        %v6061 = vpop.f32.mrf.mxu0
        %v6062 = vadd.f32 0.0, %v6061
        %6063 = vmatmul.bf16.gmra.mxu0 %v6042
        %v6064 = vpop.f32.mrf.mxu0
        %v6065 = vadd.f32 0.0, %v6064
        %v6066 = vpop.f32.mrf.mxu0
        %v6067 = vadd.f32 0.0, %v6066
        %6068 = vdwg.mxu0
        %v6069 = vsel %vm739, %v6060, -inf
        %6070 = vmax.xlane.f32.xlu0 %v6069
        %v6071 = vpop.xlane.xlu0 %6070
        %v6072 = vsel %vm739, %v6062, -inf
        %6073 = vmax.xlane.f32.xlu0 %v6072
        %v6074 = vpop.xlane.xlu0 %6073
        %v6075 = vsel %vm739, %v6065, -inf
        %6076 = vmax.xlane.f32.xlu0 %v6075
        %v6077 = vpop.xlane.xlu0 %6076
        %v6078 = vsel %vm739, %v6067, -inf
        %6079 = vmax.xlane.f32.xlu0 %v6078
        %v6080 = vpop.xlane.xlu0 %6079
        %v6081 = vsub.f32 %v6060, %v6071
        %v6082 = vsub.f32 %v6062, %v6074
        %v6083 = vsub.f32 %v6065, %v6077
        %v6084 = vsub.f32 %v6067, %v6080
        %v6085 = vmul.f32 %v6081, 1.442695
        %v6086 = vpow.pop %v6085
        %v6087 = vmul.f32 %v6082, 1.442695
        %v6088 = vpow.pop %v6087
        %v6089 = vmul.f32 %v6083, 1.442695
        %v6090 = vpow.pop %v6089
        %v6091 = vmul.f32 %v6084, 1.442695
        %v6092 = vpow.pop %v6091
        %v6093 = vsel %vm739, %v6086, 0.0
        %6094 = vadd.xlane.f32.xlu0 %v6093
        %v6095 = vpop.xlane.xlu0 %6094
        %v6096 = vsel %vm739, %v6088, 0.0
        %6097 = vadd.xlane.f32.xlu0 %v6096
        %v6098 = vpop.xlane.xlu0 %6097
        %v6099 = vsel %vm739, %v6090, 0.0
        %6100 = vadd.xlane.f32.xlu0 %v6099
        %v6101 = vpop.xlane.xlu0 %6100
        %v6102 = vsel %vm739, %v6092, 0.0
        %6103 = vadd.xlane.f32.xlu0 %v6102
        %v6104 = vpop.xlane.xlu0 %6103
        %v6105 = vrcp.pop %v6095
        %v6106 = vrcp.pop %v6098
        %v6107 = vrcp.pop %v6101
        %v6108 = vrcp.pop %v6104
        %v6109 = vmul.f32 %v6086, %v6105
        %v6110 = vmul.f32 %v6088, %v6106
        %v6111 = vmul.f32 %v6090, %v6107
        %v6112 = vmul.f32 %v6092, %v6108
        %v6113 = vpack.c.bf16 %v6109, %v6109
        %v6114 = vpack.c.bf16 %v6110, %v6110
        %v6115 = vpack.c.bf16 %v6111, %v6111
        %v6116 = vpack.c.bf16 %v6112, %v6112
        %v6121 = vunpack.c.l.b16 %v6113
        %v6122 = vunpack.c.l.b16 %v6114
        %v6123 = vunpack.c.l.b16 %v6115
        %v6124 = vunpack.c.l.b16 %v6116
        %v6125 = vpack.c.b16 %v6122, %v6121
        %v6126 = vpack.c.b16 %v6124, %v6123
        %6127 = vrot.lane.b32.xlu0 %v6001, 120
        %v6128 = vpop.permute.xlu0 %6127
        %6129 = vrot.lane.b32.xlu0 %v6002, 120
        %v6130 = vpop.permute.xlu0 %6129
        %v6134 = vsel %vm739, %v6125, 0
        %v6137 = vsel %vm739, %v6126, 0
        %6139 = vmatpush.bf16.msra.mxu0 0
        %6140 = vmatpush.bf16.msra.mxu0 0
        %6141 = vmatpush.bf16.msra.mxu0 0
        %6142 = vmatpush.bf16.msra.mxu0 0
        %6143 = vmatpush.bf16.msra.mxu0 0
        %6144 = vmatpush.bf16.msra.mxu0 0
        %6145 = vmatpush.bf16.msra.mxu0 %v6130
        %6146 = vmatpush.bf16.msra.mxu0 %v6128
        %6147 = vmatmul.bf16.gmra.mxu0 %v6134
        %v6148 = vpop.f32.mrf.mxu0
        %v6149 = vadd.f32 0.0, %v6148
        %v6150 = vpop.f32.mrf.mxu0
        %v6151 = vadd.f32 0.0, %v6150
        %6152 = vmatmul.bf16.gmra.mxu0 %v6137
        %v6153 = vpop.f32.mrf.mxu0
        %v6154 = vadd.f32 0.0, %v6153
        %v6155 = vpop.f32.mrf.mxu0
        %v6156 = vadd.f32 0.0, %v6155
        %6157 = vdwg.mxu0
        %6158 = vrot.lane.b32.xlu0 %v5898, 112
        %v6159 = vpop.permute.xlu0 %6158
        %6160 = vrot.lane.b32.xlu0 %v5899, 112
        %v6161 = vpop.permute.xlu0 %6160
        %6162 = vrot.lane.b32.xlu0 %v5898, 48
        %v6163 = vpop.permute.xlu0 %6162
        %6164 = vrot.lane.b32.xlu0 %v5899, 48
        %v6165 = vpop.permute.xlu0 %6164
        %v6167 = vsel %vm707, %v6159, 0
        %v6170 = vsel %vm707, %v6161, 0
        %v6173 = vsel %vm707, %v6163, 0
        %v6176 = vsel %vm707, %v6165, 0
        %6178 = vmatpush.bf16.xpose.msra.mxu0 0
        %6179 = vmatpush.bf16.xpose.msra.mxu0 0
        %6180 = vmatpush.bf16.xpose.msra.mxu0 0
        %6181 = vmatpush.bf16.xpose.msra.mxu0 0
        %6182 = vmatpush.bf16.xpose.msra.mxu0 0
        %6183 = vmatpush.bf16.xpose.msra.mxu0 0
        %6184 = vmatpush.bf16.xpose.msra.mxu0 %v6176
        %6185 = vmatpush.bf16.xpose.msra.mxu0 %v6173
        %6186 = vmatmul.bf16.gmra.mxu0 %v6167
        %v6187 = vpop.f32.mrf.mxu0
        %v6188 = vadd.f32 0.0, %v6187
        %v6189 = vpop.f32.mrf.mxu0
        %v6190 = vadd.f32 0.0, %v6189
        %6191 = vmatmul.bf16.gmra.mxu0 %v6170
        %v6192 = vpop.f32.mrf.mxu0
        %v6193 = vadd.f32 0.0, %v6192
        %v6194 = vpop.f32.mrf.mxu0
        %v6195 = vadd.f32 0.0, %v6194
        %6196 = vdwg.mxu0
        %v6197 = vsel %vm739, %v6188, -inf
        %6198 = vmax.xlane.f32.xlu0 %v6197
        %v6199 = vpop.xlane.xlu0 %6198
        %v6200 = vsel %vm739, %v6190, -inf
        %6201 = vmax.xlane.f32.xlu0 %v6200
        %v6202 = vpop.xlane.xlu0 %6201
        %v6203 = vsel %vm739, %v6193, -inf
        %6204 = vmax.xlane.f32.xlu0 %v6203
        %v6205 = vpop.xlane.xlu0 %6204
        %v6206 = vsel %vm739, %v6195, -inf
        %6207 = vmax.xlane.f32.xlu0 %v6206
        %v6208 = vpop.xlane.xlu0 %6207
        %v6209 = vsub.f32 %v6188, %v6199
        %v6210 = vsub.f32 %v6190, %v6202
        %v6211 = vsub.f32 %v6193, %v6205
        %v6212 = vsub.f32 %v6195, %v6208
        %v6213 = vmul.f32 %v6209, 1.442695
        %v6214 = vpow.pop %v6213
        %v6215 = vmul.f32 %v6210, 1.442695
        %v6216 = vpow.pop %v6215
        %v6217 = vmul.f32 %v6211, 1.442695
        %v6218 = vpow.pop %v6217
        %v6219 = vmul.f32 %v6212, 1.442695
        %v6220 = vpow.pop %v6219
        %v6221 = vsel %vm739, %v6214, 0.0
        %6222 = vadd.xlane.f32.xlu0 %v6221
        %v6223 = vpop.xlane.xlu0 %6222
        %v6224 = vsel %vm739, %v6216, 0.0
        %6225 = vadd.xlane.f32.xlu0 %v6224
        %v6226 = vpop.xlane.xlu0 %6225
        %v6227 = vsel %vm739, %v6218, 0.0
        %6228 = vadd.xlane.f32.xlu0 %v6227
        %v6229 = vpop.xlane.xlu0 %6228
        %v6230 = vsel %vm739, %v6220, 0.0
        %6231 = vadd.xlane.f32.xlu0 %v6230
        %v6232 = vpop.xlane.xlu0 %6231
        %v6233 = vrcp.pop %v6223
        %v6234 = vrcp.pop %v6226
        %v6235 = vrcp.pop %v6229
        %v6236 = vrcp.pop %v6232
        %v6237 = vmul.f32 %v6214, %v6233
        %v6238 = vmul.f32 %v6216, %v6234
        %v6239 = vmul.f32 %v6218, %v6235
        %v6240 = vmul.f32 %v6220, %v6236
        %v6241 = vpack.c.bf16 %v6237, %v6237
        %v6242 = vpack.c.bf16 %v6238, %v6238
        %v6243 = vpack.c.bf16 %v6239, %v6239
        %v6244 = vpack.c.bf16 %v6240, %v6240
        %v6249 = vunpack.c.l.b16 %v6241
        %v6250 = vunpack.c.l.b16 %v6242
        %v6251 = vunpack.c.l.b16 %v6243
        %v6252 = vunpack.c.l.b16 %v6244
        %v6253 = vpack.c.b16 %v6250, %v6249
        %v6254 = vpack.c.b16 %v6252, %v6251
        %6255 = vrot.lane.b32.xlu0 %v6001, 112
        %v6256 = vpop.permute.xlu0 %6255
        %6257 = vrot.lane.b32.xlu0 %v6002, 112
        %v6258 = vpop.permute.xlu0 %6257
        %v6262 = vsel %vm739, %v6253, 0
        %v6265 = vsel %vm739, %v6254, 0
        %6267 = vmatpush.bf16.msra.mxu0 0
        %6268 = vmatpush.bf16.msra.mxu0 0
        %6269 = vmatpush.bf16.msra.mxu0 0
        %6270 = vmatpush.bf16.msra.mxu0 0
        %6271 = vmatpush.bf16.msra.mxu0 0
        %6272 = vmatpush.bf16.msra.mxu0 0
        %6273 = vmatpush.bf16.msra.mxu0 %v6258
        %6274 = vmatpush.bf16.msra.mxu0 %v6256
        %6275 = vmatmul.bf16.gmra.mxu0 %v6262
        %v6276 = vpop.f32.mrf.mxu0
        %v6277 = vadd.f32 0.0, %v6276
        %v6278 = vpop.f32.mrf.mxu0
        %v6279 = vadd.f32 0.0, %v6278
        %6280 = vmatmul.bf16.gmra.mxu0 %v6265
        %v6281 = vpop.f32.mrf.mxu0
        %v6282 = vadd.f32 0.0, %v6281
        %v6283 = vpop.f32.mrf.mxu0
        %v6284 = vadd.f32 0.0, %v6283
        %6285 = vdwg.mxu0
        %6286 = vrot.lane.b32.xlu0 %v5898, 104
        %v6287 = vpop.permute.xlu0 %6286
        %6288 = vrot.lane.b32.xlu0 %v5899, 104
        %v6289 = vpop.permute.xlu0 %6288
        %6290 = vrot.lane.b32.xlu0 %v5898, 40
        %v6291 = vpop.permute.xlu0 %6290
        %6292 = vrot.lane.b32.xlu0 %v5899, 40
        %v6293 = vpop.permute.xlu0 %6292
        %v6295 = vsel %vm707, %v6287, 0
        %v6298 = vsel %vm707, %v6289, 0
        %v6301 = vsel %vm707, %v6291, 0
        %v6304 = vsel %vm707, %v6293, 0
        %6306 = vmatpush.bf16.xpose.msra.mxu0 0
        %6307 = vmatpush.bf16.xpose.msra.mxu0 0
        %6308 = vmatpush.bf16.xpose.msra.mxu0 0
        %6309 = vmatpush.bf16.xpose.msra.mxu0 0
        %6310 = vmatpush.bf16.xpose.msra.mxu0 0
        %6311 = vmatpush.bf16.xpose.msra.mxu0 0
        %6312 = vmatpush.bf16.xpose.msra.mxu0 %v6304
        %6313 = vmatpush.bf16.xpose.msra.mxu0 %v6301
        %6314 = vmatmul.bf16.gmra.mxu0 %v6295
        %v6315 = vpop.f32.mrf.mxu0
        %v6316 = vadd.f32 0.0, %v6315
        %v6317 = vpop.f32.mrf.mxu0
        %v6318 = vadd.f32 0.0, %v6317
        %6319 = vmatmul.bf16.gmra.mxu0 %v6298
        %v6320 = vpop.f32.mrf.mxu0
        %v6321 = vadd.f32 0.0, %v6320
        %v6322 = vpop.f32.mrf.mxu0
        %v6323 = vadd.f32 0.0, %v6322
        %6324 = vdwg.mxu0
        %v6325 = vsel %vm739, %v6316, -inf
        %6326 = vmax.xlane.f32.xlu0 %v6325
        %v6327 = vpop.xlane.xlu0 %6326
        %v6328 = vsel %vm739, %v6318, -inf
        %6329 = vmax.xlane.f32.xlu0 %v6328
        %v6330 = vpop.xlane.xlu0 %6329
        %v6331 = vsel %vm739, %v6321, -inf
        %6332 = vmax.xlane.f32.xlu0 %v6331
        %v6333 = vpop.xlane.xlu0 %6332
        %v6334 = vsel %vm739, %v6323, -inf
        %6335 = vmax.xlane.f32.xlu0 %v6334
        %v6336 = vpop.xlane.xlu0 %6335
        %v6337 = vsub.f32 %v6316, %v6327
        %v6338 = vsub.f32 %v6318, %v6330
        %v6339 = vsub.f32 %v6321, %v6333
        %v6340 = vsub.f32 %v6323, %v6336
        %v6341 = vmul.f32 %v6337, 1.442695
        %v6342 = vpow.pop %v6341
        %v6343 = vmul.f32 %v6338, 1.442695
        %v6344 = vpow.pop %v6343
        %v6345 = vmul.f32 %v6339, 1.442695
        %v6346 = vpow.pop %v6345
        %v6347 = vmul.f32 %v6340, 1.442695
        %v6348 = vpow.pop %v6347
        %v6349 = vsel %vm739, %v6342, 0.0
        %6350 = vadd.xlane.f32.xlu0 %v6349
        %v6351 = vpop.xlane.xlu0 %6350
        %v6352 = vsel %vm739, %v6344, 0.0
        %6353 = vadd.xlane.f32.xlu0 %v6352
        %v6354 = vpop.xlane.xlu0 %6353
        %v6355 = vsel %vm739, %v6346, 0.0
        %6356 = vadd.xlane.f32.xlu0 %v6355
        %v6357 = vpop.xlane.xlu0 %6356
        %v6358 = vsel %vm739, %v6348, 0.0
        %6359 = vadd.xlane.f32.xlu0 %v6358
        %v6360 = vpop.xlane.xlu0 %6359
        %v6361 = vrcp.pop %v6351
        %v6362 = vrcp.pop %v6354
        %v6363 = vrcp.pop %v6357
        %v6364 = vrcp.pop %v6360
        %v6365 = vmul.f32 %v6342, %v6361
        %v6366 = vmul.f32 %v6344, %v6362
        %v6367 = vmul.f32 %v6346, %v6363
        %v6368 = vmul.f32 %v6348, %v6364
        %v6369 = vpack.c.bf16 %v6365, %v6365
        %v6370 = vpack.c.bf16 %v6366, %v6366
        %v6371 = vpack.c.bf16 %v6367, %v6367
        %v6372 = vpack.c.bf16 %v6368, %v6368
        %v6377 = vunpack.c.l.b16 %v6369
        %v6378 = vunpack.c.l.b16 %v6370
        %v6379 = vunpack.c.l.b16 %v6371
        %v6380 = vunpack.c.l.b16 %v6372
        %v6381 = vpack.c.b16 %v6378, %v6377
        %v6382 = vpack.c.b16 %v6380, %v6379
        %6383 = vrot.lane.b32.xlu0 %v6001, 104
        %v6384 = vpop.permute.xlu0 %6383
        %6385 = vrot.lane.b32.xlu0 %v6002, 104
        %v6386 = vpop.permute.xlu0 %6385
        %v6390 = vsel %vm739, %v6381, 0
        %v6393 = vsel %vm739, %v6382, 0
        %6395 = vmatpush.bf16.msra.mxu0 0
        %6396 = vmatpush.bf16.msra.mxu0 0
        %6397 = vmatpush.bf16.msra.mxu0 0
        %6398 = vmatpush.bf16.msra.mxu0 0
        %6399 = vmatpush.bf16.msra.mxu0 0
        %6400 = vmatpush.bf16.msra.mxu0 0
        %6401 = vmatpush.bf16.msra.mxu0 %v6386
        %6402 = vmatpush.bf16.msra.mxu0 %v6384
        %6403 = vmatmul.bf16.gmra.mxu0 %v6390
        %v6404 = vpop.f32.mrf.mxu0
        %v6405 = vadd.f32 0.0, %v6404
        %v6406 = vpop.f32.mrf.mxu0
        %v6407 = vadd.f32 0.0, %v6406
        %6408 = vmatmul.bf16.gmra.mxu0 %v6393
        %v6409 = vpop.f32.mrf.mxu0
        %v6410 = vadd.f32 0.0, %v6409
        %v6411 = vpop.f32.mrf.mxu0
        %v6412 = vadd.f32 0.0, %v6411
        %6413 = vdwg.mxu0
        %6414 = vrot.lane.b32.xlu0 %v5898, 96
        %v6415 = vpop.permute.xlu0 %6414
        %6416 = vrot.lane.b32.xlu0 %v5899, 96
        %v6417 = vpop.permute.xlu0 %6416
        %6418 = vrot.lane.b32.xlu0 %v5898, 32
        %v6419 = vpop.permute.xlu0 %6418
        %6420 = vrot.lane.b32.xlu0 %v5899, 32
        %v6421 = vpop.permute.xlu0 %6420
        %v6423 = vsel %vm707, %v6415, 0
        %v6426 = vsel %vm707, %v6417, 0
        %v6429 = vsel %vm707, %v6419, 0
        %v6432 = vsel %vm707, %v6421, 0
        %6434 = vmatpush.bf16.xpose.msra.mxu0 0
        %6435 = vmatpush.bf16.xpose.msra.mxu0 0
        %6436 = vmatpush.bf16.xpose.msra.mxu0 0
        %6437 = vmatpush.bf16.xpose.msra.mxu0 0
        %6438 = vmatpush.bf16.xpose.msra.mxu0 0
        %6439 = vmatpush.bf16.xpose.msra.mxu0 0
        %6440 = vmatpush.bf16.xpose.msra.mxu0 %v6432
        %6441 = vmatpush.bf16.xpose.msra.mxu0 %v6429
        %6442 = vmatmul.bf16.gmra.mxu0 %v6423
        %v6443 = vpop.f32.mrf.mxu0
        %v6444 = vadd.f32 0.0, %v6443
        %v6445 = vpop.f32.mrf.mxu0
        %v6446 = vadd.f32 0.0, %v6445
        %6447 = vmatmul.bf16.gmra.mxu0 %v6426
        %v6448 = vpop.f32.mrf.mxu0
        %v6449 = vadd.f32 0.0, %v6448
        %v6450 = vpop.f32.mrf.mxu0
        %v6451 = vadd.f32 0.0, %v6450
        %6452 = vdwg.mxu0
        %v6453 = vsel %vm739, %v6444, -inf
        %6454 = vmax.xlane.f32.xlu0 %v6453
        %v6455 = vpop.xlane.xlu0 %6454
        %v6456 = vsel %vm739, %v6446, -inf
        %6457 = vmax.xlane.f32.xlu0 %v6456
        %v6458 = vpop.xlane.xlu0 %6457
        %v6459 = vsel %vm739, %v6449, -inf
        %6460 = vmax.xlane.f32.xlu0 %v6459
        %v6461 = vpop.xlane.xlu0 %6460
        %v6462 = vsel %vm739, %v6451, -inf
        %6463 = vmax.xlane.f32.xlu0 %v6462
        %v6464 = vpop.xlane.xlu0 %6463
        %v6465 = vsub.f32 %v6444, %v6455
        %v6466 = vsub.f32 %v6446, %v6458
        %v6467 = vsub.f32 %v6449, %v6461
        %v6468 = vsub.f32 %v6451, %v6464
        %v6469 = vmul.f32 %v6465, 1.442695
        %v6470 = vpow.pop %v6469
        %v6471 = vmul.f32 %v6466, 1.442695
        %v6472 = vpow.pop %v6471
        %v6473 = vmul.f32 %v6467, 1.442695
        %v6474 = vpow.pop %v6473
        %v6475 = vmul.f32 %v6468, 1.442695
        %v6476 = vpow.pop %v6475
        %v6477 = vsel %vm739, %v6470, 0.0
        %6478 = vadd.xlane.f32.xlu0 %v6477
        %v6479 = vpop.xlane.xlu0 %6478
        %v6480 = vsel %vm739, %v6472, 0.0
        %6481 = vadd.xlane.f32.xlu0 %v6480
        %v6482 = vpop.xlane.xlu0 %6481
        %v6483 = vsel %vm739, %v6474, 0.0
        %6484 = vadd.xlane.f32.xlu0 %v6483
        %v6485 = vpop.xlane.xlu0 %6484
        %v6486 = vsel %vm739, %v6476, 0.0
        %6487 = vadd.xlane.f32.xlu0 %v6486
        %v6488 = vpop.xlane.xlu0 %6487
        %v6489 = vrcp.pop %v6479
        %v6490 = vrcp.pop %v6482
        %v6491 = vrcp.pop %v6485
        %v6492 = vrcp.pop %v6488
        %v6493 = vmul.f32 %v6470, %v6489
        %v6494 = vmul.f32 %v6472, %v6490
        %v6495 = vmul.f32 %v6474, %v6491
        %v6496 = vmul.f32 %v6476, %v6492
        %v6497 = vpack.c.bf16 %v6493, %v6493
        %v6498 = vpack.c.bf16 %v6494, %v6494
        %v6499 = vpack.c.bf16 %v6495, %v6495
        %v6500 = vpack.c.bf16 %v6496, %v6496
        %v6505 = vunpack.c.l.b16 %v6497
        %v6506 = vunpack.c.l.b16 %v6498
        %v6507 = vunpack.c.l.b16 %v6499
        %v6508 = vunpack.c.l.b16 %v6500
        %v6509 = vpack.c.b16 %v6506, %v6505
        %v6510 = vpack.c.b16 %v6508, %v6507
        %6511 = vrot.lane.b32.xlu0 %v6001, 96
        %v6512 = vpop.permute.xlu0 %6511
        %6513 = vrot.lane.b32.xlu0 %v6002, 96
        %v6514 = vpop.permute.xlu0 %6513
        %v6518 = vsel %vm739, %v6509, 0
        %v6521 = vsel %vm739, %v6510, 0
        %6523 = vmatpush.bf16.msra.mxu0 0
        %6524 = vmatpush.bf16.msra.mxu0 0
        %6525 = vmatpush.bf16.msra.mxu0 0
        %6526 = vmatpush.bf16.msra.mxu0 0
        %6527 = vmatpush.bf16.msra.mxu0 0
        %6528 = vmatpush.bf16.msra.mxu0 0
        %6529 = vmatpush.bf16.msra.mxu0 %v6514
        %6530 = vmatpush.bf16.msra.mxu0 %v6512
        %6531 = vmatmul.bf16.gmra.mxu0 %v6518
        %v6532 = vpop.f32.mrf.mxu0
        %v6533 = vadd.f32 0.0, %v6532
        %v6534 = vpop.f32.mrf.mxu0
        %v6535 = vadd.f32 0.0, %v6534
        %6536 = vmatmul.bf16.gmra.mxu0 %v6521
        %v6537 = vpop.f32.mrf.mxu0
        %v6538 = vadd.f32 0.0, %v6537
        %v6539 = vpop.f32.mrf.mxu0
        %v6540 = vadd.f32 0.0, %v6539
        %6541 = vdwg.mxu0
        %6542 = vrot.lane.b32.xlu0 %v5898, 88
        %v6543 = vpop.permute.xlu0 %6542
        %6544 = vrot.lane.b32.xlu0 %v5899, 88
        %v6545 = vpop.permute.xlu0 %6544
        %6546 = vrot.lane.b32.xlu0 %v5898, 24
        %v6547 = vpop.permute.xlu0 %6546
        %6548 = vrot.lane.b32.xlu0 %v5899, 24
        %v6549 = vpop.permute.xlu0 %6548
        %v6551 = vsel %vm707, %v6543, 0
        %v6554 = vsel %vm707, %v6545, 0
        %v6557 = vsel %vm707, %v6547, 0
        %v6560 = vsel %vm707, %v6549, 0
        %6562 = vmatpush.bf16.xpose.msra.mxu0 0
        %6563 = vmatpush.bf16.xpose.msra.mxu0 0
        %6564 = vmatpush.bf16.xpose.msra.mxu0 0
        %6565 = vmatpush.bf16.xpose.msra.mxu0 0
        %6566 = vmatpush.bf16.xpose.msra.mxu0 0
        %6567 = vmatpush.bf16.xpose.msra.mxu0 0
        %6568 = vmatpush.bf16.xpose.msra.mxu0 %v6560
        %6569 = vmatpush.bf16.xpose.msra.mxu0 %v6557
        %6570 = vmatmul.bf16.gmra.mxu0 %v6551
        %v6571 = vpop.f32.mrf.mxu0
        %v6572 = vadd.f32 0.0, %v6571
        %v6573 = vpop.f32.mrf.mxu0
        %v6574 = vadd.f32 0.0, %v6573
        %6575 = vmatmul.bf16.gmra.mxu0 %v6554
        %v6576 = vpop.f32.mrf.mxu0
        %v6577 = vadd.f32 0.0, %v6576
        %v6578 = vpop.f32.mrf.mxu0
        %v6579 = vadd.f32 0.0, %v6578
        %6580 = vdwg.mxu0
        %v6581 = vsel %vm739, %v6572, -inf
        %6582 = vmax.xlane.f32.xlu0 %v6581
        %v6583 = vpop.xlane.xlu0 %6582
        %v6584 = vsel %vm739, %v6574, -inf
        %6585 = vmax.xlane.f32.xlu0 %v6584
        %v6586 = vpop.xlane.xlu0 %6585
        %v6587 = vsel %vm739, %v6577, -inf
        %6588 = vmax.xlane.f32.xlu0 %v6587
        %v6589 = vpop.xlane.xlu0 %6588
        %v6590 = vsel %vm739, %v6579, -inf
        %6591 = vmax.xlane.f32.xlu0 %v6590
        %v6592 = vpop.xlane.xlu0 %6591
        %v6593 = vsub.f32 %v6572, %v6583
        %v6594 = vsub.f32 %v6574, %v6586
        %v6595 = vsub.f32 %v6577, %v6589
        %v6596 = vsub.f32 %v6579, %v6592
        %v6597 = vmul.f32 %v6593, 1.442695
        %v6598 = vpow.pop %v6597
        %v6599 = vmul.f32 %v6594, 1.442695
        %v6600 = vpow.pop %v6599
        %v6601 = vmul.f32 %v6595, 1.442695
        %v6602 = vpow.pop %v6601
        %v6603 = vmul.f32 %v6596, 1.442695
        %v6604 = vpow.pop %v6603
        %v6605 = vsel %vm739, %v6598, 0.0
        %6606 = vadd.xlane.f32.xlu0 %v6605
        %v6607 = vpop.xlane.xlu0 %6606
        %v6608 = vsel %vm739, %v6600, 0.0
        %6609 = vadd.xlane.f32.xlu0 %v6608
        %v6610 = vpop.xlane.xlu0 %6609
        %v6611 = vsel %vm739, %v6602, 0.0
        %6612 = vadd.xlane.f32.xlu0 %v6611
        %v6613 = vpop.xlane.xlu0 %6612
        %v6614 = vsel %vm739, %v6604, 0.0
        %6615 = vadd.xlane.f32.xlu0 %v6614
        %v6616 = vpop.xlane.xlu0 %6615
        %v6617 = vrcp.pop %v6607
        %v6618 = vrcp.pop %v6610
        %v6619 = vrcp.pop %v6613
        %v6620 = vrcp.pop %v6616
        %v6621 = vmul.f32 %v6598, %v6617
        %v6622 = vmul.f32 %v6600, %v6618
        %v6623 = vmul.f32 %v6602, %v6619
        %v6624 = vmul.f32 %v6604, %v6620
        %v6625 = vpack.c.bf16 %v6621, %v6621
        %v6626 = vpack.c.bf16 %v6622, %v6622
        %v6627 = vpack.c.bf16 %v6623, %v6623
        %v6628 = vpack.c.bf16 %v6624, %v6624
        %v6633 = vunpack.c.l.b16 %v6625
        %v6634 = vunpack.c.l.b16 %v6626
        %v6635 = vunpack.c.l.b16 %v6627
        %v6636 = vunpack.c.l.b16 %v6628
        %v6637 = vpack.c.b16 %v6634, %v6633
        %v6638 = vpack.c.b16 %v6636, %v6635
        %6639 = vrot.lane.b32.xlu0 %v6001, 88
        %v6640 = vpop.permute.xlu0 %6639
        %6641 = vrot.lane.b32.xlu0 %v6002, 88
        %v6642 = vpop.permute.xlu0 %6641
        %v6646 = vsel %vm739, %v6637, 0
        %v6649 = vsel %vm739, %v6638, 0
        %6651 = vmatpush.bf16.msra.mxu0 0
        %6652 = vmatpush.bf16.msra.mxu0 0
        %6653 = vmatpush.bf16.msra.mxu0 0
        %6654 = vmatpush.bf16.msra.mxu0 0
        %6655 = vmatpush.bf16.msra.mxu0 0
        %6656 = vmatpush.bf16.msra.mxu0 0
        %6657 = vmatpush.bf16.msra.mxu0 %v6642
        %6658 = vmatpush.bf16.msra.mxu0 %v6640
        %6659 = vmatmul.bf16.gmra.mxu0 %v6646
        %v6660 = vpop.f32.mrf.mxu0
        %v6661 = vadd.f32 0.0, %v6660
        %v6662 = vpop.f32.mrf.mxu0
        %v6663 = vadd.f32 0.0, %v6662
        %6664 = vmatmul.bf16.gmra.mxu0 %v6649
        %v6665 = vpop.f32.mrf.mxu0
        %v6666 = vadd.f32 0.0, %v6665
        %v6667 = vpop.f32.mrf.mxu0
        %v6668 = vadd.f32 0.0, %v6667
        %6669 = vdwg.mxu0
        %6670 = vrot.lane.b32.xlu0 %v5898, 80
        %v6671 = vpop.permute.xlu0 %6670
        %6672 = vrot.lane.b32.xlu0 %v5899, 80
        %v6673 = vpop.permute.xlu0 %6672
        %6674 = vrot.lane.b32.xlu0 %v5898, 16
        %v6675 = vpop.permute.xlu0 %6674
        %6676 = vrot.lane.b32.xlu0 %v5899, 16
        %v6677 = vpop.permute.xlu0 %6676
        %v6679 = vsel %vm707, %v6671, 0
        %v6682 = vsel %vm707, %v6673, 0
        %v6685 = vsel %vm707, %v6675, 0
        %v6688 = vsel %vm707, %v6677, 0
        %6690 = vmatpush.bf16.xpose.msra.mxu0 0
        %6691 = vmatpush.bf16.xpose.msra.mxu0 0
        %6692 = vmatpush.bf16.xpose.msra.mxu0 0
        %6693 = vmatpush.bf16.xpose.msra.mxu0 0
        %6694 = vmatpush.bf16.xpose.msra.mxu0 0
        %6695 = vmatpush.bf16.xpose.msra.mxu0 0
        %6696 = vmatpush.bf16.xpose.msra.mxu0 %v6688
        %6697 = vmatpush.bf16.xpose.msra.mxu0 %v6685
        %6698 = vmatmul.bf16.gmra.mxu0 %v6679
        %v6699 = vpop.f32.mrf.mxu0
        %v6700 = vadd.f32 0.0, %v6699
        %v6701 = vpop.f32.mrf.mxu0
        %v6702 = vadd.f32 0.0, %v6701
        %6703 = vmatmul.bf16.gmra.mxu0 %v6682
        %v6704 = vpop.f32.mrf.mxu0
        %v6705 = vadd.f32 0.0, %v6704
        %v6706 = vpop.f32.mrf.mxu0
        %v6707 = vadd.f32 0.0, %v6706
        %6708 = vdwg.mxu0
        %v6709 = vsel %vm739, %v6700, -inf
        %6710 = vmax.xlane.f32.xlu0 %v6709
        %v6711 = vpop.xlane.xlu0 %6710
        %v6712 = vsel %vm739, %v6702, -inf
        %6713 = vmax.xlane.f32.xlu0 %v6712
        %v6714 = vpop.xlane.xlu0 %6713
        %v6715 = vsel %vm739, %v6705, -inf
        %6716 = vmax.xlane.f32.xlu0 %v6715
        %v6717 = vpop.xlane.xlu0 %6716
        %v6718 = vsel %vm739, %v6707, -inf
        %6719 = vmax.xlane.f32.xlu0 %v6718
        %v6720 = vpop.xlane.xlu0 %6719
        %v6721 = vsub.f32 %v6700, %v6711
        %v6722 = vsub.f32 %v6702, %v6714
        %v6723 = vsub.f32 %v6705, %v6717
        %v6724 = vsub.f32 %v6707, %v6720
        %v6725 = vmul.f32 %v6721, 1.442695
        %v6726 = vpow.pop %v6725
        %v6727 = vmul.f32 %v6722, 1.442695
        %v6728 = vpow.pop %v6727
        %v6729 = vmul.f32 %v6723, 1.442695
        %v6730 = vpow.pop %v6729
        %v6731 = vmul.f32 %v6724, 1.442695
        %v6732 = vpow.pop %v6731
        %v6733 = vsel %vm739, %v6726, 0.0
        %6734 = vadd.xlane.f32.xlu0 %v6733
        %v6735 = vpop.xlane.xlu0 %6734
        %v6736 = vsel %vm739, %v6728, 0.0
        %6737 = vadd.xlane.f32.xlu0 %v6736
        %v6738 = vpop.xlane.xlu0 %6737
        %v6739 = vsel %vm739, %v6730, 0.0
        %6740 = vadd.xlane.f32.xlu0 %v6739
        %v6741 = vpop.xlane.xlu0 %6740
        %v6742 = vsel %vm739, %v6732, 0.0
        %6743 = vadd.xlane.f32.xlu0 %v6742
        %v6744 = vpop.xlane.xlu0 %6743
        %v6745 = vrcp.pop %v6735
        %v6746 = vrcp.pop %v6738
        %v6747 = vrcp.pop %v6741
        %v6748 = vrcp.pop %v6744
        %v6749 = vmul.f32 %v6726, %v6745
        %v6750 = vmul.f32 %v6728, %v6746
        %v6751 = vmul.f32 %v6730, %v6747
        %v6752 = vmul.f32 %v6732, %v6748
        %v6753 = vpack.c.bf16 %v6749, %v6749
        %v6754 = vpack.c.bf16 %v6750, %v6750
        %v6755 = vpack.c.bf16 %v6751, %v6751
        %v6756 = vpack.c.bf16 %v6752, %v6752
        %v6761 = vunpack.c.l.b16 %v6753
        %v6762 = vunpack.c.l.b16 %v6754
        %v6763 = vunpack.c.l.b16 %v6755
        %v6764 = vunpack.c.l.b16 %v6756
        %v6765 = vpack.c.b16 %v6762, %v6761
        %v6766 = vpack.c.b16 %v6764, %v6763
        %6767 = vrot.lane.b32.xlu0 %v6001, 80
        %v6768 = vpop.permute.xlu0 %6767
        %6769 = vrot.lane.b32.xlu0 %v6002, 80
        %v6770 = vpop.permute.xlu0 %6769
        %v6774 = vsel %vm739, %v6765, 0
        %v6777 = vsel %vm739, %v6766, 0
        %6779 = vmatpush.bf16.msra.mxu0 0
        %6780 = vmatpush.bf16.msra.mxu0 0
        %6781 = vmatpush.bf16.msra.mxu0 0
        %6782 = vmatpush.bf16.msra.mxu0 0
        %6783 = vmatpush.bf16.msra.mxu0 0
        %6784 = vmatpush.bf16.msra.mxu0 0
        %6785 = vmatpush.bf16.msra.mxu0 %v6770
        %6786 = vmatpush.bf16.msra.mxu0 %v6768
        %6787 = vmatmul.bf16.gmra.mxu0 %v6774
        %v6788 = vpop.f32.mrf.mxu0
        %v6789 = vadd.f32 0.0, %v6788
        %v6790 = vpop.f32.mrf.mxu0
        %v6791 = vadd.f32 0.0, %v6790
        %6792 = vmatmul.bf16.gmra.mxu0 %v6777
        %v6793 = vpop.f32.mrf.mxu0
        %v6794 = vadd.f32 0.0, %v6793
        %v6795 = vpop.f32.mrf.mxu0
        %v6796 = vadd.f32 0.0, %v6795
        %6797 = vdwg.mxu0
        %6798 = vrot.lane.b32.xlu0 %v5898, 72
        %v6799 = vpop.permute.xlu0 %6798
        %6800 = vrot.lane.b32.xlu0 %v5899, 72
        %v6801 = vpop.permute.xlu0 %6800
        %6802 = vrot.lane.b32.xlu0 %v5898, 8
        %v6803 = vpop.permute.xlu0 %6802
        %6804 = vrot.lane.b32.xlu0 %v5899, 8
        %v6805 = vpop.permute.xlu0 %6804
        %v6807 = vsel %vm707, %v6799, 0
        %v6810 = vsel %vm707, %v6801, 0
        %v6813 = vsel %vm707, %v6803, 0
        %v6816 = vsel %vm707, %v6805, 0
        %6818 = vmatpush.bf16.xpose.msra.mxu0 0
        %6819 = vmatpush.bf16.xpose.msra.mxu0 0
        %6820 = vmatpush.bf16.xpose.msra.mxu0 0
        %6821 = vmatpush.bf16.xpose.msra.mxu0 0
        %6822 = vmatpush.bf16.xpose.msra.mxu0 0
        %6823 = vmatpush.bf16.xpose.msra.mxu0 0
        %6824 = vmatpush.bf16.xpose.msra.mxu0 %v6816
        %6825 = vmatpush.bf16.xpose.msra.mxu0 %v6813
        %6826 = vmatmul.bf16.gmra.mxu0 %v6807
        %v6827 = vpop.f32.mrf.mxu0
        %v6828 = vadd.f32 0.0, %v6827
        %v6829 = vpop.f32.mrf.mxu0
        %v6830 = vadd.f32 0.0, %v6829
        %6831 = vmatmul.bf16.gmra.mxu0 %v6810
        %v6832 = vpop.f32.mrf.mxu0
        %v6833 = vadd.f32 0.0, %v6832
        %v6834 = vpop.f32.mrf.mxu0
        %v6835 = vadd.f32 0.0, %v6834
        %6836 = vdwg.mxu0
        %v6837 = vsel %vm739, %v6828, -inf
        %6838 = vmax.xlane.f32.xlu0 %v6837
        %v6839 = vpop.xlane.xlu0 %6838
        %v6840 = vsel %vm739, %v6830, -inf
        %6841 = vmax.xlane.f32.xlu0 %v6840
        %v6842 = vpop.xlane.xlu0 %6841
        %v6843 = vsel %vm739, %v6833, -inf
        %6844 = vmax.xlane.f32.xlu0 %v6843
        %v6845 = vpop.xlane.xlu0 %6844
        %v6846 = vsel %vm739, %v6835, -inf
        %6847 = vmax.xlane.f32.xlu0 %v6846
        %v6848 = vpop.xlane.xlu0 %6847
        %v6849 = vsub.f32 %v6828, %v6839
        %v6850 = vsub.f32 %v6830, %v6842
        %v6851 = vsub.f32 %v6833, %v6845
        %v6852 = vsub.f32 %v6835, %v6848
        %v6853 = vmul.f32 %v6849, 1.442695
        %v6854 = vpow.pop %v6853
        %v6855 = vmul.f32 %v6850, 1.442695
        %v6856 = vpow.pop %v6855
        %v6857 = vmul.f32 %v6851, 1.442695
        %v6858 = vpow.pop %v6857
        %v6859 = vmul.f32 %v6852, 1.442695
        %v6860 = vpow.pop %v6859
        %v6861 = vsel %vm739, %v6854, 0.0
        %6862 = vadd.xlane.f32.xlu0 %v6861
        %v6863 = vpop.xlane.xlu0 %6862
        %v6864 = vsel %vm739, %v6856, 0.0
        %6865 = vadd.xlane.f32.xlu0 %v6864
        %v6866 = vpop.xlane.xlu0 %6865
        %v6867 = vsel %vm739, %v6858, 0.0
        %6868 = vadd.xlane.f32.xlu0 %v6867
        %v6869 = vpop.xlane.xlu0 %6868
        %v6870 = vsel %vm739, %v6860, 0.0
        %6871 = vadd.xlane.f32.xlu0 %v6870
        %v6872 = vpop.xlane.xlu0 %6871
        %v6873 = vrcp.pop %v6863
        %v6874 = vrcp.pop %v6866
        %v6875 = vrcp.pop %v6869
        %v6876 = vrcp.pop %v6872
        %v6877 = vmul.f32 %v6854, %v6873
        %v6878 = vmul.f32 %v6856, %v6874
        %v6879 = vmul.f32 %v6858, %v6875
        %v6880 = vmul.f32 %v6860, %v6876
        %v6881 = vpack.c.bf16 %v6877, %v6877
        %v6882 = vpack.c.bf16 %v6878, %v6878
        %v6883 = vpack.c.bf16 %v6879, %v6879
        %v6884 = vpack.c.bf16 %v6880, %v6880
        %v6889 = vunpack.c.l.b16 %v6881
        %v6890 = vunpack.c.l.b16 %v6882
        %v6891 = vunpack.c.l.b16 %v6883
        %v6892 = vunpack.c.l.b16 %v6884
        %v6893 = vpack.c.b16 %v6890, %v6889
        %v6894 = vpack.c.b16 %v6892, %v6891
        %6895 = vrot.lane.b32.xlu0 %v6001, 72
        %v6896 = vpop.permute.xlu0 %6895
        %6897 = vrot.lane.b32.xlu0 %v6002, 72
        %v6898 = vpop.permute.xlu0 %6897
        %v6902 = vsel %vm739, %v6893, 0
        %v6905 = vsel %vm739, %v6894, 0
        %6907 = vmatpush.bf16.msra.mxu0 0
        %6908 = vmatpush.bf16.msra.mxu0 0
        %6909 = vmatpush.bf16.msra.mxu0 0
        %6910 = vmatpush.bf16.msra.mxu0 0
        %6911 = vmatpush.bf16.msra.mxu0 0
        %6912 = vmatpush.bf16.msra.mxu0 0
        %6913 = vmatpush.bf16.msra.mxu0 %v6898
        %6914 = vmatpush.bf16.msra.mxu0 %v6896
        %6915 = vmatmul.bf16.gmra.mxu0 %v6902
        %v6916 = vpop.f32.mrf.mxu0
        %v6917 = vadd.f32 0.0, %v6916
        %v6918 = vpop.f32.mrf.mxu0
        %v6919 = vadd.f32 0.0, %v6918
        %6920 = vmatmul.bf16.gmra.mxu0 %v6905
        %v6921 = vpop.f32.mrf.mxu0
        %v6922 = vadd.f32 0.0, %v6921
        %v6923 = vpop.f32.mrf.mxu0
        %v6924 = vadd.f32 0.0, %v6923
        %6925 = vdwg.mxu0
        %6930 = vrot.lane.b32.xlu0 %v6149, 8
        %v6931 = vpop.permute.xlu0 %6930
        %6932 = vrot.lane.b32.xlu0 %v6151, 8
        %v6933 = vpop.permute.xlu0 %6932
        %6934 = vrot.lane.b32.xlu0 %v6154, 8
        %v6935 = vpop.permute.xlu0 %6934
        %6936 = vrot.lane.b32.xlu0 %v6156, 8
        %v6937 = vpop.permute.xlu0 %6936
        %6946 = vrot.lane.b32.xlu0 %v6277, 16
        %v6947 = vpop.permute.xlu0 %6946
        %6948 = vrot.lane.b32.xlu0 %v6279, 16
        %v6949 = vpop.permute.xlu0 %6948
        %6950 = vrot.lane.b32.xlu0 %v6282, 16
        %v6951 = vpop.permute.xlu0 %6950
        %6952 = vrot.lane.b32.xlu0 %v6284, 16
        %v6953 = vpop.permute.xlu0 %6952
        %6962 = vrot.lane.b32.xlu0 %v6405, 24
        %v6963 = vpop.permute.xlu0 %6962
        %6964 = vrot.lane.b32.xlu0 %v6407, 24
        %v6965 = vpop.permute.xlu0 %6964
        %6966 = vrot.lane.b32.xlu0 %v6410, 24
        %v6967 = vpop.permute.xlu0 %6966
        %6968 = vrot.lane.b32.xlu0 %v6412, 24
        %v6969 = vpop.permute.xlu0 %6968
        %6978 = vrot.lane.b32.xlu0 %v6533, 32
        %v6979 = vpop.permute.xlu0 %6978
        %6980 = vrot.lane.b32.xlu0 %v6535, 32
        %v6981 = vpop.permute.xlu0 %6980
        %6982 = vrot.lane.b32.xlu0 %v6538, 32
        %v6983 = vpop.permute.xlu0 %6982
        %6984 = vrot.lane.b32.xlu0 %v6540, 32
        %v6985 = vpop.permute.xlu0 %6984
        %6994 = vrot.lane.b32.xlu0 %v6661, 40
        %v6995 = vpop.permute.xlu0 %6994
        %6996 = vrot.lane.b32.xlu0 %v6663, 40
        %v6997 = vpop.permute.xlu0 %6996
        %6998 = vrot.lane.b32.xlu0 %v6666, 40
        %v6999 = vpop.permute.xlu0 %6998
        %7000 = vrot.lane.b32.xlu0 %v6668, 40
        %v7001 = vpop.permute.xlu0 %7000
        %7010 = vrot.lane.b32.xlu0 %v6789, 48
        %v7011 = vpop.permute.xlu0 %7010
        %7012 = vrot.lane.b32.xlu0 %v6791, 48
        %v7013 = vpop.permute.xlu0 %7012
        %7014 = vrot.lane.b32.xlu0 %v6794, 48
        %v7015 = vpop.permute.xlu0 %7014
        %7016 = vrot.lane.b32.xlu0 %v6796, 48
        %v7017 = vpop.permute.xlu0 %7016
        %7026 = vrot.lane.b32.xlu0 %v6917, 56
        %v7027 = vpop.permute.xlu0 %7026
        %7028 = vrot.lane.b32.xlu0 %v6919, 56
        %v7029 = vpop.permute.xlu0 %7028
        %7030 = vrot.lane.b32.xlu0 %v6922, 56
        %v7031 = vpop.permute.xlu0 %7030
        %7032 = vrot.lane.b32.xlu0 %v6924, 56
        %v7033 = vpop.permute.xlu0 %7032
        %v7038 = vsel %vm707, %v6021, %v6931
        %v7039 = vsel %vm707, %v6023, %v6933
        %v7040 = vsel %vm707, %v6026, %v6935
        %v7041 = vsel %vm707, %v6028, %v6937
        %v7042 = vsel %vm1847, %v7038, %v6947
        %v7043 = vsel %vm1847, %v7039, %v6949
        %v7044 = vsel %vm1847, %v7040, %v6951
        %v7045 = vsel %vm1847, %v7041, %v6953
        %v7046 = vsel %vm1852, %v7042, %v6963
        %v7047 = vsel %vm1852, %v7043, %v6965
        %v7048 = vsel %vm1852, %v7044, %v6967
        %v7049 = vsel %vm1852, %v7045, %v6969
        %v7050 = vsel %vm739, %v7046, %v6979
        %v7051 = vsel %vm739, %v7047, %v6981
        %v7052 = vsel %vm739, %v7048, %v6983
        %v7053 = vsel %vm739, %v7049, %v6985
        %v7054 = vsel %vm1861, %v7050, %v6995
        %v7055 = vsel %vm1861, %v7051, %v6997
        %v7056 = vsel %vm1861, %v7052, %v6999
        %v7057 = vsel %vm1861, %v7053, %v7001
        %v7058 = vsel %vm1866, %v7054, %v7011
        %v7059 = vsel %vm1866, %v7055, %v7013
        %v7060 = vsel %vm1866, %v7056, %v7015
        %v7061 = vsel %vm1866, %v7057, %v7017
        %v7062 = vsel %vm1871, %v7058, %v7027
        %v7063 = vsel %vm1871, %v7059, %v7029
        %v7064 = vsel %vm1871, %v7060, %v7031
        %v7065 = vsel %vm1871, %v7061, %v7033
        %v7066 = vpack.c.bf16 %v7063, %v7062
        %v7067 = vpack.c.bf16 %v7065, %v7064
        %s7068 = scalar_lea.vmem %s3, 96
        %v7069 = vld [vmem:[%s7068] sm:$0xf]
        %v7070 = vld [vmem:[%s7068 + $0x4] sm:$0xf]
        %v7071 = vld [vmem:[%s7068 + $0x8] sm:$0xf]
        %v7072 = vld [vmem:[%s7068 + $0xc] sm:$0xf]
        %v7073 = vld [vmem:[%s7068 + $0x10] sm:$0xf]
        %v7074 = vld [vmem:[%s7068 + $0x14] sm:$0xf]
        %v7075 = vld [vmem:[%s7068 + $0x18] sm:$0xf]
        %v7076 = vld [vmem:[%s7068 + $0x1c] sm:$0xf]
        %s7077 = scalar_lea.vmem %s4, 3
        %v7078 = vld [vmem:[%s7077] sm:$0x1]
        %v7080 = vperm.slane %v7078, 0
        %v7090 = vunpack.c.l.b16 %v7069
        %v7091 = vunpack.c.l.b16 %v7070
        %v7092 = vunpack.c.l.b16 %v7071
        %v7093 = vunpack.c.l.b16 %v7072
        %v7094 = vunpack.c.l.b16 %v7073
        %v7095 = vunpack.c.l.b16 %v7074
        %v7096 = vunpack.c.l.b16 %v7075
        %v7097 = vunpack.c.l.b16 %v7076
        %v7098 = vpack.c.b16 %v7091, %v7090
        %v7099 = vpack.c.b16 %v7093, %v7092
        %v7100 = vpack.c.b16 %v7095, %v7094
        %v7101 = vpack.c.b16 %v7097, %v7096
        %v7107 = vsel %vm640, %v7066, 0
        %v7110 = vsel %vm640, %v7067, 0
        %7112 = vmatpush.bf16.msra.mxu0 0
        %7113 = vmatpush.bf16.msra.mxu0 0
        %7114 = vmatpush.bf16.msra.mxu0 0
        %7115 = vmatpush.bf16.msra.mxu0 0
        %7116 = vmatpush.bf16.msra.mxu0 %v7101
        %7117 = vmatpush.bf16.msra.mxu0 %v7100
        %7118 = vmatpush.bf16.msra.mxu0 %v7099
        %7119 = vmatpush.bf16.msra.mxu0 %v7098
        %7120 = vmatmul.bf16.gmra.mxu0 %v7107
        %v7121 = vpop.f32.mrf.mxu0
        %v7122 = vadd.f32 %v7080, %v7121
        %v7123 = vpop.f32.mrf.mxu0
        %v7124 = vadd.f32 %v7080, %v7123
        %7125 = vmatmul.bf16.gmra.mxu0 %v7110
        %v7126 = vpop.f32.mrf.mxu0
        %v7127 = vadd.f32 %v7080, %v7126
        %v7128 = vpop.f32.mrf.mxu0
        %v7129 = vadd.f32 %v7080, %v7128
        %7130 = vdwg.mxu0
        %v7131 = vadd.f32 %v5776, %v7122
        %v7132 = vadd.f32 %v5777, %v7124
        %v7133 = vadd.f32 %v5778, %v7127
        %v7134 = vadd.f32 %v5779, %v7129
        %v7135 = vsel %vm640, %v7131, 0.0
        %7136 = vadd.xlane.f32.xlu0 %v7135
        %v7137 = vpop.xlane.xlu0 %7136
        %v7138 = vsel %vm640, %v7132, 0.0
        %7139 = vadd.xlane.f32.xlu0 %v7138
        %v7140 = vpop.xlane.xlu0 %7139
        %v7141 = vsel %vm640, %v7133, 0.0
        %7142 = vadd.xlane.f32.xlu0 %v7141
        %v7143 = vpop.xlane.xlu0 %7142
        %v7144 = vsel %vm640, %v7134, 0.0
        %7145 = vadd.xlane.f32.xlu0 %v7144
        %v7146 = vpop.xlane.xlu0 %7145
        %v7147 = vmul.f32 %v7137, %v1961
        %v7148 = vmul.f32 %v7140, %v1961
        %v7149 = vmul.f32 %v7143, %v1961
        %v7150 = vmul.f32 %v7146, %v1961
        %v7151 = vsub.f32 %v7131, %v7147
        %v7152 = vsub.f32 %v7132, %v7148
        %v7153 = vsub.f32 %v7133, %v7149
        %v7154 = vsub.f32 %v7134, %v7150
        %v7155 = vmul.f32 %v7151, %v7151
        %v7156 = vmul.f32 %v7152, %v7152
        %v7157 = vmul.f32 %v7153, %v7153
        %v7158 = vmul.f32 %v7154, %v7154
        %v7159 = vsel %vm640, %v7155, 0.0
        %7160 = vadd.xlane.f32.xlu0 %v7159
        %v7161 = vpop.xlane.xlu0 %7160
        %v7162 = vsel %vm640, %v7156, 0.0
        %7163 = vadd.xlane.f32.xlu0 %v7162
        %v7164 = vpop.xlane.xlu0 %7163
        %v7165 = vsel %vm640, %v7157, 0.0
        %7166 = vadd.xlane.f32.xlu0 %v7165
        %v7167 = vpop.xlane.xlu0 %7166
        %v7168 = vsel %vm640, %v7158, 0.0
        %7169 = vadd.xlane.f32.xlu0 %v7168
        %v7170 = vpop.xlane.xlu0 %7169
        %v7171 = vmul.f32 %v7161, %v1961
        %v7172 = vmul.f32 %v7164, %v1961
        %v7173 = vmul.f32 %v7167, %v1961
        %v7174 = vmul.f32 %v7170, %v1961
        %v7175 = vadd.f32 %v7171, 1e-05
        %v7176 = vadd.f32 %v7172, 1e-05
        %v7177 = vadd.f32 %v7173, 1e-05
        %v7178 = vadd.f32 %v7174, 1e-05
        %v7179 = vrsqrt.pop %v7175
        %v7180 = vmul.f32 %v7179, %v7175
        %v7181 = vmul.f32 %v7180, %v7179
        %v7182 = vmul.f32 0.5, %v7181
        %v7183 = vsub.f32 1.5, %v7182
        %v7184 = vmul.f32 %v7179, %v7183
        %vm7185 = vweird.f32 %v7175
        %vm7186 = vweird.f32 %v7179
        %vm7187 = vmor %vm7185, %vm7186
        %v7188 = vsel %vm7187, %v7179, %v7184
        %v7189 = vrsqrt.pop %v7176
        %v7190 = vmul.f32 %v7189, %v7176
        %v7191 = vmul.f32 %v7190, %v7189
        %v7192 = vmul.f32 0.5, %v7191
        %v7193 = vsub.f32 1.5, %v7192
        %v7194 = vmul.f32 %v7189, %v7193
        %vm7195 = vweird.f32 %v7176
        %vm7196 = vweird.f32 %v7189
        %vm7197 = vmor %vm7195, %vm7196
        %v7198 = vsel %vm7197, %v7189, %v7194
        %v7199 = vrsqrt.pop %v7177
        %v7200 = vmul.f32 %v7199, %v7177
        %v7201 = vmul.f32 %v7200, %v7199
        %v7202 = vmul.f32 0.5, %v7201
        %v7203 = vsub.f32 1.5, %v7202
        %v7204 = vmul.f32 %v7199, %v7203
        %vm7205 = vweird.f32 %v7177
        %vm7206 = vweird.f32 %v7199
        %vm7207 = vmor %vm7205, %vm7206
        %v7208 = vsel %vm7207, %v7199, %v7204
        %v7209 = vrsqrt.pop %v7178
        %v7210 = vmul.f32 %v7209, %v7178
        %v7211 = vmul.f32 %v7210, %v7209
        %v7212 = vmul.f32 0.5, %v7211
        %v7213 = vsub.f32 1.5, %v7212
        %v7214 = vmul.f32 %v7209, %v7213
        %vm7215 = vweird.f32 %v7178
        %vm7216 = vweird.f32 %v7209
        %vm7217 = vmor %vm7215, %vm7216
        %v7218 = vsel %vm7217, %v7209, %v7214
        %v7219 = vmul.f32 %v7151, %v7188
        %v7220 = vmul.f32 %v7152, %v7198
        %v7221 = vmul.f32 %v7153, %v7208
        %v7222 = vmul.f32 %v7154, %v7218
        %s7223 = scalar_lea.vmem [#allocation10], 3
        %v7224 = vld [vmem:[%s7223] sm:$0x1]
        %v7226 = vperm.slane %v7224, 0
        %v7228 = vmul.f32 %v7219, %v7226
        %v7229 = vmul.f32 %v7220, %v7226
        %v7230 = vmul.f32 %v7221, %v7226
        %v7231 = vmul.f32 %v7222, %v7226
        %s7232 = scalar_lea.vmem [#allocation11], 3
        %v7233 = vld [vmem:[%s7232] sm:$0x1]
        %v7235 = vperm.slane %v7233, 0
        %v7237 = vadd.f32 %v7228, %v7235
        %v7238 = vadd.f32 %v7229, %v7235
        %v7239 = vadd.f32 %v7230, %v7235
        %v7240 = vadd.f32 %v7231, %v7235
        %v7241 = vpack.c.bf16 %v7238, %v7237
        %v7242 = vpack.c.bf16 %v7240, %v7239
        %s7243 = scalar_lea.vmem [#allocation5], 96
        %v7244 = vld [vmem:[%s7243] sm:$0xf]
        %v7245 = vld [vmem:[%s7243 + $0x4] sm:$0xf]
        %v7246 = vld [vmem:[%s7243 + $0x8] sm:$0xf]
        %v7247 = vld [vmem:[%s7243 + $0xc] sm:$0xf]
        %v7248 = vld [vmem:[%s7243 + $0x10] sm:$0xf]
        %v7249 = vld [vmem:[%s7243 + $0x14] sm:$0xf]
        %v7250 = vld [vmem:[%s7243 + $0x18] sm:$0xf]
        %v7251 = vld [vmem:[%s7243 + $0x1c] sm:$0xf]
        %s7252 = scalar_lea.vmem [#allocation7], 3
        %v7253 = vld [vmem:[%s7252] sm:$0x1]
        %v7255 = vperm.slane %v7253, 0
        %v7265 = vunpack.c.l.b16 %v7244
        %v7266 = vunpack.c.l.b16 %v7245
        %v7267 = vunpack.c.l.b16 %v7246
        %v7268 = vunpack.c.l.b16 %v7247
        %v7269 = vunpack.c.l.b16 %v7248
        %v7270 = vunpack.c.l.b16 %v7249
        %v7271 = vunpack.c.l.b16 %v7250
        %v7272 = vunpack.c.l.b16 %v7251
        %v7273 = vpack.c.b16 %v7266, %v7265
        %v7274 = vpack.c.b16 %v7268, %v7267
        %v7275 = vpack.c.b16 %v7270, %v7269
        %v7276 = vpack.c.b16 %v7272, %v7271
        %v7282 = vsel %vm640, %v7241, 0
        %v7285 = vsel %vm640, %v7242, 0
        %7287 = vmatpush.bf16.msra.mxu0 0
        %7288 = vmatpush.bf16.msra.mxu0 0
        %7289 = vmatpush.bf16.msra.mxu0 0
        %7290 = vmatpush.bf16.msra.mxu0 0
        %7291 = vmatpush.bf16.msra.mxu0 %v7276
        %7292 = vmatpush.bf16.msra.mxu0 %v7275
        %7293 = vmatpush.bf16.msra.mxu0 %v7274
        %7294 = vmatpush.bf16.msra.mxu0 %v7273
        %7295 = vmatmul.bf16.gmra.mxu0 %v7282
        %v7296 = vpop.f32.mrf.mxu0
        %v7297 = vadd.f32 %v7255, %v7296
        %v7298 = vpop.f32.mrf.mxu0
        %v7299 = vadd.f32 %v7255, %v7298
        %7300 = vmatmul.bf16.gmra.mxu0 %v7285
        %v7301 = vpop.f32.mrf.mxu0
        %v7302 = vadd.f32 %v7255, %v7301
        %v7303 = vpop.f32.mrf.mxu0
        %v7304 = vadd.f32 %v7255, %v7303
        %7305 = vdwg.mxu0
        %v7306 = vmax.f32 %v7297, 0.0
        %v7307 = vmax.f32 %v7299, 0.0
        %v7308 = vmax.f32 %v7302, 0.0
        %v7309 = vmax.f32 %v7304, 0.0
        %v7310 = vpack.c.bf16 %v7307, %v7306
        %v7311 = vpack.c.bf16 %v7309, %v7308
        %s7312 = scalar_lea.vmem %s7, 192
        %v7313 = vld [vmem:[%s7312] sm:$0xf]
        %v7314 = vld [vmem:[%s7312 + $0x4] sm:$0xf]
        %v7315 = vld [vmem:[%s7312 + $0x8] sm:$0xf]
        %v7316 = vld [vmem:[%s7312 + $0xc] sm:$0xf]
        %v7317 = vld [vmem:[%s7312 + $0x10] sm:$0xf]
        %v7318 = vld [vmem:[%s7312 + $0x14] sm:$0xf]
        %v7319 = vld [vmem:[%s7312 + $0x18] sm:$0xf]
        %v7320 = vld [vmem:[%s7312 + $0x1c] sm:$0xf]
        %v7321 = vld [vmem:[%s7312 + $0x20] sm:$0xf]
        %v7322 = vld [vmem:[%s7312 + $0x24] sm:$0xf]
        %v7323 = vld [vmem:[%s7312 + $0x28] sm:$0xf]
        %v7324 = vld [vmem:[%s7312 + $0x2c] sm:$0xf]
        %v7325 = vld [vmem:[%s7312 + $0x30] sm:$0xf]
        %v7326 = vld [vmem:[%s7312 + $0x34] sm:$0xf]
        %v7327 = vld [vmem:[%s7312 + $0x38] sm:$0xf]
        %v7328 = vld [vmem:[%s7312 + $0x3c] sm:$0xf]
        %s7329 = scalar_lea.vmem [#allocation8], 3
        %v7330 = vld [vmem:[%s7329] sm:$0x1]
        %v7332 = vperm.slane %v7330, 0
        %v7350 = vunpack.c.l.b16 %v7313
        %v7351 = vunpack.c.l.b16 %v7314
        %v7352 = vunpack.c.l.b16 %v7315
        %v7353 = vunpack.c.l.b16 %v7316
        %v7354 = vunpack.c.l.b16 %v7317
        %v7355 = vunpack.c.l.b16 %v7318
        %v7356 = vunpack.c.l.b16 %v7319
        %v7357 = vunpack.c.l.b16 %v7320
        %v7358 = vunpack.c.l.b16 %v7321
        %v7359 = vunpack.c.l.b16 %v7322
        %v7360 = vunpack.c.l.b16 %v7323
        %v7361 = vunpack.c.l.b16 %v7324
        %v7362 = vunpack.c.l.b16 %v7325
        %v7363 = vunpack.c.l.b16 %v7326
        %v7364 = vunpack.c.l.b16 %v7327
        %v7365 = vunpack.c.l.b16 %v7328
        %v7366 = vpack.c.b16 %v7351, %v7350
        %v7367 = vpack.c.b16 %v7353, %v7352
        %v7368 = vpack.c.b16 %v7355, %v7354
        %v7369 = vpack.c.b16 %v7357, %v7356
        %v7370 = vpack.c.b16 %v7359, %v7358
        %v7371 = vpack.c.b16 %v7361, %v7360
        %v7372 = vpack.c.b16 %v7363, %v7362
        %v7373 = vpack.c.b16 %v7365, %v7364
        %7382 = vmatpush.bf16.msra.mxu0 %v7373
        %7383 = vmatpush.bf16.msra.mxu0 %v7372
        %7384 = vmatpush.bf16.msra.mxu0 %v7371
        %7385 = vmatpush.bf16.msra.mxu0 %v7370
        %7386 = vmatpush.bf16.msra.mxu0 %v7369
        %7387 = vmatpush.bf16.msra.mxu0 %v7368
        %7388 = vmatpush.bf16.msra.mxu0 %v7367
        %7389 = vmatpush.bf16.msra.mxu0 %v7366
        %7390 = vmatmul.bf16.gmra.mxu0 %v7310
        %v7391 = vpop.f32.mrf.mxu0
        %v7392 = vadd.f32 %v7332, %v7391
        %v7393 = vpop.f32.mrf.mxu0
        %v7394 = vadd.f32 %v7332, %v7393
        %7395 = vmatmul.bf16.gmra.mxu0 %v7311
        %v7396 = vpop.f32.mrf.mxu0
        %v7397 = vadd.f32 %v7332, %v7396
        %v7398 = vpop.f32.mrf.mxu0
        %v7399 = vadd.f32 %v7332, %v7398
        %7400 = vdwg.mxu0
        %v7401 = vadd.f32 %v7237, %v7392
        %v7402 = vadd.f32 %v7238, %v7394
        %v7403 = vadd.f32 %v7239, %v7397
        %v7404 = vadd.f32 %v7240, %v7399
        %v7405 = vsel %vm640, %v7401, 0.0
        %7406 = vadd.xlane.f32.xlu0 %v7405
        %v7407 = vpop.xlane.xlu0 %7406
        %v7408 = vsel %vm640, %v7402, 0.0
        %7409 = vadd.xlane.f32.xlu0 %v7408
        %v7410 = vpop.xlane.xlu0 %7409
        %v7411 = vsel %vm640, %v7403, 0.0
        %7412 = vadd.xlane.f32.xlu0 %v7411
        %v7413 = vpop.xlane.xlu0 %7412
        %v7414 = vsel %vm640, %v7404, 0.0
        %7415 = vadd.xlane.f32.xlu0 %v7414
        %v7416 = vpop.xlane.xlu0 %7415
        %v7417 = vmul.f32 %v7407, %v1961
        %v7418 = vmul.f32 %v7410, %v1961
        %v7419 = vmul.f32 %v7413, %v1961
        %v7420 = vmul.f32 %v7416, %v1961
        %v7421 = vsub.f32 %v7401, %v7417
        %v7422 = vsub.f32 %v7402, %v7418
        %v7423 = vsub.f32 %v7403, %v7419
        %v7424 = vsub.f32 %v7404, %v7420
        %v7425 = vmul.f32 %v7421, %v7421
        %v7426 = vmul.f32 %v7422, %v7422
        %v7427 = vmul.f32 %v7423, %v7423
        %v7428 = vmul.f32 %v7424, %v7424
        %v7429 = vsel %vm640, %v7425, 0.0
        %7430 = vadd.xlane.f32.xlu0 %v7429
        %v7431 = vpop.xlane.xlu0 %7430
        %v7432 = vsel %vm640, %v7426, 0.0
        %7433 = vadd.xlane.f32.xlu0 %v7432
        %v7434 = vpop.xlane.xlu0 %7433
        %v7435 = vsel %vm640, %v7427, 0.0
        %7436 = vadd.xlane.f32.xlu0 %v7435
        %v7437 = vpop.xlane.xlu0 %7436
        %v7438 = vsel %vm640, %v7428, 0.0
        %7439 = vadd.xlane.f32.xlu0 %v7438
        %v7440 = vpop.xlane.xlu0 %7439
        %v7441 = vmul.f32 %v7431, %v1961
        %v7442 = vmul.f32 %v7434, %v1961
        %v7443 = vmul.f32 %v7437, %v1961
        %v7444 = vmul.f32 %v7440, %v1961
        %v7445 = vadd.f32 %v7441, 1e-05
        %v7446 = vadd.f32 %v7442, 1e-05
        %v7447 = vadd.f32 %v7443, 1e-05
        %v7448 = vadd.f32 %v7444, 1e-05
        %v7449 = vrsqrt.pop %v7445
        %v7450 = vmul.f32 %v7449, %v7445
        %v7451 = vmul.f32 %v7450, %v7449
        %v7452 = vmul.f32 0.5, %v7451
        %v7453 = vsub.f32 1.5, %v7452
        %v7454 = vmul.f32 %v7449, %v7453
        %vm7455 = vweird.f32 %v7445
        %vm7456 = vweird.f32 %v7449
        %vm7457 = vmor %vm7455, %vm7456
        %v7458 = vsel %vm7457, %v7449, %v7454
        %v7459 = vrsqrt.pop %v7446
        %v7460 = vmul.f32 %v7459, %v7446
        %v7461 = vmul.f32 %v7460, %v7459
        %v7462 = vmul.f32 0.5, %v7461
        %v7463 = vsub.f32 1.5, %v7462
        %v7464 = vmul.f32 %v7459, %v7463
        %vm7465 = vweird.f32 %v7446
        %vm7466 = vweird.f32 %v7459
        %vm7467 = vmor %vm7465, %vm7466
        %v7468 = vsel %vm7467, %v7459, %v7464
        %v7469 = vrsqrt.pop %v7447
        %v7470 = vmul.f32 %v7469, %v7447
        %v7471 = vmul.f32 %v7470, %v7469
        %v7472 = vmul.f32 0.5, %v7471
        %v7473 = vsub.f32 1.5, %v7472
        %v7474 = vmul.f32 %v7469, %v7473
        %vm7475 = vweird.f32 %v7447
        %vm7476 = vweird.f32 %v7469
        %vm7477 = vmor %vm7475, %vm7476
        %v7478 = vsel %vm7477, %v7469, %v7474
        %v7479 = vrsqrt.pop %v7448
        %v7480 = vmul.f32 %v7479, %v7448
        %v7481 = vmul.f32 %v7480, %v7479
        %v7482 = vmul.f32 0.5, %v7481
        %v7483 = vsub.f32 1.5, %v7482
        %v7484 = vmul.f32 %v7479, %v7483
        %vm7485 = vweird.f32 %v7448
        %vm7486 = vweird.f32 %v7479
        %vm7487 = vmor %vm7485, %vm7486
        %v7488 = vsel %vm7487, %v7479, %v7484
        %v7489 = vmul.f32 %v7421, %v7458
        %v7490 = vmul.f32 %v7422, %v7468
        %v7491 = vmul.f32 %v7423, %v7478
        %v7492 = vmul.f32 %v7424, %v7488
        %s7493 = scalar_lea.vmem [#allocation13], 3
        %v7494 = vld [vmem:[%s7493] sm:$0x1]
        %v7496 = vperm.slane %v7494, 0
        %v7498 = vmul.f32 %v7489, %v7496
        %v7499 = vmul.f32 %v7490, %v7496
        %v7500 = vmul.f32 %v7491, %v7496
        %v7501 = vmul.f32 %v7492, %v7496
        %s7502 = scalar_lea.vmem [#allocation14], 3
        %v7503 = vld [vmem:[%s7502] sm:$0x1]
        %v7505 = vperm.slane %v7503, 0
        %v7507 = vadd.f32 %v7498, %v7505
        %v7508 = vadd.f32 %v7499, %v7505
        %v7509 = vadd.f32 %v7500, %v7505
        %v7510 = vadd.f32 %v7501, %v7505
        %7511 = vst.msk [vmem:[%s576] sm:$0xff] %vm640, %v7507
        %7512 = vst.msk [vmem:[%s576 + $0x8] sm:$0xff] %vm640, %v7508
        %7513 = vst.msk [vmem:[%s576 + $0x10] sm:$0xff] %vm640, %v7509
        %7514 = vst.msk [vmem:[%s576 + $0x18] sm:$0xff] %vm640, %v7510
        %s7515 = sand.u32 %s320, 1
        %s7516 = scalar_lea.sflag [#allocation4], %s7515
        %s7517 = sand.u32 %s320, 1
        %s7518 = smul.addr %s7517, 32
        %s7519 = scalar_lea.vmem [#allocation16], %s7518
        // Predicated region
        $region105: #{world_model_forward.1} parent=71 // pred_check
          %p7520 = pneg %p330
        $region106: #{world_model_forward.1} parent=71 // pred_check_branch
          %7522 = sbr.rel (%p7520) target = $region108
        $region107: #{world_model_forward.1} parent=71 // pred_region
          %s7523 = smul.u32 4, %s34
          %7525 = vsyncadd %s7516, 0
          %s7526 = smul.addr %s7523, 8
          %s7527 = scalar_lea.hbm %s13, %s7526
          %s7528 = sshll.u32 %s7519, 4
          %s7529 = int_to_ptr.vmem [resolvable:$true] %s7528
          %s7530 = sshll.u32 %s7527, 4
          %s7531 = int_to_ptr.hbm [resolvable:$true] %s7530
          %7536 = dma.vmem_to_hbm [thread:$0]  %s7529, 512, %s7531, %s7516, 128, 128, 8
        $region108: #{world_model_forward.1} parent=71 // pred_fallthru
          _
      $region72: #{world_model_forward.1} parent=5 // pred_fallthru
        _
      %p7537 = scmp.le.s32.totalorder 2, %s29
      // Predicated region
      $region109: #{world_model_forward.1} parent=5 // pred_check
        %p7538 = pneg %p7537
      $region110: #{world_model_forward.1} parent=5 // pred_check_branch
        %7540 = sbr.rel (%p7538) target = $region112
      $region111: #{world_model_forward.1} parent=5 // pred_region
        %s7541 = ssub.s32 %s29, 2
        // Predicated region
        $region113: #{world_model_forward.1} parent=111 // pred_check
          %p7542 = pneg %p336
        $region114: #{world_model_forward.1} parent=111 // pred_check_branch
          %7544 = sbr.rel (%p7542) target = $region116
        $region115: #{world_model_forward.1} parent=111 // pred_region
          %s7545 = sand.u32 %s321, 1
          %s7546 = scalar_lea.sflag [#allocation4], %s7545
          %s7547 = sand.u32 %s321, 1
          %s7548 = smul.addr %s7547, 32
          %s7549 = scalar_lea.vmem [#allocation16], %s7548
          %7551 = dma.done %s7546, 512
        $region116: #{world_model_forward.1} parent=111 // pred_fallthru
          _
      $region112: #{world_model_forward.1} parent=5 // pred_fallthru
        _
    $region6: #{world_model_forward.1} parent=1 // loop_footer
      %s33 = sadd.s32 1, %s29
    $region7: #{world_model_forward.1} parent=1 // loop_footer_branch
      %28 = sbr.rel target = $region3
    $region8: #{world_model_forward.1} parent=1 // loop_exit
      _
    %7552 = vsyncpa [#allocation3], 1
    %s7553 = scalar_lea.sflag [#allocation3], 1
    %7554 = vsyncpa %s7553, 1
    %7555 = vsyncpa [#allocation6], 1
    %7556 = vsyncpa [#allocation9], 1
    %7557 = vsyncpa [#allocation12], 1
    %7558 = vsyncpa [#allocation15], 1
    %7559 = vsyncpa [#allocation4], 1
    %s7560 = scalar_lea.sflag [#allocation4], 1
    %7561 = vsyncpa %s7560, 1

</llo_original>
